<compile_context>
chip_gen: v5e
topology: v5e:2x2
jax: 0.10.0
libtpu: 0.0.40
codegen_flags: <defaults>
</compile_context>

<pallas_src>
import functools

import jax
import jax.numpy as jnp
from jax.experimental import pallas as pl
from jax.experimental.pallas import tpu as pltpu

NUM_BLOCKS = 10
CH = 64           # trunk channels
CIN = 3           # image channels
BN_EPS = 1e-5
COUT_PAD = 128    # conv3 Cout padded to a lane-dense 128
K1_PAD = 256      # conv1 im2col K (7*7*3 = 147) padded to 256


def _fold_bn(gamma, beta, mean, var, eps=BN_EPS):
    s = gamma / jnp.sqrt(var + eps)
    b = beta - mean * s
    return s, b


# ----------------------------------------------------------------------------
# Fused kernel
# ----------------------------------------------------------------------------
def _make_fused_kernel(H, W, num_blocks):
    assert W >= 3 and H >= 3
    HW = H * W
    assert HW % 8 == 0
    P = ((W + 1 + 7) // 8) * 8          # halo rows (>= W+1, 8-aligned)
    rows = 2 * P + HW                   # ping-pong buffer rows

    def kernel(p_ref, w1_ref, wa_ref, wb_ref, ba_ref, bb_ref, w2_ref, w3_ref,
               o_ref, abuf, bbuf):
        f32 = jnp.float32

        # Zero both buffers once per image: halo rows stay zero forever, the
        # interior is overwritten by every layer.  (2 x ~76 KB, negligible.)
        abuf[...] = jnp.zeros_like(abuf)
        bbuf[...] = jnp.zeros_like(bbuf)

        # ---- conv1 (7x7, pad 3, no bias) as one deep-K matmul + ReLU -> A
        a0 = jnp.dot(p_ref[0], w1_ref[...], preferred_element_type=f32)
        abuf[P:P + HW, :] = jnp.maximum(a0, 0.0)

        # Column index of every output pixel (for wrap-around masking).
        col = jax.lax.broadcasted_iota(jnp.int32, (HW, 1), 0) % W

        def conv3x3(src_ref, w_ref, base, bias):
            # 3x3 / pad 1 conv on the flattened (HW, CH) activation held inside
            # a zero-halo (rows, CH) buffer.  Tap (kh, kw) is the contiguous
            # row slice starting at P + (kh-1)*W + (kw-1); the only wrong
            # values are the wrap-around columns, masked to zero below.
            acc = jnp.zeros((HW, CH), f32)
            for kh in range(3):
                for kw in range(3):
                    start = P + (kh - 1) * W + (kw - 1)
                    patch = src_ref[start:start + HW, :]
                    part = jnp.dot(patch, w_ref[base + kh * 3 + kw],
                                   preferred_element_type=f32)
                    if kw == 0:
                        part = jnp.where(col == 0, 0.0, part)
                    elif kw == 2:
                        part = jnp.where(col == W - 1, 0.0, part)
                    acc = acc + part
            return acc + bias           # folded BatchNorm bias (eval mode)

        def block_body(l, carry):
            base = l * 9
            # conv1 + bn1 + ReLU : A -> B
            h1 = conv3x3(abuf, wa_ref, base, ba_ref[l])
            bbuf[P:P + HW, :] = jnp.maximum(h1, 0.0)
            # conv2 + bn2 + residual + ReLU : B -> A
            h2 = conv3x3(bbuf, wb_ref, base, bb_ref[l])
            h2 = h2 + abuf[P:P + HW, :]
            abuf[P:P + HW, :] = jnp.maximum(h2, 0.0)
            return carry

        jax.lax.fori_loop(0, num_blocks, block_body, 0)

        # ---- conv2 (1x1) then conv3 (1x1, Cout zero-padded to COUT_PAD)
        act = abuf[P:P + HW, :]
        h = jnp.dot(act, w2_ref[...], preferred_element_type=f32)
        out = jnp.dot(h, w3_ref[...], preferred_element_type=f32)
        o_ref[0] = out.astype(o_ref.dtype)        # lane-dense (HW, 128) store

    return kernel, rows


# ----------------------------------------------------------------------------
# Forward pass wrapper
# ----------------------------------------------------------------------------
def generator_forward(x_nchw, params):
    # TODO(synk): BatchNorm is evaluated in inference mode (running stats);
    # PyTorch training-mode batch statistics are not reproduced.
    N, C, H, W = x_nchw.shape
    assert C == CIN
    HW = H * W
    x = jnp.transpose(x_nchw, (0, 2, 3, 1)).astype(jnp.float32)     # NHWC

    # conv1 im2col (7x7, pad 3): pure data rearrangement, done once outside.
    xp = jnp.pad(x, ((0, 0), (3, 3), (3, 3), (0, 0)))
    cols = []
    for kh in range(7):
        for kw in range(7):
            cols.append(xp[:, kh:kh + H, kw:kw + W, :])
    K1 = 7 * 7 * CIN
    pat = jnp.concatenate(cols, axis=-1).reshape(N, HW, K1)
    pat = jnp.pad(pat, ((0, 0), (0, 0), (0, K1_PAD - K1)))

    w1 = jnp.pad(params["conv1"].reshape(K1, CH), ((0, K1_PAD - K1), (0, 0)))

    # Fold BN (eval) into block conv weights / per-channel biases.
    wa, wb, ba, bb = [], [], [], []
    for blk in params["blocks"]:
        s1, b1 = _fold_bn(*blk["bn1"])
        s2, b2 = _fold_bn(*blk["bn2"])
        wa.append(blk["w1"] * s1)       # (3,3,64,64) * scale over Cout
        wb.append(blk["w2"] * s2)
        ba.append(b1)
        bb.append(b2)
    wa = jnp.stack(wa).reshape(NUM_BLOCKS * 9, CH, CH)   # idx = blk*9 + kh*3 + kw
    wb = jnp.stack(wb).reshape(NUM_BLOCKS * 9, CH, CH)
    ba = jnp.stack(ba).reshape(NUM_BLOCKS, 1, CH)
    bb = jnp.stack(bb).reshape(NUM_BLOCKS, 1, CH)

    w2 = params["conv2"].reshape(CH, CH)
    w3 = jnp.pad(params["conv3"].reshape(CH, CIN), ((0, 0), (0, COUT_PAD - CIN)))

    kernel, rows = _make_fused_kernel(H, W, NUM_BLOCKS)

    flops = 2 * N * (HW * K1_PAD * CH + NUM_BLOCKS * 2 * 9 * HW * CH * CH
                     + HW * CH * CH + HW * CH * COUT_PAD)
    bytes_accessed = 4 * (pat.size + w1.size + wa.size + wb.size + ba.size
                          + bb.size + w2.size + w3.size + N * HW * COUT_PAD)

    out = pl.pallas_call(
        kernel,
        out_shape=jax.ShapeDtypeStruct((N, HW, COUT_PAD), jnp.float32),
        grid_spec=pltpu.PrefetchScalarGridSpec(
            num_scalar_prefetch=0,
            grid=(N,),
            in_specs=[
                pl.BlockSpec((1, HW, K1_PAD), lambda n: (n, 0, 0)),
                pl.BlockSpec((K1_PAD, CH), lambda n: (0, 0)),
                pl.BlockSpec((NUM_BLOCKS * 9, CH, CH), lambda n: (0, 0, 0)),
                pl.BlockSpec((NUM_BLOCKS * 9, CH, CH), lambda n: (0, 0, 0)),
                pl.BlockSpec((NUM_BLOCKS, 1, CH), lambda n: (0, 0, 0)),
                pl.BlockSpec((NUM_BLOCKS, 1, CH), lambda n: (0, 0, 0)),
                pl.BlockSpec((CH, CH), lambda n: (0, 0)),
                pl.BlockSpec((CH, COUT_PAD), lambda n: (0, 0)),
            ],
            out_specs=pl.BlockSpec((1, HW, COUT_PAD), lambda n: (n, 0, 0)),
            scratch_shapes=[
                pltpu.VMEM((rows, CH), jnp.float32),   # ping buffer (zero halo)
                pltpu.VMEM((rows, CH), jnp.float32),   # pong buffer (zero halo)
            ],
        ),
        compiler_params=pltpu.CompilerParams(
            dimension_semantics=("parallel",)),
        cost_estimate=pl.CostEstimate(flops=flops, transcendentals=0,
                                      bytes_accessed=bytes_accessed),
    )(pat, w1, wa, wb, ba, bb, w2, w3)

    y = out[:, :, :CIN].reshape(N, H, W, CIN)
    return jnp.transpose(y, (0, 3, 1, 2))               # back to NCHW


# ----------------------------------------------------------------------------
# Parameter construction (deterministic, synthetic)
# ----------------------------------------------------------------------------
def init_params(key):
    keys = iter(jax.random.split(key, 8 + NUM_BLOCKS * 10))

    def conv_w(kh, kw, cin, cout):
        return 0.05 * jax.random.normal(next(keys), (kh, kw, cin, cout), jnp.float32)

    def bn(c):
        gamma = 0.5 + jax.random.uniform(next(keys), (c,), jnp.float32)
        beta = 0.1 * jax.random.normal(next(keys), (c,), jnp.float32)
        mean = 0.1 * jax.random.normal(next(keys), (c,), jnp.float32)
        var = 0.5 + jax.random.uniform(next(keys), (c,), jnp.float32)
        return gamma, beta, mean, var

    return {
        "conv1": conv_w(7, 7, CIN, CH),
        "conv2": conv_w(1, 1, CH, CH),
        "conv3": conv_w(1, 1, CH, CIN),
        "blocks": [
            {"w1": conv_w(3, 3, CH, CH), "bn1": bn(CH),
             "w2": conv_w(3, 3, CH, CH), "bn2": bn(CH)}
            for _ in range(NUM_BLOCKS)
        ],
    }


# ----------------------------------------------------------------------------
# Pure-JAX reference (for correctness check only)
# ----------------------------------------------------------------------------
def _conv_ref(x, w, pad):
    return jax.lax.conv_general_dilated(
        x, w, window_strides=(1, 1), padding=((pad, pad), (pad, pad)),
        dimension_numbers=("NHWC", "HWIO", "NHWC"))


def generator_reference(x_nchw, params):
    x = jnp.transpose(x_nchw, (0, 2, 3, 1)).astype(jnp.float32)
    x = jax.nn.relu(_conv_ref(x, params["conv1"], 3))
    for blk in params["blocks"]:
        s1, b1 = _fold_bn(*blk["bn1"])
        s2, b2 = _fold_bn(*blk["bn2"])
        out = jax.nn.relu(_conv_ref(x, blk["w1"], 1) * s1 + b1)
        out = _conv_ref(out, blk["w2"], 1) * s2 + b2
        x = jax.nn.relu(out + x)
    x = _conv_ref(x, params["conv2"], 0)
    x = _conv_ref(x, params["conv3"], 0)
    return jnp.transpose(x, (0, 3, 1, 2))


if __name__ == "__main__":
    key = jax.random.PRNGKey(0)
    k_x, k_p = jax.random.split(key)

    x = jax.random.normal(k_x, (2, 3, 16, 16), jnp.float32)   # NCHW like PyTorch
    params = init_params(k_p)

    fwd = jax.jit(functools.partial(generator_forward, params=params))
    y = jax.block_until_ready(fwd(x))
    assert y.shape == (2, 3, 16, 16), y.shape

    y_ref = jax.block_until_ready(generator_reference(x, params))
    max_err = float(jnp.max(jnp.abs(y - y_ref)))
    assert max_err < 1e-2, f"mismatch vs reference: {max_err}"

    print("KERNEL_OK")
</pallas_src>

<mosaic_0001>
module attributes {stable_mosaic.version = 11 : i64} {
  func.func @kernel(%arg0: i32, %arg1: memref<1x256x256xf32, #tpu.memory_space<vmem>>, %arg2: memref<256x64xf32, #tpu.memory_space<vmem>>, %arg3: memref<90x64x64xf32, #tpu.memory_space<vmem>>, %arg4: memref<90x64x64xf32, #tpu.memory_space<vmem>>, %arg5: memref<10x1x64xf32, #tpu.memory_space<vmem>>, %arg6: memref<10x1x64xf32, #tpu.memory_space<vmem>>, %arg7: memref<64x64xf32, #tpu.memory_space<vmem>>, %arg8: memref<64x128xf32, #tpu.memory_space<vmem>>, %arg9: memref<1x256x128xf32, #tpu.memory_space<vmem>>, %arg10: memref<304x64xf32, #tpu.memory_space<vmem>>, %arg11: memref<304x64xf32, #tpu.memory_space<vmem>>) attributes {dimension_semantics = [#tpu.dimension_semantics<parallel>], iteration_bounds = array<i64: 2>, scalar_prefetch = 0 : i64, scratch_operands = 2 : i64, tpu.core_type = #tpu.core_type<tc>, window_params = [{transform_indices = @transform_0, window_bounds = array<i64: 1, 256, 256>}, {pipeline_mode = #tpu.pipeline_mode<synchronous>, transform_indices = @transform_1, window_bounds = array<i64: 256, 64>}, {pipeline_mode = #tpu.pipeline_mode<synchronous>, transform_indices = @transform_2, window_bounds = array<i64: 90, 64, 64>}, {pipeline_mode = #tpu.pipeline_mode<synchronous>, transform_indices = @transform_3, window_bounds = array<i64: 90, 64, 64>}, {pipeline_mode = #tpu.pipeline_mode<synchronous>, transform_indices = @transform_4, window_bounds = array<i64: 10, 1, 64>}, {pipeline_mode = #tpu.pipeline_mode<synchronous>, transform_indices = @transform_5, window_bounds = array<i64: 10, 1, 64>}, {pipeline_mode = #tpu.pipeline_mode<synchronous>, transform_indices = @transform_6, window_bounds = array<i64: 64, 64>}, {pipeline_mode = #tpu.pipeline_mode<synchronous>, transform_indices = @transform_7, window_bounds = array<i64: 64, 128>}, {transform_indices = @transform_8, window_bounds = array<i64: 1, 256, 128>}]} {
    %cst = arith.constant 0.000000e+00 : f32
    %0 = vector.broadcast %cst : f32 to vector<304x64xf32>
    %c0 = arith.constant 0 : index
    %c0_0 = arith.constant 0 : index
    %1 = vector.load %arg10[%c0, %c0_0] : memref<304x64xf32, #tpu.memory_space<vmem>>, vector<304x64xf32>
    tpu.vector_store %arg10[%c0, %c0_0], %0 {strides = array<i32>} : memref<304x64xf32, #tpu.memory_space<vmem>>, vector<304x64xf32>,
    %cst_1 = arith.constant 0.000000e+00 : f32
    %2 = vector.broadcast %cst_1 : f32 to vector<304x64xf32>
    %c0_2 = arith.constant 0 : index
    %c0_3 = arith.constant 0 : index
    %3 = vector.load %arg11[%c0_2, %c0_3] : memref<304x64xf32, #tpu.memory_space<vmem>>, vector<304x64xf32>
    tpu.vector_store %arg11[%c0_2, %c0_3], %2 {strides = array<i32>} : memref<304x64xf32, #tpu.memory_space<vmem>>, vector<304x64xf32>,
    %c0_4 = arith.constant 0 : index
    %c0_5 = arith.constant 0 : index
    %c0_6 = arith.constant 0 : index
    %4 = vector.load %arg1[%c0_4, %c0_5, %c0_6] : memref<1x256x256xf32, #tpu.memory_space<vmem>>, vector<1x256x256xf32>
    %5 = vector.shape_cast %4 : vector<1x256x256xf32> to vector<256x256xf32>
    %c0_7 = arith.constant 0 : index
    %c0_8 = arith.constant 0 : index
    %6 = vector.load %arg2[%c0_7, %c0_8] : memref<256x64xf32, #tpu.memory_space<vmem>>, vector<256x64xf32>
    %cst_9 = arith.constant dense<0.000000e+00> : vector<256x64xf32>
    %7 = tpu.matmul %5, %6, %cst_9 {dimension_numbers = #tpu.dot_dimension_numbers<[1], [0], [0], [1], [0, 0, 1, 1], [], []>} : vector<256x256xf32>, vector<256x64xf32>, vector<256x64xf32> -> vector<256x64xf32>
    %cst_10 = arith.constant 0.000000e+00 : f32
    %8 = vector.broadcast %cst_10 : f32 to vector<256x64xf32>
    %9 = arith.maximumf %7, %8 : vector<256x64xf32>
    %c24 = arith.constant 24 : index
    %c0_11 = arith.constant 0 : index
    %10 = vector.load %arg10[%c24, %c0_11] : memref<304x64xf32, #tpu.memory_space<vmem>>, vector<256x64xf32>
    tpu.vector_store %arg10[%c24, %c0_11], %9 {strides = array<i32>} : memref<304x64xf32, #tpu.memory_space<vmem>>, vector<256x64xf32>,
    %11 = tpu.iota {dimensions = array<i32: 0>} : vector<256x1xi32>
    %c16_i32 = arith.constant 16 : i32
    %c0_i32 = arith.constant 0 : i32
    %12 = arith.cmpi eq, %c16_i32, %c0_i32 : i32
    %c1_i32 = arith.constant 1 : i32
    %13 = arith.select %12, %c1_i32, %c16_i32 : i32
    %14 = vector.broadcast %13 : i32 to vector<256x1xi32>
    %15 = arith.remsi %11, %14 : vector<256x1xi32>
    %c0_i32_12 = arith.constant 0 : i32
    %16 = vector.broadcast %c0_i32_12 : i32 to vector<256x1xi32>
    %17 = arith.cmpi ne, %15, %16 : vector<256x1xi32>
    %c0_i32_13 = arith.constant 0 : i32
    %18 = vector.broadcast %c0_i32_13 : i32 to vector<256x1xi32>
    %19 = arith.cmpi slt, %15, %18 : vector<256x1xi32>
    %c0_i32_14 = arith.constant 0 : i32
    %20 = arith.cmpi slt, %13, %c0_i32_14 : i32
    %21 = vector.broadcast %20 : i1 to vector<256x1xi1>
    %22 = vector.broadcast %21 : vector<256x1xi1> to vector<256x1xi1>
    %23 = arith.xori %19, %22 : vector<256x1xi1>
    %24 = arith.andi %23, %17 : vector<256x1xi1>
    %25 = vector.broadcast %13 : i32 to vector<256x1xi32>
    %26 = arith.addi %15, %25 : vector<256x1xi32>
    %27 = arith.select %24, %26, %15 : vector<256x1xi1>, vector<256x1xi32>
    %c0_i32_15 = arith.constant 0 : i32
    %c10_i32 = arith.constant 10 : i32
    %28 = arith.addi %c0_i32_15, %c10_i32 : i32
    %c1_i32_16 = arith.constant 1 : i32
    scf.for %arg12 = %c0_i32_15 to %28 step %c1_i32_16  : i32 {
      %c9_i32 = arith.constant 9 : i32
      %37 = arith.muli %arg12, %c9_i32 : i32
      %38 = arith.index_cast %arg12 : i32 to index
      %c0_29 = arith.constant 0 : index
      %c0_30 = arith.constant 0 : index
      %39 = vector.load %arg5[%38, %c0_29, %c0_30] : memref<10x1x64xf32, #tpu.memory_space<vmem>>, vector<1x1x64xf32>
      %40 = vector.shape_cast %39 : vector<1x1x64xf32> to vector<1x64xf32>
      %cst_31 = arith.constant 0.000000e+00 : f32
      %41 = vector.broadcast %cst_31 : f32 to vector<256x64xf32>
      %c7 = arith.constant 7 : index
      %c0_32 = arith.constant 0 : index
      %42 = vector.load %arg10[%c7, %c0_32] : memref<304x64xf32, #tpu.memory_space<vmem>>, vector<256x64xf32>
      %c0_i32_33 = arith.constant 0 : i32
      %43 = arith.addi %37, %c0_i32_33 : i32
      %c0_i32_34 = arith.constant 0 : i32
      %44 = arith.addi %43, %c0_i32_34 : i32
      %45 = arith.index_cast %44 : i32 to index
      %c0_35 = arith.constant 0 : index
      %c0_36 = arith.constant 0 : index
      %46 = vector.load %arg3[%45, %c0_35, %c0_36] : memref<90x64x64xf32, #tpu.memory_space<vmem>>, vector<1x64x64xf32>
      %47 = vector.shape_cast %46 : vector<1x64x64xf32> to vector<64x64xf32>
      %cst_37 = arith.constant dense<0.000000e+00> : vector<256x64xf32>
      %48 = tpu.matmul %42, %47, %cst_37 {dimension_numbers = #tpu.dot_dimension_numbers<[1], [0], [0], [1], [0, 0, 1, 1], [], []>} : vector<256x64xf32>, vector<64x64xf32>, vector<256x64xf32> -> vector<256x64xf32>
      %c0_i32_38 = arith.constant 0 : i32
      %49 = vector.broadcast %c0_i32_38 : i32 to vector<256x1xi32>
      %50 = arith.cmpi eq, %27, %49 : vector<256x1xi32>
      %cst_39 = arith.constant 0.000000e+00 : f32
      %51 = vector.shape_cast %50 : vector<256x1xi1> to vector<256x1xi1>
      %52 = vector.broadcast %51 : vector<256x1xi1> to vector<256x64xi1>
      %53 = vector.broadcast %cst_39 : f32 to vector<256x64xf32>
      %54 = arith.select %52, %53, %48 : vector<256x64xi1>, vector<256x64xf32>
      %55 = arith.addf %41, %54 : vector<256x64xf32>
      %c8 = arith.constant 8 : index
      %c0_40 = arith.constant 0 : index
      %56 = vector.load %arg10[%c8, %c0_40] : memref<304x64xf32, #tpu.memory_space<vmem>>, vector<256x64xf32>
      %c0_i32_41 = arith.constant 0 : i32
      %57 = arith.addi %37, %c0_i32_41 : i32
      %c1_i32_42 = arith.constant 1 : i32
      %58 = arith.addi %57, %c1_i32_42 : i32
      %59 = arith.index_cast %58 : i32 to index
      %c0_43 = arith.constant 0 : index
      %c0_44 = arith.constant 0 : index
      %60 = vector.load %arg3[%59, %c0_43, %c0_44] : memref<90x64x64xf32, #tpu.memory_space<vmem>>, vector<1x64x64xf32>
      %61 = vector.shape_cast %60 : vector<1x64x64xf32> to vector<64x64xf32>
      %cst_45 = arith.constant dense<0.000000e+00> : vector<256x64xf32>
      %62 = tpu.matmul %56, %61, %cst_45 {dimension_numbers = #tpu.dot_dimension_numbers<[1], [0], [0], [1], [0, 0, 1, 1], [], []>} : vector<256x64xf32>, vector<64x64xf32>, vector<256x64xf32> -> vector<256x64xf32>
      %63 = arith.addf %55, %62 : vector<256x64xf32>
      %c9 = arith.constant 9 : index
      %c0_46 = arith.constant 0 : index
      %64 = vector.load %arg10[%c9, %c0_46] : memref<304x64xf32, #tpu.memory_space<vmem>>, vector<256x64xf32>
      %c0_i32_47 = arith.constant 0 : i32
      %65 = arith.addi %37, %c0_i32_47 : i32
      %c2_i32 = arith.constant 2 : i32
      %66 = arith.addi %65, %c2_i32 : i32
      %67 = arith.index_cast %66 : i32 to index
      %c0_48 = arith.constant 0 : index
      %c0_49 = arith.constant 0 : index
      %68 = vector.load %arg3[%67, %c0_48, %c0_49] : memref<90x64x64xf32, #tpu.memory_space<vmem>>, vector<1x64x64xf32>
      %69 = vector.shape_cast %68 : vector<1x64x64xf32> to vector<64x64xf32>
      %cst_50 = arith.constant dense<0.000000e+00> : vector<256x64xf32>
      %70 = tpu.matmul %64, %69, %cst_50 {dimension_numbers = #tpu.dot_dimension_numbers<[1], [0], [0], [1], [0, 0, 1, 1], [], []>} : vector<256x64xf32>, vector<64x64xf32>, vector<256x64xf32> -> vector<256x64xf32>
      %c15_i32 = arith.constant 15 : i32
      %71 = vector.broadcast %c15_i32 : i32 to vector<256x1xi32>
      %72 = arith.cmpi eq, %27, %71 : vector<256x1xi32>
      %cst_51 = arith.constant 0.000000e+00 : f32
      %73 = vector.shape_cast %72 : vector<256x1xi1> to vector<256x1xi1>
      %74 = vector.broadcast %73 : vector<256x1xi1> to vector<256x64xi1>
      %75 = vector.broadcast %cst_51 : f32 to vector<256x64xf32>
      %76 = arith.select %74, %75, %70 : vector<256x64xi1>, vector<256x64xf32>
      %77 = arith.addf %63, %76 : vector<256x64xf32>
      %c23 = arith.constant 23 : index
      %c0_52 = arith.constant 0 : index
      %78 = vector.load %arg10[%c23, %c0_52] : memref<304x64xf32, #tpu.memory_space<vmem>>, vector<256x64xf32>
      %c3_i32 = arith.constant 3 : i32
      %79 = arith.addi %37, %c3_i32 : i32
      %c0_i32_53 = arith.constant 0 : i32
      %80 = arith.addi %79, %c0_i32_53 : i32
      %81 = arith.index_cast %80 : i32 to index
      %c0_54 = arith.constant 0 : index
      %c0_55 = arith.constant 0 : index
      %82 = vector.load %arg3[%81, %c0_54, %c0_55] : memref<90x64x64xf32, #tpu.memory_space<vmem>>, vector<1x64x64xf32>
      %83 = vector.shape_cast %82 : vector<1x64x64xf32> to vector<64x64xf32>
      %cst_56 = arith.constant dense<0.000000e+00> : vector<256x64xf32>
      %84 = tpu.matmul %78, %83, %cst_56 {dimension_numbers = #tpu.dot_dimension_numbers<[1], [0], [0], [1], [0, 0, 1, 1], [], []>} : vector<256x64xf32>, vector<64x64xf32>, vector<256x64xf32> -> vector<256x64xf32>
      %c0_i32_57 = arith.constant 0 : i32
      %85 = vector.broadcast %c0_i32_57 : i32 to vector<256x1xi32>
      %86 = arith.cmpi eq, %27, %85 : vector<256x1xi32>
      %cst_58 = arith.constant 0.000000e+00 : f32
      %87 = vector.shape_cast %86 : vector<256x1xi1> to vector<256x1xi1>
      %88 = vector.broadcast %87 : vector<256x1xi1> to vector<256x64xi1>
      %89 = vector.broadcast %cst_58 : f32 to vector<256x64xf32>
      %90 = arith.select %88, %89, %84 : vector<256x64xi1>, vector<256x64xf32>
      %91 = arith.addf %77, %90 : vector<256x64xf32>
      %c24_59 = arith.constant 24 : index
      %c0_60 = arith.constant 0 : index
      %92 = vector.load %arg10[%c24_59, %c0_60] : memref<304x64xf32, #tpu.memory_space<vmem>>, vector<256x64xf32>
      %c3_i32_61 = arith.constant 3 : i32
      %93 = arith.addi %37, %c3_i32_61 : i32
      %c1_i32_62 = arith.constant 1 : i32
      %94 = arith.addi %93, %c1_i32_62 : i32
      %95 = arith.index_cast %94 : i32 to index
      %c0_63 = arith.constant 0 : index
      %c0_64 = arith.constant 0 : index
      %96 = vector.load %arg3[%95, %c0_63, %c0_64] : memref<90x64x64xf32, #tpu.memory_space<vmem>>, vector<1x64x64xf32>
      %97 = vector.shape_cast %96 : vector<1x64x64xf32> to vector<64x64xf32>
      %cst_65 = arith.constant dense<0.000000e+00> : vector<256x64xf32>
      %98 = tpu.matmul %92, %97, %cst_65 {dimension_numbers = #tpu.dot_dimension_numbers<[1], [0], [0], [1], [0, 0, 1, 1], [], []>} : vector<256x64xf32>, vector<64x64xf32>, vector<256x64xf32> -> vector<256x64xf32>
      %99 = arith.addf %91, %98 : vector<256x64xf32>
      %c25 = arith.constant 25 : index
      %c0_66 = arith.constant 0 : index
      %100 = vector.load %arg10[%c25, %c0_66] : memref<304x64xf32, #tpu.memory_space<vmem>>, vector<256x64xf32>
      %c3_i32_67 = arith.constant 3 : i32
      %101 = arith.addi %37, %c3_i32_67 : i32
      %c2_i32_68 = arith.constant 2 : i32
      %102 = arith.addi %101, %c2_i32_68 : i32
      %103 = arith.index_cast %102 : i32 to index
      %c0_69 = arith.constant 0 : index
      %c0_70 = arith.constant 0 : index
      %104 = vector.load %arg3[%103, %c0_69, %c0_70] : memref<90x64x64xf32, #tpu.memory_space<vmem>>, vector<1x64x64xf32>
      %105 = vector.shape_cast %104 : vector<1x64x64xf32> to vector<64x64xf32>
      %cst_71 = arith.constant dense<0.000000e+00> : vector<256x64xf32>
      %106 = tpu.matmul %100, %105, %cst_71 {dimension_numbers = #tpu.dot_dimension_numbers<[1], [0], [0], [1], [0, 0, 1, 1], [], []>} : vector<256x64xf32>, vector<64x64xf32>, vector<256x64xf32> -> vector<256x64xf32>
      %c15_i32_72 = arith.constant 15 : i32
      %107 = vector.broadcast %c15_i32_72 : i32 to vector<256x1xi32>
      %108 = arith.cmpi eq, %27, %107 : vector<256x1xi32>
      %cst_73 = arith.constant 0.000000e+00 : f32
      %109 = vector.shape_cast %108 : vector<256x1xi1> to vector<256x1xi1>
      %110 = vector.broadcast %109 : vector<256x1xi1> to vector<256x64xi1>
      %111 = vector.broadcast %cst_73 : f32 to vector<256x64xf32>
      %112 = arith.select %110, %111, %106 : vector<256x64xi1>, vector<256x64xf32>
      %113 = arith.addf %99, %112 : vector<256x64xf32>
      %c39 = arith.constant 39 : index
      %c0_74 = arith.constant 0 : index
      %114 = vector.load %arg10[%c39, %c0_74] : memref<304x64xf32, #tpu.memory_space<vmem>>, vector<256x64xf32>
      %c6_i32 = arith.constant 6 : i32
      %115 = arith.addi %37, %c6_i32 : i32
      %c0_i32_75 = arith.constant 0 : i32
      %116 = arith.addi %115, %c0_i32_75 : i32
      %117 = arith.index_cast %116 : i32 to index
      %c0_76 = arith.constant 0 : index
      %c0_77 = arith.constant 0 : index
      %118 = vector.load %arg3[%117, %c0_76, %c0_77] : memref<90x64x64xf32, #tpu.memory_space<vmem>>, vector<1x64x64xf32>
      %119 = vector.shape_cast %118 : vector<1x64x64xf32> to vector<64x64xf32>
      %cst_78 = arith.constant dense<0.000000e+00> : vector<256x64xf32>
      %120 = tpu.matmul %114, %119, %cst_78 {dimension_numbers = #tpu.dot_dimension_numbers<[1], [0], [0], [1], [0, 0, 1, 1], [], []>} : vector<256x64xf32>, vector<64x64xf32>, vector<256x64xf32> -> vector<256x64xf32>
      %c0_i32_79 = arith.constant 0 : i32
      %121 = vector.broadcast %c0_i32_79 : i32 to vector<256x1xi32>
      %122 = arith.cmpi eq, %27, %121 : vector<256x1xi32>
      %cst_80 = arith.constant 0.000000e+00 : f32
      %123 = vector.shape_cast %122 : vector<256x1xi1> to vector<256x1xi1>
      %124 = vector.broadcast %123 : vector<256x1xi1> to vector<256x64xi1>
      %125 = vector.broadcast %cst_80 : f32 to vector<256x64xf32>
      %126 = arith.select %124, %125, %120 : vector<256x64xi1>, vector<256x64xf32>
      %127 = arith.addf %113, %126 : vector<256x64xf32>
      %c40 = arith.constant 40 : index
      %c0_81 = arith.constant 0 : index
      %128 = vector.load %arg10[%c40, %c0_81] : memref<304x64xf32, #tpu.memory_space<vmem>>, vector<256x64xf32>
      %c6_i32_82 = arith.constant 6 : i32
      %129 = arith.addi %37, %c6_i32_82 : i32
      %c1_i32_83 = arith.constant 1 : i32
      %130 = arith.addi %129, %c1_i32_83 : i32
      %131 = arith.index_cast %130 : i32 to index
      %c0_84 = arith.constant 0 : index
      %c0_85 = arith.constant 0 : index
      %132 = vector.load %arg3[%131, %c0_84, %c0_85] : memref<90x64x64xf32, #tpu.memory_space<vmem>>, vector<1x64x64xf32>
      %133 = vector.shape_cast %132 : vector<1x64x64xf32> to vector<64x64xf32>
      %cst_86 = arith.constant dense<0.000000e+00> : vector<256x64xf32>
      %134 = tpu.matmul %128, %133, %cst_86 {dimension_numbers = #tpu.dot_dimension_numbers<[1], [0], [0], [1], [0, 0, 1, 1], [], []>} : vector<256x64xf32>, vector<64x64xf32>, vector<256x64xf32> -> vector<256x64xf32>
      %135 = arith.addf %127, %134 : vector<256x64xf32>
      %c41 = arith.constant 41 : index
      %c0_87 = arith.constant 0 : index
      %136 = vector.load %arg10[%c41, %c0_87] : memref<304x64xf32, #tpu.memory_space<vmem>>, vector<256x64xf32>
      %c6_i32_88 = arith.constant 6 : i32
      %137 = arith.addi %37, %c6_i32_88 : i32
      %c2_i32_89 = arith.constant 2 : i32
      %138 = arith.addi %137, %c2_i32_89 : i32
      %139 = arith.index_cast %138 : i32 to index
      %c0_90 = arith.constant 0 : index
      %c0_91 = arith.constant 0 : index
      %140 = vector.load %arg3[%139, %c0_90, %c0_91] : memref<90x64x64xf32, #tpu.memory_space<vmem>>, vector<1x64x64xf32>
      %141 = vector.shape_cast %140 : vector<1x64x64xf32> to vector<64x64xf32>
      %cst_92 = arith.constant dense<0.000000e+00> : vector<256x64xf32>
      %142 = tpu.matmul %136, %141, %cst_92 {dimension_numbers = #tpu.dot_dimension_numbers<[1], [0], [0], [1], [0, 0, 1, 1], [], []>} : vector<256x64xf32>, vector<64x64xf32>, vector<256x64xf32> -> vector<256x64xf32>
      %c15_i32_93 = arith.constant 15 : i32
      %143 = vector.broadcast %c15_i32_93 : i32 to vector<256x1xi32>
      %144 = arith.cmpi eq, %27, %143 : vector<256x1xi32>
      %cst_94 = arith.constant 0.000000e+00 : f32
      %145 = vector.shape_cast %144 : vector<256x1xi1> to vector<256x1xi1>
      %146 = vector.broadcast %145 : vector<256x1xi1> to vector<256x64xi1>
      %147 = vector.broadcast %cst_94 : f32 to vector<256x64xf32>
      %148 = arith.select %146, %147, %142 : vector<256x64xi1>, vector<256x64xf32>
      %149 = arith.addf %135, %148 : vector<256x64xf32>
      %150 = vector.broadcast %40 : vector<1x64xf32> to vector<256x64xf32>
      %151 = arith.addf %149, %150 : vector<256x64xf32>
      %cst_95 = arith.constant 0.000000e+00 : f32
      %152 = vector.broadcast %cst_95 : f32 to vector<256x64xf32>
      %153 = arith.maximumf %151, %152 : vector<256x64xf32>
      %c24_96 = arith.constant 24 : index
      %c0_97 = arith.constant 0 : index
      %154 = vector.load %arg11[%c24_96, %c0_97] : memref<304x64xf32, #tpu.memory_space<vmem>>, vector<256x64xf32>
      tpu.vector_store %arg11[%c24_96, %c0_97], %153 {strides = array<i32>} : memref<304x64xf32, #tpu.memory_space<vmem>>, vector<256x64xf32>,
      %155 = arith.index_cast %arg12 : i32 to index
      %c0_98 = arith.constant 0 : index
      %c0_99 = arith.constant 0 : index
      %156 = vector.load %arg6[%155, %c0_98, %c0_99] : memref<10x1x64xf32, #tpu.memory_space<vmem>>, vector<1x1x64xf32>
      %157 = vector.shape_cast %156 : vector<1x1x64xf32> to vector<1x64xf32>
      %cst_100 = arith.constant 0.000000e+00 : f32
      %158 = vector.broadcast %cst_100 : f32 to vector<256x64xf32>
      %c7_101 = arith.constant 7 : index
      %c0_102 = arith.constant 0 : index
      %159 = vector.load %arg11[%c7_101, %c0_102] : memref<304x64xf32, #tpu.memory_space<vmem>>, vector<256x64xf32>
      %c0_i32_103 = arith.constant 0 : i32
      %160 = arith.addi %37, %c0_i32_103 : i32
      %c0_i32_104 = arith.constant 0 : i32
      %161 = arith.addi %160, %c0_i32_104 : i32
      %162 = arith.index_cast %161 : i32 to index
      %c0_105 = arith.constant 0 : index
      %c0_106 = arith.constant 0 : index
      %163 = vector.load %arg4[%162, %c0_105, %c0_106] : memref<90x64x64xf32, #tpu.memory_space<vmem>>, vector<1x64x64xf32>
      %164 = vector.shape_cast %163 : vector<1x64x64xf32> to vector<64x64xf32>
      %cst_107 = arith.constant dense<0.000000e+00> : vector<256x64xf32>
      %165 = tpu.matmul %159, %164, %cst_107 {dimension_numbers = #tpu.dot_dimension_numbers<[1], [0], [0], [1], [0, 0, 1, 1], [], []>} : vector<256x64xf32>, vector<64x64xf32>, vector<256x64xf32> -> vector<256x64xf32>
      %c0_i32_108 = arith.constant 0 : i32
      %166 = vector.broadcast %c0_i32_108 : i32 to vector<256x1xi32>
      %167 = arith.cmpi eq, %27, %166 : vector<256x1xi32>
      %cst_109 = arith.constant 0.000000e+00 : f32
      %168 = vector.shape_cast %167 : vector<256x1xi1> to vector<256x1xi1>
      %169 = vector.broadcast %168 : vector<256x1xi1> to vector<256x64xi1>
      %170 = vector.broadcast %cst_109 : f32 to vector<256x64xf32>
      %171 = arith.select %169, %170, %165 : vector<256x64xi1>, vector<256x64xf32>
      %172 = arith.addf %158, %171 : vector<256x64xf32>
      %c8_110 = arith.constant 8 : index
      %c0_111 = arith.constant 0 : index
      %173 = vector.load %arg11[%c8_110, %c0_111] : memref<304x64xf32, #tpu.memory_space<vmem>>, vector<256x64xf32>
      %c0_i32_112 = arith.constant 0 : i32
      %174 = arith.addi %37, %c0_i32_112 : i32
      %c1_i32_113 = arith.constant 1 : i32
      %175 = arith.addi %174, %c1_i32_113 : i32
      %176 = arith.index_cast %175 : i32 to index
      %c0_114 = arith.constant 0 : index
      %c0_115 = arith.constant 0 : index
      %177 = vector.load %arg4[%176, %c0_114, %c0_115] : memref<90x64x64xf32, #tpu.memory_space<vmem>>, vector<1x64x64xf32>
      %178 = vector.shape_cast %177 : vector<1x64x64xf32> to vector<64x64xf32>
      %cst_116 = arith.constant dense<0.000000e+00> : vector<256x64xf32>
      %179 = tpu.matmul %173, %178, %cst_116 {dimension_numbers = #tpu.dot_dimension_numbers<[1], [0], [0], [1], [0, 0, 1, 1], [], []>} : vector<256x64xf32>, vector<64x64xf32>, vector<256x64xf32> -> vector<256x64xf32>
      %180 = arith.addf %172, %179 : vector<256x64xf32>
      %c9_117 = arith.constant 9 : index
      %c0_118 = arith.constant 0 : index
      %181 = vector.load %arg11[%c9_117, %c0_118] : memref<304x64xf32, #tpu.memory_space<vmem>>, vector<256x64xf32>
      %c0_i32_119 = arith.constant 0 : i32
      %182 = arith.addi %37, %c0_i32_119 : i32
      %c2_i32_120 = arith.constant 2 : i32
      %183 = arith.addi %182, %c2_i32_120 : i32
      %184 = arith.index_cast %183 : i32 to index
      %c0_121 = arith.constant 0 : index
      %c0_122 = arith.constant 0 : index
      %185 = vector.load %arg4[%184, %c0_121, %c0_122] : memref<90x64x64xf32, #tpu.memory_space<vmem>>, vector<1x64x64xf32>
      %186 = vector.shape_cast %185 : vector<1x64x64xf32> to vector<64x64xf32>
      %cst_123 = arith.constant dense<0.000000e+00> : vector<256x64xf32>
      %187 = tpu.matmul %181, %186, %cst_123 {dimension_numbers = #tpu.dot_dimension_numbers<[1], [0], [0], [1], [0, 0, 1, 1], [], []>} : vector<256x64xf32>, vector<64x64xf32>, vector<256x64xf32> -> vector<256x64xf32>
      %c15_i32_124 = arith.constant 15 : i32
      %188 = vector.broadcast %c15_i32_124 : i32 to vector<256x1xi32>
      %189 = arith.cmpi eq, %27, %188 : vector<256x1xi32>
      %cst_125 = arith.constant 0.000000e+00 : f32
      %190 = vector.shape_cast %189 : vector<256x1xi1> to vector<256x1xi1>
      %191 = vector.broadcast %190 : vector<256x1xi1> to vector<256x64xi1>
      %192 = vector.broadcast %cst_125 : f32 to vector<256x64xf32>
      %193 = arith.select %191, %192, %187 : vector<256x64xi1>, vector<256x64xf32>
      %194 = arith.addf %180, %193 : vector<256x64xf32>
      %c23_126 = arith.constant 23 : index
      %c0_127 = arith.constant 0 : index
      %195 = vector.load %arg11[%c23_126, %c0_127] : memref<304x64xf32, #tpu.memory_space<vmem>>, vector<256x64xf32>
      %c3_i32_128 = arith.constant 3 : i32
      %196 = arith.addi %37, %c3_i32_128 : i32
      %c0_i32_129 = arith.constant 0 : i32
      %197 = arith.addi %196, %c0_i32_129 : i32
      %198 = arith.index_cast %197 : i32 to index
      %c0_130 = arith.constant 0 : index
      %c0_131 = arith.constant 0 : index
      %199 = vector.load %arg4[%198, %c0_130, %c0_131] : memref<90x64x64xf32, #tpu.memory_space<vmem>>, vector<1x64x64xf32>
      %200 = vector.shape_cast %199 : vector<1x64x64xf32> to vector<64x64xf32>
      %cst_132 = arith.constant dense<0.000000e+00> : vector<256x64xf32>
      %201 = tpu.matmul %195, %200, %cst_132 {dimension_numbers = #tpu.dot_dimension_numbers<[1], [0], [0], [1], [0, 0, 1, 1], [], []>} : vector<256x64xf32>, vector<64x64xf32>, vector<256x64xf32> -> vector<256x64xf32>
      %c0_i32_133 = arith.constant 0 : i32
      %202 = vector.broadcast %c0_i32_133 : i32 to vector<256x1xi32>
      %203 = arith.cmpi eq, %27, %202 : vector<256x1xi32>
      %cst_134 = arith.constant 0.000000e+00 : f32
      %204 = vector.shape_cast %203 : vector<256x1xi1> to vector<256x1xi1>
      %205 = vector.broadcast %204 : vector<256x1xi1> to vector<256x64xi1>
      %206 = vector.broadcast %cst_134 : f32 to vector<256x64xf32>
      %207 = arith.select %205, %206, %201 : vector<256x64xi1>, vector<256x64xf32>
      %208 = arith.addf %194, %207 : vector<256x64xf32>
      %c24_135 = arith.constant 24 : index
      %c0_136 = arith.constant 0 : index
      %209 = vector.load %arg11[%c24_135, %c0_136] : memref<304x64xf32, #tpu.memory_space<vmem>>, vector<256x64xf32>
      %c3_i32_137 = arith.constant 3 : i32
      %210 = arith.addi %37, %c3_i32_137 : i32
      %c1_i32_138 = arith.constant 1 : i32
      %211 = arith.addi %210, %c1_i32_138 : i32
      %212 = arith.index_cast %211 : i32 to index
      %c0_139 = arith.constant 0 : index
      %c0_140 = arith.constant 0 : index
      %213 = vector.load %arg4[%212, %c0_139, %c0_140] : memref<90x64x64xf32, #tpu.memory_space<vmem>>, vector<1x64x64xf32>
      %214 = vector.shape_cast %213 : vector<1x64x64xf32> to vector<64x64xf32>
      %cst_141 = arith.constant dense<0.000000e+00> : vector<256x64xf32>
      %215 = tpu.matmul %209, %214, %cst_141 {dimension_numbers = #tpu.dot_dimension_numbers<[1], [0], [0], [1], [0, 0, 1, 1], [], []>} : vector<256x64xf32>, vector<64x64xf32>, vector<256x64xf32> -> vector<256x64xf32>
      %216 = arith.addf %208, %215 : vector<256x64xf32>
      %c25_142 = arith.constant 25 : index
      %c0_143 = arith.constant 0 : index
      %217 = vector.load %arg11[%c25_142, %c0_143] : memref<304x64xf32, #tpu.memory_space<vmem>>, vector<256x64xf32>
      %c3_i32_144 = arith.constant 3 : i32
      %218 = arith.addi %37, %c3_i32_144 : i32
      %c2_i32_145 = arith.constant 2 : i32
      %219 = arith.addi %218, %c2_i32_145 : i32
      %220 = arith.index_cast %219 : i32 to index
      %c0_146 = arith.constant 0 : index
      %c0_147 = arith.constant 0 : index
      %221 = vector.load %arg4[%220, %c0_146, %c0_147] : memref<90x64x64xf32, #tpu.memory_space<vmem>>, vector<1x64x64xf32>
      %222 = vector.shape_cast %221 : vector<1x64x64xf32> to vector<64x64xf32>
      %cst_148 = arith.constant dense<0.000000e+00> : vector<256x64xf32>
      %223 = tpu.matmul %217, %222, %cst_148 {dimension_numbers = #tpu.dot_dimension_numbers<[1], [0], [0], [1], [0, 0, 1, 1], [], []>} : vector<256x64xf32>, vector<64x64xf32>, vector<256x64xf32> -> vector<256x64xf32>
      %c15_i32_149 = arith.constant 15 : i32
      %224 = vector.broadcast %c15_i32_149 : i32 to vector<256x1xi32>
      %225 = arith.cmpi eq, %27, %224 : vector<256x1xi32>
      %cst_150 = arith.constant 0.000000e+00 : f32
      %226 = vector.shape_cast %225 : vector<256x1xi1> to vector<256x1xi1>
      %227 = vector.broadcast %226 : vector<256x1xi1> to vector<256x64xi1>
      %228 = vector.broadcast %cst_150 : f32 to vector<256x64xf32>
      %229 = arith.select %227, %228, %223 : vector<256x64xi1>, vector<256x64xf32>
      %230 = arith.addf %216, %229 : vector<256x64xf32>
      %c39_151 = arith.constant 39 : index
      %c0_152 = arith.constant 0 : index
      %231 = vector.load %arg11[%c39_151, %c0_152] : memref<304x64xf32, #tpu.memory_space<vmem>>, vector<256x64xf32>
      %c6_i32_153 = arith.constant 6 : i32
      %232 = arith.addi %37, %c6_i32_153 : i32
      %c0_i32_154 = arith.constant 0 : i32
      %233 = arith.addi %232, %c0_i32_154 : i32
      %234 = arith.index_cast %233 : i32 to index
      %c0_155 = arith.constant 0 : index
      %c0_156 = arith.constant 0 : index
      %235 = vector.load %arg4[%234, %c0_155, %c0_156] : memref<90x64x64xf32, #tpu.memory_space<vmem>>, vector<1x64x64xf32>
      %236 = vector.shape_cast %235 : vector<1x64x64xf32> to vector<64x64xf32>
      %cst_157 = arith.constant dense<0.000000e+00> : vector<256x64xf32>
      %237 = tpu.matmul %231, %236, %cst_157 {dimension_numbers = #tpu.dot_dimension_numbers<[1], [0], [0], [1], [0, 0, 1, 1], [], []>} : vector<256x64xf32>, vector<64x64xf32>, vector<256x64xf32> -> vector<256x64xf32>
      %c0_i32_158 = arith.constant 0 : i32
      %238 = vector.broadcast %c0_i32_158 : i32 to vector<256x1xi32>
      %239 = arith.cmpi eq, %27, %238 : vector<256x1xi32>
      %cst_159 = arith.constant 0.000000e+00 : f32
      %240 = vector.shape_cast %239 : vector<256x1xi1> to vector<256x1xi1>
      %241 = vector.broadcast %240 : vector<256x1xi1> to vector<256x64xi1>
      %242 = vector.broadcast %cst_159 : f32 to vector<256x64xf32>
      %243 = arith.select %241, %242, %237 : vector<256x64xi1>, vector<256x64xf32>
      %244 = arith.addf %230, %243 : vector<256x64xf32>
      %c40_160 = arith.constant 40 : index
      %c0_161 = arith.constant 0 : index
      %245 = vector.load %arg11[%c40_160, %c0_161] : memref<304x64xf32, #tpu.memory_space<vmem>>, vector<256x64xf32>
      %c6_i32_162 = arith.constant 6 : i32
      %246 = arith.addi %37, %c6_i32_162 : i32
      %c1_i32_163 = arith.constant 1 : i32
      %247 = arith.addi %246, %c1_i32_163 : i32
      %248 = arith.index_cast %247 : i32 to index
      %c0_164 = arith.constant 0 : index
      %c0_165 = arith.constant 0 : index
      %249 = vector.load %arg4[%248, %c0_164, %c0_165] : memref<90x64x64xf32, #tpu.memory_space<vmem>>, vector<1x64x64xf32>
      %250 = vector.shape_cast %249 : vector<1x64x64xf32> to vector<64x64xf32>
      %cst_166 = arith.constant dense<0.000000e+00> : vector<256x64xf32>
      %251 = tpu.matmul %245, %250, %cst_166 {dimension_numbers = #tpu.dot_dimension_numbers<[1], [0], [0], [1], [0, 0, 1, 1], [], []>} : vector<256x64xf32>, vector<64x64xf32>, vector<256x64xf32> -> vector<256x64xf32>
      %252 = arith.addf %244, %251 : vector<256x64xf32>
      %c41_167 = arith.constant 41 : index
      %c0_168 = arith.constant 0 : index
      %253 = vector.load %arg11[%c41_167, %c0_168] : memref<304x64xf32, #tpu.memory_space<vmem>>, vector<256x64xf32>
      %c6_i32_169 = arith.constant 6 : i32
      %254 = arith.addi %37, %c6_i32_169 : i32
      %c2_i32_170 = arith.constant 2 : i32
      %255 = arith.addi %254, %c2_i32_170 : i32
      %256 = arith.index_cast %255 : i32 to index
      %c0_171 = arith.constant 0 : index
      %c0_172 = arith.constant 0 : index
      %257 = vector.load %arg4[%256, %c0_171, %c0_172] : memref<90x64x64xf32, #tpu.memory_space<vmem>>, vector<1x64x64xf32>
      %258 = vector.shape_cast %257 : vector<1x64x64xf32> to vector<64x64xf32>
      %cst_173 = arith.constant dense<0.000000e+00> : vector<256x64xf32>
      %259 = tpu.matmul %253, %258, %cst_173 {dimension_numbers = #tpu.dot_dimension_numbers<[1], [0], [0], [1], [0, 0, 1, 1], [], []>} : vector<256x64xf32>, vector<64x64xf32>, vector<256x64xf32> -> vector<256x64xf32>
      %c15_i32_174 = arith.constant 15 : i32
      %260 = vector.broadcast %c15_i32_174 : i32 to vector<256x1xi32>
      %261 = arith.cmpi eq, %27, %260 : vector<256x1xi32>
      %cst_175 = arith.constant 0.000000e+00 : f32
      %262 = vector.shape_cast %261 : vector<256x1xi1> to vector<256x1xi1>
      %263 = vector.broadcast %262 : vector<256x1xi1> to vector<256x64xi1>
      %264 = vector.broadcast %cst_175 : f32 to vector<256x64xf32>
      %265 = arith.select %263, %264, %259 : vector<256x64xi1>, vector<256x64xf32>
      %266 = arith.addf %252, %265 : vector<256x64xf32>
      %267 = vector.broadcast %157 : vector<1x64xf32> to vector<256x64xf32>
      %268 = arith.addf %266, %267 : vector<256x64xf32>
      %c24_176 = arith.constant 24 : index
      %c0_177 = arith.constant 0 : index
      %269 = vector.load %arg10[%c24_176, %c0_177] : memref<304x64xf32, #tpu.memory_space<vmem>>, vector<256x64xf32>
      %270 = arith.addf %268, %269 : vector<256x64xf32>
      %cst_178 = arith.constant 0.000000e+00 : f32
      %271 = vector.broadcast %cst_178 : f32 to vector<256x64xf32>
      %272 = arith.maximumf %270, %271 : vector<256x64xf32>
      %c24_179 = arith.constant 24 : index
      %c0_180 = arith.constant 0 : index
      %273 = vector.load %arg10[%c24_179, %c0_180] : memref<304x64xf32, #tpu.memory_space<vmem>>, vector<256x64xf32>
      tpu.vector_store %arg10[%c24_179, %c0_180], %272 {strides = array<i32>} : memref<304x64xf32, #tpu.memory_space<vmem>>, vector<256x64xf32>,
    }
    %c10_i32_17 = arith.constant 10 : i32
    %c24_18 = arith.constant 24 : index
    %c0_19 = arith.constant 0 : index
    %29 = vector.load %arg10[%c24_18, %c0_19] : memref<304x64xf32, #tpu.memory_space<vmem>>, vector<256x64xf32>
    %c0_20 = arith.constant 0 : index
    %c0_21 = arith.constant 0 : index
    %30 = vector.load %arg7[%c0_20, %c0_21] : memref<64x64xf32, #tpu.memory_space<vmem>>, vector<64x64xf32>
    %cst_22 = arith.constant dense<0.000000e+00> : vector<256x64xf32>
    %31 = tpu.matmul %29, %30, %cst_22 {dimension_numbers = #tpu.dot_dimension_numbers<[1], [0], [0], [1], [0, 0, 1, 1], [], []>} : vector<256x64xf32>, vector<64x64xf32>, vector<256x64xf32> -> vector<256x64xf32>
    %c0_23 = arith.constant 0 : index
    %c0_24 = arith.constant 0 : index
    %32 = vector.load %arg8[%c0_23, %c0_24] : memref<64x128xf32, #tpu.memory_space<vmem>>, vector<64x128xf32>
    %cst_25 = arith.constant dense<0.000000e+00> : vector<256x128xf32>
    %33 = tpu.matmul %31, %32, %cst_25 {dimension_numbers = #tpu.dot_dimension_numbers<[1], [0], [0], [1], [0, 0, 1, 1], [], []>} : vector<256x64xf32>, vector<64x128xf32>, vector<256x128xf32> -> vector<256x128xf32>
    %c0_26 = arith.constant 0 : index
    %c0_27 = arith.constant 0 : index
    %c0_28 = arith.constant 0 : index
    %34 = vector.load %arg9[%c0_26, %c0_27, %c0_28] : memref<1x256x128xf32, #tpu.memory_space<vmem>>, vector<1x256x128xf32>
    %35 = vector.shape_cast %34 : vector<1x256x128xf32> to vector<256x128xf32>
    %36 = vector.shape_cast %33 : vector<256x128xf32> to vector<1x256x128xf32>
    tpu.vector_store %arg9[%c0_26, %c0_27, %c0_28], %36 {strides = array<i32>} : memref<1x256x128xf32, #tpu.memory_space<vmem>>, vector<1x256x128xf32>,
    return
  }
  func.func @transform_0(%arg0: i32) -> (i32, i32, i32) {
    %c0_i32 = arith.constant 0 : i32
    %c0_i32_0 = arith.constant 0 : i32
    %c0_i32_1 = arith.constant 0 : i32
    return %arg0, %c0_i32, %c0_i32_0 : i32, i32, i32
  }
  func.func @transform_1(%arg0: i32) -> (i32, i32) {
    %c0_i32 = arith.constant 0 : i32
    %c0_i32_0 = arith.constant 0 : i32
    %c0_i32_1 = arith.constant 0 : i32
    return %c0_i32, %c0_i32_0 : i32, i32
  }
  func.func @transform_2(%arg0: i32) -> (i32, i32, i32) {
    %c0_i32 = arith.constant 0 : i32
    %c0_i32_0 = arith.constant 0 : i32
    %c0_i32_1 = arith.constant 0 : i32
    %c0_i32_2 = arith.constant 0 : i32
    return %c0_i32, %c0_i32_0, %c0_i32_1 : i32, i32, i32
  }
  func.func @transform_3(%arg0: i32) -> (i32, i32, i32) {
    %c0_i32 = arith.constant 0 : i32
    %c0_i32_0 = arith.constant 0 : i32
    %c0_i32_1 = arith.constant 0 : i32
    %c0_i32_2 = arith.constant 0 : i32
    return %c0_i32, %c0_i32_0, %c0_i32_1 : i32, i32, i32
  }
  func.func @transform_4(%arg0: i32) -> (i32, i32, i32) {
    %c0_i32 = arith.constant 0 : i32
    %c0_i32_0 = arith.constant 0 : i32
    %c0_i32_1 = arith.constant 0 : i32
    %c0_i32_2 = arith.constant 0 : i32
    return %c0_i32, %c0_i32_0, %c0_i32_1 : i32, i32, i32
  }
  func.func @transform_5(%arg0: i32) -> (i32, i32, i32) {
    %c0_i32 = arith.constant 0 : i32
    %c0_i32_0 = arith.constant 0 : i32
    %c0_i32_1 = arith.constant 0 : i32
    %c0_i32_2 = arith.constant 0 : i32
    return %c0_i32, %c0_i32_0, %c0_i32_1 : i32, i32, i32
  }
  func.func @transform_6(%arg0: i32) -> (i32, i32) {
    %c0_i32 = arith.constant 0 : i32
    %c0_i32_0 = arith.constant 0 : i32
    %c0_i32_1 = arith.constant 0 : i32
    return %c0_i32, %c0_i32_0 : i32, i32
  }
  func.func @transform_7(%arg0: i32) -> (i32, i32) {
    %c0_i32 = arith.constant 0 : i32
    %c0_i32_0 = arith.constant 0 : i32
    %c0_i32_1 = arith.constant 0 : i32
    return %c0_i32, %c0_i32_0 : i32, i32
  }
  func.func @transform_8(%arg0: i32) -> (i32, i32, i32) {
    %c0_i32 = arith.constant 0 : i32
    %c0_i32_0 = arith.constant 0 : i32
    %c0_i32_1 = arith.constant 0 : i32
    return %arg0, %c0_i32, %c0_i32_0 : i32, i32, i32
  }
}

</mosaic_0001>

<llo_original>
// kernel: generator_forward.1
$region0: #{generator_forward.1}
  #allocation0 [shape = 'u32[]', space=smem, size = 0x4, offset = 0x4, fixed_abs, tag = 'smem constant byte address 0x4 - core index']
  #allocation1 [shape = 'u32[72,128]{1,0:T(1,128)}', space=vmem, size = 0x9000, scoped, tag = 'internal scratch']
  #allocation2 [shape = 'f32[304,64]{1,0:T(8,128)}', space=vmem, size = 0x26000, scoped, tag = 'scratch operand']
  #allocation3 [shape = 'f32[304,64]{1,0:T(8,128)}', space=vmem, size = 0x26000, scoped, tag = 'scratch operand']
  %s0 = inlined_call_operand.vmem [shape: f32[2,256,256], index: 0, kind: input, shape index: {}]
  %s1 = inlined_call_operand.vmem [shape: f32[256,64], index: 1, kind: input, shape index: {}]
  %s2 = inlined_call_operand.vmem [shape: f32[90,64,64], index: 2, kind: input, shape index: {}]
  %s3 = inlined_call_operand.vmem [shape: f32[90,64,64], index: 3, kind: input, shape index: {}]
  %s4 = inlined_call_operand.vmem [shape: f32[10,1,64], index: 4, kind: input, shape index: {}]
  %s5 = inlined_call_operand.vmem [shape: f32[10,1,64], index: 5, kind: input, shape index: {}]
  %s6 = inlined_call_operand.vmem [shape: f32[64,64], index: 6, kind: input, shape index: {}]
  %s7 = inlined_call_operand.vmem [shape: f32[64,128], index: 7, kind: input, shape index: {}]
  %s8 = inlined_call_operand.vmem [shape: f32[2,256,128], index: 8, kind: output, shape index: {}]
  %s9 = sld [smem:[#allocation0]]
  $region72: #{generator_forward.1} parent=0
    _
  %s11 = ssub.s32 1, %s9
  %s12 = scalar_select 0, %s11, %s9
  loop: start=0, step=1, limit=4
  $region2: #{generator_forward.1} parent=0 // loop_pre_header
    _
  $region3: #{generator_forward.1} parent=0 // loop_header
    %s14 = sphi 0, %s18
    %p15 = scmp.ge.s32.totalorder %s14, 4
    %s24 = sphi 0, %s26
    %s27 = sphi 0, %s24
    %s28 = sphi 0, %s27
    %s44 = sphi 0, %s28
    %s48 = sphi 0, %s48
    %s50 = sphi 0, %s48
    %s51 = sphi 0, %s50
    %s65 = sphi 0, %s51
    %s69 = sphi 0, %s69
    %s71 = sphi 0, %s69
    %s72 = sphi 0, %s71
    %s86 = sphi 0, %s72
    %s90 = sphi 0, %s90
    %s92 = sphi 0, %s90
    %s93 = sphi 0, %s92
    %s107 = sphi 0, %s93
    %s111 = sphi 0, %s111
    %s113 = sphi 0, %s111
    %s114 = sphi 0, %s113
    %s128 = sphi 0, %s114
    %s132 = sphi 0, %s132
    %s134 = sphi 0, %s132
    %s135 = sphi 0, %s134
    %s149 = sphi 0, %s135
    %s153 = sphi 0, %s153
    %s155 = sphi 0, %s153
    %s156 = sphi 0, %s155
    %s170 = sphi 0, %s156
    %s174 = sphi 0, %s174
    %s176 = sphi 0, %s174
    %s177 = sphi 0, %s176
    %s191 = sphi 0, %s177
    %s197 = sphi 0, %s199
    %s200 = sphi 0, %s197
    %s201 = sphi 0, %s200
    %s217 = sphi 0, %s201
  $region4: #{generator_forward.1} parent=0 // loop_header_branch
    %17 = sbr.rel (%p15) target = $region8
  $region5: #{generator_forward.1} parent=0 // loop_body
    %s19 = ssub.s32 %s14, 1
    %s20 = ssub.s32 %s14, 2
    %s21 = sadd.s32 %s14, 1
    %s22 = ssub.s32 %s14, %s21
    %p23 = scmp.eq.s32.totalorder %s22, 0
    %s25 = sadd.s32 %s24, 1
    %s26 = scalar_select %p23, %s24, %s25
    %p29 = pneg %p23
    %p30 = scmp.eq.s32.totalorder %s14, 1
    %p31 = por %p29, %p30
    %p32 = scmp.ne.s32.totalorder %s24, %s27
    %p33 = scmp.eq.s32.totalorder %s14, 0
    %p34 = por %p32, %p33
    %p35 = scmp.ne.s32.totalorder %s24, %s27
    %p36 = scmp.eq.s32.totalorder %s19, 1
    %p37 = por %p35, %p36
    %p38 = scmp.ne.s32.totalorder %s27, %s28
    %p39 = scmp.eq.s32.totalorder %s19, 0
    %p40 = por %p38, %p39
    %p41 = scmp.ne.s32.totalorder %s27, %s28
    %p42 = scmp.eq.s32.totalorder %s20, 1
    %p43 = por %p41, %p42
    %p45 = scmp.ne.s32.totalorder %s28, %s44
    %p46 = scmp.eq.s32.totalorder %s20, 0
    %p47 = por %p45, %p46
    %s49 = sadd.s32 %s48, 1
    %p52 = scmp.eq.s32.totalorder %s14, 1
    %p53 = scmp.ne.s32.totalorder %s48, %s50
    %p54 = scmp.eq.s32.totalorder %s14, 0
    %p55 = por %p53, %p54
    %p56 = scmp.ne.s32.totalorder %s48, %s50
    %p57 = scmp.eq.s32.totalorder %s19, 1
    %p58 = por %p56, %p57
    %p59 = scmp.ne.s32.totalorder %s50, %s51
    %p60 = scmp.eq.s32.totalorder %s19, 0
    %p61 = por %p59, %p60
    %p62 = scmp.ne.s32.totalorder %s50, %s51
    %p63 = scmp.eq.s32.totalorder %s20, 1
    %p64 = por %p62, %p63
    %p66 = scmp.ne.s32.totalorder %s51, %s65
    %p67 = scmp.eq.s32.totalorder %s20, 0
    %p68 = por %p66, %p67
    %s70 = sadd.s32 %s69, 1
    %p73 = scmp.eq.s32.totalorder %s14, 1
    %p74 = scmp.ne.s32.totalorder %s69, %s71
    %p75 = scmp.eq.s32.totalorder %s14, 0
    %p76 = por %p74, %p75
    %p77 = scmp.ne.s32.totalorder %s69, %s71
    %p78 = scmp.eq.s32.totalorder %s19, 1
    %p79 = por %p77, %p78
    %p80 = scmp.ne.s32.totalorder %s71, %s72
    %p81 = scmp.eq.s32.totalorder %s19, 0
    %p82 = por %p80, %p81
    %p83 = scmp.ne.s32.totalorder %s71, %s72
    %p84 = scmp.eq.s32.totalorder %s20, 1
    %p85 = por %p83, %p84
    %p87 = scmp.ne.s32.totalorder %s72, %s86
    %p88 = scmp.eq.s32.totalorder %s20, 0
    %p89 = por %p87, %p88
    %s91 = sadd.s32 %s90, 1
    %p94 = scmp.eq.s32.totalorder %s14, 1
    %p95 = scmp.ne.s32.totalorder %s90, %s92
    %p96 = scmp.eq.s32.totalorder %s14, 0
    %p97 = por %p95, %p96
    %p98 = scmp.ne.s32.totalorder %s90, %s92
    %p99 = scmp.eq.s32.totalorder %s19, 1
    %p100 = por %p98, %p99
    %p101 = scmp.ne.s32.totalorder %s92, %s93
    %p102 = scmp.eq.s32.totalorder %s19, 0
    %p103 = por %p101, %p102
    %p104 = scmp.ne.s32.totalorder %s92, %s93
    %p105 = scmp.eq.s32.totalorder %s20, 1
    %p106 = por %p104, %p105
    %p108 = scmp.ne.s32.totalorder %s93, %s107
    %p109 = scmp.eq.s32.totalorder %s20, 0
    %p110 = por %p108, %p109
    %s112 = sadd.s32 %s111, 1
    %p115 = scmp.eq.s32.totalorder %s14, 1
    %p116 = scmp.ne.s32.totalorder %s111, %s113
    %p117 = scmp.eq.s32.totalorder %s14, 0
    %p118 = por %p116, %p117
    %p119 = scmp.ne.s32.totalorder %s111, %s113
    %p120 = scmp.eq.s32.totalorder %s19, 1
    %p121 = por %p119, %p120
    %p122 = scmp.ne.s32.totalorder %s113, %s114
    %p123 = scmp.eq.s32.totalorder %s19, 0
    %p124 = por %p122, %p123
    %p125 = scmp.ne.s32.totalorder %s113, %s114
    %p126 = scmp.eq.s32.totalorder %s20, 1
    %p127 = por %p125, %p126
    %p129 = scmp.ne.s32.totalorder %s114, %s128
    %p130 = scmp.eq.s32.totalorder %s20, 0
    %p131 = por %p129, %p130
    %s133 = sadd.s32 %s132, 1
    %p136 = scmp.eq.s32.totalorder %s14, 1
    %p137 = scmp.ne.s32.totalorder %s132, %s134
    %p138 = scmp.eq.s32.totalorder %s14, 0
    %p139 = por %p137, %p138
    %p140 = scmp.ne.s32.totalorder %s132, %s134
    %p141 = scmp.eq.s32.totalorder %s19, 1
    %p142 = por %p140, %p141
    %p143 = scmp.ne.s32.totalorder %s134, %s135
    %p144 = scmp.eq.s32.totalorder %s19, 0
    %p145 = por %p143, %p144
    %p146 = scmp.ne.s32.totalorder %s134, %s135
    %p147 = scmp.eq.s32.totalorder %s20, 1
    %p148 = por %p146, %p147
    %p150 = scmp.ne.s32.totalorder %s135, %s149
    %p151 = scmp.eq.s32.totalorder %s20, 0
    %p152 = por %p150, %p151
    %s154 = sadd.s32 %s153, 1
    %p157 = scmp.eq.s32.totalorder %s14, 1
    %p158 = scmp.ne.s32.totalorder %s153, %s155
    %p159 = scmp.eq.s32.totalorder %s14, 0
    %p160 = por %p158, %p159
    %p161 = scmp.ne.s32.totalorder %s153, %s155
    %p162 = scmp.eq.s32.totalorder %s19, 1
    %p163 = por %p161, %p162
    %p164 = scmp.ne.s32.totalorder %s155, %s156
    %p165 = scmp.eq.s32.totalorder %s19, 0
    %p166 = por %p164, %p165
    %p167 = scmp.ne.s32.totalorder %s155, %s156
    %p168 = scmp.eq.s32.totalorder %s20, 1
    %p169 = por %p167, %p168
    %p171 = scmp.ne.s32.totalorder %s156, %s170
    %p172 = scmp.eq.s32.totalorder %s20, 0
    %p173 = por %p171, %p172
    %s175 = sadd.s32 %s174, 1
    %p178 = scmp.eq.s32.totalorder %s14, 1
    %p179 = scmp.ne.s32.totalorder %s174, %s176
    %p180 = scmp.eq.s32.totalorder %s14, 0
    %p181 = por %p179, %p180
    %p182 = scmp.ne.s32.totalorder %s174, %s176
    %p183 = scmp.eq.s32.totalorder %s19, 1
    %p184 = por %p182, %p183
    %p185 = scmp.ne.s32.totalorder %s176, %s177
    %p186 = scmp.eq.s32.totalorder %s19, 0
    %p187 = por %p185, %p186
    %p188 = scmp.ne.s32.totalorder %s176, %s177
    %p189 = scmp.eq.s32.totalorder %s20, 1
    %p190 = por %p188, %p189
    %p192 = scmp.ne.s32.totalorder %s177, %s191
    %p193 = scmp.eq.s32.totalorder %s20, 0
    %p194 = por %p192, %p193
    %s195 = ssub.s32 %s14, %s21
    %p196 = scmp.eq.s32.totalorder %s195, 0
    %s198 = sadd.s32 %s197, 1
    %s199 = scalar_select %p196, %s197, %s198
    %p202 = pneg %p196
    %p203 = scmp.eq.s32.totalorder %s14, 1
    %p204 = por %p202, %p203
    %p205 = scmp.ne.s32.totalorder %s197, %s200
    %p206 = scmp.eq.s32.totalorder %s14, 0
    %p207 = por %p205, %p206
    %p208 = scmp.ne.s32.totalorder %s197, %s200
    %p209 = scmp.eq.s32.totalorder %s19, 1
    %p210 = por %p208, %p209
    %p211 = scmp.ne.s32.totalorder %s200, %s201
    %p212 = scmp.eq.s32.totalorder %s19, 0
    %p213 = por %p211, %p212
    %p214 = scmp.ne.s32.totalorder %s200, %s201
    %p215 = scmp.eq.s32.totalorder %s20, 1
    %p216 = por %p214, %p215
    %p218 = scmp.ne.s32.totalorder %s201, %s217
    %p219 = scmp.eq.s32.totalorder %s20, 0
    %p220 = por %p218, %p219
    %p221 = scmp.le.s32.totalorder 1, %s14
    %p222 = scmp.lt.s32.totalorder %s14, 3
    %p223 = pnand %p221, %p222
    %p224 = pneg %p223
    // Predicated region
    $region9: #{generator_forward.1} parent=5 // pred_check
      _
    $region10: #{generator_forward.1} parent=5 // pred_check_branch
      %226 = sbr.rel (%p223) target = $region12
    $region11: #{generator_forward.1} parent=5 // pred_region
      %s227 = ssub.s32 %s14, 1
      // Predicated region
      $region13: #{generator_forward.1} parent=11 // pred_check
        %p228 = pneg %p61
      $region14: #{generator_forward.1} parent=11 // pred_check_branch
        %230 = sbr.rel (%p228) target = $region16
      $region15: #{generator_forward.1} parent=11 // pred_region
        _
      $region16: #{generator_forward.1} parent=11 // pred_fallthru
        _
      // Predicated region
      $region17: #{generator_forward.1} parent=11 // pred_check
        %p231 = pneg %p82
      $region18: #{generator_forward.1} parent=11 // pred_check_branch
        %233 = sbr.rel (%p231) target = $region20
      $region19: #{generator_forward.1} parent=11 // pred_region
        _
      $region20: #{generator_forward.1} parent=11 // pred_fallthru
        _
      // Predicated region
      $region21: #{generator_forward.1} parent=11 // pred_check
        %p234 = pneg %p103
      $region22: #{generator_forward.1} parent=11 // pred_check_branch
        %236 = sbr.rel (%p234) target = $region24
      $region23: #{generator_forward.1} parent=11 // pred_region
        _
      $region24: #{generator_forward.1} parent=11 // pred_fallthru
        _
      // Predicated region
      $region25: #{generator_forward.1} parent=11 // pred_check
        %p237 = pneg %p124
      $region26: #{generator_forward.1} parent=11 // pred_check_branch
        %239 = sbr.rel (%p237) target = $region28
      $region27: #{generator_forward.1} parent=11 // pred_region
        _
      $region28: #{generator_forward.1} parent=11 // pred_fallthru
        _
      // Predicated region
      $region29: #{generator_forward.1} parent=11 // pred_check
        %p240 = pneg %p145
      $region30: #{generator_forward.1} parent=11 // pred_check_branch
        %242 = sbr.rel (%p240) target = $region32
      $region31: #{generator_forward.1} parent=11 // pred_region
        _
      $region32: #{generator_forward.1} parent=11 // pred_fallthru
        _
      // Predicated region
      $region33: #{generator_forward.1} parent=11 // pred_check
        %p243 = pneg %p166
      $region34: #{generator_forward.1} parent=11 // pred_check_branch
        %245 = sbr.rel (%p243) target = $region36
      $region35: #{generator_forward.1} parent=11 // pred_region
        _
      $region36: #{generator_forward.1} parent=11 // pred_fallthru
        _
      // Predicated region
      $region37: #{generator_forward.1} parent=11 // pred_check
        %p246 = pneg %p187
      $region38: #{generator_forward.1} parent=11 // pred_check_branch
        %248 = sbr.rel (%p246) target = $region40
      $region39: #{generator_forward.1} parent=11 // pred_region
        _
      $region40: #{generator_forward.1} parent=11 // pred_fallthru
        _
    $region12: #{generator_forward.1} parent=5 // pred_fallthru
      _
    %p249 = scmp.lt.s32.totalorder %s14, 2
    // Predicated region
    $region41: #{generator_forward.1} parent=5 // pred_check
      %p250 = pneg %p249
    $region42: #{generator_forward.1} parent=5 // pred_check_branch
      %252 = sbr.rel (%p250) target = $region44
    $region43: #{generator_forward.1} parent=5 // pred_region
      // Predicated region
      $region45: #{generator_forward.1} parent=43 // pred_check
        %p253 = pneg %p34
      $region46: #{generator_forward.1} parent=43 // pred_check_branch
        %255 = sbr.rel (%p253) target = $region48
      $region47: #{generator_forward.1} parent=43 // pred_region
        %p256 = scmp.lt.s32.totalorder %s14, 1
        %s257 = scalar_select %p256, %s14, 1
        %s258 = smul.addr %s257, 64
        %s259 = smul.addr %s258, 8
        %s260 = scalar_lea.vmem %s0, %s259
      $region48: #{generator_forward.1} parent=43 // pred_fallthru
        _
    $region44: #{generator_forward.1} parent=5 // pred_fallthru
      _
    %p261 = scmp.le.s32.totalorder 1, %s14
    %p262 = scmp.lt.s32.totalorder %s14, 3
    %p263 = pnand %p261, %p262
    %p264 = pneg %p263
    // Predicated region
    $region49: #{generator_forward.1} parent=5 // pred_check
      _
    $region50: #{generator_forward.1} parent=5 // pred_check_branch
      %266 = sbr.rel (%p263) target = $region52
    $region51: #{generator_forward.1} parent=5 // pred_region
      %s267 = ssub.s32 %s14, 1
      %p268 = scmp.lt.s32.totalorder %s19, 1
      %s269 = scalar_select %p268, %s19, 1
      %s270 = smul.addr %s269, 64
      %s271 = smul.addr %s270, 8
      %s272 = scalar_lea.vmem %s0, %s271
      %p273 = pneg %p40
      %p274 = pneg %p37
      %p275 = pneg %p61
      %p276 = pneg %p58
      %p277 = pneg %p82
      %p278 = pneg %p79
      %p279 = pneg %p103
      %p280 = pneg %p100
      %p281 = pneg %p124
      %p282 = pneg %p121
      %p283 = pneg %p145
      %p284 = pneg %p142
      %p285 = pneg %p166
      %p286 = pneg %p163
      %p287 = pneg %p187
      %p288 = pneg %p184
      %p289 = pneg %p213
      %p290 = pneg %p210
      %p291 = scmp.lt.s32.totalorder %s19, 1
      %s292 = scalar_select %p291, %s19, 1
      %s293 = smul.addr %s292, 32
      %s294 = smul.addr %s293, 8
      %s295 = scalar_lea.vmem %s8, %s294
      %p296 = scmp.lt.s32.totalorder %s19, 1
      %s297 = scalar_select %p296, %s19, 1
      %s298 = smul.addr %s297, 64
      %s299 = smul.addr %s298, 8
      %s300 = scalar_lea.vmem %s0, %s299
      %p301 = scmp.lt.s32.totalorder %s19, 1
      %s302 = scalar_select %p301, %s19, 1
      %s303 = smul.addr %s302, 32
      %s304 = smul.addr %s303, 8
      %s305 = scalar_lea.vmem %s8, %s304
      %vm306 = vcmask 523264
      %307 = vst.msk [vmem:[#allocation2] sm:$0xff] %vm306, 0.0
      %308 = vst.msk [vmem:[#allocation2 + $0x8] sm:$0xff] %vm306, 0.0
      %309 = vst.msk [vmem:[#allocation2 + $0x10] sm:$0xff] %vm306, 0.0
      %310 = vst.msk [vmem:[#allocation2 + $0x18] sm:$0xff] %vm306, 0.0
      %311 = vst.msk [vmem:[#allocation2 + $0x20] sm:$0xff] %vm306, 0.0
      %312 = vst.msk [vmem:[#allocation2 + $0x28] sm:$0xff] %vm306, 0.0
      %313 = vst.msk [vmem:[#allocation2 + $0x30] sm:$0xff] %vm306, 0.0
      %314 = vst.msk [vmem:[#allocation2 + $0x38] sm:$0xff] %vm306, 0.0
      %315 = vst.msk [vmem:[#allocation2 + $0x40] sm:$0xff] %vm306, 0.0
      %316 = vst.msk [vmem:[#allocation2 + $0x48] sm:$0xff] %vm306, 0.0
      %317 = vst.msk [vmem:[#allocation2 + $0x50] sm:$0xff] %vm306, 0.0
      %318 = vst.msk [vmem:[#allocation2 + $0x58] sm:$0xff] %vm306, 0.0
      %319 = vst.msk [vmem:[#allocation2 + $0x60] sm:$0xff] %vm306, 0.0
      %320 = vst.msk [vmem:[#allocation2 + $0x68] sm:$0xff] %vm306, 0.0
      %321 = vst.msk [vmem:[#allocation2 + $0x70] sm:$0xff] %vm306, 0.0
      %322 = vst.msk [vmem:[#allocation2 + $0x78] sm:$0xff] %vm306, 0.0
      %323 = vst.msk [vmem:[#allocation2 + $0x80] sm:$0xff] %vm306, 0.0
      %324 = vst.msk [vmem:[#allocation2 + $0x88] sm:$0xff] %vm306, 0.0
      %325 = vst.msk [vmem:[#allocation2 + $0x90] sm:$0xff] %vm306, 0.0
      %326 = vst.msk [vmem:[#allocation2 + $0x98] sm:$0xff] %vm306, 0.0
      %327 = vst.msk [vmem:[#allocation2 + $0xa0] sm:$0xff] %vm306, 0.0
      %328 = vst.msk [vmem:[#allocation2 + $0xa8] sm:$0xff] %vm306, 0.0
      %329 = vst.msk [vmem:[#allocation2 + $0xb0] sm:$0xff] %vm306, 0.0
      %330 = vst.msk [vmem:[#allocation2 + $0xb8] sm:$0xff] %vm306, 0.0
      %331 = vst.msk [vmem:[#allocation2 + $0xc0] sm:$0xff] %vm306, 0.0
      %332 = vst.msk [vmem:[#allocation2 + $0xc8] sm:$0xff] %vm306, 0.0
      %333 = vst.msk [vmem:[#allocation2 + $0xd0] sm:$0xff] %vm306, 0.0
      %334 = vst.msk [vmem:[#allocation2 + $0xd8] sm:$0xff] %vm306, 0.0
      %335 = vst.msk [vmem:[#allocation2 + $0xe0] sm:$0xff] %vm306, 0.0
      %336 = vst.msk [vmem:[#allocation2 + $0xe8] sm:$0xff] %vm306, 0.0
      %337 = vst.msk [vmem:[#allocation2 + $0xf0] sm:$0xff] %vm306, 0.0
      %338 = vst.msk [vmem:[#allocation2 + $0xf8] sm:$0xff] %vm306, 0.0
      %339 = vst.msk [vmem:[#allocation2 + $0x100] sm:$0xff] %vm306, 0.0
      %340 = vst.msk [vmem:[#allocation2 + $0x108] sm:$0xff] %vm306, 0.0
      %341 = vst.msk [vmem:[#allocation2 + $0x110] sm:$0xff] %vm306, 0.0
      %342 = vst.msk [vmem:[#allocation2 + $0x118] sm:$0xff] %vm306, 0.0
      %343 = vst.msk [vmem:[#allocation2 + $0x120] sm:$0xff] %vm306, 0.0
      %344 = vst.msk [vmem:[#allocation2 + $0x128] sm:$0xff] %vm306, 0.0
      %345 = vst.msk [vmem:[#allocation3] sm:$0xff] %vm306, 0.0
      %346 = vst.msk [vmem:[#allocation3 + $0x8] sm:$0xff] %vm306, 0.0
      %347 = vst.msk [vmem:[#allocation3 + $0x10] sm:$0xff] %vm306, 0.0
      %348 = vst.msk [vmem:[#allocation3 + $0x18] sm:$0xff] %vm306, 0.0
      %349 = vst.msk [vmem:[#allocation3 + $0x20] sm:$0xff] %vm306, 0.0
      %350 = vst.msk [vmem:[#allocation3 + $0x28] sm:$0xff] %vm306, 0.0
      %351 = vst.msk [vmem:[#allocation3 + $0x30] sm:$0xff] %vm306, 0.0
      %352 = vst.msk [vmem:[#allocation3 + $0x38] sm:$0xff] %vm306, 0.0
      %353 = vst.msk [vmem:[#allocation3 + $0x40] sm:$0xff] %vm306, 0.0
      %354 = vst.msk [vmem:[#allocation3 + $0x48] sm:$0xff] %vm306, 0.0
      %355 = vst.msk [vmem:[#allocation3 + $0x50] sm:$0xff] %vm306, 0.0
      %356 = vst.msk [vmem:[#allocation3 + $0x58] sm:$0xff] %vm306, 0.0
      %357 = vst.msk [vmem:[#allocation3 + $0x60] sm:$0xff] %vm306, 0.0
      %358 = vst.msk [vmem:[#allocation3 + $0x68] sm:$0xff] %vm306, 0.0
      %359 = vst.msk [vmem:[#allocation3 + $0x70] sm:$0xff] %vm306, 0.0
      %360 = vst.msk [vmem:[#allocation3 + $0x78] sm:$0xff] %vm306, 0.0
      %361 = vst.msk [vmem:[#allocation3 + $0x80] sm:$0xff] %vm306, 0.0
      %362 = vst.msk [vmem:[#allocation3 + $0x88] sm:$0xff] %vm306, 0.0
      %363 = vst.msk [vmem:[#allocation3 + $0x90] sm:$0xff] %vm306, 0.0
      %364 = vst.msk [vmem:[#allocation3 + $0x98] sm:$0xff] %vm306, 0.0
      %365 = vst.msk [vmem:[#allocation3 + $0xa0] sm:$0xff] %vm306, 0.0
      %366 = vst.msk [vmem:[#allocation3 + $0xa8] sm:$0xff] %vm306, 0.0
      %367 = vst.msk [vmem:[#allocation3 + $0xb0] sm:$0xff] %vm306, 0.0
      %368 = vst.msk [vmem:[#allocation3 + $0xb8] sm:$0xff] %vm306, 0.0
      %369 = vst.msk [vmem:[#allocation3 + $0xc0] sm:$0xff] %vm306, 0.0
      %370 = vst.msk [vmem:[#allocation3 + $0xc8] sm:$0xff] %vm306, 0.0
      %371 = vst.msk [vmem:[#allocation3 + $0xd0] sm:$0xff] %vm306, 0.0
      %372 = vst.msk [vmem:[#allocation3 + $0xd8] sm:$0xff] %vm306, 0.0
      %373 = vst.msk [vmem:[#allocation3 + $0xe0] sm:$0xff] %vm306, 0.0
      %374 = vst.msk [vmem:[#allocation3 + $0xe8] sm:$0xff] %vm306, 0.0
      %375 = vst.msk [vmem:[#allocation3 + $0xf0] sm:$0xff] %vm306, 0.0
      %376 = vst.msk [vmem:[#allocation3 + $0xf8] sm:$0xff] %vm306, 0.0
      %377 = vst.msk [vmem:[#allocation3 + $0x100] sm:$0xff] %vm306, 0.0
      %378 = vst.msk [vmem:[#allocation3 + $0x108] sm:$0xff] %vm306, 0.0
      %379 = vst.msk [vmem:[#allocation3 + $0x110] sm:$0xff] %vm306, 0.0
      %380 = vst.msk [vmem:[#allocation3 + $0x118] sm:$0xff] %vm306, 0.0
      %381 = vst.msk [vmem:[#allocation3 + $0x120] sm:$0xff] %vm306, 0.0
      %382 = vst.msk [vmem:[#allocation3 + $0x128] sm:$0xff] %vm306, 0.0
      %v383 = vld [vmem:[%s300] sm:$0xff]
      %v384 = vld [vmem:[%s300 + $0x8] sm:$0xff]
      %v385 = vld [vmem:[%s300 + $0x10] sm:$0xff]
      %v386 = vld [vmem:[%s300 + $0x18] sm:$0xff]
      %v387 = vld [vmem:[%s300 + $0x20] sm:$0xff]
      %v388 = vld [vmem:[%s300 + $0x28] sm:$0xff]
      %v389 = vld [vmem:[%s300 + $0x30] sm:$0xff]
      %v390 = vld [vmem:[%s300 + $0x38] sm:$0xff]
      %v391 = vld [vmem:[%s300 + $0x40] sm:$0xff]
      %v392 = vld [vmem:[%s300 + $0x48] sm:$0xff]
      %v393 = vld [vmem:[%s300 + $0x50] sm:$0xff]
      %v394 = vld [vmem:[%s300 + $0x58] sm:$0xff]
      %v395 = vld [vmem:[%s300 + $0x60] sm:$0xff]
      %v396 = vld [vmem:[%s300 + $0x68] sm:$0xff]
      %v397 = vld [vmem:[%s300 + $0x70] sm:$0xff]
      %v398 = vld [vmem:[%s300 + $0x78] sm:$0xff]
      %v399 = vld [vmem:[%s300 + $0x80] sm:$0xff]
      %v400 = vld [vmem:[%s300 + $0x88] sm:$0xff]
      %v401 = vld [vmem:[%s300 + $0x90] sm:$0xff]
      %v402 = vld [vmem:[%s300 + $0x98] sm:$0xff]
      %v403 = vld [vmem:[%s300 + $0xa0] sm:$0xff]
      %v404 = vld [vmem:[%s300 + $0xa8] sm:$0xff]
      %v405 = vld [vmem:[%s300 + $0xb0] sm:$0xff]
      %v406 = vld [vmem:[%s300 + $0xb8] sm:$0xff]
      %v407 = vld [vmem:[%s300 + $0xc0] sm:$0xff]
      %v408 = vld [vmem:[%s300 + $0xc8] sm:$0xff]
      %v409 = vld [vmem:[%s300 + $0xd0] sm:$0xff]
      %v410 = vld [vmem:[%s300 + $0xd8] sm:$0xff]
      %v411 = vld [vmem:[%s300 + $0xe0] sm:$0xff]
      %v412 = vld [vmem:[%s300 + $0xe8] sm:$0xff]
      %v413 = vld [vmem:[%s300 + $0xf0] sm:$0xff]
      %v414 = vld [vmem:[%s300 + $0xf8] sm:$0xff]
      %v415 = vld [vmem:[%s300 + $0x100] sm:$0xff]
      %v416 = vld [vmem:[%s300 + $0x108] sm:$0xff]
      %v417 = vld [vmem:[%s300 + $0x110] sm:$0xff]
      %v418 = vld [vmem:[%s300 + $0x118] sm:$0xff]
      %v419 = vld [vmem:[%s300 + $0x120] sm:$0xff]
      %v420 = vld [vmem:[%s300 + $0x128] sm:$0xff]
      %v421 = vld [vmem:[%s300 + $0x130] sm:$0xff]
      %v422 = vld [vmem:[%s300 + $0x138] sm:$0xff]
      %v423 = vld [vmem:[%s300 + $0x140] sm:$0xff]
      %v424 = vld [vmem:[%s300 + $0x148] sm:$0xff]
      %v425 = vld [vmem:[%s300 + $0x150] sm:$0xff]
      %v426 = vld [vmem:[%s300 + $0x158] sm:$0xff]
      %v427 = vld [vmem:[%s300 + $0x160] sm:$0xff]
      %v428 = vld [vmem:[%s300 + $0x168] sm:$0xff]
      %v429 = vld [vmem:[%s300 + $0x170] sm:$0xff]
      %v430 = vld [vmem:[%s300 + $0x178] sm:$0xff]
      %v431 = vld [vmem:[%s300 + $0x180] sm:$0xff]
      %v432 = vld [vmem:[%s300 + $0x188] sm:$0xff]
      %v433 = vld [vmem:[%s300 + $0x190] sm:$0xff]
      %v434 = vld [vmem:[%s300 + $0x198] sm:$0xff]
      %v435 = vld [vmem:[%s300 + $0x1a0] sm:$0xff]
      %v436 = vld [vmem:[%s300 + $0x1a8] sm:$0xff]
      %v437 = vld [vmem:[%s300 + $0x1b0] sm:$0xff]
      %v438 = vld [vmem:[%s300 + $0x1b8] sm:$0xff]
      %v439 = vld [vmem:[%s300 + $0x1c0] sm:$0xff]
      %v440 = vld [vmem:[%s300 + $0x1c8] sm:$0xff]
      %v441 = vld [vmem:[%s300 + $0x1d0] sm:$0xff]
      %v442 = vld [vmem:[%s300 + $0x1d8] sm:$0xff]
      %v443 = vld [vmem:[%s300 + $0x1e0] sm:$0xff]
      %v444 = vld [vmem:[%s300 + $0x1e8] sm:$0xff]
      %v445 = vld [vmem:[%s300 + $0x1f0] sm:$0xff]
      %v446 = vld [vmem:[%s300 + $0x1f8] sm:$0xff]
      %v447 = vld [vmem:[%s1] sm:$0xff]
      %v448 = vld [vmem:[%s1 + $0x8] sm:$0xff]
      %v449 = vld [vmem:[%s1 + $0x10] sm:$0xff]
      %v450 = vld [vmem:[%s1 + $0x18] sm:$0xff]
      %v451 = vld [vmem:[%s1 + $0x20] sm:$0xff]
      %v452 = vld [vmem:[%s1 + $0x28] sm:$0xff]
      %v453 = vld [vmem:[%s1 + $0x30] sm:$0xff]
      %v454 = vld [vmem:[%s1 + $0x38] sm:$0xff]
      %v455 = vld [vmem:[%s1 + $0x40] sm:$0xff]
      %v456 = vld [vmem:[%s1 + $0x48] sm:$0xff]
      %v457 = vld [vmem:[%s1 + $0x50] sm:$0xff]
      %v458 = vld [vmem:[%s1 + $0x58] sm:$0xff]
      %v459 = vld [vmem:[%s1 + $0x60] sm:$0xff]
      %v460 = vld [vmem:[%s1 + $0x68] sm:$0xff]
      %v461 = vld [vmem:[%s1 + $0x70] sm:$0xff]
      %v462 = vld [vmem:[%s1 + $0x78] sm:$0xff]
      %v463 = vld [vmem:[%s1 + $0x80] sm:$0xff]
      %v464 = vld [vmem:[%s1 + $0x88] sm:$0xff]
      %v465 = vld [vmem:[%s1 + $0x90] sm:$0xff]
      %v466 = vld [vmem:[%s1 + $0x98] sm:$0xff]
      %v467 = vld [vmem:[%s1 + $0xa0] sm:$0xff]
      %v468 = vld [vmem:[%s1 + $0xa8] sm:$0xff]
      %v469 = vld [vmem:[%s1 + $0xb0] sm:$0xff]
      %v470 = vld [vmem:[%s1 + $0xb8] sm:$0xff]
      %v471 = vld [vmem:[%s1 + $0xc0] sm:$0xff]
      %v472 = vld [vmem:[%s1 + $0xc8] sm:$0xff]
      %v473 = vld [vmem:[%s1 + $0xd0] sm:$0xff]
      %v474 = vld [vmem:[%s1 + $0xd8] sm:$0xff]
      %v475 = vld [vmem:[%s1 + $0xe0] sm:$0xff]
      %v476 = vld [vmem:[%s1 + $0xe8] sm:$0xff]
      %v477 = vld [vmem:[%s1 + $0xf0] sm:$0xff]
      %v478 = vld [vmem:[%s1 + $0xf8] sm:$0xff]
      %479 = vmatpush.msra.mxu0 %v462
      %480 = vmatpush.msra.mxu0 %v461
      %481 = vmatpush.msra.mxu0 %v460
      %482 = vmatpush.msra.mxu0 %v459
      %483 = vmatpush.msra.mxu0 %v458
      %484 = vmatpush.msra.mxu0 %v457
      %485 = vmatpush.msra.mxu0 %v456
      %486 = vmatpush.msra.mxu0 %v455
      %487 = vmatpush.msra.mxu0 %v454
      %488 = vmatpush.msra.mxu0 %v453
      %489 = vmatpush.msra.mxu0 %v452
      %490 = vmatpush.msra.mxu0 %v451
      %491 = vmatpush.msra.mxu0 %v450
      %492 = vmatpush.msra.mxu0 %v449
      %493 = vmatpush.msra.mxu0 %v448
      %494 = vmatpush.msra.mxu0 %v447
      %495 = vmatmul.f32.gmra.mxu0 %v383
      %v496 = vpop.f32.mrf.mxu0
      %v497 = vadd.f32 0.0, %v496
      %498 = vmatmul.f32.gmra.mxu0 %v385
      %v499 = vpop.f32.mrf.mxu0
      %v500 = vadd.f32 0.0, %v499
      %501 = vmatmul.f32.gmra.mxu0 %v387
      %v502 = vpop.f32.mrf.mxu0
      %v503 = vadd.f32 0.0, %v502
      %504 = vmatmul.f32.gmra.mxu0 %v389
      %v505 = vpop.f32.mrf.mxu0
      %v506 = vadd.f32 0.0, %v505
      %507 = vmatmul.f32.gmra.mxu0 %v391
      %v508 = vpop.f32.mrf.mxu0
      %v509 = vadd.f32 0.0, %v508
      %510 = vmatmul.f32.gmra.mxu0 %v393
      %v511 = vpop.f32.mrf.mxu0
      %v512 = vadd.f32 0.0, %v511
      %513 = vmatmul.f32.gmra.mxu0 %v395
      %v514 = vpop.f32.mrf.mxu0
      %v515 = vadd.f32 0.0, %v514
      %516 = vmatmul.f32.gmra.mxu0 %v397
      %v517 = vpop.f32.mrf.mxu0
      %v518 = vadd.f32 0.0, %v517
      %519 = vmatmul.f32.gmra.mxu0 %v399
      %v520 = vpop.f32.mrf.mxu0
      %v521 = vadd.f32 0.0, %v520
      %522 = vmatmul.f32.gmra.mxu0 %v401
      %v523 = vpop.f32.mrf.mxu0
      %v524 = vadd.f32 0.0, %v523
      %525 = vmatmul.f32.gmra.mxu0 %v403
      %v526 = vpop.f32.mrf.mxu0
      %v527 = vadd.f32 0.0, %v526
      %528 = vmatmul.f32.gmra.mxu0 %v405
      %v529 = vpop.f32.mrf.mxu0
      %v530 = vadd.f32 0.0, %v529
      %531 = vmatmul.f32.gmra.mxu0 %v407
      %v532 = vpop.f32.mrf.mxu0
      %v533 = vadd.f32 0.0, %v532
      %534 = vmatmul.f32.gmra.mxu0 %v409
      %v535 = vpop.f32.mrf.mxu0
      %v536 = vadd.f32 0.0, %v535
      %537 = vmatmul.f32.gmra.mxu0 %v411
      %v538 = vpop.f32.mrf.mxu0
      %v539 = vadd.f32 0.0, %v538
      %540 = vmatmul.f32.gmra.mxu0 %v413
      %v541 = vpop.f32.mrf.mxu0
      %v542 = vadd.f32 0.0, %v541
      %543 = vmatmul.f32.gmra.mxu0 %v415
      %v544 = vpop.f32.mrf.mxu0
      %v545 = vadd.f32 0.0, %v544
      %546 = vmatmul.f32.gmra.mxu0 %v417
      %v547 = vpop.f32.mrf.mxu0
      %v548 = vadd.f32 0.0, %v547
      %549 = vmatmul.f32.gmra.mxu0 %v419
      %v550 = vpop.f32.mrf.mxu0
      %v551 = vadd.f32 0.0, %v550
      %552 = vmatmul.f32.gmra.mxu0 %v421
      %v553 = vpop.f32.mrf.mxu0
      %v554 = vadd.f32 0.0, %v553
      %555 = vmatmul.f32.gmra.mxu0 %v423
      %v556 = vpop.f32.mrf.mxu0
      %v557 = vadd.f32 0.0, %v556
      %558 = vmatmul.f32.gmra.mxu0 %v425
      %v559 = vpop.f32.mrf.mxu0
      %v560 = vadd.f32 0.0, %v559
      %561 = vmatmul.f32.gmra.mxu0 %v427
      %v562 = vpop.f32.mrf.mxu0
      %v563 = vadd.f32 0.0, %v562
      %564 = vmatmul.f32.gmra.mxu0 %v429
      %v565 = vpop.f32.mrf.mxu0
      %v566 = vadd.f32 0.0, %v565
      %567 = vmatmul.f32.gmra.mxu0 %v431
      %v568 = vpop.f32.mrf.mxu0
      %v569 = vadd.f32 0.0, %v568
      %570 = vmatmul.f32.gmra.mxu0 %v433
      %v571 = vpop.f32.mrf.mxu0
      %v572 = vadd.f32 0.0, %v571
      %573 = vmatmul.f32.gmra.mxu0 %v435
      %v574 = vpop.f32.mrf.mxu0
      %v575 = vadd.f32 0.0, %v574
      %576 = vmatmul.f32.gmra.mxu0 %v437
      %v577 = vpop.f32.mrf.mxu0
      %v578 = vadd.f32 0.0, %v577
      %579 = vmatmul.f32.gmra.mxu0 %v439
      %v580 = vpop.f32.mrf.mxu0
      %v581 = vadd.f32 0.0, %v580
      %582 = vmatmul.f32.gmra.mxu0 %v441
      %v583 = vpop.f32.mrf.mxu0
      %v584 = vadd.f32 0.0, %v583
      %585 = vmatmul.f32.gmra.mxu0 %v443
      %v586 = vpop.f32.mrf.mxu0
      %v587 = vadd.f32 0.0, %v586
      %588 = vmatmul.f32.gmra.mxu0 %v445
      %v589 = vpop.f32.mrf.mxu0
      %v590 = vadd.f32 0.0, %v589
      %591 = vdwg.mxu0
      %592 = vmatpush.msra.mxu0 %v478
      %593 = vmatpush.msra.mxu0 %v477
      %594 = vmatpush.msra.mxu0 %v476
      %595 = vmatpush.msra.mxu0 %v475
      %596 = vmatpush.msra.mxu0 %v474
      %597 = vmatpush.msra.mxu0 %v473
      %598 = vmatpush.msra.mxu0 %v472
      %599 = vmatpush.msra.mxu0 %v471
      %600 = vmatpush.msra.mxu0 %v470
      %601 = vmatpush.msra.mxu0 %v469
      %602 = vmatpush.msra.mxu0 %v468
      %603 = vmatpush.msra.mxu0 %v467
      %604 = vmatpush.msra.mxu0 %v466
      %605 = vmatpush.msra.mxu0 %v465
      %606 = vmatpush.msra.mxu0 %v464
      %607 = vmatpush.msra.mxu0 %v463
      %608 = vmatmul.f32.gmra.mxu0 %v384
      %v609 = vpop.f32.mrf.mxu0
      %v610 = vadd.f32 %v497, %v609
      %611 = vmatmul.f32.gmra.mxu0 %v386
      %v612 = vpop.f32.mrf.mxu0
      %v613 = vadd.f32 %v500, %v612
      %614 = vmatmul.f32.gmra.mxu0 %v388
      %v615 = vpop.f32.mrf.mxu0
      %v616 = vadd.f32 %v503, %v615
      %617 = vmatmul.f32.gmra.mxu0 %v390
      %v618 = vpop.f32.mrf.mxu0
      %v619 = vadd.f32 %v506, %v618
      %620 = vmatmul.f32.gmra.mxu0 %v392
      %v621 = vpop.f32.mrf.mxu0
      %v622 = vadd.f32 %v509, %v621
      %623 = vmatmul.f32.gmra.mxu0 %v394
      %v624 = vpop.f32.mrf.mxu0
      %v625 = vadd.f32 %v512, %v624
      %626 = vmatmul.f32.gmra.mxu0 %v396
      %v627 = vpop.f32.mrf.mxu0
      %v628 = vadd.f32 %v515, %v627
      %629 = vmatmul.f32.gmra.mxu0 %v398
      %v630 = vpop.f32.mrf.mxu0
      %v631 = vadd.f32 %v518, %v630
      %632 = vmatmul.f32.gmra.mxu0 %v400
      %v633 = vpop.f32.mrf.mxu0
      %v634 = vadd.f32 %v521, %v633
      %635 = vmatmul.f32.gmra.mxu0 %v402
      %v636 = vpop.f32.mrf.mxu0
      %v637 = vadd.f32 %v524, %v636
      %638 = vmatmul.f32.gmra.mxu0 %v404
      %v639 = vpop.f32.mrf.mxu0
      %v640 = vadd.f32 %v527, %v639
      %641 = vmatmul.f32.gmra.mxu0 %v406
      %v642 = vpop.f32.mrf.mxu0
      %v643 = vadd.f32 %v530, %v642
      %644 = vmatmul.f32.gmra.mxu0 %v408
      %v645 = vpop.f32.mrf.mxu0
      %v646 = vadd.f32 %v533, %v645
      %647 = vmatmul.f32.gmra.mxu0 %v410
      %v648 = vpop.f32.mrf.mxu0
      %v649 = vadd.f32 %v536, %v648
      %650 = vmatmul.f32.gmra.mxu0 %v412
      %v651 = vpop.f32.mrf.mxu0
      %v652 = vadd.f32 %v539, %v651
      %653 = vmatmul.f32.gmra.mxu0 %v414
      %v654 = vpop.f32.mrf.mxu0
      %v655 = vadd.f32 %v542, %v654
      %656 = vmatmul.f32.gmra.mxu0 %v416
      %v657 = vpop.f32.mrf.mxu0
      %v658 = vadd.f32 %v545, %v657
      %659 = vmatmul.f32.gmra.mxu0 %v418
      %v660 = vpop.f32.mrf.mxu0
      %v661 = vadd.f32 %v548, %v660
      %662 = vmatmul.f32.gmra.mxu0 %v420
      %v663 = vpop.f32.mrf.mxu0
      %v664 = vadd.f32 %v551, %v663
      %665 = vmatmul.f32.gmra.mxu0 %v422
      %v666 = vpop.f32.mrf.mxu0
      %v667 = vadd.f32 %v554, %v666
      %668 = vmatmul.f32.gmra.mxu0 %v424
      %v669 = vpop.f32.mrf.mxu0
      %v670 = vadd.f32 %v557, %v669
      %671 = vmatmul.f32.gmra.mxu0 %v426
      %v672 = vpop.f32.mrf.mxu0
      %v673 = vadd.f32 %v560, %v672
      %674 = vmatmul.f32.gmra.mxu0 %v428
      %v675 = vpop.f32.mrf.mxu0
      %v676 = vadd.f32 %v563, %v675
      %677 = vmatmul.f32.gmra.mxu0 %v430
      %v678 = vpop.f32.mrf.mxu0
      %v679 = vadd.f32 %v566, %v678
      %680 = vmatmul.f32.gmra.mxu0 %v432
      %v681 = vpop.f32.mrf.mxu0
      %v682 = vadd.f32 %v569, %v681
      %683 = vmatmul.f32.gmra.mxu0 %v434
      %v684 = vpop.f32.mrf.mxu0
      %v685 = vadd.f32 %v572, %v684
      %686 = vmatmul.f32.gmra.mxu0 %v436
      %v687 = vpop.f32.mrf.mxu0
      %v688 = vadd.f32 %v575, %v687
      %689 = vmatmul.f32.gmra.mxu0 %v438
      %v690 = vpop.f32.mrf.mxu0
      %v691 = vadd.f32 %v578, %v690
      %692 = vmatmul.f32.gmra.mxu0 %v440
      %v693 = vpop.f32.mrf.mxu0
      %v694 = vadd.f32 %v581, %v693
      %695 = vmatmul.f32.gmra.mxu0 %v442
      %v696 = vpop.f32.mrf.mxu0
      %v697 = vadd.f32 %v584, %v696
      %698 = vmatmul.f32.gmra.mxu0 %v444
      %v699 = vpop.f32.mrf.mxu0
      %v700 = vadd.f32 %v587, %v699
      %701 = vmatmul.f32.gmra.mxu0 %v446
      %v702 = vpop.f32.mrf.mxu0
      %v703 = vadd.f32 %v590, %v702
      %704 = vdwg.mxu0
      %v705 = vmax.f32 %v610, 0.0
      %v706 = vmax.f32 %v613, 0.0
      %v707 = vmax.f32 %v616, 0.0
      %v708 = vmax.f32 %v619, 0.0
      %v709 = vmax.f32 %v622, 0.0
      %v710 = vmax.f32 %v625, 0.0
      %v711 = vmax.f32 %v628, 0.0
      %v712 = vmax.f32 %v631, 0.0
      %v713 = vmax.f32 %v634, 0.0
      %v714 = vmax.f32 %v637, 0.0
      %v715 = vmax.f32 %v640, 0.0
      %v716 = vmax.f32 %v643, 0.0
      %v717 = vmax.f32 %v646, 0.0
      %v718 = vmax.f32 %v649, 0.0
      %v719 = vmax.f32 %v652, 0.0
      %v720 = vmax.f32 %v655, 0.0
      %v721 = vmax.f32 %v658, 0.0
      %v722 = vmax.f32 %v661, 0.0
      %v723 = vmax.f32 %v664, 0.0
      %v724 = vmax.f32 %v667, 0.0
      %v725 = vmax.f32 %v670, 0.0
      %v726 = vmax.f32 %v673, 0.0
      %v727 = vmax.f32 %v676, 0.0
      %v728 = vmax.f32 %v679, 0.0
      %v729 = vmax.f32 %v682, 0.0
      %v730 = vmax.f32 %v685, 0.0
      %v731 = vmax.f32 %v688, 0.0
      %v732 = vmax.f32 %v691, 0.0
      %v733 = vmax.f32 %v694, 0.0
      %v734 = vmax.f32 %v697, 0.0
      %v735 = vmax.f32 %v700, 0.0
      %v736 = vmax.f32 %v703, 0.0
      %737 = vst.msk [vmem:[#allocation2 + $0x18] sm:$0xff] %vm306, %v705
      %738 = vst.msk [vmem:[#allocation2 + $0x20] sm:$0xff] %vm306, %v706
      %739 = vst.msk [vmem:[#allocation2 + $0x28] sm:$0xff] %vm306, %v707
      %740 = vst.msk [vmem:[#allocation2 + $0x30] sm:$0xff] %vm306, %v708
      %741 = vst.msk [vmem:[#allocation2 + $0x38] sm:$0xff] %vm306, %v709
      %742 = vst.msk [vmem:[#allocation2 + $0x40] sm:$0xff] %vm306, %v710
      %743 = vst.msk [vmem:[#allocation2 + $0x48] sm:$0xff] %vm306, %v711
      %744 = vst.msk [vmem:[#allocation2 + $0x50] sm:$0xff] %vm306, %v712
      %745 = vst.msk [vmem:[#allocation2 + $0x58] sm:$0xff] %vm306, %v713
      %746 = vst.msk [vmem:[#allocation2 + $0x60] sm:$0xff] %vm306, %v714
      %747 = vst.msk [vmem:[#allocation2 + $0x68] sm:$0xff] %vm306, %v715
      %748 = vst.msk [vmem:[#allocation2 + $0x70] sm:$0xff] %vm306, %v716
      %749 = vst.msk [vmem:[#allocation2 + $0x78] sm:$0xff] %vm306, %v717
      %750 = vst.msk [vmem:[#allocation2 + $0x80] sm:$0xff] %vm306, %v718
      %751 = vst.msk [vmem:[#allocation2 + $0x88] sm:$0xff] %vm306, %v719
      %752 = vst.msk [vmem:[#allocation2 + $0x90] sm:$0xff] %vm306, %v720
      %753 = vst.msk [vmem:[#allocation2 + $0x98] sm:$0xff] %vm306, %v721
      %754 = vst.msk [vmem:[#allocation2 + $0xa0] sm:$0xff] %vm306, %v722
      %755 = vst.msk [vmem:[#allocation2 + $0xa8] sm:$0xff] %vm306, %v723
      %756 = vst.msk [vmem:[#allocation2 + $0xb0] sm:$0xff] %vm306, %v724
      %757 = vst.msk [vmem:[#allocation2 + $0xb8] sm:$0xff] %vm306, %v725
      %758 = vst.msk [vmem:[#allocation2 + $0xc0] sm:$0xff] %vm306, %v726
      %759 = vst.msk [vmem:[#allocation2 + $0xc8] sm:$0xff] %vm306, %v727
      %760 = vst.msk [vmem:[#allocation2 + $0xd0] sm:$0xff] %vm306, %v728
      %761 = vst.msk [vmem:[#allocation2 + $0xd8] sm:$0xff] %vm306, %v729
      %762 = vst.msk [vmem:[#allocation2 + $0xe0] sm:$0xff] %vm306, %v730
      %763 = vst.msk [vmem:[#allocation2 + $0xe8] sm:$0xff] %vm306, %v731
      %764 = vst.msk [vmem:[#allocation2 + $0xf0] sm:$0xff] %vm306, %v732
      %765 = vst.msk [vmem:[#allocation2 + $0xf8] sm:$0xff] %vm306, %v733
      %766 = vst.msk [vmem:[#allocation2 + $0x100] sm:$0xff] %vm306, %v734
      %767 = vst.msk [vmem:[#allocation2 + $0x108] sm:$0xff] %vm306, %v735
      %768 = vst.msk [vmem:[#allocation2 + $0x110] sm:$0xff] %vm306, %v736
      %v769 = vlaneseq
      %v770 = vshrl.u32 %v769, 7
      %v771 = vadd.s32 %v770, 8
      %v772 = vadd.s32 %v770, 16
      %v773 = vadd.s32 %v770, 24
      %v774 = vadd.s32 %v770, 32
      %v775 = vadd.s32 %v770, 40
      %v776 = vadd.s32 %v770, 48
      %v777 = vadd.s32 %v770, 56
      %v778 = vadd.s32 %v770, 64
      %v779 = vadd.s32 %v770, 72
      %v780 = vadd.s32 %v770, 80
      %v781 = vadd.s32 %v770, 88
      %v782 = vadd.s32 %v770, 96
      %v783 = vadd.s32 %v770, 104
      %v784 = vadd.s32 %v770, 112
      %v785 = vadd.s32 %v770, 120
      %v786 = vadd.s32 %v770, 128
      %v787 = vadd.s32 %v770, 136
      %v788 = vadd.s32 %v770, 144
      %v789 = vadd.s32 %v770, 152
      %v790 = vadd.s32 %v770, 160
      %v791 = vadd.s32 %v770, 168
      %v792 = vadd.s32 %v770, 176
      %v793 = vadd.s32 %v770, 184
      %v794 = vadd.s32 %v770, 192
      %v795 = vadd.s32 %v770, 200
      %v796 = vadd.s32 %v770, 208
      %v797 = vadd.s32 %v770, 216
      %v798 = vadd.s32 %v770, 224
      %v799 = vadd.s32 %v770, 232
      %v800 = vadd.s32 %v770, 240
      %v801 = vadd.s32 %v770, 248
      %vm802 = vcmp.lt.s32.totalorder %v770, 0
      %v803 = vsub.s32 0, %v770
      %v804 = vsel %vm802, %v803, %v770
      %v805 = vshrl.u32 %v804, 4
      %v806 = vand.u32 %v804, 15
      %v807 = vsub.s32 0, %v806
      %v808 = vsel %vm802, %v807, %v806
      %vm809 = vcmp.lt.s32.totalorder %v771, 0
      %v810 = vsub.s32 0, %v771
      %v811 = vsel %vm809, %v810, %v771
      %v812 = vshrl.u32 %v811, 4
      %v813 = vand.u32 %v811, 15
      %v814 = vsub.s32 0, %v813
      %v815 = vsel %vm809, %v814, %v813
      %vm816 = vcmp.lt.s32.totalorder %v772, 0
      %v817 = vsub.s32 0, %v772
      %v818 = vsel %vm816, %v817, %v772
      %v819 = vshrl.u32 %v818, 4
      %v820 = vand.u32 %v818, 15
      %v821 = vsub.s32 0, %v820
      %v822 = vsel %vm816, %v821, %v820
      %vm823 = vcmp.lt.s32.totalorder %v773, 0
      %v824 = vsub.s32 0, %v773
      %v825 = vsel %vm823, %v824, %v773
      %v826 = vshrl.u32 %v825, 4
      %v827 = vand.u32 %v825, 15
      %v828 = vsub.s32 0, %v827
      %v829 = vsel %vm823, %v828, %v827
      %vm830 = vcmp.lt.s32.totalorder %v774, 0
      %v831 = vsub.s32 0, %v774
      %v832 = vsel %vm830, %v831, %v774
      %v833 = vshrl.u32 %v832, 4
      %v834 = vand.u32 %v832, 15
      %v835 = vsub.s32 0, %v834
      %v836 = vsel %vm830, %v835, %v834
      %vm837 = vcmp.lt.s32.totalorder %v775, 0
      %v838 = vsub.s32 0, %v775
      %v839 = vsel %vm837, %v838, %v775
      %v840 = vshrl.u32 %v839, 4
      %v841 = vand.u32 %v839, 15
      %v842 = vsub.s32 0, %v841
      %v843 = vsel %vm837, %v842, %v841
      %vm844 = vcmp.lt.s32.totalorder %v776, 0
      %v845 = vsub.s32 0, %v776
      %v846 = vsel %vm844, %v845, %v776
      %v847 = vshrl.u32 %v846, 4
      %v848 = vand.u32 %v846, 15
      %v849 = vsub.s32 0, %v848
      %v850 = vsel %vm844, %v849, %v848
      %vm851 = vcmp.lt.s32.totalorder %v777, 0
      %v852 = vsub.s32 0, %v777
      %v853 = vsel %vm851, %v852, %v777
      %v854 = vshrl.u32 %v853, 4
      %v855 = vand.u32 %v853, 15
      %v856 = vsub.s32 0, %v855
      %v857 = vsel %vm851, %v856, %v855
      %vm858 = vcmp.lt.s32.totalorder %v778, 0
      %v859 = vsub.s32 0, %v778
      %v860 = vsel %vm858, %v859, %v778
      %v861 = vshrl.u32 %v860, 4
      %v862 = vand.u32 %v860, 15
      %v863 = vsub.s32 0, %v862
      %v864 = vsel %vm858, %v863, %v862
      %vm865 = vcmp.lt.s32.totalorder %v779, 0
      %v866 = vsub.s32 0, %v779
      %v867 = vsel %vm865, %v866, %v779
      %v868 = vshrl.u32 %v867, 4
      %v869 = vand.u32 %v867, 15
      %v870 = vsub.s32 0, %v869
      %v871 = vsel %vm865, %v870, %v869
      %vm872 = vcmp.lt.s32.totalorder %v780, 0
      %v873 = vsub.s32 0, %v780
      %v874 = vsel %vm872, %v873, %v780
      %v875 = vshrl.u32 %v874, 4
      %v876 = vand.u32 %v874, 15
      %v877 = vsub.s32 0, %v876
      %v878 = vsel %vm872, %v877, %v876
      %vm879 = vcmp.lt.s32.totalorder %v781, 0
      %v880 = vsub.s32 0, %v781
      %v881 = vsel %vm879, %v880, %v781
      %v882 = vshrl.u32 %v881, 4
      %v883 = vand.u32 %v881, 15
      %v884 = vsub.s32 0, %v883
      %v885 = vsel %vm879, %v884, %v883
      %vm886 = vcmp.lt.s32.totalorder %v782, 0
      %v887 = vsub.s32 0, %v782
      %v888 = vsel %vm886, %v887, %v782
      %v889 = vshrl.u32 %v888, 4
      %v890 = vand.u32 %v888, 15
      %v891 = vsub.s32 0, %v890
      %v892 = vsel %vm886, %v891, %v890
      %vm893 = vcmp.lt.s32.totalorder %v783, 0
      %v894 = vsub.s32 0, %v783
      %v895 = vsel %vm893, %v894, %v783
      %v896 = vshrl.u32 %v895, 4
      %v897 = vand.u32 %v895, 15
      %v898 = vsub.s32 0, %v897
      %v899 = vsel %vm893, %v898, %v897
      %vm900 = vcmp.lt.s32.totalorder %v784, 0
      %v901 = vsub.s32 0, %v784
      %v902 = vsel %vm900, %v901, %v784
      %v903 = vshrl.u32 %v902, 4
      %v904 = vand.u32 %v902, 15
      %v905 = vsub.s32 0, %v904
      %v906 = vsel %vm900, %v905, %v904
      %vm907 = vcmp.lt.s32.totalorder %v785, 0
      %v908 = vsub.s32 0, %v785
      %v909 = vsel %vm907, %v908, %v785
      %v910 = vshrl.u32 %v909, 4
      %v911 = vand.u32 %v909, 15
      %v912 = vsub.s32 0, %v911
      %v913 = vsel %vm907, %v912, %v911
      %vm914 = vcmp.lt.s32.totalorder %v786, 0
      %v915 = vsub.s32 0, %v786
      %v916 = vsel %vm914, %v915, %v786
      %v917 = vshrl.u32 %v916, 4
      %v918 = vand.u32 %v916, 15
      %v919 = vsub.s32 0, %v918
      %v920 = vsel %vm914, %v919, %v918
      %vm921 = vcmp.lt.s32.totalorder %v787, 0
      %v922 = vsub.s32 0, %v787
      %v923 = vsel %vm921, %v922, %v787
      %v924 = vshrl.u32 %v923, 4
      %v925 = vand.u32 %v923, 15
      %v926 = vsub.s32 0, %v925
      %v927 = vsel %vm921, %v926, %v925
      %vm928 = vcmp.lt.s32.totalorder %v788, 0
      %v929 = vsub.s32 0, %v788
      %v930 = vsel %vm928, %v929, %v788
      %v931 = vshrl.u32 %v930, 4
      %v932 = vand.u32 %v930, 15
      %v933 = vsub.s32 0, %v932
      %v934 = vsel %vm928, %v933, %v932
      %vm935 = vcmp.lt.s32.totalorder %v789, 0
      %v936 = vsub.s32 0, %v789
      %v937 = vsel %vm935, %v936, %v789
      %v938 = vshrl.u32 %v937, 4
      %v939 = vand.u32 %v937, 15
      %v940 = vsub.s32 0, %v939
      %v941 = vsel %vm935, %v940, %v939
      %vm942 = vcmp.lt.s32.totalorder %v790, 0
      %v943 = vsub.s32 0, %v790
      %v944 = vsel %vm942, %v943, %v790
      %v945 = vshrl.u32 %v944, 4
      %v946 = vand.u32 %v944, 15
      %v947 = vsub.s32 0, %v946
      %v948 = vsel %vm942, %v947, %v946
      %vm949 = vcmp.lt.s32.totalorder %v791, 0
      %v950 = vsub.s32 0, %v791
      %v951 = vsel %vm949, %v950, %v791
      %v952 = vshrl.u32 %v951, 4
      %v953 = vand.u32 %v951, 15
      %v954 = vsub.s32 0, %v953
      %v955 = vsel %vm949, %v954, %v953
      %vm956 = vcmp.lt.s32.totalorder %v792, 0
      %v957 = vsub.s32 0, %v792
      %v958 = vsel %vm956, %v957, %v792
      %v959 = vshrl.u32 %v958, 4
      %v960 = vand.u32 %v958, 15
      %v961 = vsub.s32 0, %v960
      %v962 = vsel %vm956, %v961, %v960
      %vm963 = vcmp.lt.s32.totalorder %v793, 0
      %v964 = vsub.s32 0, %v793
      %v965 = vsel %vm963, %v964, %v793
      %v966 = vshrl.u32 %v965, 4
      %v967 = vand.u32 %v965, 15
      %v968 = vsub.s32 0, %v967
      %v969 = vsel %vm963, %v968, %v967
      %vm970 = vcmp.lt.s32.totalorder %v794, 0
      %v971 = vsub.s32 0, %v794
      %v972 = vsel %vm970, %v971, %v794
      %v973 = vshrl.u32 %v972, 4
      %v974 = vand.u32 %v972, 15
      %v975 = vsub.s32 0, %v974
      %v976 = vsel %vm970, %v975, %v974
      %vm977 = vcmp.lt.s32.totalorder %v795, 0
      %v978 = vsub.s32 0, %v795
      %v979 = vsel %vm977, %v978, %v795
      %v980 = vshrl.u32 %v979, 4
      %v981 = vand.u32 %v979, 15
      %v982 = vsub.s32 0, %v981
      %v983 = vsel %vm977, %v982, %v981
      %vm984 = vcmp.lt.s32.totalorder %v796, 0
      %v985 = vsub.s32 0, %v796
      %v986 = vsel %vm984, %v985, %v796
      %v987 = vshrl.u32 %v986, 4
      %v988 = vand.u32 %v986, 15
      %v989 = vsub.s32 0, %v988
      %v990 = vsel %vm984, %v989, %v988
      %vm991 = vcmp.lt.s32.totalorder %v797, 0
      %v992 = vsub.s32 0, %v797
      %v993 = vsel %vm991, %v992, %v797
      %v994 = vshrl.u32 %v993, 4
      %v995 = vand.u32 %v993, 15
      %v996 = vsub.s32 0, %v995
      %v997 = vsel %vm991, %v996, %v995
      %vm998 = vcmp.lt.s32.totalorder %v798, 0
      %v999 = vsub.s32 0, %v798
      %v1000 = vsel %vm998, %v999, %v798
      %v1001 = vshrl.u32 %v1000, 4
      %v1002 = vand.u32 %v1000, 15
      %v1003 = vsub.s32 0, %v1002
      %v1004 = vsel %vm998, %v1003, %v1002
      %vm1005 = vcmp.lt.s32.totalorder %v799, 0
      %v1006 = vsub.s32 0, %v799
      %v1007 = vsel %vm1005, %v1006, %v799
      %v1008 = vshrl.u32 %v1007, 4
      %v1009 = vand.u32 %v1007, 15
      %v1010 = vsub.s32 0, %v1009
      %v1011 = vsel %vm1005, %v1010, %v1009
      %vm1012 = vcmp.lt.s32.totalorder %v800, 0
      %v1013 = vsub.s32 0, %v800
      %v1014 = vsel %vm1012, %v1013, %v800
      %v1015 = vshrl.u32 %v1014, 4
      %v1016 = vand.u32 %v1014, 15
      %v1017 = vsub.s32 0, %v1016
      %v1018 = vsel %vm1012, %v1017, %v1016
      %vm1019 = vcmp.lt.s32.totalorder %v801, 0
      %v1020 = vsub.s32 0, %v801
      %v1021 = vsel %vm1019, %v1020, %v801
      %v1022 = vshrl.u32 %v1021, 4
      %v1023 = vand.u32 %v1021, 15
      %v1024 = vsub.s32 0, %v1023
      %v1025 = vsel %vm1019, %v1024, %v1023
      %vm1026 = vcmp.ne.s32.totalorder %v808, 0
      %vm1027 = vcmp.ne.s32.totalorder %v815, 0
      %vm1028 = vcmp.ne.s32.totalorder %v822, 0
      %vm1029 = vcmp.ne.s32.totalorder %v829, 0
      %vm1030 = vcmp.ne.s32.totalorder %v836, 0
      %vm1031 = vcmp.ne.s32.totalorder %v843, 0
      %vm1032 = vcmp.ne.s32.totalorder %v850, 0
      %vm1033 = vcmp.ne.s32.totalorder %v857, 0
      %vm1034 = vcmp.ne.s32.totalorder %v864, 0
      %vm1035 = vcmp.ne.s32.totalorder %v871, 0
      %vm1036 = vcmp.ne.s32.totalorder %v878, 0
      %vm1037 = vcmp.ne.s32.totalorder %v885, 0
      %vm1038 = vcmp.ne.s32.totalorder %v892, 0
      %vm1039 = vcmp.ne.s32.totalorder %v899, 0
      %vm1040 = vcmp.ne.s32.totalorder %v906, 0
      %vm1041 = vcmp.ne.s32.totalorder %v913, 0
      %vm1042 = vcmp.ne.s32.totalorder %v920, 0
      %vm1043 = vcmp.ne.s32.totalorder %v927, 0
      %vm1044 = vcmp.ne.s32.totalorder %v934, 0
      %vm1045 = vcmp.ne.s32.totalorder %v941, 0
      %vm1046 = vcmp.ne.s32.totalorder %v948, 0
      %vm1047 = vcmp.ne.s32.totalorder %v955, 0
      %vm1048 = vcmp.ne.s32.totalorder %v962, 0
      %vm1049 = vcmp.ne.s32.totalorder %v969, 0
      %vm1050 = vcmp.ne.s32.totalorder %v976, 0
      %vm1051 = vcmp.ne.s32.totalorder %v983, 0
      %vm1052 = vcmp.ne.s32.totalorder %v990, 0
      %vm1053 = vcmp.ne.s32.totalorder %v997, 0
      %vm1054 = vcmp.ne.s32.totalorder %v1004, 0
      %vm1055 = vcmp.ne.s32.totalorder %v1011, 0
      %vm1056 = vcmp.ne.s32.totalorder %v1018, 0
      %vm1057 = vcmp.ne.s32.totalorder %v1025, 0
      %vm1058 = vcmp.lt.s32.totalorder %v808, 0
      %vm1059 = vcmp.lt.s32.totalorder %v815, 0
      %vm1060 = vcmp.lt.s32.totalorder %v822, 0
      %vm1061 = vcmp.lt.s32.totalorder %v829, 0
      %vm1062 = vcmp.lt.s32.totalorder %v836, 0
      %vm1063 = vcmp.lt.s32.totalorder %v843, 0
      %vm1064 = vcmp.lt.s32.totalorder %v850, 0
      %vm1065 = vcmp.lt.s32.totalorder %v857, 0
      %vm1066 = vcmp.lt.s32.totalorder %v864, 0
      %vm1067 = vcmp.lt.s32.totalorder %v871, 0
      %vm1068 = vcmp.lt.s32.totalorder %v878, 0
      %vm1069 = vcmp.lt.s32.totalorder %v885, 0
      %vm1070 = vcmp.lt.s32.totalorder %v892, 0
      %vm1071 = vcmp.lt.s32.totalorder %v899, 0
      %vm1072 = vcmp.lt.s32.totalorder %v906, 0
      %vm1073 = vcmp.lt.s32.totalorder %v913, 0
      %vm1074 = vcmp.lt.s32.totalorder %v920, 0
      %vm1075 = vcmp.lt.s32.totalorder %v927, 0
      %vm1076 = vcmp.lt.s32.totalorder %v934, 0
      %vm1077 = vcmp.lt.s32.totalorder %v941, 0
      %vm1078 = vcmp.lt.s32.totalorder %v948, 0
      %vm1079 = vcmp.lt.s32.totalorder %v955, 0
      %vm1080 = vcmp.lt.s32.totalorder %v962, 0
      %vm1081 = vcmp.lt.s32.totalorder %v969, 0
      %vm1082 = vcmp.lt.s32.totalorder %v976, 0
      %vm1083 = vcmp.lt.s32.totalorder %v983, 0
      %vm1084 = vcmp.lt.s32.totalorder %v990, 0
      %vm1085 = vcmp.lt.s32.totalorder %v997, 0
      %vm1086 = vcmp.lt.s32.totalorder %v1004, 0
      %vm1087 = vcmp.lt.s32.totalorder %v1011, 0
      %vm1088 = vcmp.lt.s32.totalorder %v1018, 0
      %vm1089 = vcmp.lt.s32.totalorder %v1025, 0
      %vm1090 = vmand %vm1058, %vm1026
      %vm1091 = vmand %vm1059, %vm1027
      %vm1092 = vmand %vm1060, %vm1028
      %vm1093 = vmand %vm1061, %vm1029
      %vm1094 = vmand %vm1062, %vm1030
      %vm1095 = vmand %vm1063, %vm1031
      %vm1096 = vmand %vm1064, %vm1032
      %vm1097 = vmand %vm1065, %vm1033
      %vm1098 = vmand %vm1066, %vm1034
      %vm1099 = vmand %vm1067, %vm1035
      %vm1100 = vmand %vm1068, %vm1036
      %vm1101 = vmand %vm1069, %vm1037
      %vm1102 = vmand %vm1070, %vm1038
      %vm1103 = vmand %vm1071, %vm1039
      %vm1104 = vmand %vm1072, %vm1040
      %vm1105 = vmand %vm1073, %vm1041
      %vm1106 = vmand %vm1074, %vm1042
      %vm1107 = vmand %vm1075, %vm1043
      %vm1108 = vmand %vm1076, %vm1044
      %vm1109 = vmand %vm1077, %vm1045
      %vm1110 = vmand %vm1078, %vm1046
      %vm1111 = vmand %vm1079, %vm1047
      %vm1112 = vmand %vm1080, %vm1048
      %vm1113 = vmand %vm1081, %vm1049
      %vm1114 = vmand %vm1082, %vm1050
      %vm1115 = vmand %vm1083, %vm1051
      %vm1116 = vmand %vm1084, %vm1052
      %vm1117 = vmand %vm1085, %vm1053
      %vm1118 = vmand %vm1086, %vm1054
      %vm1119 = vmand %vm1087, %vm1055
      %vm1120 = vmand %vm1088, %vm1056
      %vm1121 = vmand %vm1089, %vm1057
      %v1122 = vadd.s32 %v808, 16
      %v1123 = vadd.s32 %v815, 16
      %v1124 = vadd.s32 %v822, 16
      %v1125 = vadd.s32 %v829, 16
      %v1126 = vadd.s32 %v836, 16
      %v1127 = vadd.s32 %v843, 16
      %v1128 = vadd.s32 %v850, 16
      %v1129 = vadd.s32 %v857, 16
      %v1130 = vadd.s32 %v864, 16
      %v1131 = vadd.s32 %v871, 16
      %v1132 = vadd.s32 %v878, 16
      %v1133 = vadd.s32 %v885, 16
      %v1134 = vadd.s32 %v892, 16
      %v1135 = vadd.s32 %v899, 16
      %v1136 = vadd.s32 %v906, 16
      %v1137 = vadd.s32 %v913, 16
      %v1138 = vadd.s32 %v920, 16
      %v1139 = vadd.s32 %v927, 16
      %v1140 = vadd.s32 %v934, 16
      %v1141 = vadd.s32 %v941, 16
      %v1142 = vadd.s32 %v948, 16
      %v1143 = vadd.s32 %v955, 16
      %v1144 = vadd.s32 %v962, 16
      %v1145 = vadd.s32 %v969, 16
      %v1146 = vadd.s32 %v976, 16
      %v1147 = vadd.s32 %v983, 16
      %v1148 = vadd.s32 %v990, 16
      %v1149 = vadd.s32 %v997, 16
      %v1150 = vadd.s32 %v1004, 16
      %v1151 = vadd.s32 %v1011, 16
      %v1152 = vadd.s32 %v1018, 16
      %v1153 = vadd.s32 %v1025, 16
      %v1154 = vsel %vm1090, %v1122, %v808
      %v1155 = vsel %vm1091, %v1123, %v815
      %v1156 = vsel %vm1092, %v1124, %v822
      %v1157 = vsel %vm1093, %v1125, %v829
      %v1158 = vsel %vm1094, %v1126, %v836
      %v1159 = vsel %vm1095, %v1127, %v843
      %v1160 = vsel %vm1096, %v1128, %v850
      %v1161 = vsel %vm1097, %v1129, %v857
      %v1162 = vsel %vm1098, %v1130, %v864
      %v1163 = vsel %vm1099, %v1131, %v871
      %v1164 = vsel %vm1100, %v1132, %v878
      %v1165 = vsel %vm1101, %v1133, %v885
      %v1166 = vsel %vm1102, %v1134, %v892
      %v1167 = vsel %vm1103, %v1135, %v899
      %v1168 = vsel %vm1104, %v1136, %v906
      %v1169 = vsel %vm1105, %v1137, %v913
      %v1170 = vsel %vm1106, %v1138, %v920
      %v1171 = vsel %vm1107, %v1139, %v927
      %v1172 = vsel %vm1108, %v1140, %v934
      %v1173 = vsel %vm1109, %v1141, %v941
      %v1174 = vsel %vm1110, %v1142, %v948
      %v1175 = vsel %vm1111, %v1143, %v955
      %v1176 = vsel %vm1112, %v1144, %v962
      %v1177 = vsel %vm1113, %v1145, %v969
      %v1178 = vsel %vm1114, %v1146, %v976
      %v1179 = vsel %vm1115, %v1147, %v983
      %v1180 = vsel %vm1116, %v1148, %v990
      %v1181 = vsel %vm1117, %v1149, %v997
      %v1182 = vsel %vm1118, %v1150, %v1004
      %v1183 = vsel %vm1119, %v1151, %v1011
      %v1184 = vsel %vm1120, %v1152, %v1018
      %v1185 = vsel %vm1121, %v1153, %v1025
      loop: start=0, step=1, limit=10
      $region53: #{generator_forward.1} parent=51 // loop_pre_header
        _
      $region54: #{generator_forward.1} parent=51 // loop_header
        %s1187 = sphi 0, %s1191
        %p1188 = scmp.ge.s32.totalorder %s1187, 10
      $region55: #{generator_forward.1} parent=51 // loop_header_branch
        %1190 = sbr.rel (%p1188) target = $region59
      $region56: #{generator_forward.1} parent=51 // loop_body
        %s1192 = smul.u32 %s1187, 9
        %s1193 = scalar_lea.vmem %s4, %s1187
        %v1194 = vld [vmem:[%s1193] sm:$0x1]
        %v1195 = vld [vmem:[#allocation2 + $0x7] sm:$0xff]
        %v1196 = vld [vmem:[#allocation2 + $0xf] sm:$0xff]
        %v1197 = vld [vmem:[#allocation2 + $0x17] sm:$0xff]
        %v1198 = vld [vmem:[#allocation2 + $0x1f] sm:$0xff]
        %v1199 = vld [vmem:[#allocation2 + $0x27] sm:$0xff]
        %v1200 = vld [vmem:[#allocation2 + $0x2f] sm:$0xff]
        %v1201 = vld [vmem:[#allocation2 + $0x37] sm:$0xff]
        %v1202 = vld [vmem:[#allocation2 + $0x3f] sm:$0xff]
        %v1203 = vld [vmem:[#allocation2 + $0x47] sm:$0xff]
        %v1204 = vld [vmem:[#allocation2 + $0x4f] sm:$0xff]
        %v1205 = vld [vmem:[#allocation2 + $0x57] sm:$0xff]
        %v1206 = vld [vmem:[#allocation2 + $0x5f] sm:$0xff]
        %v1207 = vld [vmem:[#allocation2 + $0x67] sm:$0xff]
        %v1208 = vld [vmem:[#allocation2 + $0x6f] sm:$0xff]
        %v1209 = vld [vmem:[#allocation2 + $0x77] sm:$0xff]
        %v1210 = vld [vmem:[#allocation2 + $0x7f] sm:$0xff]
        %v1211 = vld [vmem:[#allocation2 + $0x87] sm:$0xff]
        %v1212 = vld [vmem:[#allocation2 + $0x8f] sm:$0xff]
        %v1213 = vld [vmem:[#allocation2 + $0x97] sm:$0xff]
        %v1214 = vld [vmem:[#allocation2 + $0x9f] sm:$0xff]
        %v1215 = vld [vmem:[#allocation2 + $0xa7] sm:$0xff]
        %v1216 = vld [vmem:[#allocation2 + $0xaf] sm:$0xff]
        %v1217 = vld [vmem:[#allocation2 + $0xb7] sm:$0xff]
        %v1218 = vld [vmem:[#allocation2 + $0xbf] sm:$0xff]
        %v1219 = vld [vmem:[#allocation2 + $0xc7] sm:$0xff]
        %v1220 = vld [vmem:[#allocation2 + $0xcf] sm:$0xff]
        %v1221 = vld [vmem:[#allocation2 + $0xd7] sm:$0xff]
        %v1222 = vld [vmem:[#allocation2 + $0xdf] sm:$0xff]
        %v1223 = vld [vmem:[#allocation2 + $0xe7] sm:$0xff]
        %v1224 = vld [vmem:[#allocation2 + $0xef] sm:$0xff]
        %v1225 = vld [vmem:[#allocation2 + $0xf7] sm:$0xff]
        %v1226 = vld [vmem:[#allocation2 + $0xff] sm:$0xff]
        %s1227 = smul.u32 %s1192, 64
        %s1228 = scalar_lea.vmem %s2, %s1227
        %v1229 = vld [vmem:[%s1228] sm:$0xff]
        %v1230 = vld [vmem:[%s1228 + $0x8] sm:$0xff]
        %v1231 = vld [vmem:[%s1228 + $0x10] sm:$0xff]
        %v1232 = vld [vmem:[%s1228 + $0x18] sm:$0xff]
        %v1233 = vld [vmem:[%s1228 + $0x20] sm:$0xff]
        %v1234 = vld [vmem:[%s1228 + $0x28] sm:$0xff]
        %v1235 = vld [vmem:[%s1228 + $0x30] sm:$0xff]
        %v1236 = vld [vmem:[%s1228 + $0x38] sm:$0xff]
        %v1238 = vsel %vm306, %v1195, 0
        %v1241 = vsel %vm306, %v1196, 0
        %v1244 = vsel %vm306, %v1197, 0
        %v1247 = vsel %vm306, %v1198, 0
        %v1250 = vsel %vm306, %v1199, 0
        %v1253 = vsel %vm306, %v1200, 0
        %v1256 = vsel %vm306, %v1201, 0
        %v1259 = vsel %vm306, %v1202, 0
        %v1262 = vsel %vm306, %v1203, 0
        %v1265 = vsel %vm306, %v1204, 0
        %v1268 = vsel %vm306, %v1205, 0
        %v1271 = vsel %vm306, %v1206, 0
        %v1274 = vsel %vm306, %v1207, 0
        %v1277 = vsel %vm306, %v1208, 0
        %v1280 = vsel %vm306, %v1209, 0
        %v1283 = vsel %vm306, %v1210, 0
        %v1286 = vsel %vm306, %v1211, 0
        %v1289 = vsel %vm306, %v1212, 0
        %v1292 = vsel %vm306, %v1213, 0
        %v1295 = vsel %vm306, %v1214, 0
        %v1298 = vsel %vm306, %v1215, 0
        %v1301 = vsel %vm306, %v1216, 0
        %v1304 = vsel %vm306, %v1217, 0
        %v1307 = vsel %vm306, %v1218, 0
        %v1310 = vsel %vm306, %v1219, 0
        %v1313 = vsel %vm306, %v1220, 0
        %v1316 = vsel %vm306, %v1221, 0
        %v1319 = vsel %vm306, %v1222, 0
        %v1322 = vsel %vm306, %v1223, 0
        %v1325 = vsel %vm306, %v1224, 0
        %v1328 = vsel %vm306, %v1225, 0
        %v1331 = vsel %vm306, %v1226, 0
        %1333 = vmatpush.msra.mxu0 0.0
        %1334 = vmatpush.msra.mxu0 0.0
        %1335 = vmatpush.msra.mxu0 0.0
        %1336 = vmatpush.msra.mxu0 0.0
        %1337 = vmatpush.msra.mxu0 0.0
        %1338 = vmatpush.msra.mxu0 0.0
        %1339 = vmatpush.msra.mxu0 0.0
        %1340 = vmatpush.msra.mxu0 0.0
        %1341 = vmatpush.msra.mxu0 %v1236
        %1342 = vmatpush.msra.mxu0 %v1235
        %1343 = vmatpush.msra.mxu0 %v1234
        %1344 = vmatpush.msra.mxu0 %v1233
        %1345 = vmatpush.msra.mxu0 %v1232
        %1346 = vmatpush.msra.mxu0 %v1231
        %1347 = vmatpush.msra.mxu0 %v1230
        %1348 = vmatpush.msra.mxu0 %v1229
        %1349 = vmatmul.f32.gmra.mxu0 %v1238
        %v1350 = vpop.f32.mrf.mxu0
        %v1351 = vadd.f32 0.0, %v1350
        %1352 = vmatmul.f32.gmra.mxu0 %v1241
        %v1353 = vpop.f32.mrf.mxu0
        %v1354 = vadd.f32 0.0, %v1353
        %1355 = vmatmul.f32.gmra.mxu0 %v1244
        %v1356 = vpop.f32.mrf.mxu0
        %v1357 = vadd.f32 0.0, %v1356
        %1358 = vmatmul.f32.gmra.mxu0 %v1247
        %v1359 = vpop.f32.mrf.mxu0
        %v1360 = vadd.f32 0.0, %v1359
        %1361 = vmatmul.f32.gmra.mxu0 %v1250
        %v1362 = vpop.f32.mrf.mxu0
        %v1363 = vadd.f32 0.0, %v1362
        %1364 = vmatmul.f32.gmra.mxu0 %v1253
        %v1365 = vpop.f32.mrf.mxu0
        %v1366 = vadd.f32 0.0, %v1365
        %1367 = vmatmul.f32.gmra.mxu0 %v1256
        %v1368 = vpop.f32.mrf.mxu0
        %v1369 = vadd.f32 0.0, %v1368
        %1370 = vmatmul.f32.gmra.mxu0 %v1259
        %v1371 = vpop.f32.mrf.mxu0
        %v1372 = vadd.f32 0.0, %v1371
        %1373 = vmatmul.f32.gmra.mxu0 %v1262
        %v1374 = vpop.f32.mrf.mxu0
        %v1375 = vadd.f32 0.0, %v1374
        %1376 = vmatmul.f32.gmra.mxu0 %v1265
        %v1377 = vpop.f32.mrf.mxu0
        %v1378 = vadd.f32 0.0, %v1377
        %1379 = vmatmul.f32.gmra.mxu0 %v1268
        %v1380 = vpop.f32.mrf.mxu0
        %v1381 = vadd.f32 0.0, %v1380
        %1382 = vmatmul.f32.gmra.mxu0 %v1271
        %v1383 = vpop.f32.mrf.mxu0
        %v1384 = vadd.f32 0.0, %v1383
        %1385 = vmatmul.f32.gmra.mxu0 %v1274
        %v1386 = vpop.f32.mrf.mxu0
        %v1387 = vadd.f32 0.0, %v1386
        %1388 = vmatmul.f32.gmra.mxu0 %v1277
        %v1389 = vpop.f32.mrf.mxu0
        %v1390 = vadd.f32 0.0, %v1389
        %1391 = vmatmul.f32.gmra.mxu0 %v1280
        %v1392 = vpop.f32.mrf.mxu0
        %v1393 = vadd.f32 0.0, %v1392
        %1394 = vmatmul.f32.gmra.mxu0 %v1283
        %v1395 = vpop.f32.mrf.mxu0
        %v1396 = vadd.f32 0.0, %v1395
        %1397 = vmatmul.f32.gmra.mxu0 %v1286
        %v1398 = vpop.f32.mrf.mxu0
        %v1399 = vadd.f32 0.0, %v1398
        %1400 = vmatmul.f32.gmra.mxu0 %v1289
        %v1401 = vpop.f32.mrf.mxu0
        %v1402 = vadd.f32 0.0, %v1401
        %1403 = vmatmul.f32.gmra.mxu0 %v1292
        %v1404 = vpop.f32.mrf.mxu0
        %v1405 = vadd.f32 0.0, %v1404
        %1406 = vmatmul.f32.gmra.mxu0 %v1295
        %v1407 = vpop.f32.mrf.mxu0
        %v1408 = vadd.f32 0.0, %v1407
        %1409 = vmatmul.f32.gmra.mxu0 %v1298
        %v1410 = vpop.f32.mrf.mxu0
        %v1411 = vadd.f32 0.0, %v1410
        %1412 = vmatmul.f32.gmra.mxu0 %v1301
        %v1413 = vpop.f32.mrf.mxu0
        %v1414 = vadd.f32 0.0, %v1413
        %1415 = vmatmul.f32.gmra.mxu0 %v1304
        %v1416 = vpop.f32.mrf.mxu0
        %v1417 = vadd.f32 0.0, %v1416
        %1418 = vmatmul.f32.gmra.mxu0 %v1307
        %v1419 = vpop.f32.mrf.mxu0
        %v1420 = vadd.f32 0.0, %v1419
        %1421 = vmatmul.f32.gmra.mxu0 %v1310
        %v1422 = vpop.f32.mrf.mxu0
        %v1423 = vadd.f32 0.0, %v1422
        %1424 = vmatmul.f32.gmra.mxu0 %v1313
        %v1425 = vpop.f32.mrf.mxu0
        %v1426 = vadd.f32 0.0, %v1425
        %1427 = vmatmul.f32.gmra.mxu0 %v1316
        %v1428 = vpop.f32.mrf.mxu0
        %v1429 = vadd.f32 0.0, %v1428
        %1430 = vmatmul.f32.gmra.mxu0 %v1319
        %v1431 = vpop.f32.mrf.mxu0
        %v1432 = vadd.f32 0.0, %v1431
        %1433 = vmatmul.f32.gmra.mxu0 %v1322
        %v1434 = vpop.f32.mrf.mxu0
        %v1435 = vadd.f32 0.0, %v1434
        %1436 = vmatmul.f32.gmra.mxu0 %v1325
        %v1437 = vpop.f32.mrf.mxu0
        %v1438 = vadd.f32 0.0, %v1437
        %1439 = vmatmul.f32.gmra.mxu0 %v1328
        %v1440 = vpop.f32.mrf.mxu0
        %v1441 = vadd.f32 0.0, %v1440
        %1442 = vmatmul.f32.gmra.mxu0 %v1331
        %v1443 = vpop.f32.mrf.mxu0
        %v1444 = vadd.f32 0.0, %v1443
        %1445 = vdwg.mxu0
        %vm1446 = vcmp.eq.s32.totalorder %v1154, 0
        %vm1447 = vcmp.eq.s32.totalorder %v1155, 0
        %vm1448 = vcmp.eq.s32.totalorder %v1156, 0
        %vm1449 = vcmp.eq.s32.totalorder %v1157, 0
        %vm1450 = vcmp.eq.s32.totalorder %v1158, 0
        %vm1451 = vcmp.eq.s32.totalorder %v1159, 0
        %vm1452 = vcmp.eq.s32.totalorder %v1160, 0
        %vm1453 = vcmp.eq.s32.totalorder %v1161, 0
        %vm1454 = vcmp.eq.s32.totalorder %v1162, 0
        %vm1455 = vcmp.eq.s32.totalorder %v1163, 0
        %vm1456 = vcmp.eq.s32.totalorder %v1164, 0
        %vm1457 = vcmp.eq.s32.totalorder %v1165, 0
        %vm1458 = vcmp.eq.s32.totalorder %v1166, 0
        %vm1459 = vcmp.eq.s32.totalorder %v1167, 0
        %vm1460 = vcmp.eq.s32.totalorder %v1168, 0
        %vm1461 = vcmp.eq.s32.totalorder %v1169, 0
        %vm1462 = vcmp.eq.s32.totalorder %v1170, 0
        %vm1463 = vcmp.eq.s32.totalorder %v1171, 0
        %vm1464 = vcmp.eq.s32.totalorder %v1172, 0
        %vm1465 = vcmp.eq.s32.totalorder %v1173, 0
        %vm1466 = vcmp.eq.s32.totalorder %v1174, 0
        %vm1467 = vcmp.eq.s32.totalorder %v1175, 0
        %vm1468 = vcmp.eq.s32.totalorder %v1176, 0
        %vm1469 = vcmp.eq.s32.totalorder %v1177, 0
        %vm1470 = vcmp.eq.s32.totalorder %v1178, 0
        %vm1471 = vcmp.eq.s32.totalorder %v1179, 0
        %vm1472 = vcmp.eq.s32.totalorder %v1180, 0
        %vm1473 = vcmp.eq.s32.totalorder %v1181, 0
        %vm1474 = vcmp.eq.s32.totalorder %v1182, 0
        %vm1475 = vcmp.eq.s32.totalorder %v1183, 0
        %vm1476 = vcmp.eq.s32.totalorder %v1184, 0
        %vm1477 = vcmp.eq.s32.totalorder %v1185, 0
        %v1478 = vsel %vm1446, 1, 0
        %v1479 = vsel %vm1447, 1, 0
        %v1480 = vsel %vm1448, 1, 0
        %v1481 = vsel %vm1449, 1, 0
        %v1482 = vsel %vm1450, 1, 0
        %v1483 = vsel %vm1451, 1, 0
        %v1484 = vsel %vm1452, 1, 0
        %v1485 = vsel %vm1453, 1, 0
        %v1486 = vsel %vm1454, 1, 0
        %v1487 = vsel %vm1455, 1, 0
        %v1488 = vsel %vm1456, 1, 0
        %v1489 = vsel %vm1457, 1, 0
        %v1490 = vsel %vm1458, 1, 0
        %v1491 = vsel %vm1459, 1, 0
        %v1492 = vsel %vm1460, 1, 0
        %v1493 = vsel %vm1461, 1, 0
        %v1494 = vsel %vm1462, 1, 0
        %v1495 = vsel %vm1463, 1, 0
        %v1496 = vsel %vm1464, 1, 0
        %v1497 = vsel %vm1465, 1, 0
        %v1498 = vsel %vm1466, 1, 0
        %v1499 = vsel %vm1467, 1, 0
        %v1500 = vsel %vm1468, 1, 0
        %v1501 = vsel %vm1469, 1, 0
        %v1502 = vsel %vm1470, 1, 0
        %v1503 = vsel %vm1471, 1, 0
        %v1504 = vsel %vm1472, 1, 0
        %v1505 = vsel %vm1473, 1, 0
        %v1506 = vsel %vm1474, 1, 0
        %v1507 = vsel %vm1475, 1, 0
        %v1508 = vsel %vm1476, 1, 0
        %v1509 = vsel %vm1477, 1, 0
        %vm1510 = vcmp.eq.s32.totalorder %v1478, 1
        %vm1511 = vcmp.eq.s32.totalorder %v1479, 1
        %vm1512 = vcmp.eq.s32.totalorder %v1480, 1
        %vm1513 = vcmp.eq.s32.totalorder %v1481, 1
        %vm1514 = vcmp.eq.s32.totalorder %v1482, 1
        %vm1515 = vcmp.eq.s32.totalorder %v1483, 1
        %vm1516 = vcmp.eq.s32.totalorder %v1484, 1
        %vm1517 = vcmp.eq.s32.totalorder %v1485, 1
        %vm1518 = vcmp.eq.s32.totalorder %v1486, 1
        %vm1519 = vcmp.eq.s32.totalorder %v1487, 1
        %vm1520 = vcmp.eq.s32.totalorder %v1488, 1
        %vm1521 = vcmp.eq.s32.totalorder %v1489, 1
        %vm1522 = vcmp.eq.s32.totalorder %v1490, 1
        %vm1523 = vcmp.eq.s32.totalorder %v1491, 1
        %vm1524 = vcmp.eq.s32.totalorder %v1492, 1
        %vm1525 = vcmp.eq.s32.totalorder %v1493, 1
        %vm1526 = vcmp.eq.s32.totalorder %v1494, 1
        %vm1527 = vcmp.eq.s32.totalorder %v1495, 1
        %vm1528 = vcmp.eq.s32.totalorder %v1496, 1
        %vm1529 = vcmp.eq.s32.totalorder %v1497, 1
        %vm1530 = vcmp.eq.s32.totalorder %v1498, 1
        %vm1531 = vcmp.eq.s32.totalorder %v1499, 1
        %vm1532 = vcmp.eq.s32.totalorder %v1500, 1
        %vm1533 = vcmp.eq.s32.totalorder %v1501, 1
        %vm1534 = vcmp.eq.s32.totalorder %v1502, 1
        %vm1535 = vcmp.eq.s32.totalorder %v1503, 1
        %vm1536 = vcmp.eq.s32.totalorder %v1504, 1
        %vm1537 = vcmp.eq.s32.totalorder %v1505, 1
        %vm1538 = vcmp.eq.s32.totalorder %v1506, 1
        %vm1539 = vcmp.eq.s32.totalorder %v1507, 1
        %vm1540 = vcmp.eq.s32.totalorder %v1508, 1
        %vm1541 = vcmp.eq.s32.totalorder %v1509, 1
        %v1542 = vsel %vm1510, 0.0, %v1351
        %v1543 = vsel %vm1511, 0.0, %v1354
        %v1544 = vsel %vm1512, 0.0, %v1357
        %v1545 = vsel %vm1513, 0.0, %v1360
        %v1546 = vsel %vm1514, 0.0, %v1363
        %v1547 = vsel %vm1515, 0.0, %v1366
        %v1548 = vsel %vm1516, 0.0, %v1369
        %v1549 = vsel %vm1517, 0.0, %v1372
        %v1550 = vsel %vm1518, 0.0, %v1375
        %v1551 = vsel %vm1519, 0.0, %v1378
        %v1552 = vsel %vm1520, 0.0, %v1381
        %v1553 = vsel %vm1521, 0.0, %v1384
        %v1554 = vsel %vm1522, 0.0, %v1387
        %v1555 = vsel %vm1523, 0.0, %v1390
        %v1556 = vsel %vm1524, 0.0, %v1393
        %v1557 = vsel %vm1525, 0.0, %v1396
        %v1558 = vsel %vm1526, 0.0, %v1399
        %v1559 = vsel %vm1527, 0.0, %v1402
        %v1560 = vsel %vm1528, 0.0, %v1405
        %v1561 = vsel %vm1529, 0.0, %v1408
        %v1562 = vsel %vm1530, 0.0, %v1411
        %v1563 = vsel %vm1531, 0.0, %v1414
        %v1564 = vsel %vm1532, 0.0, %v1417
        %v1565 = vsel %vm1533, 0.0, %v1420
        %v1566 = vsel %vm1534, 0.0, %v1423
        %v1567 = vsel %vm1535, 0.0, %v1426
        %v1568 = vsel %vm1536, 0.0, %v1429
        %v1569 = vsel %vm1537, 0.0, %v1432
        %v1570 = vsel %vm1538, 0.0, %v1435
        %v1571 = vsel %vm1539, 0.0, %v1438
        %v1572 = vsel %vm1540, 0.0, %v1441
        %v1573 = vsel %vm1541, 0.0, %v1444
        %v1574 = vadd.f32 %v1542, 0.0
        %v1575 = vadd.f32 %v1543, 0.0
        %v1576 = vadd.f32 %v1544, 0.0
        %v1577 = vadd.f32 %v1545, 0.0
        %v1578 = vadd.f32 %v1546, 0.0
        %v1579 = vadd.f32 %v1547, 0.0
        %v1580 = vadd.f32 %v1548, 0.0
        %v1581 = vadd.f32 %v1549, 0.0
        %v1582 = vadd.f32 %v1550, 0.0
        %v1583 = vadd.f32 %v1551, 0.0
        %v1584 = vadd.f32 %v1552, 0.0
        %v1585 = vadd.f32 %v1553, 0.0
        %v1586 = vadd.f32 %v1554, 0.0
        %v1587 = vadd.f32 %v1555, 0.0
        %v1588 = vadd.f32 %v1556, 0.0
        %v1589 = vadd.f32 %v1557, 0.0
        %v1590 = vadd.f32 %v1558, 0.0
        %v1591 = vadd.f32 %v1559, 0.0
        %v1592 = vadd.f32 %v1560, 0.0
        %v1593 = vadd.f32 %v1561, 0.0
        %v1594 = vadd.f32 %v1562, 0.0
        %v1595 = vadd.f32 %v1563, 0.0
        %v1596 = vadd.f32 %v1564, 0.0
        %v1597 = vadd.f32 %v1565, 0.0
        %v1598 = vadd.f32 %v1566, 0.0
        %v1599 = vadd.f32 %v1567, 0.0
        %v1600 = vadd.f32 %v1568, 0.0
        %v1601 = vadd.f32 %v1569, 0.0
        %v1602 = vadd.f32 %v1570, 0.0
        %v1603 = vadd.f32 %v1571, 0.0
        %v1604 = vadd.f32 %v1572, 0.0
        %v1605 = vadd.f32 %v1573, 0.0
        %v1606 = vld [vmem:[#allocation2 + $0x8] sm:$0xff]
        %v1607 = vld [vmem:[#allocation2 + $0x10] sm:$0xff]
        %v1608 = vld [vmem:[#allocation2 + $0x18] sm:$0xff]
        %v1609 = vld [vmem:[#allocation2 + $0x20] sm:$0xff]
        %v1610 = vld [vmem:[#allocation2 + $0x28] sm:$0xff]
        %v1611 = vld [vmem:[#allocation2 + $0x30] sm:$0xff]
        %v1612 = vld [vmem:[#allocation2 + $0x38] sm:$0xff]
        %v1613 = vld [vmem:[#allocation2 + $0x40] sm:$0xff]
        %v1614 = vld [vmem:[#allocation2 + $0x48] sm:$0xff]
        %v1615 = vld [vmem:[#allocation2 + $0x50] sm:$0xff]
        %v1616 = vld [vmem:[#allocation2 + $0x58] sm:$0xff]
        %v1617 = vld [vmem:[#allocation2 + $0x60] sm:$0xff]
        %v1618 = vld [vmem:[#allocation2 + $0x68] sm:$0xff]
        %v1619 = vld [vmem:[#allocation2 + $0x70] sm:$0xff]
        %v1620 = vld [vmem:[#allocation2 + $0x78] sm:$0xff]
        %v1621 = vld [vmem:[#allocation2 + $0x80] sm:$0xff]
        %v1622 = vld [vmem:[#allocation2 + $0x88] sm:$0xff]
        %v1623 = vld [vmem:[#allocation2 + $0x90] sm:$0xff]
        %v1624 = vld [vmem:[#allocation2 + $0x98] sm:$0xff]
        %v1625 = vld [vmem:[#allocation2 + $0xa0] sm:$0xff]
        %v1626 = vld [vmem:[#allocation2 + $0xa8] sm:$0xff]
        %v1627 = vld [vmem:[#allocation2 + $0xb0] sm:$0xff]
        %v1628 = vld [vmem:[#allocation2 + $0xb8] sm:$0xff]
        %v1629 = vld [vmem:[#allocation2 + $0xc0] sm:$0xff]
        %v1630 = vld [vmem:[#allocation2 + $0xc8] sm:$0xff]
        %v1631 = vld [vmem:[#allocation2 + $0xd0] sm:$0xff]
        %v1632 = vld [vmem:[#allocation2 + $0xd8] sm:$0xff]
        %v1633 = vld [vmem:[#allocation2 + $0xe0] sm:$0xff]
        %v1634 = vld [vmem:[#allocation2 + $0xe8] sm:$0xff]
        %v1635 = vld [vmem:[#allocation2 + $0xf0] sm:$0xff]
        %v1636 = vld [vmem:[#allocation2 + $0xf8] sm:$0xff]
        %v1637 = vld [vmem:[#allocation2 + $0x100] sm:$0xff]
        %s1638 = sadd.s32 %s1192, 1
        %s1639 = smul.u32 %s1638, 64
        %s1640 = scalar_lea.vmem %s2, %s1639
        %v1641 = vld [vmem:[%s1640] sm:$0xff]
        %v1642 = vld [vmem:[%s1640 + $0x8] sm:$0xff]
        %v1643 = vld [vmem:[%s1640 + $0x10] sm:$0xff]
        %v1644 = vld [vmem:[%s1640 + $0x18] sm:$0xff]
        %v1645 = vld [vmem:[%s1640 + $0x20] sm:$0xff]
        %v1646 = vld [vmem:[%s1640 + $0x28] sm:$0xff]
        %v1647 = vld [vmem:[%s1640 + $0x30] sm:$0xff]
        %v1648 = vld [vmem:[%s1640 + $0x38] sm:$0xff]
        %v1650 = vsel %vm306, %v1606, 0
        %v1653 = vsel %vm306, %v1607, 0
        %v1656 = vsel %vm306, %v1608, 0
        %v1659 = vsel %vm306, %v1609, 0
        %v1662 = vsel %vm306, %v1610, 0
        %v1665 = vsel %vm306, %v1611, 0
        %v1668 = vsel %vm306, %v1612, 0
        %v1671 = vsel %vm306, %v1613, 0
        %v1674 = vsel %vm306, %v1614, 0
        %v1677 = vsel %vm306, %v1615, 0
        %v1680 = vsel %vm306, %v1616, 0
        %v1683 = vsel %vm306, %v1617, 0
        %v1686 = vsel %vm306, %v1618, 0
        %v1689 = vsel %vm306, %v1619, 0
        %v1692 = vsel %vm306, %v1620, 0
        %v1695 = vsel %vm306, %v1621, 0
        %v1698 = vsel %vm306, %v1622, 0
        %v1701 = vsel %vm306, %v1623, 0
        %v1704 = vsel %vm306, %v1624, 0
        %v1707 = vsel %vm306, %v1625, 0
        %v1710 = vsel %vm306, %v1626, 0
        %v1713 = vsel %vm306, %v1627, 0
        %v1716 = vsel %vm306, %v1628, 0
        %v1719 = vsel %vm306, %v1629, 0
        %v1722 = vsel %vm306, %v1630, 0
        %v1725 = vsel %vm306, %v1631, 0
        %v1728 = vsel %vm306, %v1632, 0
        %v1731 = vsel %vm306, %v1633, 0
        %v1734 = vsel %vm306, %v1634, 0
        %v1737 = vsel %vm306, %v1635, 0
        %v1740 = vsel %vm306, %v1636, 0
        %v1743 = vsel %vm306, %v1637, 0
        %1745 = vmatpush.msra.mxu0 0.0
        %1746 = vmatpush.msra.mxu0 0.0
        %1747 = vmatpush.msra.mxu0 0.0
        %1748 = vmatpush.msra.mxu0 0.0
        %1749 = vmatpush.msra.mxu0 0.0
        %1750 = vmatpush.msra.mxu0 0.0
        %1751 = vmatpush.msra.mxu0 0.0
        %1752 = vmatpush.msra.mxu0 0.0
        %1753 = vmatpush.msra.mxu0 %v1648
        %1754 = vmatpush.msra.mxu0 %v1647
        %1755 = vmatpush.msra.mxu0 %v1646
        %1756 = vmatpush.msra.mxu0 %v1645
        %1757 = vmatpush.msra.mxu0 %v1644
        %1758 = vmatpush.msra.mxu0 %v1643
        %1759 = vmatpush.msra.mxu0 %v1642
        %1760 = vmatpush.msra.mxu0 %v1641
        %1761 = vmatmul.f32.gmra.mxu0 %v1650
        %v1762 = vpop.f32.mrf.mxu0
        %v1763 = vadd.f32 0.0, %v1762
        %1764 = vmatmul.f32.gmra.mxu0 %v1653
        %v1765 = vpop.f32.mrf.mxu0
        %v1766 = vadd.f32 0.0, %v1765
        %1767 = vmatmul.f32.gmra.mxu0 %v1656
        %v1768 = vpop.f32.mrf.mxu0
        %v1769 = vadd.f32 0.0, %v1768
        %1770 = vmatmul.f32.gmra.mxu0 %v1659
        %v1771 = vpop.f32.mrf.mxu0
        %v1772 = vadd.f32 0.0, %v1771
        %1773 = vmatmul.f32.gmra.mxu0 %v1662
        %v1774 = vpop.f32.mrf.mxu0
        %v1775 = vadd.f32 0.0, %v1774
        %1776 = vmatmul.f32.gmra.mxu0 %v1665
        %v1777 = vpop.f32.mrf.mxu0
        %v1778 = vadd.f32 0.0, %v1777
        %1779 = vmatmul.f32.gmra.mxu0 %v1668
        %v1780 = vpop.f32.mrf.mxu0
        %v1781 = vadd.f32 0.0, %v1780
        %1782 = vmatmul.f32.gmra.mxu0 %v1671
        %v1783 = vpop.f32.mrf.mxu0
        %v1784 = vadd.f32 0.0, %v1783
        %1785 = vmatmul.f32.gmra.mxu0 %v1674
        %v1786 = vpop.f32.mrf.mxu0
        %v1787 = vadd.f32 0.0, %v1786
        %1788 = vmatmul.f32.gmra.mxu0 %v1677
        %v1789 = vpop.f32.mrf.mxu0
        %v1790 = vadd.f32 0.0, %v1789
        %1791 = vmatmul.f32.gmra.mxu0 %v1680
        %v1792 = vpop.f32.mrf.mxu0
        %v1793 = vadd.f32 0.0, %v1792
        %1794 = vmatmul.f32.gmra.mxu0 %v1683
        %v1795 = vpop.f32.mrf.mxu0
        %v1796 = vadd.f32 0.0, %v1795
        %1797 = vmatmul.f32.gmra.mxu0 %v1686
        %v1798 = vpop.f32.mrf.mxu0
        %v1799 = vadd.f32 0.0, %v1798
        %1800 = vmatmul.f32.gmra.mxu0 %v1689
        %v1801 = vpop.f32.mrf.mxu0
        %v1802 = vadd.f32 0.0, %v1801
        %1803 = vmatmul.f32.gmra.mxu0 %v1692
        %v1804 = vpop.f32.mrf.mxu0
        %v1805 = vadd.f32 0.0, %v1804
        %1806 = vmatmul.f32.gmra.mxu0 %v1695
        %v1807 = vpop.f32.mrf.mxu0
        %v1808 = vadd.f32 0.0, %v1807
        %1809 = vmatmul.f32.gmra.mxu0 %v1698
        %v1810 = vpop.f32.mrf.mxu0
        %v1811 = vadd.f32 0.0, %v1810
        %1812 = vmatmul.f32.gmra.mxu0 %v1701
        %v1813 = vpop.f32.mrf.mxu0
        %v1814 = vadd.f32 0.0, %v1813
        %1815 = vmatmul.f32.gmra.mxu0 %v1704
        %v1816 = vpop.f32.mrf.mxu0
        %v1817 = vadd.f32 0.0, %v1816
        %1818 = vmatmul.f32.gmra.mxu0 %v1707
        %v1819 = vpop.f32.mrf.mxu0
        %v1820 = vadd.f32 0.0, %v1819
        %1821 = vmatmul.f32.gmra.mxu0 %v1710
        %v1822 = vpop.f32.mrf.mxu0
        %v1823 = vadd.f32 0.0, %v1822
        %1824 = vmatmul.f32.gmra.mxu0 %v1713
        %v1825 = vpop.f32.mrf.mxu0
        %v1826 = vadd.f32 0.0, %v1825
        %1827 = vmatmul.f32.gmra.mxu0 %v1716
        %v1828 = vpop.f32.mrf.mxu0
        %v1829 = vadd.f32 0.0, %v1828
        %1830 = vmatmul.f32.gmra.mxu0 %v1719
        %v1831 = vpop.f32.mrf.mxu0
        %v1832 = vadd.f32 0.0, %v1831
        %1833 = vmatmul.f32.gmra.mxu0 %v1722
        %v1834 = vpop.f32.mrf.mxu0
        %v1835 = vadd.f32 0.0, %v1834
        %1836 = vmatmul.f32.gmra.mxu0 %v1725
        %v1837 = vpop.f32.mrf.mxu0
        %v1838 = vadd.f32 0.0, %v1837
        %1839 = vmatmul.f32.gmra.mxu0 %v1728
        %v1840 = vpop.f32.mrf.mxu0
        %v1841 = vadd.f32 0.0, %v1840
        %1842 = vmatmul.f32.gmra.mxu0 %v1731
        %v1843 = vpop.f32.mrf.mxu0
        %v1844 = vadd.f32 0.0, %v1843
        %1845 = vmatmul.f32.gmra.mxu0 %v1734
        %v1846 = vpop.f32.mrf.mxu0
        %v1847 = vadd.f32 0.0, %v1846
        %1848 = vmatmul.f32.gmra.mxu0 %v1737
        %v1849 = vpop.f32.mrf.mxu0
        %v1850 = vadd.f32 0.0, %v1849
        %1851 = vmatmul.f32.gmra.mxu0 %v1740
        %v1852 = vpop.f32.mrf.mxu0
        %v1853 = vadd.f32 0.0, %v1852
        %1854 = vmatmul.f32.gmra.mxu0 %v1743
        %v1855 = vpop.f32.mrf.mxu0
        %v1856 = vadd.f32 0.0, %v1855
        %1857 = vdwg.mxu0
        %v1858 = vadd.f32 %v1574, %v1763
        %v1859 = vadd.f32 %v1575, %v1766
        %v1860 = vadd.f32 %v1576, %v1769
        %v1861 = vadd.f32 %v1577, %v1772
        %v1862 = vadd.f32 %v1578, %v1775
        %v1863 = vadd.f32 %v1579, %v1778
        %v1864 = vadd.f32 %v1580, %v1781
        %v1865 = vadd.f32 %v1581, %v1784
        %v1866 = vadd.f32 %v1582, %v1787
        %v1867 = vadd.f32 %v1583, %v1790
        %v1868 = vadd.f32 %v1584, %v1793
        %v1869 = vadd.f32 %v1585, %v1796
        %v1870 = vadd.f32 %v1586, %v1799
        %v1871 = vadd.f32 %v1587, %v1802
        %v1872 = vadd.f32 %v1588, %v1805
        %v1873 = vadd.f32 %v1589, %v1808
        %v1874 = vadd.f32 %v1590, %v1811
        %v1875 = vadd.f32 %v1591, %v1814
        %v1876 = vadd.f32 %v1592, %v1817
        %v1877 = vadd.f32 %v1593, %v1820
        %v1878 = vadd.f32 %v1594, %v1823
        %v1879 = vadd.f32 %v1595, %v1826
        %v1880 = vadd.f32 %v1596, %v1829
        %v1881 = vadd.f32 %v1597, %v1832
        %v1882 = vadd.f32 %v1598, %v1835
        %v1883 = vadd.f32 %v1599, %v1838
        %v1884 = vadd.f32 %v1600, %v1841
        %v1885 = vadd.f32 %v1601, %v1844
        %v1886 = vadd.f32 %v1602, %v1847
        %v1887 = vadd.f32 %v1603, %v1850
        %v1888 = vadd.f32 %v1604, %v1853
        %v1889 = vadd.f32 %v1605, %v1856
        %v1890 = vld [vmem:[#allocation2 + $0x9] sm:$0xff]
        %v1891 = vld [vmem:[#allocation2 + $0x11] sm:$0xff]
        %v1892 = vld [vmem:[#allocation2 + $0x19] sm:$0xff]
        %v1893 = vld [vmem:[#allocation2 + $0x21] sm:$0xff]
        %v1894 = vld [vmem:[#allocation2 + $0x29] sm:$0xff]
        %v1895 = vld [vmem:[#allocation2 + $0x31] sm:$0xff]
        %v1896 = vld [vmem:[#allocation2 + $0x39] sm:$0xff]
        %v1897 = vld [vmem:[#allocation2 + $0x41] sm:$0xff]
        %v1898 = vld [vmem:[#allocation2 + $0x49] sm:$0xff]
        %v1899 = vld [vmem:[#allocation2 + $0x51] sm:$0xff]
        %v1900 = vld [vmem:[#allocation2 + $0x59] sm:$0xff]
        %v1901 = vld [vmem:[#allocation2 + $0x61] sm:$0xff]
        %v1902 = vld [vmem:[#allocation2 + $0x69] sm:$0xff]
        %v1903 = vld [vmem:[#allocation2 + $0x71] sm:$0xff]
        %v1904 = vld [vmem:[#allocation2 + $0x79] sm:$0xff]
        %v1905 = vld [vmem:[#allocation2 + $0x81] sm:$0xff]
        %v1906 = vld [vmem:[#allocation2 + $0x89] sm:$0xff]
        %v1907 = vld [vmem:[#allocation2 + $0x91] sm:$0xff]
        %v1908 = vld [vmem:[#allocation2 + $0x99] sm:$0xff]
        %v1909 = vld [vmem:[#allocation2 + $0xa1] sm:$0xff]
        %v1910 = vld [vmem:[#allocation2 + $0xa9] sm:$0xff]
        %v1911 = vld [vmem:[#allocation2 + $0xb1] sm:$0xff]
        %v1912 = vld [vmem:[#allocation2 + $0xb9] sm:$0xff]
        %v1913 = vld [vmem:[#allocation2 + $0xc1] sm:$0xff]
        %v1914 = vld [vmem:[#allocation2 + $0xc9] sm:$0xff]
        %v1915 = vld [vmem:[#allocation2 + $0xd1] sm:$0xff]
        %v1916 = vld [vmem:[#allocation2 + $0xd9] sm:$0xff]
        %v1917 = vld [vmem:[#allocation2 + $0xe1] sm:$0xff]
        %v1918 = vld [vmem:[#allocation2 + $0xe9] sm:$0xff]
        %v1919 = vld [vmem:[#allocation2 + $0xf1] sm:$0xff]
        %v1920 = vld [vmem:[#allocation2 + $0xf9] sm:$0xff]
        %v1921 = vld [vmem:[#allocation2 + $0x101] sm:$0xff]
        %s1922 = sadd.s32 %s1192, 2
        %s1923 = smul.u32 %s1922, 64
        %s1924 = scalar_lea.vmem %s2, %s1923
        %v1925 = vld [vmem:[%s1924] sm:$0xff]
        %v1926 = vld [vmem:[%s1924 + $0x8] sm:$0xff]
        %v1927 = vld [vmem:[%s1924 + $0x10] sm:$0xff]
        %v1928 = vld [vmem:[%s1924 + $0x18] sm:$0xff]
        %v1929 = vld [vmem:[%s1924 + $0x20] sm:$0xff]
        %v1930 = vld [vmem:[%s1924 + $0x28] sm:$0xff]
        %v1931 = vld [vmem:[%s1924 + $0x30] sm:$0xff]
        %v1932 = vld [vmem:[%s1924 + $0x38] sm:$0xff]
        %v1934 = vsel %vm306, %v1890, 0
        %v1937 = vsel %vm306, %v1891, 0
        %v1940 = vsel %vm306, %v1892, 0
        %v1943 = vsel %vm306, %v1893, 0
        %v1946 = vsel %vm306, %v1894, 0
        %v1949 = vsel %vm306, %v1895, 0
        %v1952 = vsel %vm306, %v1896, 0
        %v1955 = vsel %vm306, %v1897, 0
        %v1958 = vsel %vm306, %v1898, 0
        %v1961 = vsel %vm306, %v1899, 0
        %v1964 = vsel %vm306, %v1900, 0
        %v1967 = vsel %vm306, %v1901, 0
        %v1970 = vsel %vm306, %v1902, 0
        %v1973 = vsel %vm306, %v1903, 0
        %v1976 = vsel %vm306, %v1904, 0
        %v1979 = vsel %vm306, %v1905, 0
        %v1982 = vsel %vm306, %v1906, 0
        %v1985 = vsel %vm306, %v1907, 0
        %v1988 = vsel %vm306, %v1908, 0
        %v1991 = vsel %vm306, %v1909, 0
        %v1994 = vsel %vm306, %v1910, 0
        %v1997 = vsel %vm306, %v1911, 0
        %v2000 = vsel %vm306, %v1912, 0
        %v2003 = vsel %vm306, %v1913, 0
        %v2006 = vsel %vm306, %v1914, 0
        %v2009 = vsel %vm306, %v1915, 0
        %v2012 = vsel %vm306, %v1916, 0
        %v2015 = vsel %vm306, %v1917, 0
        %v2018 = vsel %vm306, %v1918, 0
        %v2021 = vsel %vm306, %v1919, 0
        %v2024 = vsel %vm306, %v1920, 0
        %v2027 = vsel %vm306, %v1921, 0
        %2029 = vmatpush.msra.mxu0 0.0
        %2030 = vmatpush.msra.mxu0 0.0
        %2031 = vmatpush.msra.mxu0 0.0
        %2032 = vmatpush.msra.mxu0 0.0
        %2033 = vmatpush.msra.mxu0 0.0
        %2034 = vmatpush.msra.mxu0 0.0
        %2035 = vmatpush.msra.mxu0 0.0
        %2036 = vmatpush.msra.mxu0 0.0
        %2037 = vmatpush.msra.mxu0 %v1932
        %2038 = vmatpush.msra.mxu0 %v1931
        %2039 = vmatpush.msra.mxu0 %v1930
        %2040 = vmatpush.msra.mxu0 %v1929
        %2041 = vmatpush.msra.mxu0 %v1928
        %2042 = vmatpush.msra.mxu0 %v1927
        %2043 = vmatpush.msra.mxu0 %v1926
        %2044 = vmatpush.msra.mxu0 %v1925
        %2045 = vmatmul.f32.gmra.mxu0 %v1934
        %v2046 = vpop.f32.mrf.mxu0
        %v2047 = vadd.f32 0.0, %v2046
        %2048 = vmatmul.f32.gmra.mxu0 %v1937
        %v2049 = vpop.f32.mrf.mxu0
        %v2050 = vadd.f32 0.0, %v2049
        %2051 = vmatmul.f32.gmra.mxu0 %v1940
        %v2052 = vpop.f32.mrf.mxu0
        %v2053 = vadd.f32 0.0, %v2052
        %2054 = vmatmul.f32.gmra.mxu0 %v1943
        %v2055 = vpop.f32.mrf.mxu0
        %v2056 = vadd.f32 0.0, %v2055
        %2057 = vmatmul.f32.gmra.mxu0 %v1946
        %v2058 = vpop.f32.mrf.mxu0
        %v2059 = vadd.f32 0.0, %v2058
        %2060 = vmatmul.f32.gmra.mxu0 %v1949
        %v2061 = vpop.f32.mrf.mxu0
        %v2062 = vadd.f32 0.0, %v2061
        %2063 = vmatmul.f32.gmra.mxu0 %v1952
        %v2064 = vpop.f32.mrf.mxu0
        %v2065 = vadd.f32 0.0, %v2064
        %2066 = vmatmul.f32.gmra.mxu0 %v1955
        %v2067 = vpop.f32.mrf.mxu0
        %v2068 = vadd.f32 0.0, %v2067
        %2069 = vmatmul.f32.gmra.mxu0 %v1958
        %v2070 = vpop.f32.mrf.mxu0
        %v2071 = vadd.f32 0.0, %v2070
        %2072 = vmatmul.f32.gmra.mxu0 %v1961
        %v2073 = vpop.f32.mrf.mxu0
        %v2074 = vadd.f32 0.0, %v2073
        %2075 = vmatmul.f32.gmra.mxu0 %v1964
        %v2076 = vpop.f32.mrf.mxu0
        %v2077 = vadd.f32 0.0, %v2076
        %2078 = vmatmul.f32.gmra.mxu0 %v1967
        %v2079 = vpop.f32.mrf.mxu0
        %v2080 = vadd.f32 0.0, %v2079
        %2081 = vmatmul.f32.gmra.mxu0 %v1970
        %v2082 = vpop.f32.mrf.mxu0
        %v2083 = vadd.f32 0.0, %v2082
        %2084 = vmatmul.f32.gmra.mxu0 %v1973
        %v2085 = vpop.f32.mrf.mxu0
        %v2086 = vadd.f32 0.0, %v2085
        %2087 = vmatmul.f32.gmra.mxu0 %v1976
        %v2088 = vpop.f32.mrf.mxu0
        %v2089 = vadd.f32 0.0, %v2088
        %2090 = vmatmul.f32.gmra.mxu0 %v1979
        %v2091 = vpop.f32.mrf.mxu0
        %v2092 = vadd.f32 0.0, %v2091
        %2093 = vmatmul.f32.gmra.mxu0 %v1982
        %v2094 = vpop.f32.mrf.mxu0
        %v2095 = vadd.f32 0.0, %v2094
        %2096 = vmatmul.f32.gmra.mxu0 %v1985
        %v2097 = vpop.f32.mrf.mxu0
        %v2098 = vadd.f32 0.0, %v2097
        %2099 = vmatmul.f32.gmra.mxu0 %v1988
        %v2100 = vpop.f32.mrf.mxu0
        %v2101 = vadd.f32 0.0, %v2100
        %2102 = vmatmul.f32.gmra.mxu0 %v1991
        %v2103 = vpop.f32.mrf.mxu0
        %v2104 = vadd.f32 0.0, %v2103
        %2105 = vmatmul.f32.gmra.mxu0 %v1994
        %v2106 = vpop.f32.mrf.mxu0
        %v2107 = vadd.f32 0.0, %v2106
        %2108 = vmatmul.f32.gmra.mxu0 %v1997
        %v2109 = vpop.f32.mrf.mxu0
        %v2110 = vadd.f32 0.0, %v2109
        %2111 = vmatmul.f32.gmra.mxu0 %v2000
        %v2112 = vpop.f32.mrf.mxu0
        %v2113 = vadd.f32 0.0, %v2112
        %2114 = vmatmul.f32.gmra.mxu0 %v2003
        %v2115 = vpop.f32.mrf.mxu0
        %v2116 = vadd.f32 0.0, %v2115
        %2117 = vmatmul.f32.gmra.mxu0 %v2006
        %v2118 = vpop.f32.mrf.mxu0
        %v2119 = vadd.f32 0.0, %v2118
        %2120 = vmatmul.f32.gmra.mxu0 %v2009
        %v2121 = vpop.f32.mrf.mxu0
        %v2122 = vadd.f32 0.0, %v2121
        %2123 = vmatmul.f32.gmra.mxu0 %v2012
        %v2124 = vpop.f32.mrf.mxu0
        %v2125 = vadd.f32 0.0, %v2124
        %2126 = vmatmul.f32.gmra.mxu0 %v2015
        %v2127 = vpop.f32.mrf.mxu0
        %v2128 = vadd.f32 0.0, %v2127
        %2129 = vmatmul.f32.gmra.mxu0 %v2018
        %v2130 = vpop.f32.mrf.mxu0
        %v2131 = vadd.f32 0.0, %v2130
        %2132 = vmatmul.f32.gmra.mxu0 %v2021
        %v2133 = vpop.f32.mrf.mxu0
        %v2134 = vadd.f32 0.0, %v2133
        %2135 = vmatmul.f32.gmra.mxu0 %v2024
        %v2136 = vpop.f32.mrf.mxu0
        %v2137 = vadd.f32 0.0, %v2136
        %2138 = vmatmul.f32.gmra.mxu0 %v2027
        %v2139 = vpop.f32.mrf.mxu0
        %v2140 = vadd.f32 0.0, %v2139
        %2141 = vdwg.mxu0
        %vm2142 = vcmp.eq.s32.totalorder %v1154, 15
        %vm2143 = vcmp.eq.s32.totalorder %v1155, 15
        %vm2144 = vcmp.eq.s32.totalorder %v1156, 15
        %vm2145 = vcmp.eq.s32.totalorder %v1157, 15
        %vm2146 = vcmp.eq.s32.totalorder %v1158, 15
        %vm2147 = vcmp.eq.s32.totalorder %v1159, 15
        %vm2148 = vcmp.eq.s32.totalorder %v1160, 15
        %vm2149 = vcmp.eq.s32.totalorder %v1161, 15
        %vm2150 = vcmp.eq.s32.totalorder %v1162, 15
        %vm2151 = vcmp.eq.s32.totalorder %v1163, 15
        %vm2152 = vcmp.eq.s32.totalorder %v1164, 15
        %vm2153 = vcmp.eq.s32.totalorder %v1165, 15
        %vm2154 = vcmp.eq.s32.totalorder %v1166, 15
        %vm2155 = vcmp.eq.s32.totalorder %v1167, 15
        %vm2156 = vcmp.eq.s32.totalorder %v1168, 15
        %vm2157 = vcmp.eq.s32.totalorder %v1169, 15
        %vm2158 = vcmp.eq.s32.totalorder %v1170, 15
        %vm2159 = vcmp.eq.s32.totalorder %v1171, 15
        %vm2160 = vcmp.eq.s32.totalorder %v1172, 15
        %vm2161 = vcmp.eq.s32.totalorder %v1173, 15
        %vm2162 = vcmp.eq.s32.totalorder %v1174, 15
        %vm2163 = vcmp.eq.s32.totalorder %v1175, 15
        %vm2164 = vcmp.eq.s32.totalorder %v1176, 15
        %vm2165 = vcmp.eq.s32.totalorder %v1177, 15
        %vm2166 = vcmp.eq.s32.totalorder %v1178, 15
        %vm2167 = vcmp.eq.s32.totalorder %v1179, 15
        %vm2168 = vcmp.eq.s32.totalorder %v1180, 15
        %vm2169 = vcmp.eq.s32.totalorder %v1181, 15
        %vm2170 = vcmp.eq.s32.totalorder %v1182, 15
        %vm2171 = vcmp.eq.s32.totalorder %v1183, 15
        %vm2172 = vcmp.eq.s32.totalorder %v1184, 15
        %vm2173 = vcmp.eq.s32.totalorder %v1185, 15
        %v2174 = vsel %vm2142, 1, 0
        %v2175 = vsel %vm2143, 1, 0
        %v2176 = vsel %vm2144, 1, 0
        %v2177 = vsel %vm2145, 1, 0
        %v2178 = vsel %vm2146, 1, 0
        %v2179 = vsel %vm2147, 1, 0
        %v2180 = vsel %vm2148, 1, 0
        %v2181 = vsel %vm2149, 1, 0
        %v2182 = vsel %vm2150, 1, 0
        %v2183 = vsel %vm2151, 1, 0
        %v2184 = vsel %vm2152, 1, 0
        %v2185 = vsel %vm2153, 1, 0
        %v2186 = vsel %vm2154, 1, 0
        %v2187 = vsel %vm2155, 1, 0
        %v2188 = vsel %vm2156, 1, 0
        %v2189 = vsel %vm2157, 1, 0
        %v2190 = vsel %vm2158, 1, 0
        %v2191 = vsel %vm2159, 1, 0
        %v2192 = vsel %vm2160, 1, 0
        %v2193 = vsel %vm2161, 1, 0
        %v2194 = vsel %vm2162, 1, 0
        %v2195 = vsel %vm2163, 1, 0
        %v2196 = vsel %vm2164, 1, 0
        %v2197 = vsel %vm2165, 1, 0
        %v2198 = vsel %vm2166, 1, 0
        %v2199 = vsel %vm2167, 1, 0
        %v2200 = vsel %vm2168, 1, 0
        %v2201 = vsel %vm2169, 1, 0
        %v2202 = vsel %vm2170, 1, 0
        %v2203 = vsel %vm2171, 1, 0
        %v2204 = vsel %vm2172, 1, 0
        %v2205 = vsel %vm2173, 1, 0
        %vm2206 = vcmp.eq.s32.totalorder %v2174, 1
        %vm2207 = vcmp.eq.s32.totalorder %v2175, 1
        %vm2208 = vcmp.eq.s32.totalorder %v2176, 1
        %vm2209 = vcmp.eq.s32.totalorder %v2177, 1
        %vm2210 = vcmp.eq.s32.totalorder %v2178, 1
        %vm2211 = vcmp.eq.s32.totalorder %v2179, 1
        %vm2212 = vcmp.eq.s32.totalorder %v2180, 1
        %vm2213 = vcmp.eq.s32.totalorder %v2181, 1
        %vm2214 = vcmp.eq.s32.totalorder %v2182, 1
        %vm2215 = vcmp.eq.s32.totalorder %v2183, 1
        %vm2216 = vcmp.eq.s32.totalorder %v2184, 1
        %vm2217 = vcmp.eq.s32.totalorder %v2185, 1
        %vm2218 = vcmp.eq.s32.totalorder %v2186, 1
        %vm2219 = vcmp.eq.s32.totalorder %v2187, 1
        %vm2220 = vcmp.eq.s32.totalorder %v2188, 1
        %vm2221 = vcmp.eq.s32.totalorder %v2189, 1
        %vm2222 = vcmp.eq.s32.totalorder %v2190, 1
        %vm2223 = vcmp.eq.s32.totalorder %v2191, 1
        %vm2224 = vcmp.eq.s32.totalorder %v2192, 1
        %vm2225 = vcmp.eq.s32.totalorder %v2193, 1
        %vm2226 = vcmp.eq.s32.totalorder %v2194, 1
        %vm2227 = vcmp.eq.s32.totalorder %v2195, 1
        %vm2228 = vcmp.eq.s32.totalorder %v2196, 1
        %vm2229 = vcmp.eq.s32.totalorder %v2197, 1
        %vm2230 = vcmp.eq.s32.totalorder %v2198, 1
        %vm2231 = vcmp.eq.s32.totalorder %v2199, 1
        %vm2232 = vcmp.eq.s32.totalorder %v2200, 1
        %vm2233 = vcmp.eq.s32.totalorder %v2201, 1
        %vm2234 = vcmp.eq.s32.totalorder %v2202, 1
        %vm2235 = vcmp.eq.s32.totalorder %v2203, 1
        %vm2236 = vcmp.eq.s32.totalorder %v2204, 1
        %vm2237 = vcmp.eq.s32.totalorder %v2205, 1
        %v2238 = vsel %vm2206, 0.0, %v2047
        %v2239 = vsel %vm2207, 0.0, %v2050
        %v2240 = vsel %vm2208, 0.0, %v2053
        %v2241 = vsel %vm2209, 0.0, %v2056
        %v2242 = vsel %vm2210, 0.0, %v2059
        %v2243 = vsel %vm2211, 0.0, %v2062
        %v2244 = vsel %vm2212, 0.0, %v2065
        %v2245 = vsel %vm2213, 0.0, %v2068
        %v2246 = vsel %vm2214, 0.0, %v2071
        %v2247 = vsel %vm2215, 0.0, %v2074
        %v2248 = vsel %vm2216, 0.0, %v2077
        %v2249 = vsel %vm2217, 0.0, %v2080
        %v2250 = vsel %vm2218, 0.0, %v2083
        %v2251 = vsel %vm2219, 0.0, %v2086
        %v2252 = vsel %vm2220, 0.0, %v2089
        %v2253 = vsel %vm2221, 0.0, %v2092
        %v2254 = vsel %vm2222, 0.0, %v2095
        %v2255 = vsel %vm2223, 0.0, %v2098
        %v2256 = vsel %vm2224, 0.0, %v2101
        %v2257 = vsel %vm2225, 0.0, %v2104
        %v2258 = vsel %vm2226, 0.0, %v2107
        %v2259 = vsel %vm2227, 0.0, %v2110
        %v2260 = vsel %vm2228, 0.0, %v2113
        %v2261 = vsel %vm2229, 0.0, %v2116
        %v2262 = vsel %vm2230, 0.0, %v2119
        %v2263 = vsel %vm2231, 0.0, %v2122
        %v2264 = vsel %vm2232, 0.0, %v2125
        %v2265 = vsel %vm2233, 0.0, %v2128
        %v2266 = vsel %vm2234, 0.0, %v2131
        %v2267 = vsel %vm2235, 0.0, %v2134
        %v2268 = vsel %vm2236, 0.0, %v2137
        %v2269 = vsel %vm2237, 0.0, %v2140
        %v2270 = vadd.f32 %v1858, %v2238
        %v2271 = vadd.f32 %v1859, %v2239
        %v2272 = vadd.f32 %v1860, %v2240
        %v2273 = vadd.f32 %v1861, %v2241
        %v2274 = vadd.f32 %v1862, %v2242
        %v2275 = vadd.f32 %v1863, %v2243
        %v2276 = vadd.f32 %v1864, %v2244
        %v2277 = vadd.f32 %v1865, %v2245
        %v2278 = vadd.f32 %v1866, %v2246
        %v2279 = vadd.f32 %v1867, %v2247
        %v2280 = vadd.f32 %v1868, %v2248
        %v2281 = vadd.f32 %v1869, %v2249
        %v2282 = vadd.f32 %v1870, %v2250
        %v2283 = vadd.f32 %v1871, %v2251
        %v2284 = vadd.f32 %v1872, %v2252
        %v2285 = vadd.f32 %v1873, %v2253
        %v2286 = vadd.f32 %v1874, %v2254
        %v2287 = vadd.f32 %v1875, %v2255
        %v2288 = vadd.f32 %v1876, %v2256
        %v2289 = vadd.f32 %v1877, %v2257
        %v2290 = vadd.f32 %v1878, %v2258
        %v2291 = vadd.f32 %v1879, %v2259
        %v2292 = vadd.f32 %v1880, %v2260
        %v2293 = vadd.f32 %v1881, %v2261
        %v2294 = vadd.f32 %v1882, %v2262
        %v2295 = vadd.f32 %v1883, %v2263
        %v2296 = vadd.f32 %v1884, %v2264
        %v2297 = vadd.f32 %v1885, %v2265
        %v2298 = vadd.f32 %v1886, %v2266
        %v2299 = vadd.f32 %v1887, %v2267
        %v2300 = vadd.f32 %v1888, %v2268
        %v2301 = vadd.f32 %v1889, %v2269
        %v2302 = vld [vmem:[#allocation2 + $0x17] sm:$0xff]
        %v2303 = vld [vmem:[#allocation2 + $0x1f] sm:$0xff]
        %v2304 = vld [vmem:[#allocation2 + $0x27] sm:$0xff]
        %v2305 = vld [vmem:[#allocation2 + $0x2f] sm:$0xff]
        %v2306 = vld [vmem:[#allocation2 + $0x37] sm:$0xff]
        %v2307 = vld [vmem:[#allocation2 + $0x3f] sm:$0xff]
        %v2308 = vld [vmem:[#allocation2 + $0x47] sm:$0xff]
        %v2309 = vld [vmem:[#allocation2 + $0x4f] sm:$0xff]
        %v2310 = vld [vmem:[#allocation2 + $0x57] sm:$0xff]
        %v2311 = vld [vmem:[#allocation2 + $0x5f] sm:$0xff]
        %v2312 = vld [vmem:[#allocation2 + $0x67] sm:$0xff]
        %v2313 = vld [vmem:[#allocation2 + $0x6f] sm:$0xff]
        %v2314 = vld [vmem:[#allocation2 + $0x77] sm:$0xff]
        %v2315 = vld [vmem:[#allocation2 + $0x7f] sm:$0xff]
        %v2316 = vld [vmem:[#allocation2 + $0x87] sm:$0xff]
        %v2317 = vld [vmem:[#allocation2 + $0x8f] sm:$0xff]
        %v2318 = vld [vmem:[#allocation2 + $0x97] sm:$0xff]
        %v2319 = vld [vmem:[#allocation2 + $0x9f] sm:$0xff]
        %v2320 = vld [vmem:[#allocation2 + $0xa7] sm:$0xff]
        %v2321 = vld [vmem:[#allocation2 + $0xaf] sm:$0xff]
        %v2322 = vld [vmem:[#allocation2 + $0xb7] sm:$0xff]
        %v2323 = vld [vmem:[#allocation2 + $0xbf] sm:$0xff]
        %v2324 = vld [vmem:[#allocation2 + $0xc7] sm:$0xff]
        %v2325 = vld [vmem:[#allocation2 + $0xcf] sm:$0xff]
        %v2326 = vld [vmem:[#allocation2 + $0xd7] sm:$0xff]
        %v2327 = vld [vmem:[#allocation2 + $0xdf] sm:$0xff]
        %v2328 = vld [vmem:[#allocation2 + $0xe7] sm:$0xff]
        %v2329 = vld [vmem:[#allocation2 + $0xef] sm:$0xff]
        %v2330 = vld [vmem:[#allocation2 + $0xf7] sm:$0xff]
        %v2331 = vld [vmem:[#allocation2 + $0xff] sm:$0xff]
        %v2332 = vld [vmem:[#allocation2 + $0x107] sm:$0xff]
        %v2333 = vld [vmem:[#allocation2 + $0x10f] sm:$0xff]
        %s2334 = sadd.s32 %s1192, 3
        %s2335 = smul.u32 %s2334, 64
        %s2336 = scalar_lea.vmem %s2, %s2335
        %v2337 = vld [vmem:[%s2336] sm:$0xff]
        %v2338 = vld [vmem:[%s2336 + $0x8] sm:$0xff]
        %v2339 = vld [vmem:[%s2336 + $0x10] sm:$0xff]
        %v2340 = vld [vmem:[%s2336 + $0x18] sm:$0xff]
        %v2341 = vld [vmem:[%s2336 + $0x20] sm:$0xff]
        %v2342 = vld [vmem:[%s2336 + $0x28] sm:$0xff]
        %v2343 = vld [vmem:[%s2336 + $0x30] sm:$0xff]
        %v2344 = vld [vmem:[%s2336 + $0x38] sm:$0xff]
        %v2346 = vsel %vm306, %v2302, 0
        %v2349 = vsel %vm306, %v2303, 0
        %v2352 = vsel %vm306, %v2304, 0
        %v2355 = vsel %vm306, %v2305, 0
        %v2358 = vsel %vm306, %v2306, 0
        %v2361 = vsel %vm306, %v2307, 0
        %v2364 = vsel %vm306, %v2308, 0
        %v2367 = vsel %vm306, %v2309, 0
        %v2370 = vsel %vm306, %v2310, 0
        %v2373 = vsel %vm306, %v2311, 0
        %v2376 = vsel %vm306, %v2312, 0
        %v2379 = vsel %vm306, %v2313, 0
        %v2382 = vsel %vm306, %v2314, 0
        %v2385 = vsel %vm306, %v2315, 0
        %v2388 = vsel %vm306, %v2316, 0
        %v2391 = vsel %vm306, %v2317, 0
        %v2394 = vsel %vm306, %v2318, 0
        %v2397 = vsel %vm306, %v2319, 0
        %v2400 = vsel %vm306, %v2320, 0
        %v2403 = vsel %vm306, %v2321, 0
        %v2406 = vsel %vm306, %v2322, 0
        %v2409 = vsel %vm306, %v2323, 0
        %v2412 = vsel %vm306, %v2324, 0
        %v2415 = vsel %vm306, %v2325, 0
        %v2418 = vsel %vm306, %v2326, 0
        %v2421 = vsel %vm306, %v2327, 0
        %v2424 = vsel %vm306, %v2328, 0
        %v2427 = vsel %vm306, %v2329, 0
        %v2430 = vsel %vm306, %v2330, 0
        %v2433 = vsel %vm306, %v2331, 0
        %v2436 = vsel %vm306, %v2332, 0
        %v2439 = vsel %vm306, %v2333, 0
        %2441 = vmatpush.msra.mxu0 0.0
        %2442 = vmatpush.msra.mxu0 0.0
        %2443 = vmatpush.msra.mxu0 0.0
        %2444 = vmatpush.msra.mxu0 0.0
        %2445 = vmatpush.msra.mxu0 0.0
        %2446 = vmatpush.msra.mxu0 0.0
        %2447 = vmatpush.msra.mxu0 0.0
        %2448 = vmatpush.msra.mxu0 0.0
        %2449 = vmatpush.msra.mxu0 %v2344
        %2450 = vmatpush.msra.mxu0 %v2343
        %2451 = vmatpush.msra.mxu0 %v2342
        %2452 = vmatpush.msra.mxu0 %v2341
        %2453 = vmatpush.msra.mxu0 %v2340
        %2454 = vmatpush.msra.mxu0 %v2339
        %2455 = vmatpush.msra.mxu0 %v2338
        %2456 = vmatpush.msra.mxu0 %v2337
        %2457 = vmatmul.f32.gmra.mxu0 %v2346
        %v2458 = vpop.f32.mrf.mxu0
        %v2459 = vadd.f32 0.0, %v2458
        %2460 = vmatmul.f32.gmra.mxu0 %v2349
        %v2461 = vpop.f32.mrf.mxu0
        %v2462 = vadd.f32 0.0, %v2461
        %2463 = vmatmul.f32.gmra.mxu0 %v2352
        %v2464 = vpop.f32.mrf.mxu0
        %v2465 = vadd.f32 0.0, %v2464
        %2466 = vmatmul.f32.gmra.mxu0 %v2355
        %v2467 = vpop.f32.mrf.mxu0
        %v2468 = vadd.f32 0.0, %v2467
        %2469 = vmatmul.f32.gmra.mxu0 %v2358
        %v2470 = vpop.f32.mrf.mxu0
        %v2471 = vadd.f32 0.0, %v2470
        %2472 = vmatmul.f32.gmra.mxu0 %v2361
        %v2473 = vpop.f32.mrf.mxu0
        %v2474 = vadd.f32 0.0, %v2473
        %2475 = vmatmul.f32.gmra.mxu0 %v2364
        %v2476 = vpop.f32.mrf.mxu0
        %v2477 = vadd.f32 0.0, %v2476
        %2478 = vmatmul.f32.gmra.mxu0 %v2367
        %v2479 = vpop.f32.mrf.mxu0
        %v2480 = vadd.f32 0.0, %v2479
        %2481 = vmatmul.f32.gmra.mxu0 %v2370
        %v2482 = vpop.f32.mrf.mxu0
        %v2483 = vadd.f32 0.0, %v2482
        %2484 = vmatmul.f32.gmra.mxu0 %v2373
        %v2485 = vpop.f32.mrf.mxu0
        %v2486 = vadd.f32 0.0, %v2485
        %2487 = vmatmul.f32.gmra.mxu0 %v2376
        %v2488 = vpop.f32.mrf.mxu0
        %v2489 = vadd.f32 0.0, %v2488
        %2490 = vmatmul.f32.gmra.mxu0 %v2379
        %v2491 = vpop.f32.mrf.mxu0
        %v2492 = vadd.f32 0.0, %v2491
        %2493 = vmatmul.f32.gmra.mxu0 %v2382
        %v2494 = vpop.f32.mrf.mxu0
        %v2495 = vadd.f32 0.0, %v2494
        %2496 = vmatmul.f32.gmra.mxu0 %v2385
        %v2497 = vpop.f32.mrf.mxu0
        %v2498 = vadd.f32 0.0, %v2497
        %2499 = vmatmul.f32.gmra.mxu0 %v2388
        %v2500 = vpop.f32.mrf.mxu0
        %v2501 = vadd.f32 0.0, %v2500
        %2502 = vmatmul.f32.gmra.mxu0 %v2391
        %v2503 = vpop.f32.mrf.mxu0
        %v2504 = vadd.f32 0.0, %v2503
        %2505 = vmatmul.f32.gmra.mxu0 %v2394
        %v2506 = vpop.f32.mrf.mxu0
        %v2507 = vadd.f32 0.0, %v2506
        %2508 = vmatmul.f32.gmra.mxu0 %v2397
        %v2509 = vpop.f32.mrf.mxu0
        %v2510 = vadd.f32 0.0, %v2509
        %2511 = vmatmul.f32.gmra.mxu0 %v2400
        %v2512 = vpop.f32.mrf.mxu0
        %v2513 = vadd.f32 0.0, %v2512
        %2514 = vmatmul.f32.gmra.mxu0 %v2403
        %v2515 = vpop.f32.mrf.mxu0
        %v2516 = vadd.f32 0.0, %v2515
        %2517 = vmatmul.f32.gmra.mxu0 %v2406
        %v2518 = vpop.f32.mrf.mxu0
        %v2519 = vadd.f32 0.0, %v2518
        %2520 = vmatmul.f32.gmra.mxu0 %v2409
        %v2521 = vpop.f32.mrf.mxu0
        %v2522 = vadd.f32 0.0, %v2521
        %2523 = vmatmul.f32.gmra.mxu0 %v2412
        %v2524 = vpop.f32.mrf.mxu0
        %v2525 = vadd.f32 0.0, %v2524
        %2526 = vmatmul.f32.gmra.mxu0 %v2415
        %v2527 = vpop.f32.mrf.mxu0
        %v2528 = vadd.f32 0.0, %v2527
        %2529 = vmatmul.f32.gmra.mxu0 %v2418
        %v2530 = vpop.f32.mrf.mxu0
        %v2531 = vadd.f32 0.0, %v2530
        %2532 = vmatmul.f32.gmra.mxu0 %v2421
        %v2533 = vpop.f32.mrf.mxu0
        %v2534 = vadd.f32 0.0, %v2533
        %2535 = vmatmul.f32.gmra.mxu0 %v2424
        %v2536 = vpop.f32.mrf.mxu0
        %v2537 = vadd.f32 0.0, %v2536
        %2538 = vmatmul.f32.gmra.mxu0 %v2427
        %v2539 = vpop.f32.mrf.mxu0
        %v2540 = vadd.f32 0.0, %v2539
        %2541 = vmatmul.f32.gmra.mxu0 %v2430
        %v2542 = vpop.f32.mrf.mxu0
        %v2543 = vadd.f32 0.0, %v2542
        %2544 = vmatmul.f32.gmra.mxu0 %v2433
        %v2545 = vpop.f32.mrf.mxu0
        %v2546 = vadd.f32 0.0, %v2545
        %2547 = vmatmul.f32.gmra.mxu0 %v2436
        %v2548 = vpop.f32.mrf.mxu0
        %v2549 = vadd.f32 0.0, %v2548
        %2550 = vmatmul.f32.gmra.mxu0 %v2439
        %v2551 = vpop.f32.mrf.mxu0
        %v2552 = vadd.f32 0.0, %v2551
        %2553 = vdwg.mxu0
        %v2554 = vsel %vm1510, 0.0, %v2459
        %v2555 = vsel %vm1511, 0.0, %v2462
        %v2556 = vsel %vm1512, 0.0, %v2465
        %v2557 = vsel %vm1513, 0.0, %v2468
        %v2558 = vsel %vm1514, 0.0, %v2471
        %v2559 = vsel %vm1515, 0.0, %v2474
        %v2560 = vsel %vm1516, 0.0, %v2477
        %v2561 = vsel %vm1517, 0.0, %v2480
        %v2562 = vsel %vm1518, 0.0, %v2483
        %v2563 = vsel %vm1519, 0.0, %v2486
        %v2564 = vsel %vm1520, 0.0, %v2489
        %v2565 = vsel %vm1521, 0.0, %v2492
        %v2566 = vsel %vm1522, 0.0, %v2495
        %v2567 = vsel %vm1523, 0.0, %v2498
        %v2568 = vsel %vm1524, 0.0, %v2501
        %v2569 = vsel %vm1525, 0.0, %v2504
        %v2570 = vsel %vm1526, 0.0, %v2507
        %v2571 = vsel %vm1527, 0.0, %v2510
        %v2572 = vsel %vm1528, 0.0, %v2513
        %v2573 = vsel %vm1529, 0.0, %v2516
        %v2574 = vsel %vm1530, 0.0, %v2519
        %v2575 = vsel %vm1531, 0.0, %v2522
        %v2576 = vsel %vm1532, 0.0, %v2525
        %v2577 = vsel %vm1533, 0.0, %v2528
        %v2578 = vsel %vm1534, 0.0, %v2531
        %v2579 = vsel %vm1535, 0.0, %v2534
        %v2580 = vsel %vm1536, 0.0, %v2537
        %v2581 = vsel %vm1537, 0.0, %v2540
        %v2582 = vsel %vm1538, 0.0, %v2543
        %v2583 = vsel %vm1539, 0.0, %v2546
        %v2584 = vsel %vm1540, 0.0, %v2549
        %v2585 = vsel %vm1541, 0.0, %v2552
        %v2586 = vadd.f32 %v2270, %v2554
        %v2587 = vadd.f32 %v2271, %v2555
        %v2588 = vadd.f32 %v2272, %v2556
        %v2589 = vadd.f32 %v2273, %v2557
        %v2590 = vadd.f32 %v2274, %v2558
        %v2591 = vadd.f32 %v2275, %v2559
        %v2592 = vadd.f32 %v2276, %v2560
        %v2593 = vadd.f32 %v2277, %v2561
        %v2594 = vadd.f32 %v2278, %v2562
        %v2595 = vadd.f32 %v2279, %v2563
        %v2596 = vadd.f32 %v2280, %v2564
        %v2597 = vadd.f32 %v2281, %v2565
        %v2598 = vadd.f32 %v2282, %v2566
        %v2599 = vadd.f32 %v2283, %v2567
        %v2600 = vadd.f32 %v2284, %v2568
        %v2601 = vadd.f32 %v2285, %v2569
        %v2602 = vadd.f32 %v2286, %v2570
        %v2603 = vadd.f32 %v2287, %v2571
        %v2604 = vadd.f32 %v2288, %v2572
        %v2605 = vadd.f32 %v2289, %v2573
        %v2606 = vadd.f32 %v2290, %v2574
        %v2607 = vadd.f32 %v2291, %v2575
        %v2608 = vadd.f32 %v2292, %v2576
        %v2609 = vadd.f32 %v2293, %v2577
        %v2610 = vadd.f32 %v2294, %v2578
        %v2611 = vadd.f32 %v2295, %v2579
        %v2612 = vadd.f32 %v2296, %v2580
        %v2613 = vadd.f32 %v2297, %v2581
        %v2614 = vadd.f32 %v2298, %v2582
        %v2615 = vadd.f32 %v2299, %v2583
        %v2616 = vadd.f32 %v2300, %v2584
        %v2617 = vadd.f32 %v2301, %v2585
        %v2618 = vld [vmem:[#allocation2 + $0x18] sm:$0xff]
        %v2619 = vld [vmem:[#allocation2 + $0x20] sm:$0xff]
        %v2620 = vld [vmem:[#allocation2 + $0x28] sm:$0xff]
        %v2621 = vld [vmem:[#allocation2 + $0x30] sm:$0xff]
        %v2622 = vld [vmem:[#allocation2 + $0x38] sm:$0xff]
        %v2623 = vld [vmem:[#allocation2 + $0x40] sm:$0xff]
        %v2624 = vld [vmem:[#allocation2 + $0x48] sm:$0xff]
        %v2625 = vld [vmem:[#allocation2 + $0x50] sm:$0xff]
        %v2626 = vld [vmem:[#allocation2 + $0x58] sm:$0xff]
        %v2627 = vld [vmem:[#allocation2 + $0x60] sm:$0xff]
        %v2628 = vld [vmem:[#allocation2 + $0x68] sm:$0xff]
        %v2629 = vld [vmem:[#allocation2 + $0x70] sm:$0xff]
        %v2630 = vld [vmem:[#allocation2 + $0x78] sm:$0xff]
        %v2631 = vld [vmem:[#allocation2 + $0x80] sm:$0xff]
        %v2632 = vld [vmem:[#allocation2 + $0x88] sm:$0xff]
        %v2633 = vld [vmem:[#allocation2 + $0x90] sm:$0xff]
        %v2634 = vld [vmem:[#allocation2 + $0x98] sm:$0xff]
        %v2635 = vld [vmem:[#allocation2 + $0xa0] sm:$0xff]
        %v2636 = vld [vmem:[#allocation2 + $0xa8] sm:$0xff]
        %v2637 = vld [vmem:[#allocation2 + $0xb0] sm:$0xff]
        %v2638 = vld [vmem:[#allocation2 + $0xb8] sm:$0xff]
        %v2639 = vld [vmem:[#allocation2 + $0xc0] sm:$0xff]
        %v2640 = vld [vmem:[#allocation2 + $0xc8] sm:$0xff]
        %v2641 = vld [vmem:[#allocation2 + $0xd0] sm:$0xff]
        %v2642 = vld [vmem:[#allocation2 + $0xd8] sm:$0xff]
        %v2643 = vld [vmem:[#allocation2 + $0xe0] sm:$0xff]
        %v2644 = vld [vmem:[#allocation2 + $0xe8] sm:$0xff]
        %v2645 = vld [vmem:[#allocation2 + $0xf0] sm:$0xff]
        %v2646 = vld [vmem:[#allocation2 + $0xf8] sm:$0xff]
        %v2647 = vld [vmem:[#allocation2 + $0x100] sm:$0xff]
        %v2648 = vld [vmem:[#allocation2 + $0x108] sm:$0xff]
        %v2649 = vld [vmem:[#allocation2 + $0x110] sm:$0xff]
        %s2650 = sadd.s32 %s1192, 4
        %s2651 = smul.u32 %s2650, 64
        %s2652 = scalar_lea.vmem %s2, %s2651
        %v2653 = vld [vmem:[%s2652] sm:$0xff]
        %v2654 = vld [vmem:[%s2652 + $0x8] sm:$0xff]
        %v2655 = vld [vmem:[%s2652 + $0x10] sm:$0xff]
        %v2656 = vld [vmem:[%s2652 + $0x18] sm:$0xff]
        %v2657 = vld [vmem:[%s2652 + $0x20] sm:$0xff]
        %v2658 = vld [vmem:[%s2652 + $0x28] sm:$0xff]
        %v2659 = vld [vmem:[%s2652 + $0x30] sm:$0xff]
        %v2660 = vld [vmem:[%s2652 + $0x38] sm:$0xff]
        %v2662 = vsel %vm306, %v2618, 0
        %v2665 = vsel %vm306, %v2619, 0
        %v2668 = vsel %vm306, %v2620, 0
        %v2671 = vsel %vm306, %v2621, 0
        %v2674 = vsel %vm306, %v2622, 0
        %v2677 = vsel %vm306, %v2623, 0
        %v2680 = vsel %vm306, %v2624, 0
        %v2683 = vsel %vm306, %v2625, 0
        %v2686 = vsel %vm306, %v2626, 0
        %v2689 = vsel %vm306, %v2627, 0
        %v2692 = vsel %vm306, %v2628, 0
        %v2695 = vsel %vm306, %v2629, 0
        %v2698 = vsel %vm306, %v2630, 0
        %v2701 = vsel %vm306, %v2631, 0
        %v2704 = vsel %vm306, %v2632, 0
        %v2707 = vsel %vm306, %v2633, 0
        %v2710 = vsel %vm306, %v2634, 0
        %v2713 = vsel %vm306, %v2635, 0
        %v2716 = vsel %vm306, %v2636, 0
        %v2719 = vsel %vm306, %v2637, 0
        %v2722 = vsel %vm306, %v2638, 0
        %v2725 = vsel %vm306, %v2639, 0
        %v2728 = vsel %vm306, %v2640, 0
        %v2731 = vsel %vm306, %v2641, 0
        %v2734 = vsel %vm306, %v2642, 0
        %v2737 = vsel %vm306, %v2643, 0
        %v2740 = vsel %vm306, %v2644, 0
        %v2743 = vsel %vm306, %v2645, 0
        %v2746 = vsel %vm306, %v2646, 0
        %v2749 = vsel %vm306, %v2647, 0
        %v2752 = vsel %vm306, %v2648, 0
        %v2755 = vsel %vm306, %v2649, 0
        %2757 = vmatpush.msra.mxu0 0.0
        %2758 = vmatpush.msra.mxu0 0.0
        %2759 = vmatpush.msra.mxu0 0.0
        %2760 = vmatpush.msra.mxu0 0.0
        %2761 = vmatpush.msra.mxu0 0.0
        %2762 = vmatpush.msra.mxu0 0.0
        %2763 = vmatpush.msra.mxu0 0.0
        %2764 = vmatpush.msra.mxu0 0.0
        %2765 = vmatpush.msra.mxu0 %v2660
        %2766 = vmatpush.msra.mxu0 %v2659
        %2767 = vmatpush.msra.mxu0 %v2658
        %2768 = vmatpush.msra.mxu0 %v2657
        %2769 = vmatpush.msra.mxu0 %v2656
        %2770 = vmatpush.msra.mxu0 %v2655
        %2771 = vmatpush.msra.mxu0 %v2654
        %2772 = vmatpush.msra.mxu0 %v2653
        %2773 = vmatmul.f32.gmra.mxu0 %v2662
        %v2774 = vpop.f32.mrf.mxu0
        %v2775 = vadd.f32 0.0, %v2774
        %2776 = vmatmul.f32.gmra.mxu0 %v2665
        %v2777 = vpop.f32.mrf.mxu0
        %v2778 = vadd.f32 0.0, %v2777
        %2779 = vmatmul.f32.gmra.mxu0 %v2668
        %v2780 = vpop.f32.mrf.mxu0
        %v2781 = vadd.f32 0.0, %v2780
        %2782 = vmatmul.f32.gmra.mxu0 %v2671
        %v2783 = vpop.f32.mrf.mxu0
        %v2784 = vadd.f32 0.0, %v2783
        %2785 = vmatmul.f32.gmra.mxu0 %v2674
        %v2786 = vpop.f32.mrf.mxu0
        %v2787 = vadd.f32 0.0, %v2786
        %2788 = vmatmul.f32.gmra.mxu0 %v2677
        %v2789 = vpop.f32.mrf.mxu0
        %v2790 = vadd.f32 0.0, %v2789
        %2791 = vmatmul.f32.gmra.mxu0 %v2680
        %v2792 = vpop.f32.mrf.mxu0
        %v2793 = vadd.f32 0.0, %v2792
        %2794 = vmatmul.f32.gmra.mxu0 %v2683
        %v2795 = vpop.f32.mrf.mxu0
        %v2796 = vadd.f32 0.0, %v2795
        %2797 = vmatmul.f32.gmra.mxu0 %v2686
        %v2798 = vpop.f32.mrf.mxu0
        %v2799 = vadd.f32 0.0, %v2798
        %2800 = vmatmul.f32.gmra.mxu0 %v2689
        %v2801 = vpop.f32.mrf.mxu0
        %v2802 = vadd.f32 0.0, %v2801
        %2803 = vmatmul.f32.gmra.mxu0 %v2692
        %v2804 = vpop.f32.mrf.mxu0
        %v2805 = vadd.f32 0.0, %v2804
        %2806 = vmatmul.f32.gmra.mxu0 %v2695
        %v2807 = vpop.f32.mrf.mxu0
        %v2808 = vadd.f32 0.0, %v2807
        %2809 = vmatmul.f32.gmra.mxu0 %v2698
        %v2810 = vpop.f32.mrf.mxu0
        %v2811 = vadd.f32 0.0, %v2810
        %2812 = vmatmul.f32.gmra.mxu0 %v2701
        %v2813 = vpop.f32.mrf.mxu0
        %v2814 = vadd.f32 0.0, %v2813
        %2815 = vmatmul.f32.gmra.mxu0 %v2704
        %v2816 = vpop.f32.mrf.mxu0
        %v2817 = vadd.f32 0.0, %v2816
        %2818 = vmatmul.f32.gmra.mxu0 %v2707
        %v2819 = vpop.f32.mrf.mxu0
        %v2820 = vadd.f32 0.0, %v2819
        %2821 = vmatmul.f32.gmra.mxu0 %v2710
        %v2822 = vpop.f32.mrf.mxu0
        %v2823 = vadd.f32 0.0, %v2822
        %2824 = vmatmul.f32.gmra.mxu0 %v2713
        %v2825 = vpop.f32.mrf.mxu0
        %v2826 = vadd.f32 0.0, %v2825
        %2827 = vmatmul.f32.gmra.mxu0 %v2716
        %v2828 = vpop.f32.mrf.mxu0
        %v2829 = vadd.f32 0.0, %v2828
        %2830 = vmatmul.f32.gmra.mxu0 %v2719
        %v2831 = vpop.f32.mrf.mxu0
        %v2832 = vadd.f32 0.0, %v2831
        %2833 = vmatmul.f32.gmra.mxu0 %v2722
        %v2834 = vpop.f32.mrf.mxu0
        %v2835 = vadd.f32 0.0, %v2834
        %2836 = vmatmul.f32.gmra.mxu0 %v2725
        %v2837 = vpop.f32.mrf.mxu0
        %v2838 = vadd.f32 0.0, %v2837
        %2839 = vmatmul.f32.gmra.mxu0 %v2728
        %v2840 = vpop.f32.mrf.mxu0
        %v2841 = vadd.f32 0.0, %v2840
        %2842 = vmatmul.f32.gmra.mxu0 %v2731
        %v2843 = vpop.f32.mrf.mxu0
        %v2844 = vadd.f32 0.0, %v2843
        %2845 = vmatmul.f32.gmra.mxu0 %v2734
        %v2846 = vpop.f32.mrf.mxu0
        %v2847 = vadd.f32 0.0, %v2846
        %2848 = vmatmul.f32.gmra.mxu0 %v2737
        %v2849 = vpop.f32.mrf.mxu0
        %v2850 = vadd.f32 0.0, %v2849
        %2851 = vmatmul.f32.gmra.mxu0 %v2740
        %v2852 = vpop.f32.mrf.mxu0
        %v2853 = vadd.f32 0.0, %v2852
        %2854 = vmatmul.f32.gmra.mxu0 %v2743
        %v2855 = vpop.f32.mrf.mxu0
        %v2856 = vadd.f32 0.0, %v2855
        %2857 = vmatmul.f32.gmra.mxu0 %v2746
        %v2858 = vpop.f32.mrf.mxu0
        %v2859 = vadd.f32 0.0, %v2858
        %2860 = vmatmul.f32.gmra.mxu0 %v2749
        %v2861 = vpop.f32.mrf.mxu0
        %v2862 = vadd.f32 0.0, %v2861
        %2863 = vmatmul.f32.gmra.mxu0 %v2752
        %v2864 = vpop.f32.mrf.mxu0
        %v2865 = vadd.f32 0.0, %v2864
        %2866 = vmatmul.f32.gmra.mxu0 %v2755
        %v2867 = vpop.f32.mrf.mxu0
        %v2868 = vadd.f32 0.0, %v2867
        %2869 = vdwg.mxu0
        %v2870 = vadd.f32 %v2586, %v2775
        %v2871 = vadd.f32 %v2587, %v2778
        %v2872 = vadd.f32 %v2588, %v2781
        %v2873 = vadd.f32 %v2589, %v2784
        %v2874 = vadd.f32 %v2590, %v2787
        %v2875 = vadd.f32 %v2591, %v2790
        %v2876 = vadd.f32 %v2592, %v2793
        %v2877 = vadd.f32 %v2593, %v2796
        %v2878 = vadd.f32 %v2594, %v2799
        %v2879 = vadd.f32 %v2595, %v2802
        %v2880 = vadd.f32 %v2596, %v2805
        %v2881 = vadd.f32 %v2597, %v2808
        %v2882 = vadd.f32 %v2598, %v2811
        %v2883 = vadd.f32 %v2599, %v2814
        %v2884 = vadd.f32 %v2600, %v2817
        %v2885 = vadd.f32 %v2601, %v2820
        %v2886 = vadd.f32 %v2602, %v2823
        %v2887 = vadd.f32 %v2603, %v2826
        %v2888 = vadd.f32 %v2604, %v2829
        %v2889 = vadd.f32 %v2605, %v2832
        %v2890 = vadd.f32 %v2606, %v2835
        %v2891 = vadd.f32 %v2607, %v2838
        %v2892 = vadd.f32 %v2608, %v2841
        %v2893 = vadd.f32 %v2609, %v2844
        %v2894 = vadd.f32 %v2610, %v2847
        %v2895 = vadd.f32 %v2611, %v2850
        %v2896 = vadd.f32 %v2612, %v2853
        %v2897 = vadd.f32 %v2613, %v2856
        %v2898 = vadd.f32 %v2614, %v2859
        %v2899 = vadd.f32 %v2615, %v2862
        %v2900 = vadd.f32 %v2616, %v2865
        %v2901 = vadd.f32 %v2617, %v2868
        %v2902 = vld [vmem:[#allocation2 + $0x19] sm:$0xff]
        %v2903 = vld [vmem:[#allocation2 + $0x21] sm:$0xff]
        %v2904 = vld [vmem:[#allocation2 + $0x29] sm:$0xff]
        %v2905 = vld [vmem:[#allocation2 + $0x31] sm:$0xff]
        %v2906 = vld [vmem:[#allocation2 + $0x39] sm:$0xff]
        %v2907 = vld [vmem:[#allocation2 + $0x41] sm:$0xff]
        %v2908 = vld [vmem:[#allocation2 + $0x49] sm:$0xff]
        %v2909 = vld [vmem:[#allocation2 + $0x51] sm:$0xff]
        %v2910 = vld [vmem:[#allocation2 + $0x59] sm:$0xff]
        %v2911 = vld [vmem:[#allocation2 + $0x61] sm:$0xff]
        %v2912 = vld [vmem:[#allocation2 + $0x69] sm:$0xff]
        %v2913 = vld [vmem:[#allocation2 + $0x71] sm:$0xff]
        %v2914 = vld [vmem:[#allocation2 + $0x79] sm:$0xff]
        %v2915 = vld [vmem:[#allocation2 + $0x81] sm:$0xff]
        %v2916 = vld [vmem:[#allocation2 + $0x89] sm:$0xff]
        %v2917 = vld [vmem:[#allocation2 + $0x91] sm:$0xff]
        %v2918 = vld [vmem:[#allocation2 + $0x99] sm:$0xff]
        %v2919 = vld [vmem:[#allocation2 + $0xa1] sm:$0xff]
        %v2920 = vld [vmem:[#allocation2 + $0xa9] sm:$0xff]
        %v2921 = vld [vmem:[#allocation2 + $0xb1] sm:$0xff]
        %v2922 = vld [vmem:[#allocation2 + $0xb9] sm:$0xff]
        %v2923 = vld [vmem:[#allocation2 + $0xc1] sm:$0xff]
        %v2924 = vld [vmem:[#allocation2 + $0xc9] sm:$0xff]
        %v2925 = vld [vmem:[#allocation2 + $0xd1] sm:$0xff]
        %v2926 = vld [vmem:[#allocation2 + $0xd9] sm:$0xff]
        %v2927 = vld [vmem:[#allocation2 + $0xe1] sm:$0xff]
        %v2928 = vld [vmem:[#allocation2 + $0xe9] sm:$0xff]
        %v2929 = vld [vmem:[#allocation2 + $0xf1] sm:$0xff]
        %v2930 = vld [vmem:[#allocation2 + $0xf9] sm:$0xff]
        %v2931 = vld [vmem:[#allocation2 + $0x101] sm:$0xff]
        %v2932 = vld [vmem:[#allocation2 + $0x109] sm:$0xff]
        %v2933 = vld [vmem:[#allocation2 + $0x111] sm:$0xff]
        %s2934 = sadd.s32 %s1192, 5
        %s2935 = smul.u32 %s2934, 64
        %s2936 = scalar_lea.vmem %s2, %s2935
        %v2937 = vld [vmem:[%s2936] sm:$0xff]
        %v2938 = vld [vmem:[%s2936 + $0x8] sm:$0xff]
        %v2939 = vld [vmem:[%s2936 + $0x10] sm:$0xff]
        %v2940 = vld [vmem:[%s2936 + $0x18] sm:$0xff]
        %v2941 = vld [vmem:[%s2936 + $0x20] sm:$0xff]
        %v2942 = vld [vmem:[%s2936 + $0x28] sm:$0xff]
        %v2943 = vld [vmem:[%s2936 + $0x30] sm:$0xff]
        %v2944 = vld [vmem:[%s2936 + $0x38] sm:$0xff]
        %v2946 = vsel %vm306, %v2902, 0
        %v2949 = vsel %vm306, %v2903, 0
        %v2952 = vsel %vm306, %v2904, 0
        %v2955 = vsel %vm306, %v2905, 0
        %v2958 = vsel %vm306, %v2906, 0
        %v2961 = vsel %vm306, %v2907, 0
        %v2964 = vsel %vm306, %v2908, 0
        %v2967 = vsel %vm306, %v2909, 0
        %v2970 = vsel %vm306, %v2910, 0
        %v2973 = vsel %vm306, %v2911, 0
        %v2976 = vsel %vm306, %v2912, 0
        %v2979 = vsel %vm306, %v2913, 0
        %v2982 = vsel %vm306, %v2914, 0
        %v2985 = vsel %vm306, %v2915, 0
        %v2988 = vsel %vm306, %v2916, 0
        %v2991 = vsel %vm306, %v2917, 0
        %v2994 = vsel %vm306, %v2918, 0
        %v2997 = vsel %vm306, %v2919, 0
        %v3000 = vsel %vm306, %v2920, 0
        %v3003 = vsel %vm306, %v2921, 0
        %v3006 = vsel %vm306, %v2922, 0
        %v3009 = vsel %vm306, %v2923, 0
        %v3012 = vsel %vm306, %v2924, 0
        %v3015 = vsel %vm306, %v2925, 0
        %v3018 = vsel %vm306, %v2926, 0
        %v3021 = vsel %vm306, %v2927, 0
        %v3024 = vsel %vm306, %v2928, 0
        %v3027 = vsel %vm306, %v2929, 0
        %v3030 = vsel %vm306, %v2930, 0
        %v3033 = vsel %vm306, %v2931, 0
        %v3036 = vsel %vm306, %v2932, 0
        %v3039 = vsel %vm306, %v2933, 0
        %3041 = vmatpush.msra.mxu0 0.0
        %3042 = vmatpush.msra.mxu0 0.0
        %3043 = vmatpush.msra.mxu0 0.0
        %3044 = vmatpush.msra.mxu0 0.0
        %3045 = vmatpush.msra.mxu0 0.0
        %3046 = vmatpush.msra.mxu0 0.0
        %3047 = vmatpush.msra.mxu0 0.0
        %3048 = vmatpush.msra.mxu0 0.0
        %3049 = vmatpush.msra.mxu0 %v2944
        %3050 = vmatpush.msra.mxu0 %v2943
        %3051 = vmatpush.msra.mxu0 %v2942
        %3052 = vmatpush.msra.mxu0 %v2941
        %3053 = vmatpush.msra.mxu0 %v2940
        %3054 = vmatpush.msra.mxu0 %v2939
        %3055 = vmatpush.msra.mxu0 %v2938
        %3056 = vmatpush.msra.mxu0 %v2937
        %3057 = vmatmul.f32.gmra.mxu0 %v2946
        %v3058 = vpop.f32.mrf.mxu0
        %v3059 = vadd.f32 0.0, %v3058
        %3060 = vmatmul.f32.gmra.mxu0 %v2949
        %v3061 = vpop.f32.mrf.mxu0
        %v3062 = vadd.f32 0.0, %v3061
        %3063 = vmatmul.f32.gmra.mxu0 %v2952
        %v3064 = vpop.f32.mrf.mxu0
        %v3065 = vadd.f32 0.0, %v3064
        %3066 = vmatmul.f32.gmra.mxu0 %v2955
        %v3067 = vpop.f32.mrf.mxu0
        %v3068 = vadd.f32 0.0, %v3067
        %3069 = vmatmul.f32.gmra.mxu0 %v2958
        %v3070 = vpop.f32.mrf.mxu0
        %v3071 = vadd.f32 0.0, %v3070
        %3072 = vmatmul.f32.gmra.mxu0 %v2961
        %v3073 = vpop.f32.mrf.mxu0
        %v3074 = vadd.f32 0.0, %v3073
        %3075 = vmatmul.f32.gmra.mxu0 %v2964
        %v3076 = vpop.f32.mrf.mxu0
        %v3077 = vadd.f32 0.0, %v3076
        %3078 = vmatmul.f32.gmra.mxu0 %v2967
        %v3079 = vpop.f32.mrf.mxu0
        %v3080 = vadd.f32 0.0, %v3079
        %3081 = vmatmul.f32.gmra.mxu0 %v2970
        %v3082 = vpop.f32.mrf.mxu0
        %v3083 = vadd.f32 0.0, %v3082
        %3084 = vmatmul.f32.gmra.mxu0 %v2973
        %v3085 = vpop.f32.mrf.mxu0
        %v3086 = vadd.f32 0.0, %v3085
        %3087 = vmatmul.f32.gmra.mxu0 %v2976
        %v3088 = vpop.f32.mrf.mxu0
        %v3089 = vadd.f32 0.0, %v3088
        %3090 = vmatmul.f32.gmra.mxu0 %v2979
        %v3091 = vpop.f32.mrf.mxu0
        %v3092 = vadd.f32 0.0, %v3091
        %3093 = vmatmul.f32.gmra.mxu0 %v2982
        %v3094 = vpop.f32.mrf.mxu0
        %v3095 = vadd.f32 0.0, %v3094
        %3096 = vmatmul.f32.gmra.mxu0 %v2985
        %v3097 = vpop.f32.mrf.mxu0
        %v3098 = vadd.f32 0.0, %v3097
        %3099 = vmatmul.f32.gmra.mxu0 %v2988
        %v3100 = vpop.f32.mrf.mxu0
        %v3101 = vadd.f32 0.0, %v3100
        %3102 = vmatmul.f32.gmra.mxu0 %v2991
        %v3103 = vpop.f32.mrf.mxu0
        %v3104 = vadd.f32 0.0, %v3103
        %3105 = vmatmul.f32.gmra.mxu0 %v2994
        %v3106 = vpop.f32.mrf.mxu0
        %v3107 = vadd.f32 0.0, %v3106
        %3108 = vmatmul.f32.gmra.mxu0 %v2997
        %v3109 = vpop.f32.mrf.mxu0
        %v3110 = vadd.f32 0.0, %v3109
        %3111 = vmatmul.f32.gmra.mxu0 %v3000
        %v3112 = vpop.f32.mrf.mxu0
        %v3113 = vadd.f32 0.0, %v3112
        %3114 = vmatmul.f32.gmra.mxu0 %v3003
        %v3115 = vpop.f32.mrf.mxu0
        %v3116 = vadd.f32 0.0, %v3115
        %3117 = vmatmul.f32.gmra.mxu0 %v3006
        %v3118 = vpop.f32.mrf.mxu0
        %v3119 = vadd.f32 0.0, %v3118
        %3120 = vmatmul.f32.gmra.mxu0 %v3009
        %v3121 = vpop.f32.mrf.mxu0
        %v3122 = vadd.f32 0.0, %v3121
        %3123 = vmatmul.f32.gmra.mxu0 %v3012
        %v3124 = vpop.f32.mrf.mxu0
        %v3125 = vadd.f32 0.0, %v3124
        %3126 = vmatmul.f32.gmra.mxu0 %v3015
        %v3127 = vpop.f32.mrf.mxu0
        %v3128 = vadd.f32 0.0, %v3127
        %3129 = vmatmul.f32.gmra.mxu0 %v3018
        %v3130 = vpop.f32.mrf.mxu0
        %v3131 = vadd.f32 0.0, %v3130
        %3132 = vmatmul.f32.gmra.mxu0 %v3021
        %v3133 = vpop.f32.mrf.mxu0
        %v3134 = vadd.f32 0.0, %v3133
        %3135 = vmatmul.f32.gmra.mxu0 %v3024
        %v3136 = vpop.f32.mrf.mxu0
        %v3137 = vadd.f32 0.0, %v3136
        %3138 = vmatmul.f32.gmra.mxu0 %v3027
        %v3139 = vpop.f32.mrf.mxu0
        %v3140 = vadd.f32 0.0, %v3139
        %3141 = vmatmul.f32.gmra.mxu0 %v3030
        %v3142 = vpop.f32.mrf.mxu0
        %v3143 = vadd.f32 0.0, %v3142
        %3144 = vmatmul.f32.gmra.mxu0 %v3033
        %v3145 = vpop.f32.mrf.mxu0
        %v3146 = vadd.f32 0.0, %v3145
        %3147 = vmatmul.f32.gmra.mxu0 %v3036
        %v3148 = vpop.f32.mrf.mxu0
        %v3149 = vadd.f32 0.0, %v3148
        %3150 = vmatmul.f32.gmra.mxu0 %v3039
        %v3151 = vpop.f32.mrf.mxu0
        %v3152 = vadd.f32 0.0, %v3151
        %3153 = vdwg.mxu0
        %v3154 = vsel %vm2206, 0.0, %v3059
        %v3155 = vsel %vm2207, 0.0, %v3062
        %v3156 = vsel %vm2208, 0.0, %v3065
        %v3157 = vsel %vm2209, 0.0, %v3068
        %v3158 = vsel %vm2210, 0.0, %v3071
        %v3159 = vsel %vm2211, 0.0, %v3074
        %v3160 = vsel %vm2212, 0.0, %v3077
        %v3161 = vsel %vm2213, 0.0, %v3080
        %v3162 = vsel %vm2214, 0.0, %v3083
        %v3163 = vsel %vm2215, 0.0, %v3086
        %v3164 = vsel %vm2216, 0.0, %v3089
        %v3165 = vsel %vm2217, 0.0, %v3092
        %v3166 = vsel %vm2218, 0.0, %v3095
        %v3167 = vsel %vm2219, 0.0, %v3098
        %v3168 = vsel %vm2220, 0.0, %v3101
        %v3169 = vsel %vm2221, 0.0, %v3104
        %v3170 = vsel %vm2222, 0.0, %v3107
        %v3171 = vsel %vm2223, 0.0, %v3110
        %v3172 = vsel %vm2224, 0.0, %v3113
        %v3173 = vsel %vm2225, 0.0, %v3116
        %v3174 = vsel %vm2226, 0.0, %v3119
        %v3175 = vsel %vm2227, 0.0, %v3122
        %v3176 = vsel %vm2228, 0.0, %v3125
        %v3177 = vsel %vm2229, 0.0, %v3128
        %v3178 = vsel %vm2230, 0.0, %v3131
        %v3179 = vsel %vm2231, 0.0, %v3134
        %v3180 = vsel %vm2232, 0.0, %v3137
        %v3181 = vsel %vm2233, 0.0, %v3140
        %v3182 = vsel %vm2234, 0.0, %v3143
        %v3183 = vsel %vm2235, 0.0, %v3146
        %v3184 = vsel %vm2236, 0.0, %v3149
        %v3185 = vsel %vm2237, 0.0, %v3152
        %v3186 = vadd.f32 %v2870, %v3154
        %v3187 = vadd.f32 %v2871, %v3155
        %v3188 = vadd.f32 %v2872, %v3156
        %v3189 = vadd.f32 %v2873, %v3157
        %v3190 = vadd.f32 %v2874, %v3158
        %v3191 = vadd.f32 %v2875, %v3159
        %v3192 = vadd.f32 %v2876, %v3160
        %v3193 = vadd.f32 %v2877, %v3161
        %v3194 = vadd.f32 %v2878, %v3162
        %v3195 = vadd.f32 %v2879, %v3163
        %v3196 = vadd.f32 %v2880, %v3164
        %v3197 = vadd.f32 %v2881, %v3165
        %v3198 = vadd.f32 %v2882, %v3166
        %v3199 = vadd.f32 %v2883, %v3167
        %v3200 = vadd.f32 %v2884, %v3168
        %v3201 = vadd.f32 %v2885, %v3169
        %v3202 = vadd.f32 %v2886, %v3170
        %v3203 = vadd.f32 %v2887, %v3171
        %v3204 = vadd.f32 %v2888, %v3172
        %v3205 = vadd.f32 %v2889, %v3173
        %v3206 = vadd.f32 %v2890, %v3174
        %v3207 = vadd.f32 %v2891, %v3175
        %v3208 = vadd.f32 %v2892, %v3176
        %v3209 = vadd.f32 %v2893, %v3177
        %v3210 = vadd.f32 %v2894, %v3178
        %v3211 = vadd.f32 %v2895, %v3179
        %v3212 = vadd.f32 %v2896, %v3180
        %v3213 = vadd.f32 %v2897, %v3181
        %v3214 = vadd.f32 %v2898, %v3182
        %v3215 = vadd.f32 %v2899, %v3183
        %v3216 = vadd.f32 %v2900, %v3184
        %v3217 = vadd.f32 %v2901, %v3185
        %v3218 = vld [vmem:[#allocation2 + $0x27] sm:$0xff]
        %v3219 = vld [vmem:[#allocation2 + $0x2f] sm:$0xff]
        %v3220 = vld [vmem:[#allocation2 + $0x37] sm:$0xff]
        %v3221 = vld [vmem:[#allocation2 + $0x3f] sm:$0xff]
        %v3222 = vld [vmem:[#allocation2 + $0x47] sm:$0xff]
        %v3223 = vld [vmem:[#allocation2 + $0x4f] sm:$0xff]
        %v3224 = vld [vmem:[#allocation2 + $0x57] sm:$0xff]
        %v3225 = vld [vmem:[#allocation2 + $0x5f] sm:$0xff]
        %v3226 = vld [vmem:[#allocation2 + $0x67] sm:$0xff]
        %v3227 = vld [vmem:[#allocation2 + $0x6f] sm:$0xff]
        %v3228 = vld [vmem:[#allocation2 + $0x77] sm:$0xff]
        %v3229 = vld [vmem:[#allocation2 + $0x7f] sm:$0xff]
        %v3230 = vld [vmem:[#allocation2 + $0x87] sm:$0xff]
        %v3231 = vld [vmem:[#allocation2 + $0x8f] sm:$0xff]
        %v3232 = vld [vmem:[#allocation2 + $0x97] sm:$0xff]
        %v3233 = vld [vmem:[#allocation2 + $0x9f] sm:$0xff]
        %v3234 = vld [vmem:[#allocation2 + $0xa7] sm:$0xff]
        %v3235 = vld [vmem:[#allocation2 + $0xaf] sm:$0xff]
        %v3236 = vld [vmem:[#allocation2 + $0xb7] sm:$0xff]
        %v3237 = vld [vmem:[#allocation2 + $0xbf] sm:$0xff]
        %v3238 = vld [vmem:[#allocation2 + $0xc7] sm:$0xff]
        %v3239 = vld [vmem:[#allocation2 + $0xcf] sm:$0xff]
        %v3240 = vld [vmem:[#allocation2 + $0xd7] sm:$0xff]
        %v3241 = vld [vmem:[#allocation2 + $0xdf] sm:$0xff]
        %v3242 = vld [vmem:[#allocation2 + $0xe7] sm:$0xff]
        %v3243 = vld [vmem:[#allocation2 + $0xef] sm:$0xff]
        %v3244 = vld [vmem:[#allocation2 + $0xf7] sm:$0xff]
        %v3245 = vld [vmem:[#allocation2 + $0xff] sm:$0xff]
        %v3246 = vld [vmem:[#allocation2 + $0x107] sm:$0xff]
        %v3247 = vld [vmem:[#allocation2 + $0x10f] sm:$0xff]
        %v3248 = vld [vmem:[#allocation2 + $0x117] sm:$0xff]
        %v3249 = vld [vmem:[#allocation2 + $0x11f] sm:$0xff]
        %s3250 = sadd.s32 %s1192, 6
        %s3251 = smul.u32 %s3250, 64
        %s3252 = scalar_lea.vmem %s2, %s3251
        %v3253 = vld [vmem:[%s3252] sm:$0xff]
        %v3254 = vld [vmem:[%s3252 + $0x8] sm:$0xff]
        %v3255 = vld [vmem:[%s3252 + $0x10] sm:$0xff]
        %v3256 = vld [vmem:[%s3252 + $0x18] sm:$0xff]
        %v3257 = vld [vmem:[%s3252 + $0x20] sm:$0xff]
        %v3258 = vld [vmem:[%s3252 + $0x28] sm:$0xff]
        %v3259 = vld [vmem:[%s3252 + $0x30] sm:$0xff]
        %v3260 = vld [vmem:[%s3252 + $0x38] sm:$0xff]
        %v3262 = vsel %vm306, %v3218, 0
        %v3265 = vsel %vm306, %v3219, 0
        %v3268 = vsel %vm306, %v3220, 0
        %v3271 = vsel %vm306, %v3221, 0
        %v3274 = vsel %vm306, %v3222, 0
        %v3277 = vsel %vm306, %v3223, 0
        %v3280 = vsel %vm306, %v3224, 0
        %v3283 = vsel %vm306, %v3225, 0
        %v3286 = vsel %vm306, %v3226, 0
        %v3289 = vsel %vm306, %v3227, 0
        %v3292 = vsel %vm306, %v3228, 0
        %v3295 = vsel %vm306, %v3229, 0
        %v3298 = vsel %vm306, %v3230, 0
        %v3301 = vsel %vm306, %v3231, 0
        %v3304 = vsel %vm306, %v3232, 0
        %v3307 = vsel %vm306, %v3233, 0
        %v3310 = vsel %vm306, %v3234, 0
        %v3313 = vsel %vm306, %v3235, 0
        %v3316 = vsel %vm306, %v3236, 0
        %v3319 = vsel %vm306, %v3237, 0
        %v3322 = vsel %vm306, %v3238, 0
        %v3325 = vsel %vm306, %v3239, 0
        %v3328 = vsel %vm306, %v3240, 0
        %v3331 = vsel %vm306, %v3241, 0
        %v3334 = vsel %vm306, %v3242, 0
        %v3337 = vsel %vm306, %v3243, 0
        %v3340 = vsel %vm306, %v3244, 0
        %v3343 = vsel %vm306, %v3245, 0
        %v3346 = vsel %vm306, %v3246, 0
        %v3349 = vsel %vm306, %v3247, 0
        %v3352 = vsel %vm306, %v3248, 0
        %v3355 = vsel %vm306, %v3249, 0
        %3357 = vmatpush.msra.mxu0 0.0
        %3358 = vmatpush.msra.mxu0 0.0
        %3359 = vmatpush.msra.mxu0 0.0
        %3360 = vmatpush.msra.mxu0 0.0
        %3361 = vmatpush.msra.mxu0 0.0
        %3362 = vmatpush.msra.mxu0 0.0
        %3363 = vmatpush.msra.mxu0 0.0
        %3364 = vmatpush.msra.mxu0 0.0
        %3365 = vmatpush.msra.mxu0 %v3260
        %3366 = vmatpush.msra.mxu0 %v3259
        %3367 = vmatpush.msra.mxu0 %v3258
        %3368 = vmatpush.msra.mxu0 %v3257
        %3369 = vmatpush.msra.mxu0 %v3256
        %3370 = vmatpush.msra.mxu0 %v3255
        %3371 = vmatpush.msra.mxu0 %v3254
        %3372 = vmatpush.msra.mxu0 %v3253
        %3373 = vmatmul.f32.gmra.mxu0 %v3262
        %v3374 = vpop.f32.mrf.mxu0
        %v3375 = vadd.f32 0.0, %v3374
        %3376 = vmatmul.f32.gmra.mxu0 %v3265
        %v3377 = vpop.f32.mrf.mxu0
        %v3378 = vadd.f32 0.0, %v3377
        %3379 = vmatmul.f32.gmra.mxu0 %v3268
        %v3380 = vpop.f32.mrf.mxu0
        %v3381 = vadd.f32 0.0, %v3380
        %3382 = vmatmul.f32.gmra.mxu0 %v3271
        %v3383 = vpop.f32.mrf.mxu0
        %v3384 = vadd.f32 0.0, %v3383
        %3385 = vmatmul.f32.gmra.mxu0 %v3274
        %v3386 = vpop.f32.mrf.mxu0
        %v3387 = vadd.f32 0.0, %v3386
        %3388 = vmatmul.f32.gmra.mxu0 %v3277
        %v3389 = vpop.f32.mrf.mxu0
        %v3390 = vadd.f32 0.0, %v3389
        %3391 = vmatmul.f32.gmra.mxu0 %v3280
        %v3392 = vpop.f32.mrf.mxu0
        %v3393 = vadd.f32 0.0, %v3392
        %3394 = vmatmul.f32.gmra.mxu0 %v3283
        %v3395 = vpop.f32.mrf.mxu0
        %v3396 = vadd.f32 0.0, %v3395
        %3397 = vmatmul.f32.gmra.mxu0 %v3286
        %v3398 = vpop.f32.mrf.mxu0
        %v3399 = vadd.f32 0.0, %v3398
        %3400 = vmatmul.f32.gmra.mxu0 %v3289
        %v3401 = vpop.f32.mrf.mxu0
        %v3402 = vadd.f32 0.0, %v3401
        %3403 = vmatmul.f32.gmra.mxu0 %v3292
        %v3404 = vpop.f32.mrf.mxu0
        %v3405 = vadd.f32 0.0, %v3404
        %3406 = vmatmul.f32.gmra.mxu0 %v3295
        %v3407 = vpop.f32.mrf.mxu0
        %v3408 = vadd.f32 0.0, %v3407
        %3409 = vmatmul.f32.gmra.mxu0 %v3298
        %v3410 = vpop.f32.mrf.mxu0
        %v3411 = vadd.f32 0.0, %v3410
        %3412 = vmatmul.f32.gmra.mxu0 %v3301
        %v3413 = vpop.f32.mrf.mxu0
        %v3414 = vadd.f32 0.0, %v3413
        %3415 = vmatmul.f32.gmra.mxu0 %v3304
        %v3416 = vpop.f32.mrf.mxu0
        %v3417 = vadd.f32 0.0, %v3416
        %3418 = vmatmul.f32.gmra.mxu0 %v3307
        %v3419 = vpop.f32.mrf.mxu0
        %v3420 = vadd.f32 0.0, %v3419
        %3421 = vmatmul.f32.gmra.mxu0 %v3310
        %v3422 = vpop.f32.mrf.mxu0
        %v3423 = vadd.f32 0.0, %v3422
        %3424 = vmatmul.f32.gmra.mxu0 %v3313
        %v3425 = vpop.f32.mrf.mxu0
        %v3426 = vadd.f32 0.0, %v3425
        %3427 = vmatmul.f32.gmra.mxu0 %v3316
        %v3428 = vpop.f32.mrf.mxu0
        %v3429 = vadd.f32 0.0, %v3428
        %3430 = vmatmul.f32.gmra.mxu0 %v3319
        %v3431 = vpop.f32.mrf.mxu0
        %v3432 = vadd.f32 0.0, %v3431
        %3433 = vmatmul.f32.gmra.mxu0 %v3322
        %v3434 = vpop.f32.mrf.mxu0
        %v3435 = vadd.f32 0.0, %v3434
        %3436 = vmatmul.f32.gmra.mxu0 %v3325
        %v3437 = vpop.f32.mrf.mxu0
        %v3438 = vadd.f32 0.0, %v3437
        %3439 = vmatmul.f32.gmra.mxu0 %v3328
        %v3440 = vpop.f32.mrf.mxu0
        %v3441 = vadd.f32 0.0, %v3440
        %3442 = vmatmul.f32.gmra.mxu0 %v3331
        %v3443 = vpop.f32.mrf.mxu0
        %v3444 = vadd.f32 0.0, %v3443
        %3445 = vmatmul.f32.gmra.mxu0 %v3334
        %v3446 = vpop.f32.mrf.mxu0
        %v3447 = vadd.f32 0.0, %v3446
        %3448 = vmatmul.f32.gmra.mxu0 %v3337
        %v3449 = vpop.f32.mrf.mxu0
        %v3450 = vadd.f32 0.0, %v3449
        %3451 = vmatmul.f32.gmra.mxu0 %v3340
        %v3452 = vpop.f32.mrf.mxu0
        %v3453 = vadd.f32 0.0, %v3452
        %3454 = vmatmul.f32.gmra.mxu0 %v3343
        %v3455 = vpop.f32.mrf.mxu0
        %v3456 = vadd.f32 0.0, %v3455
        %3457 = vmatmul.f32.gmra.mxu0 %v3346
        %v3458 = vpop.f32.mrf.mxu0
        %v3459 = vadd.f32 0.0, %v3458
        %3460 = vmatmul.f32.gmra.mxu0 %v3349
        %v3461 = vpop.f32.mrf.mxu0
        %v3462 = vadd.f32 0.0, %v3461
        %3463 = vmatmul.f32.gmra.mxu0 %v3352
        %v3464 = vpop.f32.mrf.mxu0
        %v3465 = vadd.f32 0.0, %v3464
        %3466 = vmatmul.f32.gmra.mxu0 %v3355
        %v3467 = vpop.f32.mrf.mxu0
        %v3468 = vadd.f32 0.0, %v3467
        %3469 = vdwg.mxu0
        %v3470 = vsel %vm1510, 0.0, %v3375
        %v3471 = vsel %vm1511, 0.0, %v3378
        %v3472 = vsel %vm1512, 0.0, %v3381
        %v3473 = vsel %vm1513, 0.0, %v3384
        %v3474 = vsel %vm1514, 0.0, %v3387
        %v3475 = vsel %vm1515, 0.0, %v3390
        %v3476 = vsel %vm1516, 0.0, %v3393
        %v3477 = vsel %vm1517, 0.0, %v3396
        %v3478 = vsel %vm1518, 0.0, %v3399
        %v3479 = vsel %vm1519, 0.0, %v3402
        %v3480 = vsel %vm1520, 0.0, %v3405
        %v3481 = vsel %vm1521, 0.0, %v3408
        %v3482 = vsel %vm1522, 0.0, %v3411
        %v3483 = vsel %vm1523, 0.0, %v3414
        %v3484 = vsel %vm1524, 0.0, %v3417
        %v3485 = vsel %vm1525, 0.0, %v3420
        %v3486 = vsel %vm1526, 0.0, %v3423
        %v3487 = vsel %vm1527, 0.0, %v3426
        %v3488 = vsel %vm1528, 0.0, %v3429
        %v3489 = vsel %vm1529, 0.0, %v3432
        %v3490 = vsel %vm1530, 0.0, %v3435
        %v3491 = vsel %vm1531, 0.0, %v3438
        %v3492 = vsel %vm1532, 0.0, %v3441
        %v3493 = vsel %vm1533, 0.0, %v3444
        %v3494 = vsel %vm1534, 0.0, %v3447
        %v3495 = vsel %vm1535, 0.0, %v3450
        %v3496 = vsel %vm1536, 0.0, %v3453
        %v3497 = vsel %vm1537, 0.0, %v3456
        %v3498 = vsel %vm1538, 0.0, %v3459
        %v3499 = vsel %vm1539, 0.0, %v3462
        %v3500 = vsel %vm1540, 0.0, %v3465
        %v3501 = vsel %vm1541, 0.0, %v3468
        %v3502 = vadd.f32 %v3186, %v3470
        %v3503 = vadd.f32 %v3187, %v3471
        %v3504 = vadd.f32 %v3188, %v3472
        %v3505 = vadd.f32 %v3189, %v3473
        %v3506 = vadd.f32 %v3190, %v3474
        %v3507 = vadd.f32 %v3191, %v3475
        %v3508 = vadd.f32 %v3192, %v3476
        %v3509 = vadd.f32 %v3193, %v3477
        %v3510 = vadd.f32 %v3194, %v3478
        %v3511 = vadd.f32 %v3195, %v3479
        %v3512 = vadd.f32 %v3196, %v3480
        %v3513 = vadd.f32 %v3197, %v3481
        %v3514 = vadd.f32 %v3198, %v3482
        %v3515 = vadd.f32 %v3199, %v3483
        %v3516 = vadd.f32 %v3200, %v3484
        %v3517 = vadd.f32 %v3201, %v3485
        %v3518 = vadd.f32 %v3202, %v3486
        %v3519 = vadd.f32 %v3203, %v3487
        %v3520 = vadd.f32 %v3204, %v3488
        %v3521 = vadd.f32 %v3205, %v3489
        %v3522 = vadd.f32 %v3206, %v3490
        %v3523 = vadd.f32 %v3207, %v3491
        %v3524 = vadd.f32 %v3208, %v3492
        %v3525 = vadd.f32 %v3209, %v3493
        %v3526 = vadd.f32 %v3210, %v3494
        %v3527 = vadd.f32 %v3211, %v3495
        %v3528 = vadd.f32 %v3212, %v3496
        %v3529 = vadd.f32 %v3213, %v3497
        %v3530 = vadd.f32 %v3214, %v3498
        %v3531 = vadd.f32 %v3215, %v3499
        %v3532 = vadd.f32 %v3216, %v3500
        %v3533 = vadd.f32 %v3217, %v3501
        %v3534 = vld [vmem:[#allocation2 + $0x28] sm:$0xff]
        %v3535 = vld [vmem:[#allocation2 + $0x30] sm:$0xff]
        %v3536 = vld [vmem:[#allocation2 + $0x38] sm:$0xff]
        %v3537 = vld [vmem:[#allocation2 + $0x40] sm:$0xff]
        %v3538 = vld [vmem:[#allocation2 + $0x48] sm:$0xff]
        %v3539 = vld [vmem:[#allocation2 + $0x50] sm:$0xff]
        %v3540 = vld [vmem:[#allocation2 + $0x58] sm:$0xff]
        %v3541 = vld [vmem:[#allocation2 + $0x60] sm:$0xff]
        %v3542 = vld [vmem:[#allocation2 + $0x68] sm:$0xff]
        %v3543 = vld [vmem:[#allocation2 + $0x70] sm:$0xff]
        %v3544 = vld [vmem:[#allocation2 + $0x78] sm:$0xff]
        %v3545 = vld [vmem:[#allocation2 + $0x80] sm:$0xff]
        %v3546 = vld [vmem:[#allocation2 + $0x88] sm:$0xff]
        %v3547 = vld [vmem:[#allocation2 + $0x90] sm:$0xff]
        %v3548 = vld [vmem:[#allocation2 + $0x98] sm:$0xff]
        %v3549 = vld [vmem:[#allocation2 + $0xa0] sm:$0xff]
        %v3550 = vld [vmem:[#allocation2 + $0xa8] sm:$0xff]
        %v3551 = vld [vmem:[#allocation2 + $0xb0] sm:$0xff]
        %v3552 = vld [vmem:[#allocation2 + $0xb8] sm:$0xff]
        %v3553 = vld [vmem:[#allocation2 + $0xc0] sm:$0xff]
        %v3554 = vld [vmem:[#allocation2 + $0xc8] sm:$0xff]
        %v3555 = vld [vmem:[#allocation2 + $0xd0] sm:$0xff]
        %v3556 = vld [vmem:[#allocation2 + $0xd8] sm:$0xff]
        %v3557 = vld [vmem:[#allocation2 + $0xe0] sm:$0xff]
        %v3558 = vld [vmem:[#allocation2 + $0xe8] sm:$0xff]
        %v3559 = vld [vmem:[#allocation2 + $0xf0] sm:$0xff]
        %v3560 = vld [vmem:[#allocation2 + $0xf8] sm:$0xff]
        %v3561 = vld [vmem:[#allocation2 + $0x100] sm:$0xff]
        %v3562 = vld [vmem:[#allocation2 + $0x108] sm:$0xff]
        %v3563 = vld [vmem:[#allocation2 + $0x110] sm:$0xff]
        %v3564 = vld [vmem:[#allocation2 + $0x118] sm:$0xff]
        %v3565 = vld [vmem:[#allocation2 + $0x120] sm:$0xff]
        %s3566 = sadd.s32 %s1192, 7
        %s3567 = smul.u32 %s3566, 64
        %s3568 = scalar_lea.vmem %s2, %s3567
        %v3569 = vld [vmem:[%s3568] sm:$0xff]
        %v3570 = vld [vmem:[%s3568 + $0x8] sm:$0xff]
        %v3571 = vld [vmem:[%s3568 + $0x10] sm:$0xff]
        %v3572 = vld [vmem:[%s3568 + $0x18] sm:$0xff]
        %v3573 = vld [vmem:[%s3568 + $0x20] sm:$0xff]
        %v3574 = vld [vmem:[%s3568 + $0x28] sm:$0xff]
        %v3575 = vld [vmem:[%s3568 + $0x30] sm:$0xff]
        %v3576 = vld [vmem:[%s3568 + $0x38] sm:$0xff]
        %v3578 = vsel %vm306, %v3534, 0
        %v3581 = vsel %vm306, %v3535, 0
        %v3584 = vsel %vm306, %v3536, 0
        %v3587 = vsel %vm306, %v3537, 0
        %v3590 = vsel %vm306, %v3538, 0
        %v3593 = vsel %vm306, %v3539, 0
        %v3596 = vsel %vm306, %v3540, 0
        %v3599 = vsel %vm306, %v3541, 0
        %v3602 = vsel %vm306, %v3542, 0
        %v3605 = vsel %vm306, %v3543, 0
        %v3608 = vsel %vm306, %v3544, 0
        %v3611 = vsel %vm306, %v3545, 0
        %v3614 = vsel %vm306, %v3546, 0
        %v3617 = vsel %vm306, %v3547, 0
        %v3620 = vsel %vm306, %v3548, 0
        %v3623 = vsel %vm306, %v3549, 0
        %v3626 = vsel %vm306, %v3550, 0
        %v3629 = vsel %vm306, %v3551, 0
        %v3632 = vsel %vm306, %v3552, 0
        %v3635 = vsel %vm306, %v3553, 0
        %v3638 = vsel %vm306, %v3554, 0
        %v3641 = vsel %vm306, %v3555, 0
        %v3644 = vsel %vm306, %v3556, 0
        %v3647 = vsel %vm306, %v3557, 0
        %v3650 = vsel %vm306, %v3558, 0
        %v3653 = vsel %vm306, %v3559, 0
        %v3656 = vsel %vm306, %v3560, 0
        %v3659 = vsel %vm306, %v3561, 0
        %v3662 = vsel %vm306, %v3562, 0
        %v3665 = vsel %vm306, %v3563, 0
        %v3668 = vsel %vm306, %v3564, 0
        %v3671 = vsel %vm306, %v3565, 0
        %3673 = vmatpush.msra.mxu0 0.0
        %3674 = vmatpush.msra.mxu0 0.0
        %3675 = vmatpush.msra.mxu0 0.0
        %3676 = vmatpush.msra.mxu0 0.0
        %3677 = vmatpush.msra.mxu0 0.0
        %3678 = vmatpush.msra.mxu0 0.0
        %3679 = vmatpush.msra.mxu0 0.0
        %3680 = vmatpush.msra.mxu0 0.0
        %3681 = vmatpush.msra.mxu0 %v3576
        %3682 = vmatpush.msra.mxu0 %v3575
        %3683 = vmatpush.msra.mxu0 %v3574
        %3684 = vmatpush.msra.mxu0 %v3573
        %3685 = vmatpush.msra.mxu0 %v3572
        %3686 = vmatpush.msra.mxu0 %v3571
        %3687 = vmatpush.msra.mxu0 %v3570
        %3688 = vmatpush.msra.mxu0 %v3569
        %3689 = vmatmul.f32.gmra.mxu0 %v3578
        %v3690 = vpop.f32.mrf.mxu0
        %v3691 = vadd.f32 0.0, %v3690
        %3692 = vmatmul.f32.gmra.mxu0 %v3581
        %v3693 = vpop.f32.mrf.mxu0
        %v3694 = vadd.f32 0.0, %v3693
        %3695 = vmatmul.f32.gmra.mxu0 %v3584
        %v3696 = vpop.f32.mrf.mxu0
        %v3697 = vadd.f32 0.0, %v3696
        %3698 = vmatmul.f32.gmra.mxu0 %v3587
        %v3699 = vpop.f32.mrf.mxu0
        %v3700 = vadd.f32 0.0, %v3699
        %3701 = vmatmul.f32.gmra.mxu0 %v3590
        %v3702 = vpop.f32.mrf.mxu0
        %v3703 = vadd.f32 0.0, %v3702
        %3704 = vmatmul.f32.gmra.mxu0 %v3593
        %v3705 = vpop.f32.mrf.mxu0
        %v3706 = vadd.f32 0.0, %v3705
        %3707 = vmatmul.f32.gmra.mxu0 %v3596
        %v3708 = vpop.f32.mrf.mxu0
        %v3709 = vadd.f32 0.0, %v3708
        %3710 = vmatmul.f32.gmra.mxu0 %v3599
        %v3711 = vpop.f32.mrf.mxu0
        %v3712 = vadd.f32 0.0, %v3711
        %3713 = vmatmul.f32.gmra.mxu0 %v3602
        %v3714 = vpop.f32.mrf.mxu0
        %v3715 = vadd.f32 0.0, %v3714
        %3716 = vmatmul.f32.gmra.mxu0 %v3605
        %v3717 = vpop.f32.mrf.mxu0
        %v3718 = vadd.f32 0.0, %v3717
        %3719 = vmatmul.f32.gmra.mxu0 %v3608
        %v3720 = vpop.f32.mrf.mxu0
        %v3721 = vadd.f32 0.0, %v3720
        %3722 = vmatmul.f32.gmra.mxu0 %v3611
        %v3723 = vpop.f32.mrf.mxu0
        %v3724 = vadd.f32 0.0, %v3723
        %3725 = vmatmul.f32.gmra.mxu0 %v3614
        %v3726 = vpop.f32.mrf.mxu0
        %v3727 = vadd.f32 0.0, %v3726
        %3728 = vmatmul.f32.gmra.mxu0 %v3617
        %v3729 = vpop.f32.mrf.mxu0
        %v3730 = vadd.f32 0.0, %v3729
        %3731 = vmatmul.f32.gmra.mxu0 %v3620
        %v3732 = vpop.f32.mrf.mxu0
        %v3733 = vadd.f32 0.0, %v3732
        %3734 = vmatmul.f32.gmra.mxu0 %v3623
        %v3735 = vpop.f32.mrf.mxu0
        %v3736 = vadd.f32 0.0, %v3735
        %3737 = vmatmul.f32.gmra.mxu0 %v3626
        %v3738 = vpop.f32.mrf.mxu0
        %v3739 = vadd.f32 0.0, %v3738
        %3740 = vmatmul.f32.gmra.mxu0 %v3629
        %v3741 = vpop.f32.mrf.mxu0
        %v3742 = vadd.f32 0.0, %v3741
        %3743 = vmatmul.f32.gmra.mxu0 %v3632
        %v3744 = vpop.f32.mrf.mxu0
        %v3745 = vadd.f32 0.0, %v3744
        %3746 = vmatmul.f32.gmra.mxu0 %v3635
        %v3747 = vpop.f32.mrf.mxu0
        %v3748 = vadd.f32 0.0, %v3747
        %3749 = vmatmul.f32.gmra.mxu0 %v3638
        %v3750 = vpop.f32.mrf.mxu0
        %v3751 = vadd.f32 0.0, %v3750
        %3752 = vmatmul.f32.gmra.mxu0 %v3641
        %v3753 = vpop.f32.mrf.mxu0
        %v3754 = vadd.f32 0.0, %v3753
        %3755 = vmatmul.f32.gmra.mxu0 %v3644
        %v3756 = vpop.f32.mrf.mxu0
        %v3757 = vadd.f32 0.0, %v3756
        %3758 = vmatmul.f32.gmra.mxu0 %v3647
        %v3759 = vpop.f32.mrf.mxu0
        %v3760 = vadd.f32 0.0, %v3759
        %3761 = vmatmul.f32.gmra.mxu0 %v3650
        %v3762 = vpop.f32.mrf.mxu0
        %v3763 = vadd.f32 0.0, %v3762
        %3764 = vmatmul.f32.gmra.mxu0 %v3653
        %v3765 = vpop.f32.mrf.mxu0
        %v3766 = vadd.f32 0.0, %v3765
        %3767 = vmatmul.f32.gmra.mxu0 %v3656
        %v3768 = vpop.f32.mrf.mxu0
        %v3769 = vadd.f32 0.0, %v3768
        %3770 = vmatmul.f32.gmra.mxu0 %v3659
        %v3771 = vpop.f32.mrf.mxu0
        %v3772 = vadd.f32 0.0, %v3771
        %3773 = vmatmul.f32.gmra.mxu0 %v3662
        %v3774 = vpop.f32.mrf.mxu0
        %v3775 = vadd.f32 0.0, %v3774
        %3776 = vmatmul.f32.gmra.mxu0 %v3665
        %v3777 = vpop.f32.mrf.mxu0
        %v3778 = vadd.f32 0.0, %v3777
        %3779 = vmatmul.f32.gmra.mxu0 %v3668
        %v3780 = vpop.f32.mrf.mxu0
        %v3781 = vadd.f32 0.0, %v3780
        %3782 = vmatmul.f32.gmra.mxu0 %v3671
        %v3783 = vpop.f32.mrf.mxu0
        %v3784 = vadd.f32 0.0, %v3783
        %3785 = vdwg.mxu0
        %v3786 = vadd.f32 %v3502, %v3691
        %v3787 = vadd.f32 %v3503, %v3694
        %v3788 = vadd.f32 %v3504, %v3697
        %v3789 = vadd.f32 %v3505, %v3700
        %v3790 = vadd.f32 %v3506, %v3703
        %v3791 = vadd.f32 %v3507, %v3706
        %v3792 = vadd.f32 %v3508, %v3709
        %v3793 = vadd.f32 %v3509, %v3712
        %v3794 = vadd.f32 %v3510, %v3715
        %v3795 = vadd.f32 %v3511, %v3718
        %v3796 = vadd.f32 %v3512, %v3721
        %v3797 = vadd.f32 %v3513, %v3724
        %v3798 = vadd.f32 %v3514, %v3727
        %v3799 = vadd.f32 %v3515, %v3730
        %v3800 = vadd.f32 %v3516, %v3733
        %v3801 = vadd.f32 %v3517, %v3736
        %v3802 = vadd.f32 %v3518, %v3739
        %v3803 = vadd.f32 %v3519, %v3742
        %v3804 = vadd.f32 %v3520, %v3745
        %v3805 = vadd.f32 %v3521, %v3748
        %v3806 = vadd.f32 %v3522, %v3751
        %v3807 = vadd.f32 %v3523, %v3754
        %v3808 = vadd.f32 %v3524, %v3757
        %v3809 = vadd.f32 %v3525, %v3760
        %v3810 = vadd.f32 %v3526, %v3763
        %v3811 = vadd.f32 %v3527, %v3766
        %v3812 = vadd.f32 %v3528, %v3769
        %v3813 = vadd.f32 %v3529, %v3772
        %v3814 = vadd.f32 %v3530, %v3775
        %v3815 = vadd.f32 %v3531, %v3778
        %v3816 = vadd.f32 %v3532, %v3781
        %v3817 = vadd.f32 %v3533, %v3784
        %v3818 = vld [vmem:[#allocation2 + $0x29] sm:$0xff]
        %v3819 = vld [vmem:[#allocation2 + $0x31] sm:$0xff]
        %v3820 = vld [vmem:[#allocation2 + $0x39] sm:$0xff]
        %v3821 = vld [vmem:[#allocation2 + $0x41] sm:$0xff]
        %v3822 = vld [vmem:[#allocation2 + $0x49] sm:$0xff]
        %v3823 = vld [vmem:[#allocation2 + $0x51] sm:$0xff]
        %v3824 = vld [vmem:[#allocation2 + $0x59] sm:$0xff]
        %v3825 = vld [vmem:[#allocation2 + $0x61] sm:$0xff]
        %v3826 = vld [vmem:[#allocation2 + $0x69] sm:$0xff]
        %v3827 = vld [vmem:[#allocation2 + $0x71] sm:$0xff]
        %v3828 = vld [vmem:[#allocation2 + $0x79] sm:$0xff]
        %v3829 = vld [vmem:[#allocation2 + $0x81] sm:$0xff]
        %v3830 = vld [vmem:[#allocation2 + $0x89] sm:$0xff]
        %v3831 = vld [vmem:[#allocation2 + $0x91] sm:$0xff]
        %v3832 = vld [vmem:[#allocation2 + $0x99] sm:$0xff]
        %v3833 = vld [vmem:[#allocation2 + $0xa1] sm:$0xff]
        %v3834 = vld [vmem:[#allocation2 + $0xa9] sm:$0xff]
        %v3835 = vld [vmem:[#allocation2 + $0xb1] sm:$0xff]
        %v3836 = vld [vmem:[#allocation2 + $0xb9] sm:$0xff]
        %v3837 = vld [vmem:[#allocation2 + $0xc1] sm:$0xff]
        %v3838 = vld [vmem:[#allocation2 + $0xc9] sm:$0xff]
        %v3839 = vld [vmem:[#allocation2 + $0xd1] sm:$0xff]
        %v3840 = vld [vmem:[#allocation2 + $0xd9] sm:$0xff]
        %v3841 = vld [vmem:[#allocation2 + $0xe1] sm:$0xff]
        %v3842 = vld [vmem:[#allocation2 + $0xe9] sm:$0xff]
        %v3843 = vld [vmem:[#allocation2 + $0xf1] sm:$0xff]
        %v3844 = vld [vmem:[#allocation2 + $0xf9] sm:$0xff]
        %v3845 = vld [vmem:[#allocation2 + $0x101] sm:$0xff]
        %v3846 = vld [vmem:[#allocation2 + $0x109] sm:$0xff]
        %v3847 = vld [vmem:[#allocation2 + $0x111] sm:$0xff]
        %v3848 = vld [vmem:[#allocation2 + $0x119] sm:$0xff]
        %v3849 = vld [vmem:[#allocation2 + $0x121] sm:$0xff]
        %s3850 = sadd.s32 %s1192, 8
        %s3851 = smul.u32 %s3850, 64
        %s3852 = scalar_lea.vmem %s2, %s3851
        %v3853 = vld [vmem:[%s3852] sm:$0xff]
        %v3854 = vld [vmem:[%s3852 + $0x8] sm:$0xff]
        %v3855 = vld [vmem:[%s3852 + $0x10] sm:$0xff]
        %v3856 = vld [vmem:[%s3852 + $0x18] sm:$0xff]
        %v3857 = vld [vmem:[%s3852 + $0x20] sm:$0xff]
        %v3858 = vld [vmem:[%s3852 + $0x28] sm:$0xff]
        %v3859 = vld [vmem:[%s3852 + $0x30] sm:$0xff]
        %v3860 = vld [vmem:[%s3852 + $0x38] sm:$0xff]
        %v3862 = vsel %vm306, %v3818, 0
        %v3865 = vsel %vm306, %v3819, 0
        %v3868 = vsel %vm306, %v3820, 0
        %v3871 = vsel %vm306, %v3821, 0
        %v3874 = vsel %vm306, %v3822, 0
        %v3877 = vsel %vm306, %v3823, 0
        %v3880 = vsel %vm306, %v3824, 0
        %v3883 = vsel %vm306, %v3825, 0
        %v3886 = vsel %vm306, %v3826, 0
        %v3889 = vsel %vm306, %v3827, 0
        %v3892 = vsel %vm306, %v3828, 0
        %v3895 = vsel %vm306, %v3829, 0
        %v3898 = vsel %vm306, %v3830, 0
        %v3901 = vsel %vm306, %v3831, 0
        %v3904 = vsel %vm306, %v3832, 0
        %v3907 = vsel %vm306, %v3833, 0
        %v3910 = vsel %vm306, %v3834, 0
        %v3913 = vsel %vm306, %v3835, 0
        %v3916 = vsel %vm306, %v3836, 0
        %v3919 = vsel %vm306, %v3837, 0
        %v3922 = vsel %vm306, %v3838, 0
        %v3925 = vsel %vm306, %v3839, 0
        %v3928 = vsel %vm306, %v3840, 0
        %v3931 = vsel %vm306, %v3841, 0
        %v3934 = vsel %vm306, %v3842, 0
        %v3937 = vsel %vm306, %v3843, 0
        %v3940 = vsel %vm306, %v3844, 0
        %v3943 = vsel %vm306, %v3845, 0
        %v3946 = vsel %vm306, %v3846, 0
        %v3949 = vsel %vm306, %v3847, 0
        %v3952 = vsel %vm306, %v3848, 0
        %v3955 = vsel %vm306, %v3849, 0
        %3957 = vmatpush.msra.mxu0 0.0
        %3958 = vmatpush.msra.mxu0 0.0
        %3959 = vmatpush.msra.mxu0 0.0
        %3960 = vmatpush.msra.mxu0 0.0
        %3961 = vmatpush.msra.mxu0 0.0
        %3962 = vmatpush.msra.mxu0 0.0
        %3963 = vmatpush.msra.mxu0 0.0
        %3964 = vmatpush.msra.mxu0 0.0
        %3965 = vmatpush.msra.mxu0 %v3860
        %3966 = vmatpush.msra.mxu0 %v3859
        %3967 = vmatpush.msra.mxu0 %v3858
        %3968 = vmatpush.msra.mxu0 %v3857
        %3969 = vmatpush.msra.mxu0 %v3856
        %3970 = vmatpush.msra.mxu0 %v3855
        %3971 = vmatpush.msra.mxu0 %v3854
        %3972 = vmatpush.msra.mxu0 %v3853
        %3973 = vmatmul.f32.gmra.mxu0 %v3862
        %v3974 = vpop.f32.mrf.mxu0
        %v3975 = vadd.f32 0.0, %v3974
        %3976 = vmatmul.f32.gmra.mxu0 %v3865
        %v3977 = vpop.f32.mrf.mxu0
        %v3978 = vadd.f32 0.0, %v3977
        %3979 = vmatmul.f32.gmra.mxu0 %v3868
        %v3980 = vpop.f32.mrf.mxu0
        %v3981 = vadd.f32 0.0, %v3980
        %3982 = vmatmul.f32.gmra.mxu0 %v3871
        %v3983 = vpop.f32.mrf.mxu0
        %v3984 = vadd.f32 0.0, %v3983
        %3985 = vmatmul.f32.gmra.mxu0 %v3874
        %v3986 = vpop.f32.mrf.mxu0
        %v3987 = vadd.f32 0.0, %v3986
        %3988 = vmatmul.f32.gmra.mxu0 %v3877
        %v3989 = vpop.f32.mrf.mxu0
        %v3990 = vadd.f32 0.0, %v3989
        %3991 = vmatmul.f32.gmra.mxu0 %v3880
        %v3992 = vpop.f32.mrf.mxu0
        %v3993 = vadd.f32 0.0, %v3992
        %3994 = vmatmul.f32.gmra.mxu0 %v3883
        %v3995 = vpop.f32.mrf.mxu0
        %v3996 = vadd.f32 0.0, %v3995
        %3997 = vmatmul.f32.gmra.mxu0 %v3886
        %v3998 = vpop.f32.mrf.mxu0
        %v3999 = vadd.f32 0.0, %v3998
        %4000 = vmatmul.f32.gmra.mxu0 %v3889
        %v4001 = vpop.f32.mrf.mxu0
        %v4002 = vadd.f32 0.0, %v4001
        %4003 = vmatmul.f32.gmra.mxu0 %v3892
        %v4004 = vpop.f32.mrf.mxu0
        %v4005 = vadd.f32 0.0, %v4004
        %4006 = vmatmul.f32.gmra.mxu0 %v3895
        %v4007 = vpop.f32.mrf.mxu0
        %v4008 = vadd.f32 0.0, %v4007
        %4009 = vmatmul.f32.gmra.mxu0 %v3898
        %v4010 = vpop.f32.mrf.mxu0
        %v4011 = vadd.f32 0.0, %v4010
        %4012 = vmatmul.f32.gmra.mxu0 %v3901
        %v4013 = vpop.f32.mrf.mxu0
        %v4014 = vadd.f32 0.0, %v4013
        %4015 = vmatmul.f32.gmra.mxu0 %v3904
        %v4016 = vpop.f32.mrf.mxu0
        %v4017 = vadd.f32 0.0, %v4016
        %4018 = vmatmul.f32.gmra.mxu0 %v3907
        %v4019 = vpop.f32.mrf.mxu0
        %v4020 = vadd.f32 0.0, %v4019
        %4021 = vmatmul.f32.gmra.mxu0 %v3910
        %v4022 = vpop.f32.mrf.mxu0
        %v4023 = vadd.f32 0.0, %v4022
        %4024 = vmatmul.f32.gmra.mxu0 %v3913
        %v4025 = vpop.f32.mrf.mxu0
        %v4026 = vadd.f32 0.0, %v4025
        %4027 = vmatmul.f32.gmra.mxu0 %v3916
        %v4028 = vpop.f32.mrf.mxu0
        %v4029 = vadd.f32 0.0, %v4028
        %4030 = vmatmul.f32.gmra.mxu0 %v3919
        %v4031 = vpop.f32.mrf.mxu0
        %v4032 = vadd.f32 0.0, %v4031
        %4033 = vmatmul.f32.gmra.mxu0 %v3922
        %v4034 = vpop.f32.mrf.mxu0
        %v4035 = vadd.f32 0.0, %v4034
        %4036 = vmatmul.f32.gmra.mxu0 %v3925
        %v4037 = vpop.f32.mrf.mxu0
        %v4038 = vadd.f32 0.0, %v4037
        %4039 = vmatmul.f32.gmra.mxu0 %v3928
        %v4040 = vpop.f32.mrf.mxu0
        %v4041 = vadd.f32 0.0, %v4040
        %4042 = vmatmul.f32.gmra.mxu0 %v3931
        %v4043 = vpop.f32.mrf.mxu0
        %v4044 = vadd.f32 0.0, %v4043
        %4045 = vmatmul.f32.gmra.mxu0 %v3934
        %v4046 = vpop.f32.mrf.mxu0
        %v4047 = vadd.f32 0.0, %v4046
        %4048 = vmatmul.f32.gmra.mxu0 %v3937
        %v4049 = vpop.f32.mrf.mxu0
        %v4050 = vadd.f32 0.0, %v4049
        %4051 = vmatmul.f32.gmra.mxu0 %v3940
        %v4052 = vpop.f32.mrf.mxu0
        %v4053 = vadd.f32 0.0, %v4052
        %4054 = vmatmul.f32.gmra.mxu0 %v3943
        %v4055 = vpop.f32.mrf.mxu0
        %v4056 = vadd.f32 0.0, %v4055
        %4057 = vmatmul.f32.gmra.mxu0 %v3946
        %v4058 = vpop.f32.mrf.mxu0
        %v4059 = vadd.f32 0.0, %v4058
        %4060 = vmatmul.f32.gmra.mxu0 %v3949
        %v4061 = vpop.f32.mrf.mxu0
        %v4062 = vadd.f32 0.0, %v4061
        %4063 = vmatmul.f32.gmra.mxu0 %v3952
        %v4064 = vpop.f32.mrf.mxu0
        %v4065 = vadd.f32 0.0, %v4064
        %4066 = vmatmul.f32.gmra.mxu0 %v3955
        %v4067 = vpop.f32.mrf.mxu0
        %v4068 = vadd.f32 0.0, %v4067
        %4069 = vdwg.mxu0
        %v4070 = vsel %vm2206, 0.0, %v3975
        %v4071 = vsel %vm2207, 0.0, %v3978
        %v4072 = vsel %vm2208, 0.0, %v3981
        %v4073 = vsel %vm2209, 0.0, %v3984
        %v4074 = vsel %vm2210, 0.0, %v3987
        %v4075 = vsel %vm2211, 0.0, %v3990
        %v4076 = vsel %vm2212, 0.0, %v3993
        %v4077 = vsel %vm2213, 0.0, %v3996
        %v4078 = vsel %vm2214, 0.0, %v3999
        %v4079 = vsel %vm2215, 0.0, %v4002
        %v4080 = vsel %vm2216, 0.0, %v4005
        %v4081 = vsel %vm2217, 0.0, %v4008
        %v4082 = vsel %vm2218, 0.0, %v4011
        %v4083 = vsel %vm2219, 0.0, %v4014
        %v4084 = vsel %vm2220, 0.0, %v4017
        %v4085 = vsel %vm2221, 0.0, %v4020
        %v4086 = vsel %vm2222, 0.0, %v4023
        %v4087 = vsel %vm2223, 0.0, %v4026
        %v4088 = vsel %vm2224, 0.0, %v4029
        %v4089 = vsel %vm2225, 0.0, %v4032
        %v4090 = vsel %vm2226, 0.0, %v4035
        %v4091 = vsel %vm2227, 0.0, %v4038
        %v4092 = vsel %vm2228, 0.0, %v4041
        %v4093 = vsel %vm2229, 0.0, %v4044
        %v4094 = vsel %vm2230, 0.0, %v4047
        %v4095 = vsel %vm2231, 0.0, %v4050
        %v4096 = vsel %vm2232, 0.0, %v4053
        %v4097 = vsel %vm2233, 0.0, %v4056
        %v4098 = vsel %vm2234, 0.0, %v4059
        %v4099 = vsel %vm2235, 0.0, %v4062
        %v4100 = vsel %vm2236, 0.0, %v4065
        %v4101 = vsel %vm2237, 0.0, %v4068
        %v4102 = vadd.f32 %v3786, %v4070
        %v4103 = vadd.f32 %v3787, %v4071
        %v4104 = vadd.f32 %v3788, %v4072
        %v4105 = vadd.f32 %v3789, %v4073
        %v4106 = vadd.f32 %v3790, %v4074
        %v4107 = vadd.f32 %v3791, %v4075
        %v4108 = vadd.f32 %v3792, %v4076
        %v4109 = vadd.f32 %v3793, %v4077
        %v4110 = vadd.f32 %v3794, %v4078
        %v4111 = vadd.f32 %v3795, %v4079
        %v4112 = vadd.f32 %v3796, %v4080
        %v4113 = vadd.f32 %v3797, %v4081
        %v4114 = vadd.f32 %v3798, %v4082
        %v4115 = vadd.f32 %v3799, %v4083
        %v4116 = vadd.f32 %v3800, %v4084
        %v4117 = vadd.f32 %v3801, %v4085
        %v4118 = vadd.f32 %v3802, %v4086
        %v4119 = vadd.f32 %v3803, %v4087
        %v4120 = vadd.f32 %v3804, %v4088
        %v4121 = vadd.f32 %v3805, %v4089
        %v4122 = vadd.f32 %v3806, %v4090
        %v4123 = vadd.f32 %v3807, %v4091
        %v4124 = vadd.f32 %v3808, %v4092
        %v4125 = vadd.f32 %v3809, %v4093
        %v4126 = vadd.f32 %v3810, %v4094
        %v4127 = vadd.f32 %v3811, %v4095
        %v4128 = vadd.f32 %v3812, %v4096
        %v4129 = vadd.f32 %v3813, %v4097
        %v4130 = vadd.f32 %v3814, %v4098
        %v4131 = vadd.f32 %v3815, %v4099
        %v4132 = vadd.f32 %v3816, %v4100
        %v4133 = vadd.f32 %v3817, %v4101
        %v4135 = vperm.slane %v1194, 0
        %v4137 = vadd.f32 %v4102, %v4135
        %v4138 = vadd.f32 %v4103, %v4135
        %v4139 = vadd.f32 %v4104, %v4135
        %v4140 = vadd.f32 %v4105, %v4135
        %v4141 = vadd.f32 %v4106, %v4135
        %v4142 = vadd.f32 %v4107, %v4135
        %v4143 = vadd.f32 %v4108, %v4135
        %v4144 = vadd.f32 %v4109, %v4135
        %v4145 = vadd.f32 %v4110, %v4135
        %v4146 = vadd.f32 %v4111, %v4135
        %v4147 = vadd.f32 %v4112, %v4135
        %v4148 = vadd.f32 %v4113, %v4135
        %v4149 = vadd.f32 %v4114, %v4135
        %v4150 = vadd.f32 %v4115, %v4135
        %v4151 = vadd.f32 %v4116, %v4135
        %v4152 = vadd.f32 %v4117, %v4135
        %v4153 = vadd.f32 %v4118, %v4135
        %v4154 = vadd.f32 %v4119, %v4135
        %v4155 = vadd.f32 %v4120, %v4135
        %v4156 = vadd.f32 %v4121, %v4135
        %v4157 = vadd.f32 %v4122, %v4135
        %v4158 = vadd.f32 %v4123, %v4135
        %v4159 = vadd.f32 %v4124, %v4135
        %v4160 = vadd.f32 %v4125, %v4135
        %v4161 = vadd.f32 %v4126, %v4135
        %v4162 = vadd.f32 %v4127, %v4135
        %v4163 = vadd.f32 %v4128, %v4135
        %v4164 = vadd.f32 %v4129, %v4135
        %v4165 = vadd.f32 %v4130, %v4135
        %v4166 = vadd.f32 %v4131, %v4135
        %v4167 = vadd.f32 %v4132, %v4135
        %v4168 = vadd.f32 %v4133, %v4135
        %v4169 = vmax.f32 %v4137, 0.0
        %v4170 = vmax.f32 %v4138, 0.0
        %v4171 = vmax.f32 %v4139, 0.0
        %v4172 = vmax.f32 %v4140, 0.0
        %v4173 = vmax.f32 %v4141, 0.0
        %v4174 = vmax.f32 %v4142, 0.0
        %v4175 = vmax.f32 %v4143, 0.0
        %v4176 = vmax.f32 %v4144, 0.0
        %v4177 = vmax.f32 %v4145, 0.0
        %v4178 = vmax.f32 %v4146, 0.0
        %v4179 = vmax.f32 %v4147, 0.0
        %v4180 = vmax.f32 %v4148, 0.0
        %v4181 = vmax.f32 %v4149, 0.0
        %v4182 = vmax.f32 %v4150, 0.0
        %v4183 = vmax.f32 %v4151, 0.0
        %v4184 = vmax.f32 %v4152, 0.0
        %v4185 = vmax.f32 %v4153, 0.0
        %v4186 = vmax.f32 %v4154, 0.0
        %v4187 = vmax.f32 %v4155, 0.0
        %v4188 = vmax.f32 %v4156, 0.0
        %v4189 = vmax.f32 %v4157, 0.0
        %v4190 = vmax.f32 %v4158, 0.0
        %v4191 = vmax.f32 %v4159, 0.0
        %v4192 = vmax.f32 %v4160, 0.0
        %v4193 = vmax.f32 %v4161, 0.0
        %v4194 = vmax.f32 %v4162, 0.0
        %v4195 = vmax.f32 %v4163, 0.0
        %v4196 = vmax.f32 %v4164, 0.0
        %v4197 = vmax.f32 %v4165, 0.0
        %v4198 = vmax.f32 %v4166, 0.0
        %v4199 = vmax.f32 %v4167, 0.0
        %v4200 = vmax.f32 %v4168, 0.0
        %4201 = vst.msk [vmem:[#allocation3 + $0x18] sm:$0xff] %vm306, %v4169
        %4202 = vst.msk [vmem:[#allocation3 + $0x20] sm:$0xff] %vm306, %v4170
        %4203 = vst.msk [vmem:[#allocation3 + $0x28] sm:$0xff] %vm306, %v4171
        %4204 = vst.msk [vmem:[#allocation3 + $0x30] sm:$0xff] %vm306, %v4172
        %4205 = vst.msk [vmem:[#allocation3 + $0x38] sm:$0xff] %vm306, %v4173
        %4206 = vst.msk [vmem:[#allocation3 + $0x40] sm:$0xff] %vm306, %v4174
        %4207 = vst.msk [vmem:[#allocation3 + $0x48] sm:$0xff] %vm306, %v4175
        %4208 = vst.msk [vmem:[#allocation3 + $0x50] sm:$0xff] %vm306, %v4176
        %4209 = vst.msk [vmem:[#allocation3 + $0x58] sm:$0xff] %vm306, %v4177
        %4210 = vst.msk [vmem:[#allocation3 + $0x60] sm:$0xff] %vm306, %v4178
        %4211 = vst.msk [vmem:[#allocation3 + $0x68] sm:$0xff] %vm306, %v4179
        %4212 = vst.msk [vmem:[#allocation3 + $0x70] sm:$0xff] %vm306, %v4180
        %4213 = vst.msk [vmem:[#allocation3 + $0x78] sm:$0xff] %vm306, %v4181
        %4214 = vst.msk [vmem:[#allocation3 + $0x80] sm:$0xff] %vm306, %v4182
        %4215 = vst.msk [vmem:[#allocation3 + $0x88] sm:$0xff] %vm306, %v4183
        %4216 = vst.msk [vmem:[#allocation3 + $0x90] sm:$0xff] %vm306, %v4184
        %4217 = vst.msk [vmem:[#allocation3 + $0x98] sm:$0xff] %vm306, %v4185
        %4218 = vst.msk [vmem:[#allocation3 + $0xa0] sm:$0xff] %vm306, %v4186
        %4219 = vst.msk [vmem:[#allocation3 + $0xa8] sm:$0xff] %vm306, %v4187
        %4220 = vst.msk [vmem:[#allocation3 + $0xb0] sm:$0xff] %vm306, %v4188
        %4221 = vst.msk [vmem:[#allocation3 + $0xb8] sm:$0xff] %vm306, %v4189
        %4222 = vst.msk [vmem:[#allocation3 + $0xc0] sm:$0xff] %vm306, %v4190
        %4223 = vst.msk [vmem:[#allocation3 + $0xc8] sm:$0xff] %vm306, %v4191
        %4224 = vst.msk [vmem:[#allocation3 + $0xd0] sm:$0xff] %vm306, %v4192
        %4225 = vst.msk [vmem:[#allocation3 + $0xd8] sm:$0xff] %vm306, %v4193
        %4226 = vst.msk [vmem:[#allocation3 + $0xe0] sm:$0xff] %vm306, %v4194
        %4227 = vst.msk [vmem:[#allocation3 + $0xe8] sm:$0xff] %vm306, %v4195
        %4228 = vst.msk [vmem:[#allocation3 + $0xf0] sm:$0xff] %vm306, %v4196
        %4229 = vst.msk [vmem:[#allocation3 + $0xf8] sm:$0xff] %vm306, %v4197
        %4230 = vst.msk [vmem:[#allocation3 + $0x100] sm:$0xff] %vm306, %v4198
        %4231 = vst.msk [vmem:[#allocation3 + $0x108] sm:$0xff] %vm306, %v4199
        %4232 = vst.msk [vmem:[#allocation3 + $0x110] sm:$0xff] %vm306, %v4200
        %s4233 = scalar_lea.vmem %s5, %s1187
        %v4234 = vld [vmem:[%s4233] sm:$0x1]
        %v4235 = vld [vmem:[#allocation3 + $0x7] sm:$0xff]
        %v4236 = vld [vmem:[#allocation3 + $0xf] sm:$0xff]
        %v4237 = vld [vmem:[#allocation3 + $0x17] sm:$0xff]
        %v4238 = vld [vmem:[#allocation3 + $0x1f] sm:$0xff]
        %v4239 = vld [vmem:[#allocation3 + $0x27] sm:$0xff]
        %v4240 = vld [vmem:[#allocation3 + $0x2f] sm:$0xff]
        %v4241 = vld [vmem:[#allocation3 + $0x37] sm:$0xff]
        %v4242 = vld [vmem:[#allocation3 + $0x3f] sm:$0xff]
        %v4243 = vld [vmem:[#allocation3 + $0x47] sm:$0xff]
        %v4244 = vld [vmem:[#allocation3 + $0x4f] sm:$0xff]
        %v4245 = vld [vmem:[#allocation3 + $0x57] sm:$0xff]
        %v4246 = vld [vmem:[#allocation3 + $0x5f] sm:$0xff]
        %v4247 = vld [vmem:[#allocation3 + $0x67] sm:$0xff]
        %v4248 = vld [vmem:[#allocation3 + $0x6f] sm:$0xff]
        %v4249 = vld [vmem:[#allocation3 + $0x77] sm:$0xff]
        %v4250 = vld [vmem:[#allocation3 + $0x7f] sm:$0xff]
        %v4251 = vld [vmem:[#allocation3 + $0x87] sm:$0xff]
        %v4252 = vld [vmem:[#allocation3 + $0x8f] sm:$0xff]
        %v4253 = vld [vmem:[#allocation3 + $0x97] sm:$0xff]
        %v4254 = vld [vmem:[#allocation3 + $0x9f] sm:$0xff]
        %v4255 = vld [vmem:[#allocation3 + $0xa7] sm:$0xff]
        %v4256 = vld [vmem:[#allocation3 + $0xaf] sm:$0xff]
        %v4257 = vld [vmem:[#allocation3 + $0xb7] sm:$0xff]
        %v4258 = vld [vmem:[#allocation3 + $0xbf] sm:$0xff]
        %v4259 = vld [vmem:[#allocation3 + $0xc7] sm:$0xff]
        %v4260 = vld [vmem:[#allocation3 + $0xcf] sm:$0xff]
        %v4261 = vld [vmem:[#allocation3 + $0xd7] sm:$0xff]
        %v4262 = vld [vmem:[#allocation3 + $0xdf] sm:$0xff]
        %v4263 = vld [vmem:[#allocation3 + $0xe7] sm:$0xff]
        %v4264 = vld [vmem:[#allocation3 + $0xef] sm:$0xff]
        %v4265 = vld [vmem:[#allocation3 + $0xf7] sm:$0xff]
        %v4266 = vld [vmem:[#allocation3 + $0xff] sm:$0xff]
        %s4267 = scalar_lea.vmem %s3, %s1227
        %v4268 = vld [vmem:[%s4267] sm:$0xff]
        %v4269 = vld [vmem:[%s4267 + $0x8] sm:$0xff]
        %v4270 = vld [vmem:[%s4267 + $0x10] sm:$0xff]
        %v4271 = vld [vmem:[%s4267 + $0x18] sm:$0xff]
        %v4272 = vld [vmem:[%s4267 + $0x20] sm:$0xff]
        %v4273 = vld [vmem:[%s4267 + $0x28] sm:$0xff]
        %v4274 = vld [vmem:[%s4267 + $0x30] sm:$0xff]
        %v4275 = vld [vmem:[%s4267 + $0x38] sm:$0xff]
        %v4277 = vsel %vm306, %v4235, 0
        %v4280 = vsel %vm306, %v4236, 0
        %v4283 = vsel %vm306, %v4237, 0
        %v4286 = vsel %vm306, %v4238, 0
        %v4289 = vsel %vm306, %v4239, 0
        %v4292 = vsel %vm306, %v4240, 0
        %v4295 = vsel %vm306, %v4241, 0
        %v4298 = vsel %vm306, %v4242, 0
        %v4301 = vsel %vm306, %v4243, 0
        %v4304 = vsel %vm306, %v4244, 0
        %v4307 = vsel %vm306, %v4245, 0
        %v4310 = vsel %vm306, %v4246, 0
        %v4313 = vsel %vm306, %v4247, 0
        %v4316 = vsel %vm306, %v4248, 0
        %v4319 = vsel %vm306, %v4249, 0
        %v4322 = vsel %vm306, %v4250, 0
        %v4325 = vsel %vm306, %v4251, 0
        %v4328 = vsel %vm306, %v4252, 0
        %v4331 = vsel %vm306, %v4253, 0
        %v4334 = vsel %vm306, %v4254, 0
        %v4337 = vsel %vm306, %v4255, 0
        %v4340 = vsel %vm306, %v4256, 0
        %v4343 = vsel %vm306, %v4257, 0
        %v4346 = vsel %vm306, %v4258, 0
        %v4349 = vsel %vm306, %v4259, 0
        %v4352 = vsel %vm306, %v4260, 0
        %v4355 = vsel %vm306, %v4261, 0
        %v4358 = vsel %vm306, %v4262, 0
        %v4361 = vsel %vm306, %v4263, 0
        %v4364 = vsel %vm306, %v4264, 0
        %v4367 = vsel %vm306, %v4265, 0
        %v4370 = vsel %vm306, %v4266, 0
        %4372 = vmatpush.msra.mxu0 0.0
        %4373 = vmatpush.msra.mxu0 0.0
        %4374 = vmatpush.msra.mxu0 0.0
        %4375 = vmatpush.msra.mxu0 0.0
        %4376 = vmatpush.msra.mxu0 0.0
        %4377 = vmatpush.msra.mxu0 0.0
        %4378 = vmatpush.msra.mxu0 0.0
        %4379 = vmatpush.msra.mxu0 0.0
        %4380 = vmatpush.msra.mxu0 %v4275
        %4381 = vmatpush.msra.mxu0 %v4274
        %4382 = vmatpush.msra.mxu0 %v4273
        %4383 = vmatpush.msra.mxu0 %v4272
        %4384 = vmatpush.msra.mxu0 %v4271
        %4385 = vmatpush.msra.mxu0 %v4270
        %4386 = vmatpush.msra.mxu0 %v4269
        %4387 = vmatpush.msra.mxu0 %v4268
        %4388 = vmatmul.f32.gmra.mxu0 %v4277
        %v4389 = vpop.f32.mrf.mxu0
        %v4390 = vadd.f32 0.0, %v4389
        %4391 = vmatmul.f32.gmra.mxu0 %v4280
        %v4392 = vpop.f32.mrf.mxu0
        %v4393 = vadd.f32 0.0, %v4392
        %4394 = vmatmul.f32.gmra.mxu0 %v4283
        %v4395 = vpop.f32.mrf.mxu0
        %v4396 = vadd.f32 0.0, %v4395
        %4397 = vmatmul.f32.gmra.mxu0 %v4286
        %v4398 = vpop.f32.mrf.mxu0
        %v4399 = vadd.f32 0.0, %v4398
        %4400 = vmatmul.f32.gmra.mxu0 %v4289
        %v4401 = vpop.f32.mrf.mxu0
        %v4402 = vadd.f32 0.0, %v4401
        %4403 = vmatmul.f32.gmra.mxu0 %v4292
        %v4404 = vpop.f32.mrf.mxu0
        %v4405 = vadd.f32 0.0, %v4404
        %4406 = vmatmul.f32.gmra.mxu0 %v4295
        %v4407 = vpop.f32.mrf.mxu0
        %v4408 = vadd.f32 0.0, %v4407
        %4409 = vmatmul.f32.gmra.mxu0 %v4298
        %v4410 = vpop.f32.mrf.mxu0
        %v4411 = vadd.f32 0.0, %v4410
        %4412 = vmatmul.f32.gmra.mxu0 %v4301
        %v4413 = vpop.f32.mrf.mxu0
        %v4414 = vadd.f32 0.0, %v4413
        %4415 = vmatmul.f32.gmra.mxu0 %v4304
        %v4416 = vpop.f32.mrf.mxu0
        %v4417 = vadd.f32 0.0, %v4416
        %4418 = vmatmul.f32.gmra.mxu0 %v4307
        %v4419 = vpop.f32.mrf.mxu0
        %v4420 = vadd.f32 0.0, %v4419
        %4421 = vmatmul.f32.gmra.mxu0 %v4310
        %v4422 = vpop.f32.mrf.mxu0
        %v4423 = vadd.f32 0.0, %v4422
        %4424 = vmatmul.f32.gmra.mxu0 %v4313
        %v4425 = vpop.f32.mrf.mxu0
        %v4426 = vadd.f32 0.0, %v4425
        %4427 = vmatmul.f32.gmra.mxu0 %v4316
        %v4428 = vpop.f32.mrf.mxu0
        %v4429 = vadd.f32 0.0, %v4428
        %4430 = vmatmul.f32.gmra.mxu0 %v4319
        %v4431 = vpop.f32.mrf.mxu0
        %v4432 = vadd.f32 0.0, %v4431
        %4433 = vmatmul.f32.gmra.mxu0 %v4322
        %v4434 = vpop.f32.mrf.mxu0
        %v4435 = vadd.f32 0.0, %v4434
        %4436 = vmatmul.f32.gmra.mxu0 %v4325
        %v4437 = vpop.f32.mrf.mxu0
        %v4438 = vadd.f32 0.0, %v4437
        %4439 = vmatmul.f32.gmra.mxu0 %v4328
        %v4440 = vpop.f32.mrf.mxu0
        %v4441 = vadd.f32 0.0, %v4440
        %4442 = vmatmul.f32.gmra.mxu0 %v4331
        %v4443 = vpop.f32.mrf.mxu0
        %v4444 = vadd.f32 0.0, %v4443
        %4445 = vmatmul.f32.gmra.mxu0 %v4334
        %v4446 = vpop.f32.mrf.mxu0
        %v4447 = vadd.f32 0.0, %v4446
        %4448 = vmatmul.f32.gmra.mxu0 %v4337
        %v4449 = vpop.f32.mrf.mxu0
        %v4450 = vadd.f32 0.0, %v4449
        %4451 = vmatmul.f32.gmra.mxu0 %v4340
        %v4452 = vpop.f32.mrf.mxu0
        %v4453 = vadd.f32 0.0, %v4452
        %4454 = vmatmul.f32.gmra.mxu0 %v4343
        %v4455 = vpop.f32.mrf.mxu0
        %v4456 = vadd.f32 0.0, %v4455
        %4457 = vmatmul.f32.gmra.mxu0 %v4346
        %v4458 = vpop.f32.mrf.mxu0
        %v4459 = vadd.f32 0.0, %v4458
        %4460 = vmatmul.f32.gmra.mxu0 %v4349
        %v4461 = vpop.f32.mrf.mxu0
        %v4462 = vadd.f32 0.0, %v4461
        %4463 = vmatmul.f32.gmra.mxu0 %v4352
        %v4464 = vpop.f32.mrf.mxu0
        %v4465 = vadd.f32 0.0, %v4464
        %4466 = vmatmul.f32.gmra.mxu0 %v4355
        %v4467 = vpop.f32.mrf.mxu0
        %v4468 = vadd.f32 0.0, %v4467
        %4469 = vmatmul.f32.gmra.mxu0 %v4358
        %v4470 = vpop.f32.mrf.mxu0
        %v4471 = vadd.f32 0.0, %v4470
        %4472 = vmatmul.f32.gmra.mxu0 %v4361
        %v4473 = vpop.f32.mrf.mxu0
        %v4474 = vadd.f32 0.0, %v4473
        %4475 = vmatmul.f32.gmra.mxu0 %v4364
        %v4476 = vpop.f32.mrf.mxu0
        %v4477 = vadd.f32 0.0, %v4476
        %4478 = vmatmul.f32.gmra.mxu0 %v4367
        %v4479 = vpop.f32.mrf.mxu0
        %v4480 = vadd.f32 0.0, %v4479
        %4481 = vmatmul.f32.gmra.mxu0 %v4370
        %v4482 = vpop.f32.mrf.mxu0
        %v4483 = vadd.f32 0.0, %v4482
        %4484 = vdwg.mxu0
        %v4485 = vsel %vm1510, 0.0, %v4390
        %v4486 = vsel %vm1511, 0.0, %v4393
        %v4487 = vsel %vm1512, 0.0, %v4396
        %v4488 = vsel %vm1513, 0.0, %v4399
        %v4489 = vsel %vm1514, 0.0, %v4402
        %v4490 = vsel %vm1515, 0.0, %v4405
        %v4491 = vsel %vm1516, 0.0, %v4408
        %v4492 = vsel %vm1517, 0.0, %v4411
        %v4493 = vsel %vm1518, 0.0, %v4414
        %v4494 = vsel %vm1519, 0.0, %v4417
        %v4495 = vsel %vm1520, 0.0, %v4420
        %v4496 = vsel %vm1521, 0.0, %v4423
        %v4497 = vsel %vm1522, 0.0, %v4426
        %v4498 = vsel %vm1523, 0.0, %v4429
        %v4499 = vsel %vm1524, 0.0, %v4432
        %v4500 = vsel %vm1525, 0.0, %v4435
        %v4501 = vsel %vm1526, 0.0, %v4438
        %v4502 = vsel %vm1527, 0.0, %v4441
        %v4503 = vsel %vm1528, 0.0, %v4444
        %v4504 = vsel %vm1529, 0.0, %v4447
        %v4505 = vsel %vm1530, 0.0, %v4450
        %v4506 = vsel %vm1531, 0.0, %v4453
        %v4507 = vsel %vm1532, 0.0, %v4456
        %v4508 = vsel %vm1533, 0.0, %v4459
        %v4509 = vsel %vm1534, 0.0, %v4462
        %v4510 = vsel %vm1535, 0.0, %v4465
        %v4511 = vsel %vm1536, 0.0, %v4468
        %v4512 = vsel %vm1537, 0.0, %v4471
        %v4513 = vsel %vm1538, 0.0, %v4474
        %v4514 = vsel %vm1539, 0.0, %v4477
        %v4515 = vsel %vm1540, 0.0, %v4480
        %v4516 = vsel %vm1541, 0.0, %v4483
        %v4517 = vadd.f32 %v4485, 0.0
        %v4518 = vadd.f32 %v4486, 0.0
        %v4519 = vadd.f32 %v4487, 0.0
        %v4520 = vadd.f32 %v4488, 0.0
        %v4521 = vadd.f32 %v4489, 0.0
        %v4522 = vadd.f32 %v4490, 0.0
        %v4523 = vadd.f32 %v4491, 0.0
        %v4524 = vadd.f32 %v4492, 0.0
        %v4525 = vadd.f32 %v4493, 0.0
        %v4526 = vadd.f32 %v4494, 0.0
        %v4527 = vadd.f32 %v4495, 0.0
        %v4528 = vadd.f32 %v4496, 0.0
        %v4529 = vadd.f32 %v4497, 0.0
        %v4530 = vadd.f32 %v4498, 0.0
        %v4531 = vadd.f32 %v4499, 0.0
        %v4532 = vadd.f32 %v4500, 0.0
        %v4533 = vadd.f32 %v4501, 0.0
        %v4534 = vadd.f32 %v4502, 0.0
        %v4535 = vadd.f32 %v4503, 0.0
        %v4536 = vadd.f32 %v4504, 0.0
        %v4537 = vadd.f32 %v4505, 0.0
        %v4538 = vadd.f32 %v4506, 0.0
        %v4539 = vadd.f32 %v4507, 0.0
        %v4540 = vadd.f32 %v4508, 0.0
        %v4541 = vadd.f32 %v4509, 0.0
        %v4542 = vadd.f32 %v4510, 0.0
        %v4543 = vadd.f32 %v4511, 0.0
        %v4544 = vadd.f32 %v4512, 0.0
        %v4545 = vadd.f32 %v4513, 0.0
        %v4546 = vadd.f32 %v4514, 0.0
        %v4547 = vadd.f32 %v4515, 0.0
        %v4548 = vadd.f32 %v4516, 0.0
        %v4549 = vld [vmem:[#allocation3 + $0x8] sm:$0xff]
        %v4550 = vld [vmem:[#allocation3 + $0x10] sm:$0xff]
        %v4551 = vld [vmem:[#allocation3 + $0x18] sm:$0xff]
        %v4552 = vld [vmem:[#allocation3 + $0x20] sm:$0xff]
        %v4553 = vld [vmem:[#allocation3 + $0x28] sm:$0xff]
        %v4554 = vld [vmem:[#allocation3 + $0x30] sm:$0xff]
        %v4555 = vld [vmem:[#allocation3 + $0x38] sm:$0xff]
        %v4556 = vld [vmem:[#allocation3 + $0x40] sm:$0xff]
        %v4557 = vld [vmem:[#allocation3 + $0x48] sm:$0xff]
        %v4558 = vld [vmem:[#allocation3 + $0x50] sm:$0xff]
        %v4559 = vld [vmem:[#allocation3 + $0x58] sm:$0xff]
        %v4560 = vld [vmem:[#allocation3 + $0x60] sm:$0xff]
        %v4561 = vld [vmem:[#allocation3 + $0x68] sm:$0xff]
        %v4562 = vld [vmem:[#allocation3 + $0x70] sm:$0xff]
        %v4563 = vld [vmem:[#allocation3 + $0x78] sm:$0xff]
        %v4564 = vld [vmem:[#allocation3 + $0x80] sm:$0xff]
        %v4565 = vld [vmem:[#allocation3 + $0x88] sm:$0xff]
        %v4566 = vld [vmem:[#allocation3 + $0x90] sm:$0xff]
        %v4567 = vld [vmem:[#allocation3 + $0x98] sm:$0xff]
        %v4568 = vld [vmem:[#allocation3 + $0xa0] sm:$0xff]
        %v4569 = vld [vmem:[#allocation3 + $0xa8] sm:$0xff]
        %v4570 = vld [vmem:[#allocation3 + $0xb0] sm:$0xff]
        %v4571 = vld [vmem:[#allocation3 + $0xb8] sm:$0xff]
        %v4572 = vld [vmem:[#allocation3 + $0xc0] sm:$0xff]
        %v4573 = vld [vmem:[#allocation3 + $0xc8] sm:$0xff]
        %v4574 = vld [vmem:[#allocation3 + $0xd0] sm:$0xff]
        %v4575 = vld [vmem:[#allocation3 + $0xd8] sm:$0xff]
        %v4576 = vld [vmem:[#allocation3 + $0xe0] sm:$0xff]
        %v4577 = vld [vmem:[#allocation3 + $0xe8] sm:$0xff]
        %v4578 = vld [vmem:[#allocation3 + $0xf0] sm:$0xff]
        %v4579 = vld [vmem:[#allocation3 + $0xf8] sm:$0xff]
        %v4580 = vld [vmem:[#allocation3 + $0x100] sm:$0xff]
        %s4581 = scalar_lea.vmem %s3, %s1639
        %v4582 = vld [vmem:[%s4581] sm:$0xff]
        %v4583 = vld [vmem:[%s4581 + $0x8] sm:$0xff]
        %v4584 = vld [vmem:[%s4581 + $0x10] sm:$0xff]
        %v4585 = vld [vmem:[%s4581 + $0x18] sm:$0xff]
        %v4586 = vld [vmem:[%s4581 + $0x20] sm:$0xff]
        %v4587 = vld [vmem:[%s4581 + $0x28] sm:$0xff]
        %v4588 = vld [vmem:[%s4581 + $0x30] sm:$0xff]
        %v4589 = vld [vmem:[%s4581 + $0x38] sm:$0xff]
        %v4591 = vsel %vm306, %v4549, 0
        %v4594 = vsel %vm306, %v4550, 0
        %v4597 = vsel %vm306, %v4551, 0
        %v4600 = vsel %vm306, %v4552, 0
        %v4603 = vsel %vm306, %v4553, 0
        %v4606 = vsel %vm306, %v4554, 0
        %v4609 = vsel %vm306, %v4555, 0
        %v4612 = vsel %vm306, %v4556, 0
        %v4615 = vsel %vm306, %v4557, 0
        %v4618 = vsel %vm306, %v4558, 0
        %v4621 = vsel %vm306, %v4559, 0
        %v4624 = vsel %vm306, %v4560, 0
        %v4627 = vsel %vm306, %v4561, 0
        %v4630 = vsel %vm306, %v4562, 0
        %v4633 = vsel %vm306, %v4563, 0
        %v4636 = vsel %vm306, %v4564, 0
        %v4639 = vsel %vm306, %v4565, 0
        %v4642 = vsel %vm306, %v4566, 0
        %v4645 = vsel %vm306, %v4567, 0
        %v4648 = vsel %vm306, %v4568, 0
        %v4651 = vsel %vm306, %v4569, 0
        %v4654 = vsel %vm306, %v4570, 0
        %v4657 = vsel %vm306, %v4571, 0
        %v4660 = vsel %vm306, %v4572, 0
        %v4663 = vsel %vm306, %v4573, 0
        %v4666 = vsel %vm306, %v4574, 0
        %v4669 = vsel %vm306, %v4575, 0
        %v4672 = vsel %vm306, %v4576, 0
        %v4675 = vsel %vm306, %v4577, 0
        %v4678 = vsel %vm306, %v4578, 0
        %v4681 = vsel %vm306, %v4579, 0
        %v4684 = vsel %vm306, %v4580, 0
        %4686 = vmatpush.msra.mxu0 0.0
        %4687 = vmatpush.msra.mxu0 0.0
        %4688 = vmatpush.msra.mxu0 0.0
        %4689 = vmatpush.msra.mxu0 0.0
        %4690 = vmatpush.msra.mxu0 0.0
        %4691 = vmatpush.msra.mxu0 0.0
        %4692 = vmatpush.msra.mxu0 0.0
        %4693 = vmatpush.msra.mxu0 0.0
        %4694 = vmatpush.msra.mxu0 %v4589
        %4695 = vmatpush.msra.mxu0 %v4588
        %4696 = vmatpush.msra.mxu0 %v4587
        %4697 = vmatpush.msra.mxu0 %v4586
        %4698 = vmatpush.msra.mxu0 %v4585
        %4699 = vmatpush.msra.mxu0 %v4584
        %4700 = vmatpush.msra.mxu0 %v4583
        %4701 = vmatpush.msra.mxu0 %v4582
        %4702 = vmatmul.f32.gmra.mxu0 %v4591
        %v4703 = vpop.f32.mrf.mxu0
        %v4704 = vadd.f32 0.0, %v4703
        %4705 = vmatmul.f32.gmra.mxu0 %v4594
        %v4706 = vpop.f32.mrf.mxu0
        %v4707 = vadd.f32 0.0, %v4706
        %4708 = vmatmul.f32.gmra.mxu0 %v4597
        %v4709 = vpop.f32.mrf.mxu0
        %v4710 = vadd.f32 0.0, %v4709
        %4711 = vmatmul.f32.gmra.mxu0 %v4600
        %v4712 = vpop.f32.mrf.mxu0
        %v4713 = vadd.f32 0.0, %v4712
        %4714 = vmatmul.f32.gmra.mxu0 %v4603
        %v4715 = vpop.f32.mrf.mxu0
        %v4716 = vadd.f32 0.0, %v4715
        %4717 = vmatmul.f32.gmra.mxu0 %v4606
        %v4718 = vpop.f32.mrf.mxu0
        %v4719 = vadd.f32 0.0, %v4718
        %4720 = vmatmul.f32.gmra.mxu0 %v4609
        %v4721 = vpop.f32.mrf.mxu0
        %v4722 = vadd.f32 0.0, %v4721
        %4723 = vmatmul.f32.gmra.mxu0 %v4612
        %v4724 = vpop.f32.mrf.mxu0
        %v4725 = vadd.f32 0.0, %v4724
        %4726 = vmatmul.f32.gmra.mxu0 %v4615
        %v4727 = vpop.f32.mrf.mxu0
        %v4728 = vadd.f32 0.0, %v4727
        %4729 = vmatmul.f32.gmra.mxu0 %v4618
        %v4730 = vpop.f32.mrf.mxu0
        %v4731 = vadd.f32 0.0, %v4730
        %4732 = vmatmul.f32.gmra.mxu0 %v4621
        %v4733 = vpop.f32.mrf.mxu0
        %v4734 = vadd.f32 0.0, %v4733
        %4735 = vmatmul.f32.gmra.mxu0 %v4624
        %v4736 = vpop.f32.mrf.mxu0
        %v4737 = vadd.f32 0.0, %v4736
        %4738 = vmatmul.f32.gmra.mxu0 %v4627
        %v4739 = vpop.f32.mrf.mxu0
        %v4740 = vadd.f32 0.0, %v4739
        %4741 = vmatmul.f32.gmra.mxu0 %v4630
        %v4742 = vpop.f32.mrf.mxu0
        %v4743 = vadd.f32 0.0, %v4742
        %4744 = vmatmul.f32.gmra.mxu0 %v4633
        %v4745 = vpop.f32.mrf.mxu0
        %v4746 = vadd.f32 0.0, %v4745
        %4747 = vmatmul.f32.gmra.mxu0 %v4636
        %v4748 = vpop.f32.mrf.mxu0
        %v4749 = vadd.f32 0.0, %v4748
        %4750 = vmatmul.f32.gmra.mxu0 %v4639
        %v4751 = vpop.f32.mrf.mxu0
        %v4752 = vadd.f32 0.0, %v4751
        %4753 = vmatmul.f32.gmra.mxu0 %v4642
        %v4754 = vpop.f32.mrf.mxu0
        %v4755 = vadd.f32 0.0, %v4754
        %4756 = vmatmul.f32.gmra.mxu0 %v4645
        %v4757 = vpop.f32.mrf.mxu0
        %v4758 = vadd.f32 0.0, %v4757
        %4759 = vmatmul.f32.gmra.mxu0 %v4648
        %v4760 = vpop.f32.mrf.mxu0
        %v4761 = vadd.f32 0.0, %v4760
        %4762 = vmatmul.f32.gmra.mxu0 %v4651
        %v4763 = vpop.f32.mrf.mxu0
        %v4764 = vadd.f32 0.0, %v4763
        %4765 = vmatmul.f32.gmra.mxu0 %v4654
        %v4766 = vpop.f32.mrf.mxu0
        %v4767 = vadd.f32 0.0, %v4766
        %4768 = vmatmul.f32.gmra.mxu0 %v4657
        %v4769 = vpop.f32.mrf.mxu0
        %v4770 = vadd.f32 0.0, %v4769
        %4771 = vmatmul.f32.gmra.mxu0 %v4660
        %v4772 = vpop.f32.mrf.mxu0
        %v4773 = vadd.f32 0.0, %v4772
        %4774 = vmatmul.f32.gmra.mxu0 %v4663
        %v4775 = vpop.f32.mrf.mxu0
        %v4776 = vadd.f32 0.0, %v4775
        %4777 = vmatmul.f32.gmra.mxu0 %v4666
        %v4778 = vpop.f32.mrf.mxu0
        %v4779 = vadd.f32 0.0, %v4778
        %4780 = vmatmul.f32.gmra.mxu0 %v4669
        %v4781 = vpop.f32.mrf.mxu0
        %v4782 = vadd.f32 0.0, %v4781
        %4783 = vmatmul.f32.gmra.mxu0 %v4672
        %v4784 = vpop.f32.mrf.mxu0
        %v4785 = vadd.f32 0.0, %v4784
        %4786 = vmatmul.f32.gmra.mxu0 %v4675
        %v4787 = vpop.f32.mrf.mxu0
        %v4788 = vadd.f32 0.0, %v4787
        %4789 = vmatmul.f32.gmra.mxu0 %v4678
        %v4790 = vpop.f32.mrf.mxu0
        %v4791 = vadd.f32 0.0, %v4790
        %4792 = vmatmul.f32.gmra.mxu0 %v4681
        %v4793 = vpop.f32.mrf.mxu0
        %v4794 = vadd.f32 0.0, %v4793
        %4795 = vmatmul.f32.gmra.mxu0 %v4684
        %v4796 = vpop.f32.mrf.mxu0
        %v4797 = vadd.f32 0.0, %v4796
        %4798 = vdwg.mxu0
        %v4799 = vadd.f32 %v4517, %v4704
        %v4800 = vadd.f32 %v4518, %v4707
        %v4801 = vadd.f32 %v4519, %v4710
        %v4802 = vadd.f32 %v4520, %v4713
        %v4803 = vadd.f32 %v4521, %v4716
        %v4804 = vadd.f32 %v4522, %v4719
        %v4805 = vadd.f32 %v4523, %v4722
        %v4806 = vadd.f32 %v4524, %v4725
        %v4807 = vadd.f32 %v4525, %v4728
        %v4808 = vadd.f32 %v4526, %v4731
        %v4809 = vadd.f32 %v4527, %v4734
        %v4810 = vadd.f32 %v4528, %v4737
        %v4811 = vadd.f32 %v4529, %v4740
        %v4812 = vadd.f32 %v4530, %v4743
        %v4813 = vadd.f32 %v4531, %v4746
        %v4814 = vadd.f32 %v4532, %v4749
        %v4815 = vadd.f32 %v4533, %v4752
        %v4816 = vadd.f32 %v4534, %v4755
        %v4817 = vadd.f32 %v4535, %v4758
        %v4818 = vadd.f32 %v4536, %v4761
        %v4819 = vadd.f32 %v4537, %v4764
        %v4820 = vadd.f32 %v4538, %v4767
        %v4821 = vadd.f32 %v4539, %v4770
        %v4822 = vadd.f32 %v4540, %v4773
        %v4823 = vadd.f32 %v4541, %v4776
        %v4824 = vadd.f32 %v4542, %v4779
        %v4825 = vadd.f32 %v4543, %v4782
        %v4826 = vadd.f32 %v4544, %v4785
        %v4827 = vadd.f32 %v4545, %v4788
        %v4828 = vadd.f32 %v4546, %v4791
        %v4829 = vadd.f32 %v4547, %v4794
        %v4830 = vadd.f32 %v4548, %v4797
        %v4831 = vld [vmem:[#allocation3 + $0x9] sm:$0xff]
        %v4832 = vld [vmem:[#allocation3 + $0x11] sm:$0xff]
        %v4833 = vld [vmem:[#allocation3 + $0x19] sm:$0xff]
        %v4834 = vld [vmem:[#allocation3 + $0x21] sm:$0xff]
        %v4835 = vld [vmem:[#allocation3 + $0x29] sm:$0xff]
        %v4836 = vld [vmem:[#allocation3 + $0x31] sm:$0xff]
        %v4837 = vld [vmem:[#allocation3 + $0x39] sm:$0xff]
        %v4838 = vld [vmem:[#allocation3 + $0x41] sm:$0xff]
        %v4839 = vld [vmem:[#allocation3 + $0x49] sm:$0xff]
        %v4840 = vld [vmem:[#allocation3 + $0x51] sm:$0xff]
        %v4841 = vld [vmem:[#allocation3 + $0x59] sm:$0xff]
        %v4842 = vld [vmem:[#allocation3 + $0x61] sm:$0xff]
        %v4843 = vld [vmem:[#allocation3 + $0x69] sm:$0xff]
        %v4844 = vld [vmem:[#allocation3 + $0x71] sm:$0xff]
        %v4845 = vld [vmem:[#allocation3 + $0x79] sm:$0xff]
        %v4846 = vld [vmem:[#allocation3 + $0x81] sm:$0xff]
        %v4847 = vld [vmem:[#allocation3 + $0x89] sm:$0xff]
        %v4848 = vld [vmem:[#allocation3 + $0x91] sm:$0xff]
        %v4849 = vld [vmem:[#allocation3 + $0x99] sm:$0xff]
        %v4850 = vld [vmem:[#allocation3 + $0xa1] sm:$0xff]
        %v4851 = vld [vmem:[#allocation3 + $0xa9] sm:$0xff]
        %v4852 = vld [vmem:[#allocation3 + $0xb1] sm:$0xff]
        %v4853 = vld [vmem:[#allocation3 + $0xb9] sm:$0xff]
        %v4854 = vld [vmem:[#allocation3 + $0xc1] sm:$0xff]
        %v4855 = vld [vmem:[#allocation3 + $0xc9] sm:$0xff]
        %v4856 = vld [vmem:[#allocation3 + $0xd1] sm:$0xff]
        %v4857 = vld [vmem:[#allocation3 + $0xd9] sm:$0xff]
        %v4858 = vld [vmem:[#allocation3 + $0xe1] sm:$0xff]
        %v4859 = vld [vmem:[#allocation3 + $0xe9] sm:$0xff]
        %v4860 = vld [vmem:[#allocation3 + $0xf1] sm:$0xff]
        %v4861 = vld [vmem:[#allocation3 + $0xf9] sm:$0xff]
        %v4862 = vld [vmem:[#allocation3 + $0x101] sm:$0xff]
        %s4863 = scalar_lea.vmem %s3, %s1923
        %v4864 = vld [vmem:[%s4863] sm:$0xff]
        %v4865 = vld [vmem:[%s4863 + $0x8] sm:$0xff]
        %v4866 = vld [vmem:[%s4863 + $0x10] sm:$0xff]
        %v4867 = vld [vmem:[%s4863 + $0x18] sm:$0xff]
        %v4868 = vld [vmem:[%s4863 + $0x20] sm:$0xff]
        %v4869 = vld [vmem:[%s4863 + $0x28] sm:$0xff]
        %v4870 = vld [vmem:[%s4863 + $0x30] sm:$0xff]
        %v4871 = vld [vmem:[%s4863 + $0x38] sm:$0xff]
        %v4873 = vsel %vm306, %v4831, 0
        %v4876 = vsel %vm306, %v4832, 0
        %v4879 = vsel %vm306, %v4833, 0
        %v4882 = vsel %vm306, %v4834, 0
        %v4885 = vsel %vm306, %v4835, 0
        %v4888 = vsel %vm306, %v4836, 0
        %v4891 = vsel %vm306, %v4837, 0
        %v4894 = vsel %vm306, %v4838, 0
        %v4897 = vsel %vm306, %v4839, 0
        %v4900 = vsel %vm306, %v4840, 0
        %v4903 = vsel %vm306, %v4841, 0
        %v4906 = vsel %vm306, %v4842, 0
        %v4909 = vsel %vm306, %v4843, 0
        %v4912 = vsel %vm306, %v4844, 0
        %v4915 = vsel %vm306, %v4845, 0
        %v4918 = vsel %vm306, %v4846, 0
        %v4921 = vsel %vm306, %v4847, 0
        %v4924 = vsel %vm306, %v4848, 0
        %v4927 = vsel %vm306, %v4849, 0
        %v4930 = vsel %vm306, %v4850, 0
        %v4933 = vsel %vm306, %v4851, 0
        %v4936 = vsel %vm306, %v4852, 0
        %v4939 = vsel %vm306, %v4853, 0
        %v4942 = vsel %vm306, %v4854, 0
        %v4945 = vsel %vm306, %v4855, 0
        %v4948 = vsel %vm306, %v4856, 0
        %v4951 = vsel %vm306, %v4857, 0
        %v4954 = vsel %vm306, %v4858, 0
        %v4957 = vsel %vm306, %v4859, 0
        %v4960 = vsel %vm306, %v4860, 0
        %v4963 = vsel %vm306, %v4861, 0
        %v4966 = vsel %vm306, %v4862, 0
        %4968 = vmatpush.msra.mxu0 0.0
        %4969 = vmatpush.msra.mxu0 0.0
        %4970 = vmatpush.msra.mxu0 0.0
        %4971 = vmatpush.msra.mxu0 0.0
        %4972 = vmatpush.msra.mxu0 0.0
        %4973 = vmatpush.msra.mxu0 0.0
        %4974 = vmatpush.msra.mxu0 0.0
        %4975 = vmatpush.msra.mxu0 0.0
        %4976 = vmatpush.msra.mxu0 %v4871
        %4977 = vmatpush.msra.mxu0 %v4870
        %4978 = vmatpush.msra.mxu0 %v4869
        %4979 = vmatpush.msra.mxu0 %v4868
        %4980 = vmatpush.msra.mxu0 %v4867
        %4981 = vmatpush.msra.mxu0 %v4866
        %4982 = vmatpush.msra.mxu0 %v4865
        %4983 = vmatpush.msra.mxu0 %v4864
        %4984 = vmatmul.f32.gmra.mxu0 %v4873
        %v4985 = vpop.f32.mrf.mxu0
        %v4986 = vadd.f32 0.0, %v4985
        %4987 = vmatmul.f32.gmra.mxu0 %v4876
        %v4988 = vpop.f32.mrf.mxu0
        %v4989 = vadd.f32 0.0, %v4988
        %4990 = vmatmul.f32.gmra.mxu0 %v4879
        %v4991 = vpop.f32.mrf.mxu0
        %v4992 = vadd.f32 0.0, %v4991
        %4993 = vmatmul.f32.gmra.mxu0 %v4882
        %v4994 = vpop.f32.mrf.mxu0
        %v4995 = vadd.f32 0.0, %v4994
        %4996 = vmatmul.f32.gmra.mxu0 %v4885
        %v4997 = vpop.f32.mrf.mxu0
        %v4998 = vadd.f32 0.0, %v4997
        %4999 = vmatmul.f32.gmra.mxu0 %v4888
        %v5000 = vpop.f32.mrf.mxu0
        %v5001 = vadd.f32 0.0, %v5000
        %5002 = vmatmul.f32.gmra.mxu0 %v4891
        %v5003 = vpop.f32.mrf.mxu0
        %v5004 = vadd.f32 0.0, %v5003
        %5005 = vmatmul.f32.gmra.mxu0 %v4894
        %v5006 = vpop.f32.mrf.mxu0
        %v5007 = vadd.f32 0.0, %v5006
        %5008 = vmatmul.f32.gmra.mxu0 %v4897
        %v5009 = vpop.f32.mrf.mxu0
        %v5010 = vadd.f32 0.0, %v5009
        %5011 = vmatmul.f32.gmra.mxu0 %v4900
        %v5012 = vpop.f32.mrf.mxu0
        %v5013 = vadd.f32 0.0, %v5012
        %5014 = vmatmul.f32.gmra.mxu0 %v4903
        %v5015 = vpop.f32.mrf.mxu0
        %v5016 = vadd.f32 0.0, %v5015
        %5017 = vmatmul.f32.gmra.mxu0 %v4906
        %v5018 = vpop.f32.mrf.mxu0
        %v5019 = vadd.f32 0.0, %v5018
        %5020 = vmatmul.f32.gmra.mxu0 %v4909
        %v5021 = vpop.f32.mrf.mxu0
        %v5022 = vadd.f32 0.0, %v5021
        %5023 = vmatmul.f32.gmra.mxu0 %v4912
        %v5024 = vpop.f32.mrf.mxu0
        %v5025 = vadd.f32 0.0, %v5024
        %5026 = vmatmul.f32.gmra.mxu0 %v4915
        %v5027 = vpop.f32.mrf.mxu0
        %v5028 = vadd.f32 0.0, %v5027
        %5029 = vmatmul.f32.gmra.mxu0 %v4918
        %v5030 = vpop.f32.mrf.mxu0
        %v5031 = vadd.f32 0.0, %v5030
        %5032 = vmatmul.f32.gmra.mxu0 %v4921
        %v5033 = vpop.f32.mrf.mxu0
        %v5034 = vadd.f32 0.0, %v5033
        %5035 = vmatmul.f32.gmra.mxu0 %v4924
        %v5036 = vpop.f32.mrf.mxu0
        %v5037 = vadd.f32 0.0, %v5036
        %5038 = vmatmul.f32.gmra.mxu0 %v4927
        %v5039 = vpop.f32.mrf.mxu0
        %v5040 = vadd.f32 0.0, %v5039
        %5041 = vmatmul.f32.gmra.mxu0 %v4930
        %v5042 = vpop.f32.mrf.mxu0
        %v5043 = vadd.f32 0.0, %v5042
        %5044 = vmatmul.f32.gmra.mxu0 %v4933
        %v5045 = vpop.f32.mrf.mxu0
        %v5046 = vadd.f32 0.0, %v5045
        %5047 = vmatmul.f32.gmra.mxu0 %v4936
        %v5048 = vpop.f32.mrf.mxu0
        %v5049 = vadd.f32 0.0, %v5048
        %5050 = vmatmul.f32.gmra.mxu0 %v4939
        %v5051 = vpop.f32.mrf.mxu0
        %v5052 = vadd.f32 0.0, %v5051
        %5053 = vmatmul.f32.gmra.mxu0 %v4942
        %v5054 = vpop.f32.mrf.mxu0
        %v5055 = vadd.f32 0.0, %v5054
        %5056 = vmatmul.f32.gmra.mxu0 %v4945
        %v5057 = vpop.f32.mrf.mxu0
        %v5058 = vadd.f32 0.0, %v5057
        %5059 = vmatmul.f32.gmra.mxu0 %v4948
        %v5060 = vpop.f32.mrf.mxu0
        %v5061 = vadd.f32 0.0, %v5060
        %5062 = vmatmul.f32.gmra.mxu0 %v4951
        %v5063 = vpop.f32.mrf.mxu0
        %v5064 = vadd.f32 0.0, %v5063
        %5065 = vmatmul.f32.gmra.mxu0 %v4954
        %v5066 = vpop.f32.mrf.mxu0
        %v5067 = vadd.f32 0.0, %v5066
        %5068 = vmatmul.f32.gmra.mxu0 %v4957
        %v5069 = vpop.f32.mrf.mxu0
        %v5070 = vadd.f32 0.0, %v5069
        %5071 = vmatmul.f32.gmra.mxu0 %v4960
        %v5072 = vpop.f32.mrf.mxu0
        %v5073 = vadd.f32 0.0, %v5072
        %5074 = vmatmul.f32.gmra.mxu0 %v4963
        %v5075 = vpop.f32.mrf.mxu0
        %v5076 = vadd.f32 0.0, %v5075
        %5077 = vmatmul.f32.gmra.mxu0 %v4966
        %v5078 = vpop.f32.mrf.mxu0
        %v5079 = vadd.f32 0.0, %v5078
        %5080 = vdwg.mxu0
        %v5081 = vsel %vm2206, 0.0, %v4986
        %v5082 = vsel %vm2207, 0.0, %v4989
        %v5083 = vsel %vm2208, 0.0, %v4992
        %v5084 = vsel %vm2209, 0.0, %v4995
        %v5085 = vsel %vm2210, 0.0, %v4998
        %v5086 = vsel %vm2211, 0.0, %v5001
        %v5087 = vsel %vm2212, 0.0, %v5004
        %v5088 = vsel %vm2213, 0.0, %v5007
        %v5089 = vsel %vm2214, 0.0, %v5010
        %v5090 = vsel %vm2215, 0.0, %v5013
        %v5091 = vsel %vm2216, 0.0, %v5016
        %v5092 = vsel %vm2217, 0.0, %v5019
        %v5093 = vsel %vm2218, 0.0, %v5022
        %v5094 = vsel %vm2219, 0.0, %v5025
        %v5095 = vsel %vm2220, 0.0, %v5028
        %v5096 = vsel %vm2221, 0.0, %v5031
        %v5097 = vsel %vm2222, 0.0, %v5034
        %v5098 = vsel %vm2223, 0.0, %v5037
        %v5099 = vsel %vm2224, 0.0, %v5040
        %v5100 = vsel %vm2225, 0.0, %v5043
        %v5101 = vsel %vm2226, 0.0, %v5046
        %v5102 = vsel %vm2227, 0.0, %v5049
        %v5103 = vsel %vm2228, 0.0, %v5052
        %v5104 = vsel %vm2229, 0.0, %v5055
        %v5105 = vsel %vm2230, 0.0, %v5058
        %v5106 = vsel %vm2231, 0.0, %v5061
        %v5107 = vsel %vm2232, 0.0, %v5064
        %v5108 = vsel %vm2233, 0.0, %v5067
        %v5109 = vsel %vm2234, 0.0, %v5070
        %v5110 = vsel %vm2235, 0.0, %v5073
        %v5111 = vsel %vm2236, 0.0, %v5076
        %v5112 = vsel %vm2237, 0.0, %v5079
        %v5113 = vadd.f32 %v4799, %v5081
        %v5114 = vadd.f32 %v4800, %v5082
        %v5115 = vadd.f32 %v4801, %v5083
        %v5116 = vadd.f32 %v4802, %v5084
        %v5117 = vadd.f32 %v4803, %v5085
        %v5118 = vadd.f32 %v4804, %v5086
        %v5119 = vadd.f32 %v4805, %v5087
        %v5120 = vadd.f32 %v4806, %v5088
        %v5121 = vadd.f32 %v4807, %v5089
        %v5122 = vadd.f32 %v4808, %v5090
        %v5123 = vadd.f32 %v4809, %v5091
        %v5124 = vadd.f32 %v4810, %v5092
        %v5125 = vadd.f32 %v4811, %v5093
        %v5126 = vadd.f32 %v4812, %v5094
        %v5127 = vadd.f32 %v4813, %v5095
        %v5128 = vadd.f32 %v4814, %v5096
        %v5129 = vadd.f32 %v4815, %v5097
        %v5130 = vadd.f32 %v4816, %v5098
        %v5131 = vadd.f32 %v4817, %v5099
        %v5132 = vadd.f32 %v4818, %v5100
        %v5133 = vadd.f32 %v4819, %v5101
        %v5134 = vadd.f32 %v4820, %v5102
        %v5135 = vadd.f32 %v4821, %v5103
        %v5136 = vadd.f32 %v4822, %v5104
        %v5137 = vadd.f32 %v4823, %v5105
        %v5138 = vadd.f32 %v4824, %v5106
        %v5139 = vadd.f32 %v4825, %v5107
        %v5140 = vadd.f32 %v4826, %v5108
        %v5141 = vadd.f32 %v4827, %v5109
        %v5142 = vadd.f32 %v4828, %v5110
        %v5143 = vadd.f32 %v4829, %v5111
        %v5144 = vadd.f32 %v4830, %v5112
        %v5145 = vld [vmem:[#allocation3 + $0x17] sm:$0xff]
        %v5146 = vld [vmem:[#allocation3 + $0x1f] sm:$0xff]
        %v5147 = vld [vmem:[#allocation3 + $0x27] sm:$0xff]
        %v5148 = vld [vmem:[#allocation3 + $0x2f] sm:$0xff]
        %v5149 = vld [vmem:[#allocation3 + $0x37] sm:$0xff]
        %v5150 = vld [vmem:[#allocation3 + $0x3f] sm:$0xff]
        %v5151 = vld [vmem:[#allocation3 + $0x47] sm:$0xff]
        %v5152 = vld [vmem:[#allocation3 + $0x4f] sm:$0xff]
        %v5153 = vld [vmem:[#allocation3 + $0x57] sm:$0xff]
        %v5154 = vld [vmem:[#allocation3 + $0x5f] sm:$0xff]
        %v5155 = vld [vmem:[#allocation3 + $0x67] sm:$0xff]
        %v5156 = vld [vmem:[#allocation3 + $0x6f] sm:$0xff]
        %v5157 = vld [vmem:[#allocation3 + $0x77] sm:$0xff]
        %v5158 = vld [vmem:[#allocation3 + $0x7f] sm:$0xff]
        %v5159 = vld [vmem:[#allocation3 + $0x87] sm:$0xff]
        %v5160 = vld [vmem:[#allocation3 + $0x8f] sm:$0xff]
        %v5161 = vld [vmem:[#allocation3 + $0x97] sm:$0xff]
        %v5162 = vld [vmem:[#allocation3 + $0x9f] sm:$0xff]
        %v5163 = vld [vmem:[#allocation3 + $0xa7] sm:$0xff]
        %v5164 = vld [vmem:[#allocation3 + $0xaf] sm:$0xff]
        %v5165 = vld [vmem:[#allocation3 + $0xb7] sm:$0xff]
        %v5166 = vld [vmem:[#allocation3 + $0xbf] sm:$0xff]
        %v5167 = vld [vmem:[#allocation3 + $0xc7] sm:$0xff]
        %v5168 = vld [vmem:[#allocation3 + $0xcf] sm:$0xff]
        %v5169 = vld [vmem:[#allocation3 + $0xd7] sm:$0xff]
        %v5170 = vld [vmem:[#allocation3 + $0xdf] sm:$0xff]
        %v5171 = vld [vmem:[#allocation3 + $0xe7] sm:$0xff]
        %v5172 = vld [vmem:[#allocation3 + $0xef] sm:$0xff]
        %v5173 = vld [vmem:[#allocation3 + $0xf7] sm:$0xff]
        %v5174 = vld [vmem:[#allocation3 + $0xff] sm:$0xff]
        %v5175 = vld [vmem:[#allocation3 + $0x107] sm:$0xff]
        %v5176 = vld [vmem:[#allocation3 + $0x10f] sm:$0xff]
        %s5177 = scalar_lea.vmem %s3, %s2335
        %v5178 = vld [vmem:[%s5177] sm:$0xff]
        %v5179 = vld [vmem:[%s5177 + $0x8] sm:$0xff]
        %v5180 = vld [vmem:[%s5177 + $0x10] sm:$0xff]
        %v5181 = vld [vmem:[%s5177 + $0x18] sm:$0xff]
        %v5182 = vld [vmem:[%s5177 + $0x20] sm:$0xff]
        %v5183 = vld [vmem:[%s5177 + $0x28] sm:$0xff]
        %v5184 = vld [vmem:[%s5177 + $0x30] sm:$0xff]
        %v5185 = vld [vmem:[%s5177 + $0x38] sm:$0xff]
        %v5187 = vsel %vm306, %v5145, 0
        %v5190 = vsel %vm306, %v5146, 0
        %v5193 = vsel %vm306, %v5147, 0
        %v5196 = vsel %vm306, %v5148, 0
        %v5199 = vsel %vm306, %v5149, 0
        %v5202 = vsel %vm306, %v5150, 0
        %v5205 = vsel %vm306, %v5151, 0
        %v5208 = vsel %vm306, %v5152, 0
        %v5211 = vsel %vm306, %v5153, 0
        %v5214 = vsel %vm306, %v5154, 0
        %v5217 = vsel %vm306, %v5155, 0
        %v5220 = vsel %vm306, %v5156, 0
        %v5223 = vsel %vm306, %v5157, 0
        %v5226 = vsel %vm306, %v5158, 0
        %v5229 = vsel %vm306, %v5159, 0
        %v5232 = vsel %vm306, %v5160, 0
        %v5235 = vsel %vm306, %v5161, 0
        %v5238 = vsel %vm306, %v5162, 0
        %v5241 = vsel %vm306, %v5163, 0
        %v5244 = vsel %vm306, %v5164, 0
        %v5247 = vsel %vm306, %v5165, 0
        %v5250 = vsel %vm306, %v5166, 0
        %v5253 = vsel %vm306, %v5167, 0
        %v5256 = vsel %vm306, %v5168, 0
        %v5259 = vsel %vm306, %v5169, 0
        %v5262 = vsel %vm306, %v5170, 0
        %v5265 = vsel %vm306, %v5171, 0
        %v5268 = vsel %vm306, %v5172, 0
        %v5271 = vsel %vm306, %v5173, 0
        %v5274 = vsel %vm306, %v5174, 0
        %v5277 = vsel %vm306, %v5175, 0
        %v5280 = vsel %vm306, %v5176, 0
        %5282 = vmatpush.msra.mxu0 0.0
        %5283 = vmatpush.msra.mxu0 0.0
        %5284 = vmatpush.msra.mxu0 0.0
        %5285 = vmatpush.msra.mxu0 0.0
        %5286 = vmatpush.msra.mxu0 0.0
        %5287 = vmatpush.msra.mxu0 0.0
        %5288 = vmatpush.msra.mxu0 0.0
        %5289 = vmatpush.msra.mxu0 0.0
        %5290 = vmatpush.msra.mxu0 %v5185
        %5291 = vmatpush.msra.mxu0 %v5184
        %5292 = vmatpush.msra.mxu0 %v5183
        %5293 = vmatpush.msra.mxu0 %v5182
        %5294 = vmatpush.msra.mxu0 %v5181
        %5295 = vmatpush.msra.mxu0 %v5180
        %5296 = vmatpush.msra.mxu0 %v5179
        %5297 = vmatpush.msra.mxu0 %v5178
        %5298 = vmatmul.f32.gmra.mxu0 %v5187
        %v5299 = vpop.f32.mrf.mxu0
        %v5300 = vadd.f32 0.0, %v5299
        %5301 = vmatmul.f32.gmra.mxu0 %v5190
        %v5302 = vpop.f32.mrf.mxu0
        %v5303 = vadd.f32 0.0, %v5302
        %5304 = vmatmul.f32.gmra.mxu0 %v5193
        %v5305 = vpop.f32.mrf.mxu0
        %v5306 = vadd.f32 0.0, %v5305
        %5307 = vmatmul.f32.gmra.mxu0 %v5196
        %v5308 = vpop.f32.mrf.mxu0
        %v5309 = vadd.f32 0.0, %v5308
        %5310 = vmatmul.f32.gmra.mxu0 %v5199
        %v5311 = vpop.f32.mrf.mxu0
        %v5312 = vadd.f32 0.0, %v5311
        %5313 = vmatmul.f32.gmra.mxu0 %v5202
        %v5314 = vpop.f32.mrf.mxu0
        %v5315 = vadd.f32 0.0, %v5314
        %5316 = vmatmul.f32.gmra.mxu0 %v5205
        %v5317 = vpop.f32.mrf.mxu0
        %v5318 = vadd.f32 0.0, %v5317
        %5319 = vmatmul.f32.gmra.mxu0 %v5208
        %v5320 = vpop.f32.mrf.mxu0
        %v5321 = vadd.f32 0.0, %v5320
        %5322 = vmatmul.f32.gmra.mxu0 %v5211
        %v5323 = vpop.f32.mrf.mxu0
        %v5324 = vadd.f32 0.0, %v5323
        %5325 = vmatmul.f32.gmra.mxu0 %v5214
        %v5326 = vpop.f32.mrf.mxu0
        %v5327 = vadd.f32 0.0, %v5326
        %5328 = vmatmul.f32.gmra.mxu0 %v5217
        %v5329 = vpop.f32.mrf.mxu0
        %v5330 = vadd.f32 0.0, %v5329
        %5331 = vmatmul.f32.gmra.mxu0 %v5220
        %v5332 = vpop.f32.mrf.mxu0
        %v5333 = vadd.f32 0.0, %v5332
        %5334 = vmatmul.f32.gmra.mxu0 %v5223
        %v5335 = vpop.f32.mrf.mxu0
        %v5336 = vadd.f32 0.0, %v5335
        %5337 = vmatmul.f32.gmra.mxu0 %v5226
        %v5338 = vpop.f32.mrf.mxu0
        %v5339 = vadd.f32 0.0, %v5338
        %5340 = vmatmul.f32.gmra.mxu0 %v5229
        %v5341 = vpop.f32.mrf.mxu0
        %v5342 = vadd.f32 0.0, %v5341
        %5343 = vmatmul.f32.gmra.mxu0 %v5232
        %v5344 = vpop.f32.mrf.mxu0
        %v5345 = vadd.f32 0.0, %v5344
        %5346 = vmatmul.f32.gmra.mxu0 %v5235
        %v5347 = vpop.f32.mrf.mxu0
        %v5348 = vadd.f32 0.0, %v5347
        %5349 = vmatmul.f32.gmra.mxu0 %v5238
        %v5350 = vpop.f32.mrf.mxu0
        %v5351 = vadd.f32 0.0, %v5350
        %5352 = vmatmul.f32.gmra.mxu0 %v5241
        %v5353 = vpop.f32.mrf.mxu0
        %v5354 = vadd.f32 0.0, %v5353
        %5355 = vmatmul.f32.gmra.mxu0 %v5244
        %v5356 = vpop.f32.mrf.mxu0
        %v5357 = vadd.f32 0.0, %v5356
        %5358 = vmatmul.f32.gmra.mxu0 %v5247
        %v5359 = vpop.f32.mrf.mxu0
        %v5360 = vadd.f32 0.0, %v5359
        %5361 = vmatmul.f32.gmra.mxu0 %v5250
        %v5362 = vpop.f32.mrf.mxu0
        %v5363 = vadd.f32 0.0, %v5362
        %5364 = vmatmul.f32.gmra.mxu0 %v5253
        %v5365 = vpop.f32.mrf.mxu0
        %v5366 = vadd.f32 0.0, %v5365
        %5367 = vmatmul.f32.gmra.mxu0 %v5256
        %v5368 = vpop.f32.mrf.mxu0
        %v5369 = vadd.f32 0.0, %v5368
        %5370 = vmatmul.f32.gmra.mxu0 %v5259
        %v5371 = vpop.f32.mrf.mxu0
        %v5372 = vadd.f32 0.0, %v5371
        %5373 = vmatmul.f32.gmra.mxu0 %v5262
        %v5374 = vpop.f32.mrf.mxu0
        %v5375 = vadd.f32 0.0, %v5374
        %5376 = vmatmul.f32.gmra.mxu0 %v5265
        %v5377 = vpop.f32.mrf.mxu0
        %v5378 = vadd.f32 0.0, %v5377
        %5379 = vmatmul.f32.gmra.mxu0 %v5268
        %v5380 = vpop.f32.mrf.mxu0
        %v5381 = vadd.f32 0.0, %v5380
        %5382 = vmatmul.f32.gmra.mxu0 %v5271
        %v5383 = vpop.f32.mrf.mxu0
        %v5384 = vadd.f32 0.0, %v5383
        %5385 = vmatmul.f32.gmra.mxu0 %v5274
        %v5386 = vpop.f32.mrf.mxu0
        %v5387 = vadd.f32 0.0, %v5386
        %5388 = vmatmul.f32.gmra.mxu0 %v5277
        %v5389 = vpop.f32.mrf.mxu0
        %v5390 = vadd.f32 0.0, %v5389
        %5391 = vmatmul.f32.gmra.mxu0 %v5280
        %v5392 = vpop.f32.mrf.mxu0
        %v5393 = vadd.f32 0.0, %v5392
        %5394 = vdwg.mxu0
        %v5395 = vsel %vm1510, 0.0, %v5300
        %v5396 = vsel %vm1511, 0.0, %v5303
        %v5397 = vsel %vm1512, 0.0, %v5306
        %v5398 = vsel %vm1513, 0.0, %v5309
        %v5399 = vsel %vm1514, 0.0, %v5312
        %v5400 = vsel %vm1515, 0.0, %v5315
        %v5401 = vsel %vm1516, 0.0, %v5318
        %v5402 = vsel %vm1517, 0.0, %v5321
        %v5403 = vsel %vm1518, 0.0, %v5324
        %v5404 = vsel %vm1519, 0.0, %v5327
        %v5405 = vsel %vm1520, 0.0, %v5330
        %v5406 = vsel %vm1521, 0.0, %v5333
        %v5407 = vsel %vm1522, 0.0, %v5336
        %v5408 = vsel %vm1523, 0.0, %v5339
        %v5409 = vsel %vm1524, 0.0, %v5342
        %v5410 = vsel %vm1525, 0.0, %v5345
        %v5411 = vsel %vm1526, 0.0, %v5348
        %v5412 = vsel %vm1527, 0.0, %v5351
        %v5413 = vsel %vm1528, 0.0, %v5354
        %v5414 = vsel %vm1529, 0.0, %v5357
        %v5415 = vsel %vm1530, 0.0, %v5360
        %v5416 = vsel %vm1531, 0.0, %v5363
        %v5417 = vsel %vm1532, 0.0, %v5366
        %v5418 = vsel %vm1533, 0.0, %v5369
        %v5419 = vsel %vm1534, 0.0, %v5372
        %v5420 = vsel %vm1535, 0.0, %v5375
        %v5421 = vsel %vm1536, 0.0, %v5378
        %v5422 = vsel %vm1537, 0.0, %v5381
        %v5423 = vsel %vm1538, 0.0, %v5384
        %v5424 = vsel %vm1539, 0.0, %v5387
        %v5425 = vsel %vm1540, 0.0, %v5390
        %v5426 = vsel %vm1541, 0.0, %v5393
        %v5427 = vadd.f32 %v5113, %v5395
        %v5428 = vadd.f32 %v5114, %v5396
        %v5429 = vadd.f32 %v5115, %v5397
        %v5430 = vadd.f32 %v5116, %v5398
        %v5431 = vadd.f32 %v5117, %v5399
        %v5432 = vadd.f32 %v5118, %v5400
        %v5433 = vadd.f32 %v5119, %v5401
        %v5434 = vadd.f32 %v5120, %v5402
        %v5435 = vadd.f32 %v5121, %v5403
        %v5436 = vadd.f32 %v5122, %v5404
        %v5437 = vadd.f32 %v5123, %v5405
        %v5438 = vadd.f32 %v5124, %v5406
        %v5439 = vadd.f32 %v5125, %v5407
        %v5440 = vadd.f32 %v5126, %v5408
        %v5441 = vadd.f32 %v5127, %v5409
        %v5442 = vadd.f32 %v5128, %v5410
        %v5443 = vadd.f32 %v5129, %v5411
        %v5444 = vadd.f32 %v5130, %v5412
        %v5445 = vadd.f32 %v5131, %v5413
        %v5446 = vadd.f32 %v5132, %v5414
        %v5447 = vadd.f32 %v5133, %v5415
        %v5448 = vadd.f32 %v5134, %v5416
        %v5449 = vadd.f32 %v5135, %v5417
        %v5450 = vadd.f32 %v5136, %v5418
        %v5451 = vadd.f32 %v5137, %v5419
        %v5452 = vadd.f32 %v5138, %v5420
        %v5453 = vadd.f32 %v5139, %v5421
        %v5454 = vadd.f32 %v5140, %v5422
        %v5455 = vadd.f32 %v5141, %v5423
        %v5456 = vadd.f32 %v5142, %v5424
        %v5457 = vadd.f32 %v5143, %v5425
        %v5458 = vadd.f32 %v5144, %v5426
        %v5459 = vld [vmem:[#allocation3 + $0x18] sm:$0xff]
        %v5460 = vld [vmem:[#allocation3 + $0x20] sm:$0xff]
        %v5461 = vld [vmem:[#allocation3 + $0x28] sm:$0xff]
        %v5462 = vld [vmem:[#allocation3 + $0x30] sm:$0xff]
        %v5463 = vld [vmem:[#allocation3 + $0x38] sm:$0xff]
        %v5464 = vld [vmem:[#allocation3 + $0x40] sm:$0xff]
        %v5465 = vld [vmem:[#allocation3 + $0x48] sm:$0xff]
        %v5466 = vld [vmem:[#allocation3 + $0x50] sm:$0xff]
        %v5467 = vld [vmem:[#allocation3 + $0x58] sm:$0xff]
        %v5468 = vld [vmem:[#allocation3 + $0x60] sm:$0xff]
        %v5469 = vld [vmem:[#allocation3 + $0x68] sm:$0xff]
        %v5470 = vld [vmem:[#allocation3 + $0x70] sm:$0xff]
        %v5471 = vld [vmem:[#allocation3 + $0x78] sm:$0xff]
        %v5472 = vld [vmem:[#allocation3 + $0x80] sm:$0xff]
        %v5473 = vld [vmem:[#allocation3 + $0x88] sm:$0xff]
        %v5474 = vld [vmem:[#allocation3 + $0x90] sm:$0xff]
        %v5475 = vld [vmem:[#allocation3 + $0x98] sm:$0xff]
        %v5476 = vld [vmem:[#allocation3 + $0xa0] sm:$0xff]
        %v5477 = vld [vmem:[#allocation3 + $0xa8] sm:$0xff]
        %v5478 = vld [vmem:[#allocation3 + $0xb0] sm:$0xff]
        %v5479 = vld [vmem:[#allocation3 + $0xb8] sm:$0xff]
        %v5480 = vld [vmem:[#allocation3 + $0xc0] sm:$0xff]
        %v5481 = vld [vmem:[#allocation3 + $0xc8] sm:$0xff]
        %v5482 = vld [vmem:[#allocation3 + $0xd0] sm:$0xff]
        %v5483 = vld [vmem:[#allocation3 + $0xd8] sm:$0xff]
        %v5484 = vld [vmem:[#allocation3 + $0xe0] sm:$0xff]
        %v5485 = vld [vmem:[#allocation3 + $0xe8] sm:$0xff]
        %v5486 = vld [vmem:[#allocation3 + $0xf0] sm:$0xff]
        %v5487 = vld [vmem:[#allocation3 + $0xf8] sm:$0xff]
        %v5488 = vld [vmem:[#allocation3 + $0x100] sm:$0xff]
        %v5489 = vld [vmem:[#allocation3 + $0x108] sm:$0xff]
        %v5490 = vld [vmem:[#allocation3 + $0x110] sm:$0xff]
        %s5491 = scalar_lea.vmem %s3, %s2651
        %v5492 = vld [vmem:[%s5491] sm:$0xff]
        %v5493 = vld [vmem:[%s5491 + $0x8] sm:$0xff]
        %v5494 = vld [vmem:[%s5491 + $0x10] sm:$0xff]
        %v5495 = vld [vmem:[%s5491 + $0x18] sm:$0xff]
        %v5496 = vld [vmem:[%s5491 + $0x20] sm:$0xff]
        %v5497 = vld [vmem:[%s5491 + $0x28] sm:$0xff]
        %v5498 = vld [vmem:[%s5491 + $0x30] sm:$0xff]
        %v5499 = vld [vmem:[%s5491 + $0x38] sm:$0xff]
        %v5501 = vsel %vm306, %v5459, 0
        %v5504 = vsel %vm306, %v5460, 0
        %v5507 = vsel %vm306, %v5461, 0
        %v5510 = vsel %vm306, %v5462, 0
        %v5513 = vsel %vm306, %v5463, 0
        %v5516 = vsel %vm306, %v5464, 0
        %v5519 = vsel %vm306, %v5465, 0
        %v5522 = vsel %vm306, %v5466, 0
        %v5525 = vsel %vm306, %v5467, 0
        %v5528 = vsel %vm306, %v5468, 0
        %v5531 = vsel %vm306, %v5469, 0
        %v5534 = vsel %vm306, %v5470, 0
        %v5537 = vsel %vm306, %v5471, 0
        %v5540 = vsel %vm306, %v5472, 0
        %v5543 = vsel %vm306, %v5473, 0
        %v5546 = vsel %vm306, %v5474, 0
        %v5549 = vsel %vm306, %v5475, 0
        %v5552 = vsel %vm306, %v5476, 0
        %v5555 = vsel %vm306, %v5477, 0
        %v5558 = vsel %vm306, %v5478, 0
        %v5561 = vsel %vm306, %v5479, 0
        %v5564 = vsel %vm306, %v5480, 0
        %v5567 = vsel %vm306, %v5481, 0
        %v5570 = vsel %vm306, %v5482, 0
        %v5573 = vsel %vm306, %v5483, 0
        %v5576 = vsel %vm306, %v5484, 0
        %v5579 = vsel %vm306, %v5485, 0
        %v5582 = vsel %vm306, %v5486, 0
        %v5585 = vsel %vm306, %v5487, 0
        %v5588 = vsel %vm306, %v5488, 0
        %v5591 = vsel %vm306, %v5489, 0
        %v5594 = vsel %vm306, %v5490, 0
        %5596 = vmatpush.msra.mxu0 0.0
        %5597 = vmatpush.msra.mxu0 0.0
        %5598 = vmatpush.msra.mxu0 0.0
        %5599 = vmatpush.msra.mxu0 0.0
        %5600 = vmatpush.msra.mxu0 0.0
        %5601 = vmatpush.msra.mxu0 0.0
        %5602 = vmatpush.msra.mxu0 0.0
        %5603 = vmatpush.msra.mxu0 0.0
        %5604 = vmatpush.msra.mxu0 %v5499
        %5605 = vmatpush.msra.mxu0 %v5498
        %5606 = vmatpush.msra.mxu0 %v5497
        %5607 = vmatpush.msra.mxu0 %v5496
        %5608 = vmatpush.msra.mxu0 %v5495
        %5609 = vmatpush.msra.mxu0 %v5494
        %5610 = vmatpush.msra.mxu0 %v5493
        %5611 = vmatpush.msra.mxu0 %v5492
        %5612 = vmatmul.f32.gmra.mxu0 %v5501
        %v5613 = vpop.f32.mrf.mxu0
        %v5614 = vadd.f32 0.0, %v5613
        %5615 = vmatmul.f32.gmra.mxu0 %v5504
        %v5616 = vpop.f32.mrf.mxu0
        %v5617 = vadd.f32 0.0, %v5616
        %5618 = vmatmul.f32.gmra.mxu0 %v5507
        %v5619 = vpop.f32.mrf.mxu0
        %v5620 = vadd.f32 0.0, %v5619
        %5621 = vmatmul.f32.gmra.mxu0 %v5510
        %v5622 = vpop.f32.mrf.mxu0
        %v5623 = vadd.f32 0.0, %v5622
        %5624 = vmatmul.f32.gmra.mxu0 %v5513
        %v5625 = vpop.f32.mrf.mxu0
        %v5626 = vadd.f32 0.0, %v5625
        %5627 = vmatmul.f32.gmra.mxu0 %v5516
        %v5628 = vpop.f32.mrf.mxu0
        %v5629 = vadd.f32 0.0, %v5628
        %5630 = vmatmul.f32.gmra.mxu0 %v5519
        %v5631 = vpop.f32.mrf.mxu0
        %v5632 = vadd.f32 0.0, %v5631
        %5633 = vmatmul.f32.gmra.mxu0 %v5522
        %v5634 = vpop.f32.mrf.mxu0
        %v5635 = vadd.f32 0.0, %v5634
        %5636 = vmatmul.f32.gmra.mxu0 %v5525
        %v5637 = vpop.f32.mrf.mxu0
        %v5638 = vadd.f32 0.0, %v5637
        %5639 = vmatmul.f32.gmra.mxu0 %v5528
        %v5640 = vpop.f32.mrf.mxu0
        %v5641 = vadd.f32 0.0, %v5640
        %5642 = vmatmul.f32.gmra.mxu0 %v5531
        %v5643 = vpop.f32.mrf.mxu0
        %v5644 = vadd.f32 0.0, %v5643
        %5645 = vmatmul.f32.gmra.mxu0 %v5534
        %v5646 = vpop.f32.mrf.mxu0
        %v5647 = vadd.f32 0.0, %v5646
        %5648 = vmatmul.f32.gmra.mxu0 %v5537
        %v5649 = vpop.f32.mrf.mxu0
        %v5650 = vadd.f32 0.0, %v5649
        %5651 = vmatmul.f32.gmra.mxu0 %v5540
        %v5652 = vpop.f32.mrf.mxu0
        %v5653 = vadd.f32 0.0, %v5652
        %5654 = vmatmul.f32.gmra.mxu0 %v5543
        %v5655 = vpop.f32.mrf.mxu0
        %v5656 = vadd.f32 0.0, %v5655
        %5657 = vmatmul.f32.gmra.mxu0 %v5546
        %v5658 = vpop.f32.mrf.mxu0
        %v5659 = vadd.f32 0.0, %v5658
        %5660 = vmatmul.f32.gmra.mxu0 %v5549
        %v5661 = vpop.f32.mrf.mxu0
        %v5662 = vadd.f32 0.0, %v5661
        %5663 = vmatmul.f32.gmra.mxu0 %v5552
        %v5664 = vpop.f32.mrf.mxu0
        %v5665 = vadd.f32 0.0, %v5664
        %5666 = vmatmul.f32.gmra.mxu0 %v5555
        %v5667 = vpop.f32.mrf.mxu0
        %v5668 = vadd.f32 0.0, %v5667
        %5669 = vmatmul.f32.gmra.mxu0 %v5558
        %v5670 = vpop.f32.mrf.mxu0
        %v5671 = vadd.f32 0.0, %v5670
        %5672 = vmatmul.f32.gmra.mxu0 %v5561
        %v5673 = vpop.f32.mrf.mxu0
        %v5674 = vadd.f32 0.0, %v5673
        %5675 = vmatmul.f32.gmra.mxu0 %v5564
        %v5676 = vpop.f32.mrf.mxu0
        %v5677 = vadd.f32 0.0, %v5676
        %5678 = vmatmul.f32.gmra.mxu0 %v5567
        %v5679 = vpop.f32.mrf.mxu0
        %v5680 = vadd.f32 0.0, %v5679
        %5681 = vmatmul.f32.gmra.mxu0 %v5570
        %v5682 = vpop.f32.mrf.mxu0
        %v5683 = vadd.f32 0.0, %v5682
        %5684 = vmatmul.f32.gmra.mxu0 %v5573
        %v5685 = vpop.f32.mrf.mxu0
        %v5686 = vadd.f32 0.0, %v5685
        %5687 = vmatmul.f32.gmra.mxu0 %v5576
        %v5688 = vpop.f32.mrf.mxu0
        %v5689 = vadd.f32 0.0, %v5688
        %5690 = vmatmul.f32.gmra.mxu0 %v5579
        %v5691 = vpop.f32.mrf.mxu0
        %v5692 = vadd.f32 0.0, %v5691
        %5693 = vmatmul.f32.gmra.mxu0 %v5582
        %v5694 = vpop.f32.mrf.mxu0
        %v5695 = vadd.f32 0.0, %v5694
        %5696 = vmatmul.f32.gmra.mxu0 %v5585
        %v5697 = vpop.f32.mrf.mxu0
        %v5698 = vadd.f32 0.0, %v5697
        %5699 = vmatmul.f32.gmra.mxu0 %v5588
        %v5700 = vpop.f32.mrf.mxu0
        %v5701 = vadd.f32 0.0, %v5700
        %5702 = vmatmul.f32.gmra.mxu0 %v5591
        %v5703 = vpop.f32.mrf.mxu0
        %v5704 = vadd.f32 0.0, %v5703
        %5705 = vmatmul.f32.gmra.mxu0 %v5594
        %v5706 = vpop.f32.mrf.mxu0
        %v5707 = vadd.f32 0.0, %v5706
        %5708 = vdwg.mxu0
        %v5709 = vadd.f32 %v5427, %v5614
        %v5710 = vadd.f32 %v5428, %v5617
        %v5711 = vadd.f32 %v5429, %v5620
        %v5712 = vadd.f32 %v5430, %v5623
        %v5713 = vadd.f32 %v5431, %v5626
        %v5714 = vadd.f32 %v5432, %v5629
        %v5715 = vadd.f32 %v5433, %v5632
        %v5716 = vadd.f32 %v5434, %v5635
        %v5717 = vadd.f32 %v5435, %v5638
        %v5718 = vadd.f32 %v5436, %v5641
        %v5719 = vadd.f32 %v5437, %v5644
        %v5720 = vadd.f32 %v5438, %v5647
        %v5721 = vadd.f32 %v5439, %v5650
        %v5722 = vadd.f32 %v5440, %v5653
        %v5723 = vadd.f32 %v5441, %v5656
        %v5724 = vadd.f32 %v5442, %v5659
        %v5725 = vadd.f32 %v5443, %v5662
        %v5726 = vadd.f32 %v5444, %v5665
        %v5727 = vadd.f32 %v5445, %v5668
        %v5728 = vadd.f32 %v5446, %v5671
        %v5729 = vadd.f32 %v5447, %v5674
        %v5730 = vadd.f32 %v5448, %v5677
        %v5731 = vadd.f32 %v5449, %v5680
        %v5732 = vadd.f32 %v5450, %v5683
        %v5733 = vadd.f32 %v5451, %v5686
        %v5734 = vadd.f32 %v5452, %v5689
        %v5735 = vadd.f32 %v5453, %v5692
        %v5736 = vadd.f32 %v5454, %v5695
        %v5737 = vadd.f32 %v5455, %v5698
        %v5738 = vadd.f32 %v5456, %v5701
        %v5739 = vadd.f32 %v5457, %v5704
        %v5740 = vadd.f32 %v5458, %v5707
        %v5741 = vld [vmem:[#allocation3 + $0x19] sm:$0xff]
        %v5742 = vld [vmem:[#allocation3 + $0x21] sm:$0xff]
        %v5743 = vld [vmem:[#allocation3 + $0x29] sm:$0xff]
        %v5744 = vld [vmem:[#allocation3 + $0x31] sm:$0xff]
        %v5745 = vld [vmem:[#allocation3 + $0x39] sm:$0xff]
        %v5746 = vld [vmem:[#allocation3 + $0x41] sm:$0xff]
        %v5747 = vld [vmem:[#allocation3 + $0x49] sm:$0xff]
        %v5748 = vld [vmem:[#allocation3 + $0x51] sm:$0xff]
        %v5749 = vld [vmem:[#allocation3 + $0x59] sm:$0xff]
        %v5750 = vld [vmem:[#allocation3 + $0x61] sm:$0xff]
        %v5751 = vld [vmem:[#allocation3 + $0x69] sm:$0xff]
        %v5752 = vld [vmem:[#allocation3 + $0x71] sm:$0xff]
        %v5753 = vld [vmem:[#allocation3 + $0x79] sm:$0xff]
        %v5754 = vld [vmem:[#allocation3 + $0x81] sm:$0xff]
        %v5755 = vld [vmem:[#allocation3 + $0x89] sm:$0xff]
        %v5756 = vld [vmem:[#allocation3 + $0x91] sm:$0xff]
        %v5757 = vld [vmem:[#allocation3 + $0x99] sm:$0xff]
        %v5758 = vld [vmem:[#allocation3 + $0xa1] sm:$0xff]
        %v5759 = vld [vmem:[#allocation3 + $0xa9] sm:$0xff]
        %v5760 = vld [vmem:[#allocation3 + $0xb1] sm:$0xff]
        %v5761 = vld [vmem:[#allocation3 + $0xb9] sm:$0xff]
        %v5762 = vld [vmem:[#allocation3 + $0xc1] sm:$0xff]
        %v5763 = vld [vmem:[#allocation3 + $0xc9] sm:$0xff]
        %v5764 = vld [vmem:[#allocation3 + $0xd1] sm:$0xff]
        %v5765 = vld [vmem:[#allocation3 + $0xd9] sm:$0xff]
        %v5766 = vld [vmem:[#allocation3 + $0xe1] sm:$0xff]
        %v5767 = vld [vmem:[#allocation3 + $0xe9] sm:$0xff]
        %v5768 = vld [vmem:[#allocation3 + $0xf1] sm:$0xff]
        %v5769 = vld [vmem:[#allocation3 + $0xf9] sm:$0xff]
        %v5770 = vld [vmem:[#allocation3 + $0x101] sm:$0xff]
        %v5771 = vld [vmem:[#allocation3 + $0x109] sm:$0xff]
        %v5772 = vld [vmem:[#allocation3 + $0x111] sm:$0xff]
        %s5773 = scalar_lea.vmem %s3, %s2935
        %v5774 = vld [vmem:[%s5773] sm:$0xff]
        %v5775 = vld [vmem:[%s5773 + $0x8] sm:$0xff]
        %v5776 = vld [vmem:[%s5773 + $0x10] sm:$0xff]
        %v5777 = vld [vmem:[%s5773 + $0x18] sm:$0xff]
        %v5778 = vld [vmem:[%s5773 + $0x20] sm:$0xff]
        %v5779 = vld [vmem:[%s5773 + $0x28] sm:$0xff]
        %v5780 = vld [vmem:[%s5773 + $0x30] sm:$0xff]
        %v5781 = vld [vmem:[%s5773 + $0x38] sm:$0xff]
        %v5783 = vsel %vm306, %v5741, 0
        %v5786 = vsel %vm306, %v5742, 0
        %v5789 = vsel %vm306, %v5743, 0
        %v5792 = vsel %vm306, %v5744, 0
        %v5795 = vsel %vm306, %v5745, 0
        %v5798 = vsel %vm306, %v5746, 0
        %v5801 = vsel %vm306, %v5747, 0
        %v5804 = vsel %vm306, %v5748, 0
        %v5807 = vsel %vm306, %v5749, 0
        %v5810 = vsel %vm306, %v5750, 0
        %v5813 = vsel %vm306, %v5751, 0
        %v5816 = vsel %vm306, %v5752, 0
        %v5819 = vsel %vm306, %v5753, 0
        %v5822 = vsel %vm306, %v5754, 0
        %v5825 = vsel %vm306, %v5755, 0
        %v5828 = vsel %vm306, %v5756, 0
        %v5831 = vsel %vm306, %v5757, 0
        %v5834 = vsel %vm306, %v5758, 0
        %v5837 = vsel %vm306, %v5759, 0
        %v5840 = vsel %vm306, %v5760, 0
        %v5843 = vsel %vm306, %v5761, 0
        %v5846 = vsel %vm306, %v5762, 0
        %v5849 = vsel %vm306, %v5763, 0
        %v5852 = vsel %vm306, %v5764, 0
        %v5855 = vsel %vm306, %v5765, 0
        %v5858 = vsel %vm306, %v5766, 0
        %v5861 = vsel %vm306, %v5767, 0
        %v5864 = vsel %vm306, %v5768, 0
        %v5867 = vsel %vm306, %v5769, 0
        %v5870 = vsel %vm306, %v5770, 0
        %v5873 = vsel %vm306, %v5771, 0
        %v5876 = vsel %vm306, %v5772, 0
        %5878 = vmatpush.msra.mxu0 0.0
        %5879 = vmatpush.msra.mxu0 0.0
        %5880 = vmatpush.msra.mxu0 0.0
        %5881 = vmatpush.msra.mxu0 0.0
        %5882 = vmatpush.msra.mxu0 0.0
        %5883 = vmatpush.msra.mxu0 0.0
        %5884 = vmatpush.msra.mxu0 0.0
        %5885 = vmatpush.msra.mxu0 0.0
        %5886 = vmatpush.msra.mxu0 %v5781
        %5887 = vmatpush.msra.mxu0 %v5780
        %5888 = vmatpush.msra.mxu0 %v5779
        %5889 = vmatpush.msra.mxu0 %v5778
        %5890 = vmatpush.msra.mxu0 %v5777
        %5891 = vmatpush.msra.mxu0 %v5776
        %5892 = vmatpush.msra.mxu0 %v5775
        %5893 = vmatpush.msra.mxu0 %v5774
        %5894 = vmatmul.f32.gmra.mxu0 %v5783
        %v5895 = vpop.f32.mrf.mxu0
        %v5896 = vadd.f32 0.0, %v5895
        %5897 = vmatmul.f32.gmra.mxu0 %v5786
        %v5898 = vpop.f32.mrf.mxu0
        %v5899 = vadd.f32 0.0, %v5898
        %5900 = vmatmul.f32.gmra.mxu0 %v5789
        %v5901 = vpop.f32.mrf.mxu0
        %v5902 = vadd.f32 0.0, %v5901
        %5903 = vmatmul.f32.gmra.mxu0 %v5792
        %v5904 = vpop.f32.mrf.mxu0
        %v5905 = vadd.f32 0.0, %v5904
        %5906 = vmatmul.f32.gmra.mxu0 %v5795
        %v5907 = vpop.f32.mrf.mxu0
        %v5908 = vadd.f32 0.0, %v5907
        %5909 = vmatmul.f32.gmra.mxu0 %v5798
        %v5910 = vpop.f32.mrf.mxu0
        %v5911 = vadd.f32 0.0, %v5910
        %5912 = vmatmul.f32.gmra.mxu0 %v5801
        %v5913 = vpop.f32.mrf.mxu0
        %v5914 = vadd.f32 0.0, %v5913
        %5915 = vmatmul.f32.gmra.mxu0 %v5804
        %v5916 = vpop.f32.mrf.mxu0
        %v5917 = vadd.f32 0.0, %v5916
        %5918 = vmatmul.f32.gmra.mxu0 %v5807
        %v5919 = vpop.f32.mrf.mxu0
        %v5920 = vadd.f32 0.0, %v5919
        %5921 = vmatmul.f32.gmra.mxu0 %v5810
        %v5922 = vpop.f32.mrf.mxu0
        %v5923 = vadd.f32 0.0, %v5922
        %5924 = vmatmul.f32.gmra.mxu0 %v5813
        %v5925 = vpop.f32.mrf.mxu0
        %v5926 = vadd.f32 0.0, %v5925
        %5927 = vmatmul.f32.gmra.mxu0 %v5816
        %v5928 = vpop.f32.mrf.mxu0
        %v5929 = vadd.f32 0.0, %v5928
        %5930 = vmatmul.f32.gmra.mxu0 %v5819
        %v5931 = vpop.f32.mrf.mxu0
        %v5932 = vadd.f32 0.0, %v5931
        %5933 = vmatmul.f32.gmra.mxu0 %v5822
        %v5934 = vpop.f32.mrf.mxu0
        %v5935 = vadd.f32 0.0, %v5934
        %5936 = vmatmul.f32.gmra.mxu0 %v5825
        %v5937 = vpop.f32.mrf.mxu0
        %v5938 = vadd.f32 0.0, %v5937
        %5939 = vmatmul.f32.gmra.mxu0 %v5828
        %v5940 = vpop.f32.mrf.mxu0
        %v5941 = vadd.f32 0.0, %v5940
        %5942 = vmatmul.f32.gmra.mxu0 %v5831
        %v5943 = vpop.f32.mrf.mxu0
        %v5944 = vadd.f32 0.0, %v5943
        %5945 = vmatmul.f32.gmra.mxu0 %v5834
        %v5946 = vpop.f32.mrf.mxu0
        %v5947 = vadd.f32 0.0, %v5946
        %5948 = vmatmul.f32.gmra.mxu0 %v5837
        %v5949 = vpop.f32.mrf.mxu0
        %v5950 = vadd.f32 0.0, %v5949
        %5951 = vmatmul.f32.gmra.mxu0 %v5840
        %v5952 = vpop.f32.mrf.mxu0
        %v5953 = vadd.f32 0.0, %v5952
        %5954 = vmatmul.f32.gmra.mxu0 %v5843
        %v5955 = vpop.f32.mrf.mxu0
        %v5956 = vadd.f32 0.0, %v5955
        %5957 = vmatmul.f32.gmra.mxu0 %v5846
        %v5958 = vpop.f32.mrf.mxu0
        %v5959 = vadd.f32 0.0, %v5958
        %5960 = vmatmul.f32.gmra.mxu0 %v5849
        %v5961 = vpop.f32.mrf.mxu0
        %v5962 = vadd.f32 0.0, %v5961
        %5963 = vmatmul.f32.gmra.mxu0 %v5852
        %v5964 = vpop.f32.mrf.mxu0
        %v5965 = vadd.f32 0.0, %v5964
        %5966 = vmatmul.f32.gmra.mxu0 %v5855
        %v5967 = vpop.f32.mrf.mxu0
        %v5968 = vadd.f32 0.0, %v5967
        %5969 = vmatmul.f32.gmra.mxu0 %v5858
        %v5970 = vpop.f32.mrf.mxu0
        %v5971 = vadd.f32 0.0, %v5970
        %5972 = vmatmul.f32.gmra.mxu0 %v5861
        %v5973 = vpop.f32.mrf.mxu0
        %v5974 = vadd.f32 0.0, %v5973
        %5975 = vmatmul.f32.gmra.mxu0 %v5864
        %v5976 = vpop.f32.mrf.mxu0
        %v5977 = vadd.f32 0.0, %v5976
        %5978 = vmatmul.f32.gmra.mxu0 %v5867
        %v5979 = vpop.f32.mrf.mxu0
        %v5980 = vadd.f32 0.0, %v5979
        %5981 = vmatmul.f32.gmra.mxu0 %v5870
        %v5982 = vpop.f32.mrf.mxu0
        %v5983 = vadd.f32 0.0, %v5982
        %5984 = vmatmul.f32.gmra.mxu0 %v5873
        %v5985 = vpop.f32.mrf.mxu0
        %v5986 = vadd.f32 0.0, %v5985
        %5987 = vmatmul.f32.gmra.mxu0 %v5876
        %v5988 = vpop.f32.mrf.mxu0
        %v5989 = vadd.f32 0.0, %v5988
        %5990 = vdwg.mxu0
        %v5991 = vsel %vm2206, 0.0, %v5896
        %v5992 = vsel %vm2207, 0.0, %v5899
        %v5993 = vsel %vm2208, 0.0, %v5902
        %v5994 = vsel %vm2209, 0.0, %v5905
        %v5995 = vsel %vm2210, 0.0, %v5908
        %v5996 = vsel %vm2211, 0.0, %v5911
        %v5997 = vsel %vm2212, 0.0, %v5914
        %v5998 = vsel %vm2213, 0.0, %v5917
        %v5999 = vsel %vm2214, 0.0, %v5920
        %v6000 = vsel %vm2215, 0.0, %v5923
        %v6001 = vsel %vm2216, 0.0, %v5926
        %v6002 = vsel %vm2217, 0.0, %v5929
        %v6003 = vsel %vm2218, 0.0, %v5932
        %v6004 = vsel %vm2219, 0.0, %v5935
        %v6005 = vsel %vm2220, 0.0, %v5938
        %v6006 = vsel %vm2221, 0.0, %v5941
        %v6007 = vsel %vm2222, 0.0, %v5944
        %v6008 = vsel %vm2223, 0.0, %v5947
        %v6009 = vsel %vm2224, 0.0, %v5950
        %v6010 = vsel %vm2225, 0.0, %v5953
        %v6011 = vsel %vm2226, 0.0, %v5956
        %v6012 = vsel %vm2227, 0.0, %v5959
        %v6013 = vsel %vm2228, 0.0, %v5962
        %v6014 = vsel %vm2229, 0.0, %v5965
        %v6015 = vsel %vm2230, 0.0, %v5968
        %v6016 = vsel %vm2231, 0.0, %v5971
        %v6017 = vsel %vm2232, 0.0, %v5974
        %v6018 = vsel %vm2233, 0.0, %v5977
        %v6019 = vsel %vm2234, 0.0, %v5980
        %v6020 = vsel %vm2235, 0.0, %v5983
        %v6021 = vsel %vm2236, 0.0, %v5986
        %v6022 = vsel %vm2237, 0.0, %v5989
        %v6023 = vadd.f32 %v5709, %v5991
        %v6024 = vadd.f32 %v5710, %v5992
        %v6025 = vadd.f32 %v5711, %v5993
        %v6026 = vadd.f32 %v5712, %v5994
        %v6027 = vadd.f32 %v5713, %v5995
        %v6028 = vadd.f32 %v5714, %v5996
        %v6029 = vadd.f32 %v5715, %v5997
        %v6030 = vadd.f32 %v5716, %v5998
        %v6031 = vadd.f32 %v5717, %v5999
        %v6032 = vadd.f32 %v5718, %v6000
        %v6033 = vadd.f32 %v5719, %v6001
        %v6034 = vadd.f32 %v5720, %v6002
        %v6035 = vadd.f32 %v5721, %v6003
        %v6036 = vadd.f32 %v5722, %v6004
        %v6037 = vadd.f32 %v5723, %v6005
        %v6038 = vadd.f32 %v5724, %v6006
        %v6039 = vadd.f32 %v5725, %v6007
        %v6040 = vadd.f32 %v5726, %v6008
        %v6041 = vadd.f32 %v5727, %v6009
        %v6042 = vadd.f32 %v5728, %v6010
        %v6043 = vadd.f32 %v5729, %v6011
        %v6044 = vadd.f32 %v5730, %v6012
        %v6045 = vadd.f32 %v5731, %v6013
        %v6046 = vadd.f32 %v5732, %v6014
        %v6047 = vadd.f32 %v5733, %v6015
        %v6048 = vadd.f32 %v5734, %v6016
        %v6049 = vadd.f32 %v5735, %v6017
        %v6050 = vadd.f32 %v5736, %v6018
        %v6051 = vadd.f32 %v5737, %v6019
        %v6052 = vadd.f32 %v5738, %v6020
        %v6053 = vadd.f32 %v5739, %v6021
        %v6054 = vadd.f32 %v5740, %v6022
        %v6055 = vld [vmem:[#allocation3 + $0x27] sm:$0xff]
        %v6056 = vld [vmem:[#allocation3 + $0x2f] sm:$0xff]
        %v6057 = vld [vmem:[#allocation3 + $0x37] sm:$0xff]
        %v6058 = vld [vmem:[#allocation3 + $0x3f] sm:$0xff]
        %v6059 = vld [vmem:[#allocation3 + $0x47] sm:$0xff]
        %v6060 = vld [vmem:[#allocation3 + $0x4f] sm:$0xff]
        %v6061 = vld [vmem:[#allocation3 + $0x57] sm:$0xff]
        %v6062 = vld [vmem:[#allocation3 + $0x5f] sm:$0xff]
        %v6063 = vld [vmem:[#allocation3 + $0x67] sm:$0xff]
        %v6064 = vld [vmem:[#allocation3 + $0x6f] sm:$0xff]
        %v6065 = vld [vmem:[#allocation3 + $0x77] sm:$0xff]
        %v6066 = vld [vmem:[#allocation3 + $0x7f] sm:$0xff]
        %v6067 = vld [vmem:[#allocation3 + $0x87] sm:$0xff]
        %v6068 = vld [vmem:[#allocation3 + $0x8f] sm:$0xff]
        %v6069 = vld [vmem:[#allocation3 + $0x97] sm:$0xff]
        %v6070 = vld [vmem:[#allocation3 + $0x9f] sm:$0xff]
        %v6071 = vld [vmem:[#allocation3 + $0xa7] sm:$0xff]
        %v6072 = vld [vmem:[#allocation3 + $0xaf] sm:$0xff]
        %v6073 = vld [vmem:[#allocation3 + $0xb7] sm:$0xff]
        %v6074 = vld [vmem:[#allocation3 + $0xbf] sm:$0xff]
        %v6075 = vld [vmem:[#allocation3 + $0xc7] sm:$0xff]
        %v6076 = vld [vmem:[#allocation3 + $0xcf] sm:$0xff]
        %v6077 = vld [vmem:[#allocation3 + $0xd7] sm:$0xff]
        %v6078 = vld [vmem:[#allocation3 + $0xdf] sm:$0xff]
        %v6079 = vld [vmem:[#allocation3 + $0xe7] sm:$0xff]
        %v6080 = vld [vmem:[#allocation3 + $0xef] sm:$0xff]
        %v6081 = vld [vmem:[#allocation3 + $0xf7] sm:$0xff]
        %v6082 = vld [vmem:[#allocation3 + $0xff] sm:$0xff]
        %v6083 = vld [vmem:[#allocation3 + $0x107] sm:$0xff]
        %v6084 = vld [vmem:[#allocation3 + $0x10f] sm:$0xff]
        %v6085 = vld [vmem:[#allocation3 + $0x117] sm:$0xff]
        %v6086 = vld [vmem:[#allocation3 + $0x11f] sm:$0xff]
        %s6087 = scalar_lea.vmem %s3, %s3251
        %v6088 = vld [vmem:[%s6087] sm:$0xff]
        %v6089 = vld [vmem:[%s6087 + $0x8] sm:$0xff]
        %v6090 = vld [vmem:[%s6087 + $0x10] sm:$0xff]
        %v6091 = vld [vmem:[%s6087 + $0x18] sm:$0xff]
        %v6092 = vld [vmem:[%s6087 + $0x20] sm:$0xff]
        %v6093 = vld [vmem:[%s6087 + $0x28] sm:$0xff]
        %v6094 = vld [vmem:[%s6087 + $0x30] sm:$0xff]
        %v6095 = vld [vmem:[%s6087 + $0x38] sm:$0xff]
        %v6097 = vsel %vm306, %v6055, 0
        %v6100 = vsel %vm306, %v6056, 0
        %v6103 = vsel %vm306, %v6057, 0
        %v6106 = vsel %vm306, %v6058, 0
        %v6109 = vsel %vm306, %v6059, 0
        %v6112 = vsel %vm306, %v6060, 0
        %v6115 = vsel %vm306, %v6061, 0
        %v6118 = vsel %vm306, %v6062, 0
        %v6121 = vsel %vm306, %v6063, 0
        %v6124 = vsel %vm306, %v6064, 0
        %v6127 = vsel %vm306, %v6065, 0
        %v6130 = vsel %vm306, %v6066, 0
        %v6133 = vsel %vm306, %v6067, 0
        %v6136 = vsel %vm306, %v6068, 0
        %v6139 = vsel %vm306, %v6069, 0
        %v6142 = vsel %vm306, %v6070, 0
        %v6145 = vsel %vm306, %v6071, 0
        %v6148 = vsel %vm306, %v6072, 0
        %v6151 = vsel %vm306, %v6073, 0
        %v6154 = vsel %vm306, %v6074, 0
        %v6157 = vsel %vm306, %v6075, 0
        %v6160 = vsel %vm306, %v6076, 0
        %v6163 = vsel %vm306, %v6077, 0
        %v6166 = vsel %vm306, %v6078, 0
        %v6169 = vsel %vm306, %v6079, 0
        %v6172 = vsel %vm306, %v6080, 0
        %v6175 = vsel %vm306, %v6081, 0
        %v6178 = vsel %vm306, %v6082, 0
        %v6181 = vsel %vm306, %v6083, 0
        %v6184 = vsel %vm306, %v6084, 0
        %v6187 = vsel %vm306, %v6085, 0
        %v6190 = vsel %vm306, %v6086, 0
        %6192 = vmatpush.msra.mxu0 0.0
        %6193 = vmatpush.msra.mxu0 0.0
        %6194 = vmatpush.msra.mxu0 0.0
        %6195 = vmatpush.msra.mxu0 0.0
        %6196 = vmatpush.msra.mxu0 0.0
        %6197 = vmatpush.msra.mxu0 0.0
        %6198 = vmatpush.msra.mxu0 0.0
        %6199 = vmatpush.msra.mxu0 0.0
        %6200 = vmatpush.msra.mxu0 %v6095
        %6201 = vmatpush.msra.mxu0 %v6094
        %6202 = vmatpush.msra.mxu0 %v6093
        %6203 = vmatpush.msra.mxu0 %v6092
        %6204 = vmatpush.msra.mxu0 %v6091
        %6205 = vmatpush.msra.mxu0 %v6090
        %6206 = vmatpush.msra.mxu0 %v6089
        %6207 = vmatpush.msra.mxu0 %v6088
        %6208 = vmatmul.f32.gmra.mxu0 %v6097
        %v6209 = vpop.f32.mrf.mxu0
        %v6210 = vadd.f32 0.0, %v6209
        %6211 = vmatmul.f32.gmra.mxu0 %v6100
        %v6212 = vpop.f32.mrf.mxu0
        %v6213 = vadd.f32 0.0, %v6212
        %6214 = vmatmul.f32.gmra.mxu0 %v6103
        %v6215 = vpop.f32.mrf.mxu0
        %v6216 = vadd.f32 0.0, %v6215
        %6217 = vmatmul.f32.gmra.mxu0 %v6106
        %v6218 = vpop.f32.mrf.mxu0
        %v6219 = vadd.f32 0.0, %v6218
        %6220 = vmatmul.f32.gmra.mxu0 %v6109
        %v6221 = vpop.f32.mrf.mxu0
        %v6222 = vadd.f32 0.0, %v6221
        %6223 = vmatmul.f32.gmra.mxu0 %v6112
        %v6224 = vpop.f32.mrf.mxu0
        %v6225 = vadd.f32 0.0, %v6224
        %6226 = vmatmul.f32.gmra.mxu0 %v6115
        %v6227 = vpop.f32.mrf.mxu0
        %v6228 = vadd.f32 0.0, %v6227
        %6229 = vmatmul.f32.gmra.mxu0 %v6118
        %v6230 = vpop.f32.mrf.mxu0
        %v6231 = vadd.f32 0.0, %v6230
        %6232 = vmatmul.f32.gmra.mxu0 %v6121
        %v6233 = vpop.f32.mrf.mxu0
        %v6234 = vadd.f32 0.0, %v6233
        %6235 = vmatmul.f32.gmra.mxu0 %v6124
        %v6236 = vpop.f32.mrf.mxu0
        %v6237 = vadd.f32 0.0, %v6236
        %6238 = vmatmul.f32.gmra.mxu0 %v6127
        %v6239 = vpop.f32.mrf.mxu0
        %v6240 = vadd.f32 0.0, %v6239
        %6241 = vmatmul.f32.gmra.mxu0 %v6130
        %v6242 = vpop.f32.mrf.mxu0
        %v6243 = vadd.f32 0.0, %v6242
        %6244 = vmatmul.f32.gmra.mxu0 %v6133
        %v6245 = vpop.f32.mrf.mxu0
        %v6246 = vadd.f32 0.0, %v6245
        %6247 = vmatmul.f32.gmra.mxu0 %v6136
        %v6248 = vpop.f32.mrf.mxu0
        %v6249 = vadd.f32 0.0, %v6248
        %6250 = vmatmul.f32.gmra.mxu0 %v6139
        %v6251 = vpop.f32.mrf.mxu0
        %v6252 = vadd.f32 0.0, %v6251
        %6253 = vmatmul.f32.gmra.mxu0 %v6142
        %v6254 = vpop.f32.mrf.mxu0
        %v6255 = vadd.f32 0.0, %v6254
        %6256 = vmatmul.f32.gmra.mxu0 %v6145
        %v6257 = vpop.f32.mrf.mxu0
        %v6258 = vadd.f32 0.0, %v6257
        %6259 = vmatmul.f32.gmra.mxu0 %v6148
        %v6260 = vpop.f32.mrf.mxu0
        %v6261 = vadd.f32 0.0, %v6260
        %6262 = vmatmul.f32.gmra.mxu0 %v6151
        %v6263 = vpop.f32.mrf.mxu0
        %v6264 = vadd.f32 0.0, %v6263
        %6265 = vmatmul.f32.gmra.mxu0 %v6154
        %v6266 = vpop.f32.mrf.mxu0
        %v6267 = vadd.f32 0.0, %v6266
        %6268 = vmatmul.f32.gmra.mxu0 %v6157
        %v6269 = vpop.f32.mrf.mxu0
        %v6270 = vadd.f32 0.0, %v6269
        %6271 = vmatmul.f32.gmra.mxu0 %v6160
        %v6272 = vpop.f32.mrf.mxu0
        %v6273 = vadd.f32 0.0, %v6272
        %6274 = vmatmul.f32.gmra.mxu0 %v6163
        %v6275 = vpop.f32.mrf.mxu0
        %v6276 = vadd.f32 0.0, %v6275
        %6277 = vmatmul.f32.gmra.mxu0 %v6166
        %v6278 = vpop.f32.mrf.mxu0
        %v6279 = vadd.f32 0.0, %v6278
        %6280 = vmatmul.f32.gmra.mxu0 %v6169
        %v6281 = vpop.f32.mrf.mxu0
        %v6282 = vadd.f32 0.0, %v6281
        %6283 = vmatmul.f32.gmra.mxu0 %v6172
        %v6284 = vpop.f32.mrf.mxu0
        %v6285 = vadd.f32 0.0, %v6284
        %6286 = vmatmul.f32.gmra.mxu0 %v6175
        %v6287 = vpop.f32.mrf.mxu0
        %v6288 = vadd.f32 0.0, %v6287
        %6289 = vmatmul.f32.gmra.mxu0 %v6178
        %v6290 = vpop.f32.mrf.mxu0
        %v6291 = vadd.f32 0.0, %v6290
        %6292 = vmatmul.f32.gmra.mxu0 %v6181
        %v6293 = vpop.f32.mrf.mxu0
        %v6294 = vadd.f32 0.0, %v6293
        %6295 = vmatmul.f32.gmra.mxu0 %v6184
        %v6296 = vpop.f32.mrf.mxu0
        %v6297 = vadd.f32 0.0, %v6296
        %6298 = vmatmul.f32.gmra.mxu0 %v6187
        %v6299 = vpop.f32.mrf.mxu0
        %v6300 = vadd.f32 0.0, %v6299
        %6301 = vmatmul.f32.gmra.mxu0 %v6190
        %v6302 = vpop.f32.mrf.mxu0
        %v6303 = vadd.f32 0.0, %v6302
        %6304 = vdwg.mxu0
        %v6305 = vsel %vm1510, 0.0, %v6210
        %v6306 = vsel %vm1511, 0.0, %v6213
        %v6307 = vsel %vm1512, 0.0, %v6216
        %v6308 = vsel %vm1513, 0.0, %v6219
        %v6309 = vsel %vm1514, 0.0, %v6222
        %v6310 = vsel %vm1515, 0.0, %v6225
        %v6311 = vsel %vm1516, 0.0, %v6228
        %v6312 = vsel %vm1517, 0.0, %v6231
        %v6313 = vsel %vm1518, 0.0, %v6234
        %v6314 = vsel %vm1519, 0.0, %v6237
        %v6315 = vsel %vm1520, 0.0, %v6240
        %v6316 = vsel %vm1521, 0.0, %v6243
        %v6317 = vsel %vm1522, 0.0, %v6246
        %v6318 = vsel %vm1523, 0.0, %v6249
        %v6319 = vsel %vm1524, 0.0, %v6252
        %v6320 = vsel %vm1525, 0.0, %v6255
        %v6321 = vsel %vm1526, 0.0, %v6258
        %v6322 = vsel %vm1527, 0.0, %v6261
        %v6323 = vsel %vm1528, 0.0, %v6264
        %v6324 = vsel %vm1529, 0.0, %v6267
        %v6325 = vsel %vm1530, 0.0, %v6270
        %v6326 = vsel %vm1531, 0.0, %v6273
        %v6327 = vsel %vm1532, 0.0, %v6276
        %v6328 = vsel %vm1533, 0.0, %v6279
        %v6329 = vsel %vm1534, 0.0, %v6282
        %v6330 = vsel %vm1535, 0.0, %v6285
        %v6331 = vsel %vm1536, 0.0, %v6288
        %v6332 = vsel %vm1537, 0.0, %v6291
        %v6333 = vsel %vm1538, 0.0, %v6294
        %v6334 = vsel %vm1539, 0.0, %v6297
        %v6335 = vsel %vm1540, 0.0, %v6300
        %v6336 = vsel %vm1541, 0.0, %v6303
        %v6337 = vadd.f32 %v6023, %v6305
        %v6338 = vadd.f32 %v6024, %v6306
        %v6339 = vadd.f32 %v6025, %v6307
        %v6340 = vadd.f32 %v6026, %v6308
        %v6341 = vadd.f32 %v6027, %v6309
        %v6342 = vadd.f32 %v6028, %v6310
        %v6343 = vadd.f32 %v6029, %v6311
        %v6344 = vadd.f32 %v6030, %v6312
        %v6345 = vadd.f32 %v6031, %v6313
        %v6346 = vadd.f32 %v6032, %v6314
        %v6347 = vadd.f32 %v6033, %v6315
        %v6348 = vadd.f32 %v6034, %v6316
        %v6349 = vadd.f32 %v6035, %v6317
        %v6350 = vadd.f32 %v6036, %v6318
        %v6351 = vadd.f32 %v6037, %v6319
        %v6352 = vadd.f32 %v6038, %v6320
        %v6353 = vadd.f32 %v6039, %v6321
        %v6354 = vadd.f32 %v6040, %v6322
        %v6355 = vadd.f32 %v6041, %v6323
        %v6356 = vadd.f32 %v6042, %v6324
        %v6357 = vadd.f32 %v6043, %v6325
        %v6358 = vadd.f32 %v6044, %v6326
        %v6359 = vadd.f32 %v6045, %v6327
        %v6360 = vadd.f32 %v6046, %v6328
        %v6361 = vadd.f32 %v6047, %v6329
        %v6362 = vadd.f32 %v6048, %v6330
        %v6363 = vadd.f32 %v6049, %v6331
        %v6364 = vadd.f32 %v6050, %v6332
        %v6365 = vadd.f32 %v6051, %v6333
        %v6366 = vadd.f32 %v6052, %v6334
        %v6367 = vadd.f32 %v6053, %v6335
        %v6368 = vadd.f32 %v6054, %v6336
        %v6369 = vld [vmem:[#allocation3 + $0x28] sm:$0xff]
        %v6370 = vld [vmem:[#allocation3 + $0x30] sm:$0xff]
        %v6371 = vld [vmem:[#allocation3 + $0x38] sm:$0xff]
        %v6372 = vld [vmem:[#allocation3 + $0x40] sm:$0xff]
        %v6373 = vld [vmem:[#allocation3 + $0x48] sm:$0xff]
        %v6374 = vld [vmem:[#allocation3 + $0x50] sm:$0xff]
        %v6375 = vld [vmem:[#allocation3 + $0x58] sm:$0xff]
        %v6376 = vld [vmem:[#allocation3 + $0x60] sm:$0xff]
        %v6377 = vld [vmem:[#allocation3 + $0x68] sm:$0xff]
        %v6378 = vld [vmem:[#allocation3 + $0x70] sm:$0xff]
        %v6379 = vld [vmem:[#allocation3 + $0x78] sm:$0xff]
        %v6380 = vld [vmem:[#allocation3 + $0x80] sm:$0xff]
        %v6381 = vld [vmem:[#allocation3 + $0x88] sm:$0xff]
        %v6382 = vld [vmem:[#allocation3 + $0x90] sm:$0xff]
        %v6383 = vld [vmem:[#allocation3 + $0x98] sm:$0xff]
        %v6384 = vld [vmem:[#allocation3 + $0xa0] sm:$0xff]
        %v6385 = vld [vmem:[#allocation3 + $0xa8] sm:$0xff]
        %v6386 = vld [vmem:[#allocation3 + $0xb0] sm:$0xff]
        %v6387 = vld [vmem:[#allocation3 + $0xb8] sm:$0xff]
        %v6388 = vld [vmem:[#allocation3 + $0xc0] sm:$0xff]
        %v6389 = vld [vmem:[#allocation3 + $0xc8] sm:$0xff]
        %v6390 = vld [vmem:[#allocation3 + $0xd0] sm:$0xff]
        %v6391 = vld [vmem:[#allocation3 + $0xd8] sm:$0xff]
        %v6392 = vld [vmem:[#allocation3 + $0xe0] sm:$0xff]
        %v6393 = vld [vmem:[#allocation3 + $0xe8] sm:$0xff]
        %v6394 = vld [vmem:[#allocation3 + $0xf0] sm:$0xff]
        %v6395 = vld [vmem:[#allocation3 + $0xf8] sm:$0xff]
        %v6396 = vld [vmem:[#allocation3 + $0x100] sm:$0xff]
        %v6397 = vld [vmem:[#allocation3 + $0x108] sm:$0xff]
        %v6398 = vld [vmem:[#allocation3 + $0x110] sm:$0xff]
        %v6399 = vld [vmem:[#allocation3 + $0x118] sm:$0xff]
        %v6400 = vld [vmem:[#allocation3 + $0x120] sm:$0xff]
        %s6401 = scalar_lea.vmem %s3, %s3567
        %v6402 = vld [vmem:[%s6401] sm:$0xff]
        %v6403 = vld [vmem:[%s6401 + $0x8] sm:$0xff]
        %v6404 = vld [vmem:[%s6401 + $0x10] sm:$0xff]
        %v6405 = vld [vmem:[%s6401 + $0x18] sm:$0xff]
        %v6406 = vld [vmem:[%s6401 + $0x20] sm:$0xff]
        %v6407 = vld [vmem:[%s6401 + $0x28] sm:$0xff]
        %v6408 = vld [vmem:[%s6401 + $0x30] sm:$0xff]
        %v6409 = vld [vmem:[%s6401 + $0x38] sm:$0xff]
        %v6411 = vsel %vm306, %v6369, 0
        %v6414 = vsel %vm306, %v6370, 0
        %v6417 = vsel %vm306, %v6371, 0
        %v6420 = vsel %vm306, %v6372, 0
        %v6423 = vsel %vm306, %v6373, 0
        %v6426 = vsel %vm306, %v6374, 0
        %v6429 = vsel %vm306, %v6375, 0
        %v6432 = vsel %vm306, %v6376, 0
        %v6435 = vsel %vm306, %v6377, 0
        %v6438 = vsel %vm306, %v6378, 0
        %v6441 = vsel %vm306, %v6379, 0
        %v6444 = vsel %vm306, %v6380, 0
        %v6447 = vsel %vm306, %v6381, 0
        %v6450 = vsel %vm306, %v6382, 0
        %v6453 = vsel %vm306, %v6383, 0
        %v6456 = vsel %vm306, %v6384, 0
        %v6459 = vsel %vm306, %v6385, 0
        %v6462 = vsel %vm306, %v6386, 0
        %v6465 = vsel %vm306, %v6387, 0
        %v6468 = vsel %vm306, %v6388, 0
        %v6471 = vsel %vm306, %v6389, 0
        %v6474 = vsel %vm306, %v6390, 0
        %v6477 = vsel %vm306, %v6391, 0
        %v6480 = vsel %vm306, %v6392, 0
        %v6483 = vsel %vm306, %v6393, 0
        %v6486 = vsel %vm306, %v6394, 0
        %v6489 = vsel %vm306, %v6395, 0
        %v6492 = vsel %vm306, %v6396, 0
        %v6495 = vsel %vm306, %v6397, 0
        %v6498 = vsel %vm306, %v6398, 0
        %v6501 = vsel %vm306, %v6399, 0
        %v6504 = vsel %vm306, %v6400, 0
        %6506 = vmatpush.msra.mxu0 0.0
        %6507 = vmatpush.msra.mxu0 0.0
        %6508 = vmatpush.msra.mxu0 0.0
        %6509 = vmatpush.msra.mxu0 0.0
        %6510 = vmatpush.msra.mxu0 0.0
        %6511 = vmatpush.msra.mxu0 0.0
        %6512 = vmatpush.msra.mxu0 0.0
        %6513 = vmatpush.msra.mxu0 0.0
        %6514 = vmatpush.msra.mxu0 %v6409
        %6515 = vmatpush.msra.mxu0 %v6408
        %6516 = vmatpush.msra.mxu0 %v6407
        %6517 = vmatpush.msra.mxu0 %v6406
        %6518 = vmatpush.msra.mxu0 %v6405
        %6519 = vmatpush.msra.mxu0 %v6404
        %6520 = vmatpush.msra.mxu0 %v6403
        %6521 = vmatpush.msra.mxu0 %v6402
        %6522 = vmatmul.f32.gmra.mxu0 %v6411
        %v6523 = vpop.f32.mrf.mxu0
        %v6524 = vadd.f32 0.0, %v6523
        %6525 = vmatmul.f32.gmra.mxu0 %v6414
        %v6526 = vpop.f32.mrf.mxu0
        %v6527 = vadd.f32 0.0, %v6526
        %6528 = vmatmul.f32.gmra.mxu0 %v6417
        %v6529 = vpop.f32.mrf.mxu0
        %v6530 = vadd.f32 0.0, %v6529
        %6531 = vmatmul.f32.gmra.mxu0 %v6420
        %v6532 = vpop.f32.mrf.mxu0
        %v6533 = vadd.f32 0.0, %v6532
        %6534 = vmatmul.f32.gmra.mxu0 %v6423
        %v6535 = vpop.f32.mrf.mxu0
        %v6536 = vadd.f32 0.0, %v6535
        %6537 = vmatmul.f32.gmra.mxu0 %v6426
        %v6538 = vpop.f32.mrf.mxu0
        %v6539 = vadd.f32 0.0, %v6538
        %6540 = vmatmul.f32.gmra.mxu0 %v6429
        %v6541 = vpop.f32.mrf.mxu0
        %v6542 = vadd.f32 0.0, %v6541
        %6543 = vmatmul.f32.gmra.mxu0 %v6432
        %v6544 = vpop.f32.mrf.mxu0
        %v6545 = vadd.f32 0.0, %v6544
        %6546 = vmatmul.f32.gmra.mxu0 %v6435
        %v6547 = vpop.f32.mrf.mxu0
        %v6548 = vadd.f32 0.0, %v6547
        %6549 = vmatmul.f32.gmra.mxu0 %v6438
        %v6550 = vpop.f32.mrf.mxu0
        %v6551 = vadd.f32 0.0, %v6550
        %6552 = vmatmul.f32.gmra.mxu0 %v6441
        %v6553 = vpop.f32.mrf.mxu0
        %v6554 = vadd.f32 0.0, %v6553
        %6555 = vmatmul.f32.gmra.mxu0 %v6444
        %v6556 = vpop.f32.mrf.mxu0
        %v6557 = vadd.f32 0.0, %v6556
        %6558 = vmatmul.f32.gmra.mxu0 %v6447
        %v6559 = vpop.f32.mrf.mxu0
        %v6560 = vadd.f32 0.0, %v6559
        %6561 = vmatmul.f32.gmra.mxu0 %v6450
        %v6562 = vpop.f32.mrf.mxu0
        %v6563 = vadd.f32 0.0, %v6562
        %6564 = vmatmul.f32.gmra.mxu0 %v6453
        %v6565 = vpop.f32.mrf.mxu0
        %v6566 = vadd.f32 0.0, %v6565
        %6567 = vmatmul.f32.gmra.mxu0 %v6456
        %v6568 = vpop.f32.mrf.mxu0
        %v6569 = vadd.f32 0.0, %v6568
        %6570 = vmatmul.f32.gmra.mxu0 %v6459
        %v6571 = vpop.f32.mrf.mxu0
        %v6572 = vadd.f32 0.0, %v6571
        %6573 = vmatmul.f32.gmra.mxu0 %v6462
        %v6574 = vpop.f32.mrf.mxu0
        %v6575 = vadd.f32 0.0, %v6574
        %6576 = vmatmul.f32.gmra.mxu0 %v6465
        %v6577 = vpop.f32.mrf.mxu0
        %v6578 = vadd.f32 0.0, %v6577
        %6579 = vmatmul.f32.gmra.mxu0 %v6468
        %v6580 = vpop.f32.mrf.mxu0
        %v6581 = vadd.f32 0.0, %v6580
        %6582 = vmatmul.f32.gmra.mxu0 %v6471
        %v6583 = vpop.f32.mrf.mxu0
        %v6584 = vadd.f32 0.0, %v6583
        %6585 = vmatmul.f32.gmra.mxu0 %v6474
        %v6586 = vpop.f32.mrf.mxu0
        %v6587 = vadd.f32 0.0, %v6586
        %6588 = vmatmul.f32.gmra.mxu0 %v6477
        %v6589 = vpop.f32.mrf.mxu0
        %v6590 = vadd.f32 0.0, %v6589
        %6591 = vmatmul.f32.gmra.mxu0 %v6480
        %v6592 = vpop.f32.mrf.mxu0
        %v6593 = vadd.f32 0.0, %v6592
        %6594 = vmatmul.f32.gmra.mxu0 %v6483
        %v6595 = vpop.f32.mrf.mxu0
        %v6596 = vadd.f32 0.0, %v6595
        %6597 = vmatmul.f32.gmra.mxu0 %v6486
        %v6598 = vpop.f32.mrf.mxu0
        %v6599 = vadd.f32 0.0, %v6598
        %6600 = vmatmul.f32.gmra.mxu0 %v6489
        %v6601 = vpop.f32.mrf.mxu0
        %v6602 = vadd.f32 0.0, %v6601
        %6603 = vmatmul.f32.gmra.mxu0 %v6492
        %v6604 = vpop.f32.mrf.mxu0
        %v6605 = vadd.f32 0.0, %v6604
        %6606 = vmatmul.f32.gmra.mxu0 %v6495
        %v6607 = vpop.f32.mrf.mxu0
        %v6608 = vadd.f32 0.0, %v6607
        %6609 = vmatmul.f32.gmra.mxu0 %v6498
        %v6610 = vpop.f32.mrf.mxu0
        %v6611 = vadd.f32 0.0, %v6610
        %6612 = vmatmul.f32.gmra.mxu0 %v6501
        %v6613 = vpop.f32.mrf.mxu0
        %v6614 = vadd.f32 0.0, %v6613
        %6615 = vmatmul.f32.gmra.mxu0 %v6504
        %v6616 = vpop.f32.mrf.mxu0
        %v6617 = vadd.f32 0.0, %v6616
        %6618 = vdwg.mxu0
        %v6619 = vadd.f32 %v6337, %v6524
        %v6620 = vadd.f32 %v6338, %v6527
        %v6621 = vadd.f32 %v6339, %v6530
        %v6622 = vadd.f32 %v6340, %v6533
        %v6623 = vadd.f32 %v6341, %v6536
        %v6624 = vadd.f32 %v6342, %v6539
        %v6625 = vadd.f32 %v6343, %v6542
        %v6626 = vadd.f32 %v6344, %v6545
        %v6627 = vadd.f32 %v6345, %v6548
        %v6628 = vadd.f32 %v6346, %v6551
        %v6629 = vadd.f32 %v6347, %v6554
        %v6630 = vadd.f32 %v6348, %v6557
        %v6631 = vadd.f32 %v6349, %v6560
        %v6632 = vadd.f32 %v6350, %v6563
        %v6633 = vadd.f32 %v6351, %v6566
        %v6634 = vadd.f32 %v6352, %v6569
        %v6635 = vadd.f32 %v6353, %v6572
        %v6636 = vadd.f32 %v6354, %v6575
        %v6637 = vadd.f32 %v6355, %v6578
        %v6638 = vadd.f32 %v6356, %v6581
        %v6639 = vadd.f32 %v6357, %v6584
        %v6640 = vadd.f32 %v6358, %v6587
        %v6641 = vadd.f32 %v6359, %v6590
        %v6642 = vadd.f32 %v6360, %v6593
        %v6643 = vadd.f32 %v6361, %v6596
        %v6644 = vadd.f32 %v6362, %v6599
        %v6645 = vadd.f32 %v6363, %v6602
        %v6646 = vadd.f32 %v6364, %v6605
        %v6647 = vadd.f32 %v6365, %v6608
        %v6648 = vadd.f32 %v6366, %v6611
        %v6649 = vadd.f32 %v6367, %v6614
        %v6650 = vadd.f32 %v6368, %v6617
        %v6651 = vld [vmem:[#allocation3 + $0x29] sm:$0xff]
        %v6652 = vld [vmem:[#allocation3 + $0x31] sm:$0xff]
        %v6653 = vld [vmem:[#allocation3 + $0x39] sm:$0xff]
        %v6654 = vld [vmem:[#allocation3 + $0x41] sm:$0xff]
        %v6655 = vld [vmem:[#allocation3 + $0x49] sm:$0xff]
        %v6656 = vld [vmem:[#allocation3 + $0x51] sm:$0xff]
        %v6657 = vld [vmem:[#allocation3 + $0x59] sm:$0xff]
        %v6658 = vld [vmem:[#allocation3 + $0x61] sm:$0xff]
        %v6659 = vld [vmem:[#allocation3 + $0x69] sm:$0xff]
        %v6660 = vld [vmem:[#allocation3 + $0x71] sm:$0xff]
        %v6661 = vld [vmem:[#allocation3 + $0x79] sm:$0xff]
        %v6662 = vld [vmem:[#allocation3 + $0x81] sm:$0xff]
        %v6663 = vld [vmem:[#allocation3 + $0x89] sm:$0xff]
        %v6664 = vld [vmem:[#allocation3 + $0x91] sm:$0xff]
        %v6665 = vld [vmem:[#allocation3 + $0x99] sm:$0xff]
        %v6666 = vld [vmem:[#allocation3 + $0xa1] sm:$0xff]
        %v6667 = vld [vmem:[#allocation3 + $0xa9] sm:$0xff]
        %v6668 = vld [vmem:[#allocation3 + $0xb1] sm:$0xff]
        %v6669 = vld [vmem:[#allocation3 + $0xb9] sm:$0xff]
        %v6670 = vld [vmem:[#allocation3 + $0xc1] sm:$0xff]
        %v6671 = vld [vmem:[#allocation3 + $0xc9] sm:$0xff]
        %v6672 = vld [vmem:[#allocation3 + $0xd1] sm:$0xff]
        %v6673 = vld [vmem:[#allocation3 + $0xd9] sm:$0xff]
        %v6674 = vld [vmem:[#allocation3 + $0xe1] sm:$0xff]
        %v6675 = vld [vmem:[#allocation3 + $0xe9] sm:$0xff]
        %v6676 = vld [vmem:[#allocation3 + $0xf1] sm:$0xff]
        %v6677 = vld [vmem:[#allocation3 + $0xf9] sm:$0xff]
        %v6678 = vld [vmem:[#allocation3 + $0x101] sm:$0xff]
        %v6679 = vld [vmem:[#allocation3 + $0x109] sm:$0xff]
        %v6680 = vld [vmem:[#allocation3 + $0x111] sm:$0xff]
        %v6681 = vld [vmem:[#allocation3 + $0x119] sm:$0xff]
        %v6682 = vld [vmem:[#allocation3 + $0x121] sm:$0xff]
        %s6683 = scalar_lea.vmem %s3, %s3851
        %v6684 = vld [vmem:[%s6683] sm:$0xff]
        %v6685 = vld [vmem:[%s6683 + $0x8] sm:$0xff]
        %v6686 = vld [vmem:[%s6683 + $0x10] sm:$0xff]
        %v6687 = vld [vmem:[%s6683 + $0x18] sm:$0xff]
        %v6688 = vld [vmem:[%s6683 + $0x20] sm:$0xff]
        %v6689 = vld [vmem:[%s6683 + $0x28] sm:$0xff]
        %v6690 = vld [vmem:[%s6683 + $0x30] sm:$0xff]
        %v6691 = vld [vmem:[%s6683 + $0x38] sm:$0xff]
        %v6693 = vsel %vm306, %v6651, 0
        %v6696 = vsel %vm306, %v6652, 0
        %v6699 = vsel %vm306, %v6653, 0
        %v6702 = vsel %vm306, %v6654, 0
        %v6705 = vsel %vm306, %v6655, 0
        %v6708 = vsel %vm306, %v6656, 0
        %v6711 = vsel %vm306, %v6657, 0
        %v6714 = vsel %vm306, %v6658, 0
        %v6717 = vsel %vm306, %v6659, 0
        %v6720 = vsel %vm306, %v6660, 0
        %v6723 = vsel %vm306, %v6661, 0
        %v6726 = vsel %vm306, %v6662, 0
        %v6729 = vsel %vm306, %v6663, 0
        %v6732 = vsel %vm306, %v6664, 0
        %v6735 = vsel %vm306, %v6665, 0
        %v6738 = vsel %vm306, %v6666, 0
        %v6741 = vsel %vm306, %v6667, 0
        %v6744 = vsel %vm306, %v6668, 0
        %v6747 = vsel %vm306, %v6669, 0
        %v6750 = vsel %vm306, %v6670, 0
        %v6753 = vsel %vm306, %v6671, 0
        %v6756 = vsel %vm306, %v6672, 0
        %v6759 = vsel %vm306, %v6673, 0
        %v6762 = vsel %vm306, %v6674, 0
        %v6765 = vsel %vm306, %v6675, 0
        %v6768 = vsel %vm306, %v6676, 0
        %v6771 = vsel %vm306, %v6677, 0
        %v6774 = vsel %vm306, %v6678, 0
        %v6777 = vsel %vm306, %v6679, 0
        %v6780 = vsel %vm306, %v6680, 0
        %v6783 = vsel %vm306, %v6681, 0
        %v6786 = vsel %vm306, %v6682, 0
        %6788 = vmatpush.msra.mxu0 0.0
        %6789 = vmatpush.msra.mxu0 0.0
        %6790 = vmatpush.msra.mxu0 0.0
        %6791 = vmatpush.msra.mxu0 0.0
        %6792 = vmatpush.msra.mxu0 0.0
        %6793 = vmatpush.msra.mxu0 0.0
        %6794 = vmatpush.msra.mxu0 0.0
        %6795 = vmatpush.msra.mxu0 0.0
        %6796 = vmatpush.msra.mxu0 %v6691
        %6797 = vmatpush.msra.mxu0 %v6690
        %6798 = vmatpush.msra.mxu0 %v6689
        %6799 = vmatpush.msra.mxu0 %v6688
        %6800 = vmatpush.msra.mxu0 %v6687
        %6801 = vmatpush.msra.mxu0 %v6686
        %6802 = vmatpush.msra.mxu0 %v6685
        %6803 = vmatpush.msra.mxu0 %v6684
        %6804 = vmatmul.f32.gmra.mxu0 %v6693
        %v6805 = vpop.f32.mrf.mxu0
        %v6806 = vadd.f32 0.0, %v6805
        %6807 = vmatmul.f32.gmra.mxu0 %v6696
        %v6808 = vpop.f32.mrf.mxu0
        %v6809 = vadd.f32 0.0, %v6808
        %6810 = vmatmul.f32.gmra.mxu0 %v6699
        %v6811 = vpop.f32.mrf.mxu0
        %v6812 = vadd.f32 0.0, %v6811
        %6813 = vmatmul.f32.gmra.mxu0 %v6702
        %v6814 = vpop.f32.mrf.mxu0
        %v6815 = vadd.f32 0.0, %v6814
        %6816 = vmatmul.f32.gmra.mxu0 %v6705
        %v6817 = vpop.f32.mrf.mxu0
        %v6818 = vadd.f32 0.0, %v6817
        %6819 = vmatmul.f32.gmra.mxu0 %v6708
        %v6820 = vpop.f32.mrf.mxu0
        %v6821 = vadd.f32 0.0, %v6820
        %6822 = vmatmul.f32.gmra.mxu0 %v6711
        %v6823 = vpop.f32.mrf.mxu0
        %v6824 = vadd.f32 0.0, %v6823
        %6825 = vmatmul.f32.gmra.mxu0 %v6714
        %v6826 = vpop.f32.mrf.mxu0
        %v6827 = vadd.f32 0.0, %v6826
        %6828 = vmatmul.f32.gmra.mxu0 %v6717
        %v6829 = vpop.f32.mrf.mxu0
        %v6830 = vadd.f32 0.0, %v6829
        %6831 = vmatmul.f32.gmra.mxu0 %v6720
        %v6832 = vpop.f32.mrf.mxu0
        %v6833 = vadd.f32 0.0, %v6832
        %6834 = vmatmul.f32.gmra.mxu0 %v6723
        %v6835 = vpop.f32.mrf.mxu0
        %v6836 = vadd.f32 0.0, %v6835
        %6837 = vmatmul.f32.gmra.mxu0 %v6726
        %v6838 = vpop.f32.mrf.mxu0
        %v6839 = vadd.f32 0.0, %v6838
        %6840 = vmatmul.f32.gmra.mxu0 %v6729
        %v6841 = vpop.f32.mrf.mxu0
        %v6842 = vadd.f32 0.0, %v6841
        %6843 = vmatmul.f32.gmra.mxu0 %v6732
        %v6844 = vpop.f32.mrf.mxu0
        %v6845 = vadd.f32 0.0, %v6844
        %6846 = vmatmul.f32.gmra.mxu0 %v6735
        %v6847 = vpop.f32.mrf.mxu0
        %v6848 = vadd.f32 0.0, %v6847
        %6849 = vmatmul.f32.gmra.mxu0 %v6738
        %v6850 = vpop.f32.mrf.mxu0
        %v6851 = vadd.f32 0.0, %v6850
        %6852 = vmatmul.f32.gmra.mxu0 %v6741
        %v6853 = vpop.f32.mrf.mxu0
        %v6854 = vadd.f32 0.0, %v6853
        %6855 = vmatmul.f32.gmra.mxu0 %v6744
        %v6856 = vpop.f32.mrf.mxu0
        %v6857 = vadd.f32 0.0, %v6856
        %6858 = vmatmul.f32.gmra.mxu0 %v6747
        %v6859 = vpop.f32.mrf.mxu0
        %v6860 = vadd.f32 0.0, %v6859
        %6861 = vmatmul.f32.gmra.mxu0 %v6750
        %v6862 = vpop.f32.mrf.mxu0
        %v6863 = vadd.f32 0.0, %v6862
        %6864 = vmatmul.f32.gmra.mxu0 %v6753
        %v6865 = vpop.f32.mrf.mxu0
        %v6866 = vadd.f32 0.0, %v6865
        %6867 = vmatmul.f32.gmra.mxu0 %v6756
        %v6868 = vpop.f32.mrf.mxu0
        %v6869 = vadd.f32 0.0, %v6868
        %6870 = vmatmul.f32.gmra.mxu0 %v6759
        %v6871 = vpop.f32.mrf.mxu0
        %v6872 = vadd.f32 0.0, %v6871
        %6873 = vmatmul.f32.gmra.mxu0 %v6762
        %v6874 = vpop.f32.mrf.mxu0
        %v6875 = vadd.f32 0.0, %v6874
        %6876 = vmatmul.f32.gmra.mxu0 %v6765
        %v6877 = vpop.f32.mrf.mxu0
        %v6878 = vadd.f32 0.0, %v6877
        %6879 = vmatmul.f32.gmra.mxu0 %v6768
        %v6880 = vpop.f32.mrf.mxu0
        %v6881 = vadd.f32 0.0, %v6880
        %6882 = vmatmul.f32.gmra.mxu0 %v6771
        %v6883 = vpop.f32.mrf.mxu0
        %v6884 = vadd.f32 0.0, %v6883
        %6885 = vmatmul.f32.gmra.mxu0 %v6774
        %v6886 = vpop.f32.mrf.mxu0
        %v6887 = vadd.f32 0.0, %v6886
        %6888 = vmatmul.f32.gmra.mxu0 %v6777
        %v6889 = vpop.f32.mrf.mxu0
        %v6890 = vadd.f32 0.0, %v6889
        %6891 = vmatmul.f32.gmra.mxu0 %v6780
        %v6892 = vpop.f32.mrf.mxu0
        %v6893 = vadd.f32 0.0, %v6892
        %6894 = vmatmul.f32.gmra.mxu0 %v6783
        %v6895 = vpop.f32.mrf.mxu0
        %v6896 = vadd.f32 0.0, %v6895
        %6897 = vmatmul.f32.gmra.mxu0 %v6786
        %v6898 = vpop.f32.mrf.mxu0
        %v6899 = vadd.f32 0.0, %v6898
        %6900 = vdwg.mxu0
        %v6901 = vsel %vm2206, 0.0, %v6806
        %v6902 = vsel %vm2207, 0.0, %v6809
        %v6903 = vsel %vm2208, 0.0, %v6812
        %v6904 = vsel %vm2209, 0.0, %v6815
        %v6905 = vsel %vm2210, 0.0, %v6818
        %v6906 = vsel %vm2211, 0.0, %v6821
        %v6907 = vsel %vm2212, 0.0, %v6824
        %v6908 = vsel %vm2213, 0.0, %v6827
        %v6909 = vsel %vm2214, 0.0, %v6830
        %v6910 = vsel %vm2215, 0.0, %v6833
        %v6911 = vsel %vm2216, 0.0, %v6836
        %v6912 = vsel %vm2217, 0.0, %v6839
        %v6913 = vsel %vm2218, 0.0, %v6842
        %v6914 = vsel %vm2219, 0.0, %v6845
        %v6915 = vsel %vm2220, 0.0, %v6848
        %v6916 = vsel %vm2221, 0.0, %v6851
        %v6917 = vsel %vm2222, 0.0, %v6854
        %v6918 = vsel %vm2223, 0.0, %v6857
        %v6919 = vsel %vm2224, 0.0, %v6860
        %v6920 = vsel %vm2225, 0.0, %v6863
        %v6921 = vsel %vm2226, 0.0, %v6866
        %v6922 = vsel %vm2227, 0.0, %v6869
        %v6923 = vsel %vm2228, 0.0, %v6872
        %v6924 = vsel %vm2229, 0.0, %v6875
        %v6925 = vsel %vm2230, 0.0, %v6878
        %v6926 = vsel %vm2231, 0.0, %v6881
        %v6927 = vsel %vm2232, 0.0, %v6884
        %v6928 = vsel %vm2233, 0.0, %v6887
        %v6929 = vsel %vm2234, 0.0, %v6890
        %v6930 = vsel %vm2235, 0.0, %v6893
        %v6931 = vsel %vm2236, 0.0, %v6896
        %v6932 = vsel %vm2237, 0.0, %v6899
        %v6933 = vadd.f32 %v6619, %v6901
        %v6934 = vadd.f32 %v6620, %v6902
        %v6935 = vadd.f32 %v6621, %v6903
        %v6936 = vadd.f32 %v6622, %v6904
        %v6937 = vadd.f32 %v6623, %v6905
        %v6938 = vadd.f32 %v6624, %v6906
        %v6939 = vadd.f32 %v6625, %v6907
        %v6940 = vadd.f32 %v6626, %v6908
        %v6941 = vadd.f32 %v6627, %v6909
        %v6942 = vadd.f32 %v6628, %v6910
        %v6943 = vadd.f32 %v6629, %v6911
        %v6944 = vadd.f32 %v6630, %v6912
        %v6945 = vadd.f32 %v6631, %v6913
        %v6946 = vadd.f32 %v6632, %v6914
        %v6947 = vadd.f32 %v6633, %v6915
        %v6948 = vadd.f32 %v6634, %v6916
        %v6949 = vadd.f32 %v6635, %v6917
        %v6950 = vadd.f32 %v6636, %v6918
        %v6951 = vadd.f32 %v6637, %v6919
        %v6952 = vadd.f32 %v6638, %v6920
        %v6953 = vadd.f32 %v6639, %v6921
        %v6954 = vadd.f32 %v6640, %v6922
        %v6955 = vadd.f32 %v6641, %v6923
        %v6956 = vadd.f32 %v6642, %v6924
        %v6957 = vadd.f32 %v6643, %v6925
        %v6958 = vadd.f32 %v6644, %v6926
        %v6959 = vadd.f32 %v6645, %v6927
        %v6960 = vadd.f32 %v6646, %v6928
        %v6961 = vadd.f32 %v6647, %v6929
        %v6962 = vadd.f32 %v6648, %v6930
        %v6963 = vadd.f32 %v6649, %v6931
        %v6964 = vadd.f32 %v6650, %v6932
        %v6966 = vperm.slane %v4234, 0
        %v6968 = vadd.f32 %v6933, %v6966
        %v6969 = vadd.f32 %v6934, %v6966
        %v6970 = vadd.f32 %v6935, %v6966
        %v6971 = vadd.f32 %v6936, %v6966
        %v6972 = vadd.f32 %v6937, %v6966
        %v6973 = vadd.f32 %v6938, %v6966
        %v6974 = vadd.f32 %v6939, %v6966
        %v6975 = vadd.f32 %v6940, %v6966
        %v6976 = vadd.f32 %v6941, %v6966
        %v6977 = vadd.f32 %v6942, %v6966
        %v6978 = vadd.f32 %v6943, %v6966
        %v6979 = vadd.f32 %v6944, %v6966
        %v6980 = vadd.f32 %v6945, %v6966
        %v6981 = vadd.f32 %v6946, %v6966
        %v6982 = vadd.f32 %v6947, %v6966
        %v6983 = vadd.f32 %v6948, %v6966
        %v6984 = vadd.f32 %v6949, %v6966
        %v6985 = vadd.f32 %v6950, %v6966
        %v6986 = vadd.f32 %v6951, %v6966
        %v6987 = vadd.f32 %v6952, %v6966
        %v6988 = vadd.f32 %v6953, %v6966
        %v6989 = vadd.f32 %v6954, %v6966
        %v6990 = vadd.f32 %v6955, %v6966
        %v6991 = vadd.f32 %v6956, %v6966
        %v6992 = vadd.f32 %v6957, %v6966
        %v6993 = vadd.f32 %v6958, %v6966
        %v6994 = vadd.f32 %v6959, %v6966
        %v6995 = vadd.f32 %v6960, %v6966
        %v6996 = vadd.f32 %v6961, %v6966
        %v6997 = vadd.f32 %v6962, %v6966
        %v6998 = vadd.f32 %v6963, %v6966
        %v6999 = vadd.f32 %v6964, %v6966
        %v7000 = vld [vmem:[#allocation2 + $0x18] sm:$0xff]
        %v7001 = vld [vmem:[#allocation2 + $0x20] sm:$0xff]
        %v7002 = vld [vmem:[#allocation2 + $0x28] sm:$0xff]
        %v7003 = vld [vmem:[#allocation2 + $0x30] sm:$0xff]
        %v7004 = vld [vmem:[#allocation2 + $0x38] sm:$0xff]
        %v7005 = vld [vmem:[#allocation2 + $0x40] sm:$0xff]
        %v7006 = vld [vmem:[#allocation2 + $0x48] sm:$0xff]
        %v7007 = vld [vmem:[#allocation2 + $0x50] sm:$0xff]
        %v7008 = vld [vmem:[#allocation2 + $0x58] sm:$0xff]
        %v7009 = vld [vmem:[#allocation2 + $0x60] sm:$0xff]
        %v7010 = vld [vmem:[#allocation2 + $0x68] sm:$0xff]
        %v7011 = vld [vmem:[#allocation2 + $0x70] sm:$0xff]
        %v7012 = vld [vmem:[#allocation2 + $0x78] sm:$0xff]
        %v7013 = vld [vmem:[#allocation2 + $0x80] sm:$0xff]
        %v7014 = vld [vmem:[#allocation2 + $0x88] sm:$0xff]
        %v7015 = vld [vmem:[#allocation2 + $0x90] sm:$0xff]
        %v7016 = vld [vmem:[#allocation2 + $0x98] sm:$0xff]
        %v7017 = vld [vmem:[#allocation2 + $0xa0] sm:$0xff]
        %v7018 = vld [vmem:[#allocation2 + $0xa8] sm:$0xff]
        %v7019 = vld [vmem:[#allocation2 + $0xb0] sm:$0xff]
        %v7020 = vld [vmem:[#allocation2 + $0xb8] sm:$0xff]
        %v7021 = vld [vmem:[#allocation2 + $0xc0] sm:$0xff]
        %v7022 = vld [vmem:[#allocation2 + $0xc8] sm:$0xff]
        %v7023 = vld [vmem:[#allocation2 + $0xd0] sm:$0xff]
        %v7024 = vld [vmem:[#allocation2 + $0xd8] sm:$0xff]
        %v7025 = vld [vmem:[#allocation2 + $0xe0] sm:$0xff]
        %v7026 = vld [vmem:[#allocation2 + $0xe8] sm:$0xff]
        %v7027 = vld [vmem:[#allocation2 + $0xf0] sm:$0xff]
        %v7028 = vld [vmem:[#allocation2 + $0xf8] sm:$0xff]
        %v7029 = vld [vmem:[#allocation2 + $0x100] sm:$0xff]
        %v7030 = vld [vmem:[#allocation2 + $0x108] sm:$0xff]
        %v7031 = vld [vmem:[#allocation2 + $0x110] sm:$0xff]
        %v7032 = vadd.f32 %v6968, %v7000
        %v7033 = vadd.f32 %v6969, %v7001
        %v7034 = vadd.f32 %v6970, %v7002
        %v7035 = vadd.f32 %v6971, %v7003
        %v7036 = vadd.f32 %v6972, %v7004
        %v7037 = vadd.f32 %v6973, %v7005
        %v7038 = vadd.f32 %v6974, %v7006
        %v7039 = vadd.f32 %v6975, %v7007
        %v7040 = vadd.f32 %v6976, %v7008
        %v7041 = vadd.f32 %v6977, %v7009
        %v7042 = vadd.f32 %v6978, %v7010
        %v7043 = vadd.f32 %v6979, %v7011
        %v7044 = vadd.f32 %v6980, %v7012
        %v7045 = vadd.f32 %v6981, %v7013
        %v7046 = vadd.f32 %v6982, %v7014
        %v7047 = vadd.f32 %v6983, %v7015
        %v7048 = vadd.f32 %v6984, %v7016
        %v7049 = vadd.f32 %v6985, %v7017
        %v7050 = vadd.f32 %v6986, %v7018
        %v7051 = vadd.f32 %v6987, %v7019
        %v7052 = vadd.f32 %v6988, %v7020
        %v7053 = vadd.f32 %v6989, %v7021
        %v7054 = vadd.f32 %v6990, %v7022
        %v7055 = vadd.f32 %v6991, %v7023
        %v7056 = vadd.f32 %v6992, %v7024
        %v7057 = vadd.f32 %v6993, %v7025
        %v7058 = vadd.f32 %v6994, %v7026
        %v7059 = vadd.f32 %v6995, %v7027
        %v7060 = vadd.f32 %v6996, %v7028
        %v7061 = vadd.f32 %v6997, %v7029
        %v7062 = vadd.f32 %v6998, %v7030
        %v7063 = vadd.f32 %v6999, %v7031
        %v7064 = vmax.f32 %v7032, 0.0
        %v7065 = vmax.f32 %v7033, 0.0
        %v7066 = vmax.f32 %v7034, 0.0
        %v7067 = vmax.f32 %v7035, 0.0
        %v7068 = vmax.f32 %v7036, 0.0
        %v7069 = vmax.f32 %v7037, 0.0
        %v7070 = vmax.f32 %v7038, 0.0
        %v7071 = vmax.f32 %v7039, 0.0
        %v7072 = vmax.f32 %v7040, 0.0
        %v7073 = vmax.f32 %v7041, 0.0
        %v7074 = vmax.f32 %v7042, 0.0
        %v7075 = vmax.f32 %v7043, 0.0
        %v7076 = vmax.f32 %v7044, 0.0
        %v7077 = vmax.f32 %v7045, 0.0
        %v7078 = vmax.f32 %v7046, 0.0
        %v7079 = vmax.f32 %v7047, 0.0
        %v7080 = vmax.f32 %v7048, 0.0
        %v7081 = vmax.f32 %v7049, 0.0
        %v7082 = vmax.f32 %v7050, 0.0
        %v7083 = vmax.f32 %v7051, 0.0
        %v7084 = vmax.f32 %v7052, 0.0
        %v7085 = vmax.f32 %v7053, 0.0
        %v7086 = vmax.f32 %v7054, 0.0
        %v7087 = vmax.f32 %v7055, 0.0
        %v7088 = vmax.f32 %v7056, 0.0
        %v7089 = vmax.f32 %v7057, 0.0
        %v7090 = vmax.f32 %v7058, 0.0
        %v7091 = vmax.f32 %v7059, 0.0
        %v7092 = vmax.f32 %v7060, 0.0
        %v7093 = vmax.f32 %v7061, 0.0
        %v7094 = vmax.f32 %v7062, 0.0
        %v7095 = vmax.f32 %v7063, 0.0
        %7096 = vst.msk [vmem:[#allocation2 + $0x18] sm:$0xff] %vm306, %v7064
        %7097 = vst.msk [vmem:[#allocation2 + $0x20] sm:$0xff] %vm306, %v7065
        %7098 = vst.msk [vmem:[#allocation2 + $0x28] sm:$0xff] %vm306, %v7066
        %7099 = vst.msk [vmem:[#allocation2 + $0x30] sm:$0xff] %vm306, %v7067
        %7100 = vst.msk [vmem:[#allocation2 + $0x38] sm:$0xff] %vm306, %v7068
        %7101 = vst.msk [vmem:[#allocation2 + $0x40] sm:$0xff] %vm306, %v7069
        %7102 = vst.msk [vmem:[#allocation2 + $0x48] sm:$0xff] %vm306, %v7070
        %7103 = vst.msk [vmem:[#allocation2 + $0x50] sm:$0xff] %vm306, %v7071
        %7104 = vst.msk [vmem:[#allocation2 + $0x58] sm:$0xff] %vm306, %v7072
        %7105 = vst.msk [vmem:[#allocation2 + $0x60] sm:$0xff] %vm306, %v7073
        %7106 = vst.msk [vmem:[#allocation2 + $0x68] sm:$0xff] %vm306, %v7074
        %7107 = vst.msk [vmem:[#allocation2 + $0x70] sm:$0xff] %vm306, %v7075
        %7108 = vst.msk [vmem:[#allocation2 + $0x78] sm:$0xff] %vm306, %v7076
        %7109 = vst.msk [vmem:[#allocation2 + $0x80] sm:$0xff] %vm306, %v7077
        %7110 = vst.msk [vmem:[#allocation2 + $0x88] sm:$0xff] %vm306, %v7078
        %7111 = vst.msk [vmem:[#allocation2 + $0x90] sm:$0xff] %vm306, %v7079
        %7112 = vst.msk [vmem:[#allocation2 + $0x98] sm:$0xff] %vm306, %v7080
        %7113 = vst.msk [vmem:[#allocation2 + $0xa0] sm:$0xff] %vm306, %v7081
        %7114 = vst.msk [vmem:[#allocation2 + $0xa8] sm:$0xff] %vm306, %v7082
        %7115 = vst.msk [vmem:[#allocation2 + $0xb0] sm:$0xff] %vm306, %v7083
        %7116 = vst.msk [vmem:[#allocation2 + $0xb8] sm:$0xff] %vm306, %v7084
        %7117 = vst.msk [vmem:[#allocation2 + $0xc0] sm:$0xff] %vm306, %v7085
        %7118 = vst.msk [vmem:[#allocation2 + $0xc8] sm:$0xff] %vm306, %v7086
        %7119 = vst.msk [vmem:[#allocation2 + $0xd0] sm:$0xff] %vm306, %v7087
        %7120 = vst.msk [vmem:[#allocation2 + $0xd8] sm:$0xff] %vm306, %v7088
        %7121 = vst.msk [vmem:[#allocation2 + $0xe0] sm:$0xff] %vm306, %v7089
        %7122 = vst.msk [vmem:[#allocation2 + $0xe8] sm:$0xff] %vm306, %v7090
        %7123 = vst.msk [vmem:[#allocation2 + $0xf0] sm:$0xff] %vm306, %v7091
        %7124 = vst.msk [vmem:[#allocation2 + $0xf8] sm:$0xff] %vm306, %v7092
        %7125 = vst.msk [vmem:[#allocation2 + $0x100] sm:$0xff] %vm306, %v7093
        %7126 = vst.msk [vmem:[#allocation2 + $0x108] sm:$0xff] %vm306, %v7094
        %7127 = vst.msk [vmem:[#allocation2 + $0x110] sm:$0xff] %vm306, %v7095
      $region57: #{generator_forward.1} parent=51 // loop_footer
        %s1191 = sadd.s32 1, %s1187
      $region58: #{generator_forward.1} parent=51 // loop_footer_branch
        %1186 = sbr.rel target = $region54
      $region59: #{generator_forward.1} parent=51 // loop_exit
        _
      %v7128 = vld [vmem:[#allocation2 + $0x18] sm:$0xff]
      %v7129 = vld [vmem:[#allocation2 + $0x20] sm:$0xff]
      %v7130 = vld [vmem:[#allocation2 + $0x28] sm:$0xff]
      %v7131 = vld [vmem:[#allocation2 + $0x30] sm:$0xff]
      %v7132 = vld [vmem:[#allocation2 + $0x38] sm:$0xff]
      %v7133 = vld [vmem:[#allocation2 + $0x40] sm:$0xff]
      %v7134 = vld [vmem:[#allocation2 + $0x48] sm:$0xff]
      %v7135 = vld [vmem:[#allocation2 + $0x50] sm:$0xff]
      %v7136 = vld [vmem:[#allocation2 + $0x58] sm:$0xff]
      %v7137 = vld [vmem:[#allocation2 + $0x60] sm:$0xff]
      %v7138 = vld [vmem:[#allocation2 + $0x68] sm:$0xff]
      %v7139 = vld [vmem:[#allocation2 + $0x70] sm:$0xff]
      %v7140 = vld [vmem:[#allocation2 + $0x78] sm:$0xff]
      %v7141 = vld [vmem:[#allocation2 + $0x80] sm:$0xff]
      %v7142 = vld [vmem:[#allocation2 + $0x88] sm:$0xff]
      %v7143 = vld [vmem:[#allocation2 + $0x90] sm:$0xff]
      %v7144 = vld [vmem:[#allocation2 + $0x98] sm:$0xff]
      %v7145 = vld [vmem:[#allocation2 + $0xa0] sm:$0xff]
      %v7146 = vld [vmem:[#allocation2 + $0xa8] sm:$0xff]
      %v7147 = vld [vmem:[#allocation2 + $0xb0] sm:$0xff]
      %v7148 = vld [vmem:[#allocation2 + $0xb8] sm:$0xff]
      %v7149 = vld [vmem:[#allocation2 + $0xc0] sm:$0xff]
      %v7150 = vld [vmem:[#allocation2 + $0xc8] sm:$0xff]
      %v7151 = vld [vmem:[#allocation2 + $0xd0] sm:$0xff]
      %v7152 = vld [vmem:[#allocation2 + $0xd8] sm:$0xff]
      %v7153 = vld [vmem:[#allocation2 + $0xe0] sm:$0xff]
      %v7154 = vld [vmem:[#allocation2 + $0xe8] sm:$0xff]
      %v7155 = vld [vmem:[#allocation2 + $0xf0] sm:$0xff]
      %v7156 = vld [vmem:[#allocation2 + $0xf8] sm:$0xff]
      %v7157 = vld [vmem:[#allocation2 + $0x100] sm:$0xff]
      %v7158 = vld [vmem:[#allocation2 + $0x108] sm:$0xff]
      %v7159 = vld [vmem:[#allocation2 + $0x110] sm:$0xff]
      %v7160 = vld [vmem:[%s6] sm:$0xff]
      %v7161 = vld [vmem:[%s6 + $0x8] sm:$0xff]
      %v7162 = vld [vmem:[%s6 + $0x10] sm:$0xff]
      %v7163 = vld [vmem:[%s6 + $0x18] sm:$0xff]
      %v7164 = vld [vmem:[%s6 + $0x20] sm:$0xff]
      %v7165 = vld [vmem:[%s6 + $0x28] sm:$0xff]
      %v7166 = vld [vmem:[%s6 + $0x30] sm:$0xff]
      %v7167 = vld [vmem:[%s6 + $0x38] sm:$0xff]
      %v7169 = vsel %vm306, %v7128, 0
      %v7172 = vsel %vm306, %v7129, 0
      %v7175 = vsel %vm306, %v7130, 0
      %v7178 = vsel %vm306, %v7131, 0
      %v7181 = vsel %vm306, %v7132, 0
      %v7184 = vsel %vm306, %v7133, 0
      %v7187 = vsel %vm306, %v7134, 0
      %v7190 = vsel %vm306, %v7135, 0
      %v7193 = vsel %vm306, %v7136, 0
      %v7196 = vsel %vm306, %v7137, 0
      %v7199 = vsel %vm306, %v7138, 0
      %v7202 = vsel %vm306, %v7139, 0
      %v7205 = vsel %vm306, %v7140, 0
      %v7208 = vsel %vm306, %v7141, 0
      %v7211 = vsel %vm306, %v7142, 0
      %v7214 = vsel %vm306, %v7143, 0
      %v7217 = vsel %vm306, %v7144, 0
      %v7220 = vsel %vm306, %v7145, 0
      %v7223 = vsel %vm306, %v7146, 0
      %v7226 = vsel %vm306, %v7147, 0
      %v7229 = vsel %vm306, %v7148, 0
      %v7232 = vsel %vm306, %v7149, 0
      %v7235 = vsel %vm306, %v7150, 0
      %v7238 = vsel %vm306, %v7151, 0
      %v7241 = vsel %vm306, %v7152, 0
      %v7244 = vsel %vm306, %v7153, 0
      %v7247 = vsel %vm306, %v7154, 0
      %v7250 = vsel %vm306, %v7155, 0
      %v7253 = vsel %vm306, %v7156, 0
      %v7256 = vsel %vm306, %v7157, 0
      %v7259 = vsel %vm306, %v7158, 0
      %v7262 = vsel %vm306, %v7159, 0
      %7264 = vmatpush.msra.mxu0 0.0
      %7265 = vmatpush.msra.mxu0 0.0
      %7266 = vmatpush.msra.mxu0 0.0
      %7267 = vmatpush.msra.mxu0 0.0
      %7268 = vmatpush.msra.mxu0 0.0
      %7269 = vmatpush.msra.mxu0 0.0
      %7270 = vmatpush.msra.mxu0 0.0
      %7271 = vmatpush.msra.mxu0 0.0
      %7272 = vmatpush.msra.mxu0 %v7167
      %7273 = vmatpush.msra.mxu0 %v7166
      %7274 = vmatpush.msra.mxu0 %v7165
      %7275 = vmatpush.msra.mxu0 %v7164
      %7276 = vmatpush.msra.mxu0 %v7163
      %7277 = vmatpush.msra.mxu0 %v7162
      %7278 = vmatpush.msra.mxu0 %v7161
      %7279 = vmatpush.msra.mxu0 %v7160
      %7280 = vmatmul.f32.gmra.mxu0 %v7169
      %v7281 = vpop.f32.mrf.mxu0
      %v7282 = vadd.f32 0.0, %v7281
      %7283 = vmatmul.f32.gmra.mxu0 %v7172
      %v7284 = vpop.f32.mrf.mxu0
      %v7285 = vadd.f32 0.0, %v7284
      %7286 = vmatmul.f32.gmra.mxu0 %v7175
      %v7287 = vpop.f32.mrf.mxu0
      %v7288 = vadd.f32 0.0, %v7287
      %7289 = vmatmul.f32.gmra.mxu0 %v7178
      %v7290 = vpop.f32.mrf.mxu0
      %v7291 = vadd.f32 0.0, %v7290
      %7292 = vmatmul.f32.gmra.mxu0 %v7181
      %v7293 = vpop.f32.mrf.mxu0
      %v7294 = vadd.f32 0.0, %v7293
      %7295 = vmatmul.f32.gmra.mxu0 %v7184
      %v7296 = vpop.f32.mrf.mxu0
      %v7297 = vadd.f32 0.0, %v7296
      %7298 = vmatmul.f32.gmra.mxu0 %v7187
      %v7299 = vpop.f32.mrf.mxu0
      %v7300 = vadd.f32 0.0, %v7299
      %7301 = vmatmul.f32.gmra.mxu0 %v7190
      %v7302 = vpop.f32.mrf.mxu0
      %v7303 = vadd.f32 0.0, %v7302
      %7304 = vmatmul.f32.gmra.mxu0 %v7193
      %v7305 = vpop.f32.mrf.mxu0
      %v7306 = vadd.f32 0.0, %v7305
      %7307 = vmatmul.f32.gmra.mxu0 %v7196
      %v7308 = vpop.f32.mrf.mxu0
      %v7309 = vadd.f32 0.0, %v7308
      %7310 = vmatmul.f32.gmra.mxu0 %v7199
      %v7311 = vpop.f32.mrf.mxu0
      %v7312 = vadd.f32 0.0, %v7311
      %7313 = vmatmul.f32.gmra.mxu0 %v7202
      %v7314 = vpop.f32.mrf.mxu0
      %v7315 = vadd.f32 0.0, %v7314
      %7316 = vmatmul.f32.gmra.mxu0 %v7205
      %v7317 = vpop.f32.mrf.mxu0
      %v7318 = vadd.f32 0.0, %v7317
      %7319 = vmatmul.f32.gmra.mxu0 %v7208
      %v7320 = vpop.f32.mrf.mxu0
      %v7321 = vadd.f32 0.0, %v7320
      %7322 = vmatmul.f32.gmra.mxu0 %v7211
      %v7323 = vpop.f32.mrf.mxu0
      %v7324 = vadd.f32 0.0, %v7323
      %7325 = vmatmul.f32.gmra.mxu0 %v7214
      %v7326 = vpop.f32.mrf.mxu0
      %v7327 = vadd.f32 0.0, %v7326
      %7328 = vmatmul.f32.gmra.mxu0 %v7217
      %v7329 = vpop.f32.mrf.mxu0
      %v7330 = vadd.f32 0.0, %v7329
      %7331 = vmatmul.f32.gmra.mxu0 %v7220
      %v7332 = vpop.f32.mrf.mxu0
      %v7333 = vadd.f32 0.0, %v7332
      %7334 = vmatmul.f32.gmra.mxu0 %v7223
      %v7335 = vpop.f32.mrf.mxu0
      %v7336 = vadd.f32 0.0, %v7335
      %7337 = vmatmul.f32.gmra.mxu0 %v7226
      %v7338 = vpop.f32.mrf.mxu0
      %v7339 = vadd.f32 0.0, %v7338
      %7340 = vmatmul.f32.gmra.mxu0 %v7229
      %v7341 = vpop.f32.mrf.mxu0
      %v7342 = vadd.f32 0.0, %v7341
      %7343 = vmatmul.f32.gmra.mxu0 %v7232
      %v7344 = vpop.f32.mrf.mxu0
      %v7345 = vadd.f32 0.0, %v7344
      %7346 = vmatmul.f32.gmra.mxu0 %v7235
      %v7347 = vpop.f32.mrf.mxu0
      %v7348 = vadd.f32 0.0, %v7347
      %7349 = vmatmul.f32.gmra.mxu0 %v7238
      %v7350 = vpop.f32.mrf.mxu0
      %v7351 = vadd.f32 0.0, %v7350
      %7352 = vmatmul.f32.gmra.mxu0 %v7241
      %v7353 = vpop.f32.mrf.mxu0
      %v7354 = vadd.f32 0.0, %v7353
      %7355 = vmatmul.f32.gmra.mxu0 %v7244
      %v7356 = vpop.f32.mrf.mxu0
      %v7357 = vadd.f32 0.0, %v7356
      %7358 = vmatmul.f32.gmra.mxu0 %v7247
      %v7359 = vpop.f32.mrf.mxu0
      %v7360 = vadd.f32 0.0, %v7359
      %7361 = vmatmul.f32.gmra.mxu0 %v7250
      %v7362 = vpop.f32.mrf.mxu0
      %v7363 = vadd.f32 0.0, %v7362
      %7364 = vmatmul.f32.gmra.mxu0 %v7253
      %v7365 = vpop.f32.mrf.mxu0
      %v7366 = vadd.f32 0.0, %v7365
      %7367 = vmatmul.f32.gmra.mxu0 %v7256
      %v7368 = vpop.f32.mrf.mxu0
      %v7369 = vadd.f32 0.0, %v7368
      %7370 = vmatmul.f32.gmra.mxu0 %v7259
      %v7371 = vpop.f32.mrf.mxu0
      %v7372 = vadd.f32 0.0, %v7371
      %7373 = vmatmul.f32.gmra.mxu0 %v7262
      %v7374 = vpop.f32.mrf.mxu0
      %v7375 = vadd.f32 0.0, %v7374
      %7376 = vdwg.mxu0
      %v7377 = vld [vmem:[%s7] sm:$0xff]
      %v7378 = vld [vmem:[%s7 + $0x8] sm:$0xff]
      %v7379 = vld [vmem:[%s7 + $0x10] sm:$0xff]
      %v7380 = vld [vmem:[%s7 + $0x18] sm:$0xff]
      %v7381 = vld [vmem:[%s7 + $0x20] sm:$0xff]
      %v7382 = vld [vmem:[%s7 + $0x28] sm:$0xff]
      %v7383 = vld [vmem:[%s7 + $0x30] sm:$0xff]
      %v7384 = vld [vmem:[%s7 + $0x38] sm:$0xff]
      %v7386 = vsel %vm306, %v7282, 0
      %v7389 = vsel %vm306, %v7285, 0
      %v7392 = vsel %vm306, %v7288, 0
      %v7395 = vsel %vm306, %v7291, 0
      %v7398 = vsel %vm306, %v7294, 0
      %v7401 = vsel %vm306, %v7297, 0
      %v7404 = vsel %vm306, %v7300, 0
      %v7407 = vsel %vm306, %v7303, 0
      %v7410 = vsel %vm306, %v7306, 0
      %v7413 = vsel %vm306, %v7309, 0
      %v7416 = vsel %vm306, %v7312, 0
      %v7419 = vsel %vm306, %v7315, 0
      %v7422 = vsel %vm306, %v7318, 0
      %v7425 = vsel %vm306, %v7321, 0
      %v7428 = vsel %vm306, %v7324, 0
      %v7431 = vsel %vm306, %v7327, 0
      %v7434 = vsel %vm306, %v7330, 0
      %v7437 = vsel %vm306, %v7333, 0
      %v7440 = vsel %vm306, %v7336, 0
      %v7443 = vsel %vm306, %v7339, 0
      %v7446 = vsel %vm306, %v7342, 0
      %v7449 = vsel %vm306, %v7345, 0
      %v7452 = vsel %vm306, %v7348, 0
      %v7455 = vsel %vm306, %v7351, 0
      %v7458 = vsel %vm306, %v7354, 0
      %v7461 = vsel %vm306, %v7357, 0
      %v7464 = vsel %vm306, %v7360, 0
      %v7467 = vsel %vm306, %v7363, 0
      %v7470 = vsel %vm306, %v7366, 0
      %v7473 = vsel %vm306, %v7369, 0
      %v7476 = vsel %vm306, %v7372, 0
      %v7479 = vsel %vm306, %v7375, 0
      %7481 = vmatpush.msra.mxu0 0.0
      %7482 = vmatpush.msra.mxu0 0.0
      %7483 = vmatpush.msra.mxu0 0.0
      %7484 = vmatpush.msra.mxu0 0.0
      %7485 = vmatpush.msra.mxu0 0.0
      %7486 = vmatpush.msra.mxu0 0.0
      %7487 = vmatpush.msra.mxu0 0.0
      %7488 = vmatpush.msra.mxu0 0.0
      %7489 = vmatpush.msra.mxu0 %v7384
      %7490 = vmatpush.msra.mxu0 %v7383
      %7491 = vmatpush.msra.mxu0 %v7382
      %7492 = vmatpush.msra.mxu0 %v7381
      %7493 = vmatpush.msra.mxu0 %v7380
      %7494 = vmatpush.msra.mxu0 %v7379
      %7495 = vmatpush.msra.mxu0 %v7378
      %7496 = vmatpush.msra.mxu0 %v7377
      %7497 = vmatmul.f32.gmra.mxu0 %v7386
      %v7498 = vpop.f32.mrf.mxu0
      %v7499 = vadd.f32 0.0, %v7498
      %7500 = vmatmul.f32.gmra.mxu0 %v7389
      %v7501 = vpop.f32.mrf.mxu0
      %v7502 = vadd.f32 0.0, %v7501
      %7503 = vmatmul.f32.gmra.mxu0 %v7392
      %v7504 = vpop.f32.mrf.mxu0
      %v7505 = vadd.f32 0.0, %v7504
      %7506 = vmatmul.f32.gmra.mxu0 %v7395
      %v7507 = vpop.f32.mrf.mxu0
      %v7508 = vadd.f32 0.0, %v7507
      %7509 = vmatmul.f32.gmra.mxu0 %v7398
      %v7510 = vpop.f32.mrf.mxu0
      %v7511 = vadd.f32 0.0, %v7510
      %7512 = vmatmul.f32.gmra.mxu0 %v7401
      %v7513 = vpop.f32.mrf.mxu0
      %v7514 = vadd.f32 0.0, %v7513
      %7515 = vmatmul.f32.gmra.mxu0 %v7404
      %v7516 = vpop.f32.mrf.mxu0
      %v7517 = vadd.f32 0.0, %v7516
      %7518 = vmatmul.f32.gmra.mxu0 %v7407
      %v7519 = vpop.f32.mrf.mxu0
      %v7520 = vadd.f32 0.0, %v7519
      %7521 = vmatmul.f32.gmra.mxu0 %v7410
      %v7522 = vpop.f32.mrf.mxu0
      %v7523 = vadd.f32 0.0, %v7522
      %7524 = vmatmul.f32.gmra.mxu0 %v7413
      %v7525 = vpop.f32.mrf.mxu0
      %v7526 = vadd.f32 0.0, %v7525
      %7527 = vmatmul.f32.gmra.mxu0 %v7416
      %v7528 = vpop.f32.mrf.mxu0
      %v7529 = vadd.f32 0.0, %v7528
      %7530 = vmatmul.f32.gmra.mxu0 %v7419
      %v7531 = vpop.f32.mrf.mxu0
      %v7532 = vadd.f32 0.0, %v7531
      %7533 = vmatmul.f32.gmra.mxu0 %v7422
      %v7534 = vpop.f32.mrf.mxu0
      %v7535 = vadd.f32 0.0, %v7534
      %7536 = vmatmul.f32.gmra.mxu0 %v7425
      %v7537 = vpop.f32.mrf.mxu0
      %v7538 = vadd.f32 0.0, %v7537
      %7539 = vmatmul.f32.gmra.mxu0 %v7428
      %v7540 = vpop.f32.mrf.mxu0
      %v7541 = vadd.f32 0.0, %v7540
      %7542 = vmatmul.f32.gmra.mxu0 %v7431
      %v7543 = vpop.f32.mrf.mxu0
      %v7544 = vadd.f32 0.0, %v7543
      %7545 = vmatmul.f32.gmra.mxu0 %v7434
      %v7546 = vpop.f32.mrf.mxu0
      %v7547 = vadd.f32 0.0, %v7546
      %7548 = vmatmul.f32.gmra.mxu0 %v7437
      %v7549 = vpop.f32.mrf.mxu0
      %v7550 = vadd.f32 0.0, %v7549
      %7551 = vmatmul.f32.gmra.mxu0 %v7440
      %v7552 = vpop.f32.mrf.mxu0
      %v7553 = vadd.f32 0.0, %v7552
      %7554 = vmatmul.f32.gmra.mxu0 %v7443
      %v7555 = vpop.f32.mrf.mxu0
      %v7556 = vadd.f32 0.0, %v7555
      %7557 = vmatmul.f32.gmra.mxu0 %v7446
      %v7558 = vpop.f32.mrf.mxu0
      %v7559 = vadd.f32 0.0, %v7558
      %7560 = vmatmul.f32.gmra.mxu0 %v7449
      %v7561 = vpop.f32.mrf.mxu0
      %v7562 = vadd.f32 0.0, %v7561
      %7563 = vmatmul.f32.gmra.mxu0 %v7452
      %v7564 = vpop.f32.mrf.mxu0
      %v7565 = vadd.f32 0.0, %v7564
      %7566 = vmatmul.f32.gmra.mxu0 %v7455
      %v7567 = vpop.f32.mrf.mxu0
      %v7568 = vadd.f32 0.0, %v7567
      %7569 = vmatmul.f32.gmra.mxu0 %v7458
      %v7570 = vpop.f32.mrf.mxu0
      %v7571 = vadd.f32 0.0, %v7570
      %7572 = vmatmul.f32.gmra.mxu0 %v7461
      %v7573 = vpop.f32.mrf.mxu0
      %v7574 = vadd.f32 0.0, %v7573
      %7575 = vmatmul.f32.gmra.mxu0 %v7464
      %v7576 = vpop.f32.mrf.mxu0
      %v7577 = vadd.f32 0.0, %v7576
      %7578 = vmatmul.f32.gmra.mxu0 %v7467
      %v7579 = vpop.f32.mrf.mxu0
      %v7580 = vadd.f32 0.0, %v7579
      %7581 = vmatmul.f32.gmra.mxu0 %v7470
      %v7582 = vpop.f32.mrf.mxu0
      %v7583 = vadd.f32 0.0, %v7582
      %7584 = vmatmul.f32.gmra.mxu0 %v7473
      %v7585 = vpop.f32.mrf.mxu0
      %v7586 = vadd.f32 0.0, %v7585
      %7587 = vmatmul.f32.gmra.mxu0 %v7476
      %v7588 = vpop.f32.mrf.mxu0
      %v7589 = vadd.f32 0.0, %v7588
      %7590 = vmatmul.f32.gmra.mxu0 %v7479
      %v7591 = vpop.f32.mrf.mxu0
      %v7592 = vadd.f32 0.0, %v7591
      %7593 = vdwg.mxu0
      %7594 = vst [vmem:[%s305] sm:$0xff] %v7499
      %7595 = vst [vmem:[%s305 + $0x8] sm:$0xff] %v7502
      %7596 = vst [vmem:[%s305 + $0x10] sm:$0xff] %v7505
      %7597 = vst [vmem:[%s305 + $0x18] sm:$0xff] %v7508
      %7598 = vst [vmem:[%s305 + $0x20] sm:$0xff] %v7511
      %7599 = vst [vmem:[%s305 + $0x28] sm:$0xff] %v7514
      %7600 = vst [vmem:[%s305 + $0x30] sm:$0xff] %v7517
      %7601 = vst [vmem:[%s305 + $0x38] sm:$0xff] %v7520
      %7602 = vst [vmem:[%s305 + $0x40] sm:$0xff] %v7523
      %7603 = vst [vmem:[%s305 + $0x48] sm:$0xff] %v7526
      %7604 = vst [vmem:[%s305 + $0x50] sm:$0xff] %v7529
      %7605 = vst [vmem:[%s305 + $0x58] sm:$0xff] %v7532
      %7606 = vst [vmem:[%s305 + $0x60] sm:$0xff] %v7535
      %7607 = vst [vmem:[%s305 + $0x68] sm:$0xff] %v7538
      %7608 = vst [vmem:[%s305 + $0x70] sm:$0xff] %v7541
      %7609 = vst [vmem:[%s305 + $0x78] sm:$0xff] %v7544
      %7610 = vst [vmem:[%s305 + $0x80] sm:$0xff] %v7547
      %7611 = vst [vmem:[%s305 + $0x88] sm:$0xff] %v7550
      %7612 = vst [vmem:[%s305 + $0x90] sm:$0xff] %v7553
      %7613 = vst [vmem:[%s305 + $0x98] sm:$0xff] %v7556
      %7614 = vst [vmem:[%s305 + $0xa0] sm:$0xff] %v7559
      %7615 = vst [vmem:[%s305 + $0xa8] sm:$0xff] %v7562
      %7616 = vst [vmem:[%s305 + $0xb0] sm:$0xff] %v7565
      %7617 = vst [vmem:[%s305 + $0xb8] sm:$0xff] %v7568
      %7618 = vst [vmem:[%s305 + $0xc0] sm:$0xff] %v7571
      %7619 = vst [vmem:[%s305 + $0xc8] sm:$0xff] %v7574
      %7620 = vst [vmem:[%s305 + $0xd0] sm:$0xff] %v7577
      %7621 = vst [vmem:[%s305 + $0xd8] sm:$0xff] %v7580
      %7622 = vst [vmem:[%s305 + $0xe0] sm:$0xff] %v7583
      %7623 = vst [vmem:[%s305 + $0xe8] sm:$0xff] %v7586
      %7624 = vst [vmem:[%s305 + $0xf0] sm:$0xff] %v7589
      %7625 = vst [vmem:[%s305 + $0xf8] sm:$0xff] %v7592
      %p7626 = scmp.lt.s32.totalorder %s19, 1
      %s7627 = scalar_select %p7626, %s19, 1
      %s7628 = smul.addr %s7627, 32
      %s7629 = smul.addr %s7628, 8
      %s7630 = scalar_lea.vmem %s8, %s7629
      // Predicated region
      $region60: #{generator_forward.1} parent=51 // pred_check
        %p7631 = pneg %p210
      $region61: #{generator_forward.1} parent=51 // pred_check_branch
        %7633 = sbr.rel (%p7631) target = $region63
      $region62: #{generator_forward.1} parent=51 // pred_region
        _
      $region63: #{generator_forward.1} parent=51 // pred_fallthru
        _
    $region52: #{generator_forward.1} parent=5 // pred_fallthru
      _
    %p7634 = scmp.le.s32.totalorder 2, %s14
    // Predicated region
    $region64: #{generator_forward.1} parent=5 // pred_check
      %p7635 = pneg %p7634
    $region65: #{generator_forward.1} parent=5 // pred_check_branch
      %7637 = sbr.rel (%p7635) target = $region67
    $region66: #{generator_forward.1} parent=5 // pred_region
      %s7638 = ssub.s32 %s14, 2
      // Predicated region
      $region68: #{generator_forward.1} parent=66 // pred_check
        %p7639 = pneg %p216
      $region69: #{generator_forward.1} parent=66 // pred_check_branch
        %7641 = sbr.rel (%p7639) target = $region71
      $region70: #{generator_forward.1} parent=66 // pred_region
        %p7642 = scmp.lt.s32.totalorder %s20, 1
        %s7643 = scalar_select %p7642, %s20, 1
        %s7644 = smul.addr %s7643, 32
        %s7645 = smul.addr %s7644, 8
        %s7646 = scalar_lea.vmem %s8, %s7645
      $region71: #{generator_forward.1} parent=66 // pred_fallthru
        _
    $region67: #{generator_forward.1} parent=5 // pred_fallthru
      _
  $region6: #{generator_forward.1} parent=0 // loop_footer
    %s18 = sadd.s32 1, %s14
  $region7: #{generator_forward.1} parent=0 // loop_footer_branch
    %13 = sbr.rel target = $region3
  $region8: #{generator_forward.1} parent=0 // loop_exit
    _

</llo_original>
